<compile_context>
chip_gen: v5e
topology: v5e:2x2
jax: 0.10.0
libtpu: 0.0.40
codegen_flags: <defaults>
</compile_context>

<pallas_src>
import jax
import jax.numpy as jnp
from jax import lax
from jax.experimental import pallas as pl
from jax.experimental.pallas import tpu as pltpu

_COMPUTE_DTYPE = jnp.bfloat16     # MXU operand dtype; accumulation stays f32


def _leaky(x, slope=0.2):
    return jnp.where(x > 0, x, slope * x)


def _shifted_taps(h16):
    """Row-shifted copies of h16 with zero boundary rows (no (L+2) halo tensor).

    h16: (TB, L, C) bf16.  prev[:, l] = h16[:, l-1] (row 0 zeroed),
    nxt[:, l] = h16[:, l+1] (row L-1 zeroed).  Each is one sublane shift of data that is
    already live, done in bf16 so the copies are half the bytes of the old f32 halo path.
    """
    TB, L, C = h16.shape
    zero = jnp.zeros((TB, 1, C), h16.dtype)
    prev = jnp.concatenate([zero, h16[:, : L - 1, :]], axis=1)
    nxt = jnp.concatenate([h16[:, 1:, :], zero], axis=1)
    return prev, nxt


def _conv1d_k3_taps(h, w_ref, b_ref):
    """Conv1d(k=3, s=1, p=1) as three accumulated K=Cin MXU dots (no lane concat).

    Used for conv1/conv2 where 3*Cin (12 / 192) is not a 128-lane multiple, so a fused
    lane stack would produce misaligned vregs.  w_ref: (3, Cin, Cout) bf16 with tap order
    [l-1, l, l+1]; b_ref: (1, Cout) f32.
    """
    TB, L, C = h.shape
    h16 = h.astype(w_ref.dtype)
    prev, nxt = _shifted_taps(h16)
    m = TB * L
    y = jnp.dot(prev.reshape(m, C), w_ref[0], preferred_element_type=jnp.float32)
    y = y + jnp.dot(h16.reshape(m, C), w_ref[1], preferred_element_type=jnp.float32)
    y = y + jnp.dot(nxt.reshape(m, C), w_ref[2], preferred_element_type=jnp.float32)
    return _leaky(y.reshape(TB, L, -1) + b_ref[...])


def _conv1d_k3_fused(h, w_ref, b_ref):
    """Conv1d(k=3) as ONE fused K=3*Cin MXU matmul (conv3: 3*128=384, lane-aligned).

    Better MXU fill on the 256-deep v6e/v7x MXU; on v5e the tap-by-tap form would be a
    touch better for this layer but the difference is small.  w_ref: (3*Cin, Cout) bf16
    with rows ordered tap-major (t*Cin + c); b_ref: (1, Cout) f32.
    """
    TB, L, C = h.shape
    h16 = h.astype(w_ref.dtype)
    prev, nxt = _shifted_taps(h16)
    stacked = jnp.concatenate([prev, h16, nxt], axis=-1)            # (TB, L, 3C) bf16
    y = jnp.dot(stacked.reshape(TB * L, 3 * C), w_ref[...],
                preferred_element_type=jnp.float32)
    return _leaky(y.reshape(TB, L, -1) + b_ref[...])


def disc_kernel(x_ref, w1_ref, b1_ref, w2_ref, b2_ref, w3_ref, b3_ref,
                wfc1_ref, bfc1_ref, wfc2_ref, bfc2_ref, out_ref):
    h = x_ref[...].astype(jnp.float32)                  # (TB, L, V)
    h = _conv1d_k3_taps(h, w1_ref, b1_ref)              # (TB, L, 64)
    h = _conv1d_k3_taps(h, w2_ref, b2_ref)              # (TB, L, 128)
    h = _conv1d_k3_fused(h, w3_ref, b3_ref)             # (TB, L, 256)
    TB, L, C = h.shape
    # fc1 contracts each sample's (L, 256) block.  The L->lane merge below is the one
    # remaining relayout copy; doing it in bf16 halves its traffic.
    # TODO(synk): for very large L on v7x (64 MiB VMEM), block fc1 along L with a trailing
    # "arbitrary" reduction grid axis + f32 VMEM accumulator so wfc1 is never fully resident.
    flat = h.astype(wfc1_ref.dtype).reshape(TB, L * C)
    z = jnp.dot(flat, wfc1_ref[...], preferred_element_type=jnp.float32) + bfc1_ref[...]
    z = _leaky(z)                                        # (TB, 128) f32
    # fc2 has a single output column: VPU multiply + XLU lane reduction instead of a
    # 1/128-filled MXU push; store a true (TB, 1) block (no 128-wide zero padding).
    logit = jnp.sum(z * wfc2_ref[...], axis=-1, keepdims=True) + bfc2_ref[...]
    out_ref[...] = 1.0 / (1.0 + jnp.exp(-logit))         # exact sigmoid (exp on the EUP)


def _tpu_limits():
    """Returns (scoped VMEM limit for the kernel, TensorCores per chip)."""
    vmem_cap = 64 * 1024 * 1024          # conservative default (v7x per-core VMEM)
    cores = 1
    try:
        info = pltpu.get_tpu_info()
        vmem_cap = int(getattr(info, "vmem_capacity_bytes", vmem_cap))
        cores = int(getattr(info, "num_cores",
                            getattr(info, "tensorcores_per_chip", cores)))
    except Exception:
        pass
    cores = max(1, min(cores, 2))        # 1 TC on v5e/v6e, 2 on v7x
    return min(vmem_cap * 3 // 4, 100 * 1024 * 1024), cores


def _pick_batch_tile(batch, length, vocab, vmem_limit, weight_bytes, num_cores):
    """Largest batch tile that (a) divides `batch`, (b) is a multiple of 8 or the whole
    batch (so the (TB, L, V) / (TB, 1) blocks obey the (8,128) layout rule), and (c) fits
    the activation VMEM budget after subtracting 2x the resident weight bytes.  On
    multi-TensorCore chips prefer >= 2 grid steps per core when the batch allows it; on
    single-core chips take the largest tile (fewest grid steps)."""
    c3 = 256
    per_row = length * (
        c3 * 4            # conv3 input h (f32)
        + 3 * c3 * 2      # bf16 copy + two shifted taps
        + 3 * 128 * 2     # lane-stacked conv3 lhs (bf16, 384 lanes)
        + c3 * 4          # conv3 output accumulator (f32)
        + c3 * 2          # fc1 lhs (bf16)
        + 2 * vocab * 4   # double-buffered input block
    )
    per_row = int(per_row * 1.25)        # headroom for compiler temporaries
    budget = max(vmem_limit - 2 * weight_bytes, 8 * per_row)
    cap = max(8, (budget // per_row) // 8 * 8)

    def ok(t):
        return t <= cap and batch % t == 0 and (t % 8 == 0 or t == batch)

    candidates = [t for t in range(min(batch, cap), 0, -1) if ok(t)]
    if not candidates:
        return batch                     # tiny / awkward batch: one full-batch block
    if num_cores > 1:
        for min_steps in (2 * num_cores, num_cores):
            for t in candidates:
                if batch // t >= min_steps:
                    return t
    return candidates[0]


def _const_index_map(ndim):
    return lambda *_: (0,) * ndim        # weight stays VMEM-resident across grid steps


def conv_discriminator(x, p):
    """x: (B, max_length, vocab_size) f32; p: kernel-layout params from init_params."""
    B, L, V = x.shape
    vmem_limit, num_cores = _tpu_limits()

    ins = (x, p["w1"], p["b1"], p["w2"], p["b2"], p["w3"], p["b3"],
           p["wfc1"], p["bfc1"], p["wfc2"], p["bfc2"])
    weight_bytes = sum(int(a.size) * a.dtype.itemsize for a in ins[1:])
    TB = _pick_batch_tile(B, L, V, vmem_limit, weight_bytes, num_cores)
    grid = (B // TB,)

    flops = (2 * B * L * 3 * (V * 64 + 64 * 128 + 128 * 256)
             + 2 * B * (L * 256 * 128 + 128))
    bytes_accessed = x.size * x.dtype.itemsize + weight_bytes + B * 4
    cost = pl.CostEstimate(flops=flops, transcendentals=B,
                           bytes_accessed=bytes_accessed)

    def build(weight_mode):
        in_specs = [pl.BlockSpec((TB, L, V), lambda b: (b, 0, 0))]
        in_specs += [pl.BlockSpec(a.shape, _const_index_map(a.ndim),
                                  pipeline_mode=weight_mode)
                     for a in ins[1:]]
        return pl.pallas_call(
            disc_kernel,
            out_shape=jax.ShapeDtypeStruct((B, 1), jnp.float32),
            grid_spec=pltpu.PrefetchScalarGridSpec(
                num_scalar_prefetch=0, grid=grid,
                in_specs=in_specs,
                out_specs=pl.BlockSpec((TB, 1), lambda b: (b, 0))),
            compiler_params=pltpu.CompilerParams(
                dimension_semantics=("parallel",),
                vmem_limit_bytes=vmem_limit),
            cost_estimate=cost,
        )

    try:
        # Constant-index_map weights only ever need one VMEM buffer; single-buffering
        # halves resident weight VMEM (dominated by wfc1 = L*64 KiB at large L).
        return build(pl.Buffered(1))(*ins)
    except Exception:
        # Fallback for JAX versions that reject buffer_count=1 on pipelined inputs.
        return build(None)(*ins)


def init_params(key, max_length, vocab_size, compute_dtype=_COMPUTE_DTYPE):
    """Deterministic synthetic params in PyTorch shapes + kernel-layout remaps."""
    ks = jax.random.split(key, 10)

    def u(k, shape, fan_in):
        bound = 1.0 / jnp.sqrt(jnp.float32(fan_in))
        return jax.random.uniform(k, shape, jnp.float32, -bound, bound)

    L = max_length
    torch_p = {                       # PyTorch shapes: Conv1d (out,in,k), Linear (out,in)
        "w1": u(ks[0], (64, vocab_size, 3), vocab_size * 3),
        "b1": u(ks[1], (64,), vocab_size * 3),
        "w2": u(ks[2], (128, 64, 3), 64 * 3),
        "b2": u(ks[3], (128,), 64 * 3),
        "w3": u(ks[4], (256, 128, 3), 128 * 3),
        "b3": u(ks[5], (256,), 128 * 3),
        "wfc1": u(ks[6], (128, 256 * L), 256 * L),
        "bfc1": u(ks[7], (128,), 256 * L),
        "wfc2": u(ks[8], (1, 128), 128),
        "bfc2": u(ks[9], (1,), 128),
    }

    def conv_taps(w):                 # (Cout, Cin, 3) -> (3, Cin, Cout), taps [l-1, l, l+1]
        return w.transpose(2, 1, 0).astype(compute_dtype)

    kern_p = {
        "w1": conv_taps(torch_p["w1"]),
        "b1": torch_p["b1"][None, :],
        "w2": conv_taps(torch_p["w2"]),
        "b2": torch_p["b2"][None, :],
        # conv3 is consumed as a fused K=3*128 matmul: flatten taps into rows t*128 + c.
        "w3": conv_taps(torch_p["w3"]).reshape(3 * 128, 256),
        "b3": torch_p["b3"][None, :],
        # fc1: remap PyTorch channel-major flatten (c*L + l) -> kernel (l*256 + c) flatten.
        "wfc1": torch_p["wfc1"].reshape(128, 256, L).transpose(2, 1, 0)
                               .reshape(L * 256, 128).astype(compute_dtype),
        "bfc1": torch_p["bfc1"][None, :],
        # fc2 runs on the VPU (multiply + lane reduce) in f32: keep the (1,128) row as-is.
        "wfc2": torch_p["wfc2"],
        "bfc2": torch_p["bfc2"][None, :],
    }
    return torch_p, kern_p


def reference(x, tp, max_length, vocab_size, compute_dtype=_COMPUTE_DTYPE):
    """Pure-JAX replica of the PyTorch forward (NCW conv, channel-major flatten), using
    the same bf16-operand / f32-accumulation recipe as the kernel."""
    B = x.shape[0]
    h = x.reshape(B, max_length, vocab_size).transpose(0, 2, 1)     # (B, V, L)
    for w, b in ((tp["w1"], tp["b1"]), (tp["w2"], tp["b2"]), (tp["w3"], tp["b3"])):
        h = lax.conv_general_dilated(
            h.astype(compute_dtype), w.astype(compute_dtype),
            window_strides=(1,), padding=((1, 1),),
            dimension_numbers=("NCH", "OIH", "NCH"),
            preferred_element_type=jnp.float32)
        h = h + b[None, :, None]
        h = jnp.where(h > 0, h, 0.2 * h)
    h = h.reshape(B, -1)                                            # Flatten: c*L + l
    h = jnp.dot(h.astype(compute_dtype), tp["wfc1"].T.astype(compute_dtype),
                preferred_element_type=jnp.float32) + tp["bfc1"]
    h = jnp.where(h > 0, h, 0.2 * h)
    h = jnp.dot(h, tp["wfc2"].T) + tp["bfc2"]                       # f32, same as kernel fc2
    return 1.0 / (1.0 + jnp.exp(-h))


if __name__ == "__main__":
    max_length, vocab_size, batch = 16, 4, 16
    key = jax.random.PRNGKey(0)
    kx, kp = jax.random.split(key)
    x = jax.random.normal(kx, (batch, max_length, vocab_size), jnp.float32)

    torch_p, kern_p = init_params(kp, max_length, vocab_size)

    out = jax.block_until_ready(conv_discriminator(x, kern_p))
    ref = reference(x, torch_p, max_length, vocab_size)

    assert out.shape == (batch, 1), out.shape
    # Tolerance covers bf16 operand rounding (matched in the reference); the sigmoid
    # epilogue is exact in this version (no approximate reciprocal).
    assert jnp.allclose(out, ref, atol=5e-3, rtol=5e-3), (out, ref)
    print("KERNEL_OK")
</pallas_src>

<mosaic_0001>
module attributes {stable_mosaic.version = 11 : i64} {
  func.func @disc_kernel(%arg0: i32, %arg1: memref<16x16x4xf32, #tpu.memory_space<vmem>>, %arg2: memref<3x4x64xbf16, #tpu.memory_space<vmem>>, %arg3: memref<1x64xf32, #tpu.memory_space<vmem>>, %arg4: memref<3x64x128xbf16, #tpu.memory_space<vmem>>, %arg5: memref<1x128xf32, #tpu.memory_space<vmem>>, %arg6: memref<384x256xbf16, #tpu.memory_space<vmem>>, %arg7: memref<1x256xf32, #tpu.memory_space<vmem>>, %arg8: memref<4096x128xbf16, #tpu.memory_space<vmem>>, %arg9: memref<1x128xf32, #tpu.memory_space<vmem>>, %arg10: memref<1x128xf32, #tpu.memory_space<vmem>>, %arg11: memref<1x1xf32, #tpu.memory_space<vmem>>, %arg12: memref<16x1xf32, #tpu.memory_space<vmem>>) attributes {dimension_semantics = [#tpu.dimension_semantics<parallel>], iteration_bounds = array<i64: 1>, scalar_prefetch = 0 : i64, scratch_operands = 0 : i64, tpu.core_type = #tpu.core_type<tc>, window_params = [{transform_indices = @transform_0, window_bounds = array<i64: 16, 16, 4>}, {pipeline_mode = #tpu.pipeline_mode<synchronous>, transform_indices = @transform_1, window_bounds = array<i64: 3, 4, 64>}, {pipeline_mode = #tpu.pipeline_mode<synchronous>, transform_indices = @transform_2, window_bounds = array<i64: 1, 64>}, {pipeline_mode = #tpu.pipeline_mode<synchronous>, transform_indices = @transform_3, window_bounds = array<i64: 3, 64, 128>}, {pipeline_mode = #tpu.pipeline_mode<synchronous>, transform_indices = @transform_4, window_bounds = array<i64: 1, 128>}, {pipeline_mode = #tpu.pipeline_mode<synchronous>, transform_indices = @transform_5, window_bounds = array<i64: 384, 256>}, {pipeline_mode = #tpu.pipeline_mode<synchronous>, transform_indices = @transform_6, window_bounds = array<i64: 1, 256>}, {pipeline_mode = #tpu.pipeline_mode<synchronous>, transform_indices = @transform_7, window_bounds = array<i64: 4096, 128>}, {pipeline_mode = #tpu.pipeline_mode<synchronous>, transform_indices = @transform_8, window_bounds = array<i64: 1, 128>}, {pipeline_mode = #tpu.pipeline_mode<synchronous>, transform_indices = @transform_9, window_bounds = array<i64: 1, 128>}, {pipeline_mode = #tpu.pipeline_mode<synchronous>, transform_indices = @transform_10, window_bounds = array<i64: 1, 1>}, {transform_indices = @transform_11, window_bounds = array<i64: 16, 1>}]} {
    %c0 = arith.constant 0 : index
    %c0_0 = arith.constant 0 : index
    %c0_1 = arith.constant 0 : index
    %0 = vector.load %arg1[%c0, %c0_0, %c0_1] : memref<16x16x4xf32, #tpu.memory_space<vmem>>, vector<16x16x4xf32>
    %1 = arith.truncf %0 : vector<16x16x4xf32> to vector<16x16x4xbf16>
    %cst = arith.constant 0.000000e+00 : bf16
    %2 = vector.broadcast %cst : bf16 to vector<16x1x4xbf16>
    %3 = vector.extract_strided_slice %1 {offsets = [0, 0, 0], sizes = [16, 15, 4], strides = [1, 1, 1]} : vector<16x16x4xbf16> to vector<16x15x4xbf16>
    %4 = tpu.concatenate %2, %3 in 1 : vector<16x1x4xbf16>, vector<16x15x4xbf16> -> vector<16x16x4xbf16>
    %5 = vector.extract_strided_slice %1 {offsets = [0, 1, 0], sizes = [16, 15, 4], strides = [1, 1, 1]} : vector<16x16x4xbf16> to vector<16x15x4xbf16>
    %6 = tpu.concatenate %5, %2 in 1 : vector<16x15x4xbf16>, vector<16x1x4xbf16> -> vector<16x16x4xbf16>
    %7 = vector.shape_cast %4 : vector<16x16x4xbf16> to vector<256x4xbf16>
    %c0_2 = arith.constant 0 : index
    %c0_3 = arith.constant 0 : index
    %c0_4 = arith.constant 0 : index
    %8 = vector.load %arg2[%c0_2, %c0_3, %c0_4] : memref<3x4x64xbf16, #tpu.memory_space<vmem>>, vector<1x4x64xbf16>
    %9 = vector.shape_cast %8 : vector<1x4x64xbf16> to vector<4x64xbf16>
    %cst_5 = arith.constant dense<0.000000e+00> : vector<256x64xf32>
    %10 = tpu.matmul %7, %9, %cst_5 {dimension_numbers = #tpu.dot_dimension_numbers<[1], [0], [0], [1], [0, 0, 1, 1], [], []>} : vector<256x4xbf16>, vector<4x64xbf16>, vector<256x64xf32> -> vector<256x64xf32>
    %11 = vector.shape_cast %1 : vector<16x16x4xbf16> to vector<256x4xbf16>
    %c1 = arith.constant 1 : index
    %c0_6 = arith.constant 0 : index
    %c0_7 = arith.constant 0 : index
    %12 = vector.load %arg2[%c1, %c0_6, %c0_7] : memref<3x4x64xbf16, #tpu.memory_space<vmem>>, vector<1x4x64xbf16>
    %13 = vector.shape_cast %12 : vector<1x4x64xbf16> to vector<4x64xbf16>
    %cst_8 = arith.constant dense<0.000000e+00> : vector<256x64xf32>
    %14 = tpu.matmul %11, %13, %cst_8 {dimension_numbers = #tpu.dot_dimension_numbers<[1], [0], [0], [1], [0, 0, 1, 1], [], []>} : vector<256x4xbf16>, vector<4x64xbf16>, vector<256x64xf32> -> vector<256x64xf32>
    %15 = arith.addf %10, %14 : vector<256x64xf32>
    %16 = vector.shape_cast %6 : vector<16x16x4xbf16> to vector<256x4xbf16>
    %c2 = arith.constant 2 : index
    %c0_9 = arith.constant 0 : index
    %c0_10 = arith.constant 0 : index
    %17 = vector.load %arg2[%c2, %c0_9, %c0_10] : memref<3x4x64xbf16, #tpu.memory_space<vmem>>, vector<1x4x64xbf16>
    %18 = vector.shape_cast %17 : vector<1x4x64xbf16> to vector<4x64xbf16>
    %cst_11 = arith.constant dense<0.000000e+00> : vector<256x64xf32>
    %19 = tpu.matmul %16, %18, %cst_11 {dimension_numbers = #tpu.dot_dimension_numbers<[1], [0], [0], [1], [0, 0, 1, 1], [], []>} : vector<256x4xbf16>, vector<4x64xbf16>, vector<256x64xf32> -> vector<256x64xf32>
    %20 = arith.addf %15, %19 : vector<256x64xf32>
    %21 = vector.shape_cast %20 : vector<256x64xf32> to vector<16x16x64xf32>
    %c0_12 = arith.constant 0 : index
    %c0_13 = arith.constant 0 : index
    %22 = vector.load %arg3[%c0_12, %c0_13] : memref<1x64xf32, #tpu.memory_space<vmem>>, vector<1x64xf32>
    %23 = vector.shape_cast %22 : vector<1x64xf32> to vector<1x1x64xf32>
    %24 = vector.broadcast %23 : vector<1x1x64xf32> to vector<16x16x64xf32>
    %25 = arith.addf %21, %24 : vector<16x16x64xf32>
    %cst_14 = arith.constant 0.000000e+00 : f32
    %26 = vector.broadcast %cst_14 : f32 to vector<16x16x64xf32>
    %27 = arith.cmpf ogt, %25, %26 : vector<16x16x64xf32>
    %cst_15 = arith.constant 2.000000e-01 : f32
    %28 = vector.broadcast %cst_15 : f32 to vector<16x16x64xf32>
    %29 = arith.mulf %28, %25 : vector<16x16x64xf32>
    %30 = arith.select %27, %25, %29 : vector<16x16x64xi1>, vector<16x16x64xf32>
    %31 = arith.truncf %30 : vector<16x16x64xf32> to vector<16x16x64xbf16>
    %cst_16 = arith.constant 0.000000e+00 : bf16
    %32 = vector.broadcast %cst_16 : bf16 to vector<16x1x64xbf16>
    %33 = vector.extract_strided_slice %31 {offsets = [0, 0, 0], sizes = [16, 15, 64], strides = [1, 1, 1]} : vector<16x16x64xbf16> to vector<16x15x64xbf16>
    %34 = tpu.concatenate %32, %33 in 1 : vector<16x1x64xbf16>, vector<16x15x64xbf16> -> vector<16x16x64xbf16>
    %35 = vector.extract_strided_slice %31 {offsets = [0, 1, 0], sizes = [16, 15, 64], strides = [1, 1, 1]} : vector<16x16x64xbf16> to vector<16x15x64xbf16>
    %36 = tpu.concatenate %35, %32 in 1 : vector<16x15x64xbf16>, vector<16x1x64xbf16> -> vector<16x16x64xbf16>
    %37 = vector.shape_cast %34 : vector<16x16x64xbf16> to vector<256x64xbf16>
    %c0_17 = arith.constant 0 : index
    %c0_18 = arith.constant 0 : index
    %c0_19 = arith.constant 0 : index
    %38 = vector.load %arg4[%c0_17, %c0_18, %c0_19] : memref<3x64x128xbf16, #tpu.memory_space<vmem>>, vector<1x64x128xbf16>
    %39 = vector.shape_cast %38 : vector<1x64x128xbf16> to vector<64x128xbf16>
    %cst_20 = arith.constant dense<0.000000e+00> : vector<256x128xf32>
    %40 = tpu.matmul %37, %39, %cst_20 {dimension_numbers = #tpu.dot_dimension_numbers<[1], [0], [0], [1], [0, 0, 1, 1], [], []>} : vector<256x64xbf16>, vector<64x128xbf16>, vector<256x128xf32> -> vector<256x128xf32>
    %41 = vector.shape_cast %31 : vector<16x16x64xbf16> to vector<256x64xbf16>
    %c1_21 = arith.constant 1 : index
    %c0_22 = arith.constant 0 : index
    %c0_23 = arith.constant 0 : index
    %42 = vector.load %arg4[%c1_21, %c0_22, %c0_23] : memref<3x64x128xbf16, #tpu.memory_space<vmem>>, vector<1x64x128xbf16>
    %43 = vector.shape_cast %42 : vector<1x64x128xbf16> to vector<64x128xbf16>
    %cst_24 = arith.constant dense<0.000000e+00> : vector<256x128xf32>
    %44 = tpu.matmul %41, %43, %cst_24 {dimension_numbers = #tpu.dot_dimension_numbers<[1], [0], [0], [1], [0, 0, 1, 1], [], []>} : vector<256x64xbf16>, vector<64x128xbf16>, vector<256x128xf32> -> vector<256x128xf32>
    %45 = arith.addf %40, %44 : vector<256x128xf32>
    %46 = vector.shape_cast %36 : vector<16x16x64xbf16> to vector<256x64xbf16>
    %c2_25 = arith.constant 2 : index
    %c0_26 = arith.constant 0 : index
    %c0_27 = arith.constant 0 : index
    %47 = vector.load %arg4[%c2_25, %c0_26, %c0_27] : memref<3x64x128xbf16, #tpu.memory_space<vmem>>, vector<1x64x128xbf16>
    %48 = vector.shape_cast %47 : vector<1x64x128xbf16> to vector<64x128xbf16>
    %cst_28 = arith.constant dense<0.000000e+00> : vector<256x128xf32>
    %49 = tpu.matmul %46, %48, %cst_28 {dimension_numbers = #tpu.dot_dimension_numbers<[1], [0], [0], [1], [0, 0, 1, 1], [], []>} : vector<256x64xbf16>, vector<64x128xbf16>, vector<256x128xf32> -> vector<256x128xf32>
    %50 = arith.addf %45, %49 : vector<256x128xf32>
    %51 = vector.shape_cast %50 : vector<256x128xf32> to vector<16x16x128xf32>
    %c0_29 = arith.constant 0 : index
    %c0_30 = arith.constant 0 : index
    %52 = vector.load %arg5[%c0_29, %c0_30] : memref<1x128xf32, #tpu.memory_space<vmem>>, vector<1x128xf32>
    %53 = vector.shape_cast %52 : vector<1x128xf32> to vector<1x1x128xf32>
    %54 = vector.broadcast %53 : vector<1x1x128xf32> to vector<16x16x128xf32>
    %55 = arith.addf %51, %54 : vector<16x16x128xf32>
    %cst_31 = arith.constant 0.000000e+00 : f32
    %56 = vector.broadcast %cst_31 : f32 to vector<16x16x128xf32>
    %57 = arith.cmpf ogt, %55, %56 : vector<16x16x128xf32>
    %cst_32 = arith.constant 2.000000e-01 : f32
    %58 = vector.broadcast %cst_32 : f32 to vector<16x16x128xf32>
    %59 = arith.mulf %58, %55 : vector<16x16x128xf32>
    %60 = arith.select %57, %55, %59 : vector<16x16x128xi1>, vector<16x16x128xf32>
    %61 = arith.truncf %60 : vector<16x16x128xf32> to vector<16x16x128xbf16>
    %cst_33 = arith.constant 0.000000e+00 : bf16
    %62 = vector.broadcast %cst_33 : bf16 to vector<16x1x128xbf16>
    %63 = vector.extract_strided_slice %61 {offsets = [0, 0, 0], sizes = [16, 15, 128], strides = [1, 1, 1]} : vector<16x16x128xbf16> to vector<16x15x128xbf16>
    %64 = tpu.concatenate %62, %63 in 1 : vector<16x1x128xbf16>, vector<16x15x128xbf16> -> vector<16x16x128xbf16>
    %65 = vector.extract_strided_slice %61 {offsets = [0, 1, 0], sizes = [16, 15, 128], strides = [1, 1, 1]} : vector<16x16x128xbf16> to vector<16x15x128xbf16>
    %66 = tpu.concatenate %65, %62 in 1 : vector<16x15x128xbf16>, vector<16x1x128xbf16> -> vector<16x16x128xbf16>
    %67 = tpu.concatenate %64, %61, %66 in 2 : vector<16x16x128xbf16>, vector<16x16x128xbf16>, vector<16x16x128xbf16> -> vector<16x16x384xbf16>
    %68 = vector.shape_cast %67 : vector<16x16x384xbf16> to vector<256x384xbf16>
    %c0_34 = arith.constant 0 : index
    %c0_35 = arith.constant 0 : index
    %69 = vector.load %arg6[%c0_34, %c0_35] : memref<384x256xbf16, #tpu.memory_space<vmem>>, vector<384x256xbf16>
    %cst_36 = arith.constant dense<0.000000e+00> : vector<256x256xf32>
    %70 = tpu.matmul %68, %69, %cst_36 {dimension_numbers = #tpu.dot_dimension_numbers<[1], [0], [0], [1], [0, 0, 1, 1], [], []>} : vector<256x384xbf16>, vector<384x256xbf16>, vector<256x256xf32> -> vector<256x256xf32>
    %71 = vector.shape_cast %70 : vector<256x256xf32> to vector<16x16x256xf32>
    %c0_37 = arith.constant 0 : index
    %c0_38 = arith.constant 0 : index
    %72 = vector.load %arg7[%c0_37, %c0_38] : memref<1x256xf32, #tpu.memory_space<vmem>>, vector<1x256xf32>
    %73 = vector.shape_cast %72 : vector<1x256xf32> to vector<1x1x256xf32>
    %74 = vector.broadcast %73 : vector<1x1x256xf32> to vector<16x16x256xf32>
    %75 = arith.addf %71, %74 : vector<16x16x256xf32>
    %cst_39 = arith.constant 0.000000e+00 : f32
    %76 = vector.broadcast %cst_39 : f32 to vector<16x16x256xf32>
    %77 = arith.cmpf ogt, %75, %76 : vector<16x16x256xf32>
    %cst_40 = arith.constant 2.000000e-01 : f32
    %78 = vector.broadcast %cst_40 : f32 to vector<16x16x256xf32>
    %79 = arith.mulf %78, %75 : vector<16x16x256xf32>
    %80 = arith.select %77, %75, %79 : vector<16x16x256xi1>, vector<16x16x256xf32>
    %81 = arith.truncf %80 : vector<16x16x256xf32> to vector<16x16x256xbf16>
    %82 = vector.shape_cast %81 : vector<16x16x256xbf16> to vector<16x4096xbf16>
    %c0_41 = arith.constant 0 : index
    %c0_42 = arith.constant 0 : index
    %83 = vector.load %arg8[%c0_41, %c0_42] : memref<4096x128xbf16, #tpu.memory_space<vmem>>, vector<4096x128xbf16>
    %cst_43 = arith.constant dense<0.000000e+00> : vector<16x128xf32>
    %84 = tpu.matmul %82, %83, %cst_43 {dimension_numbers = #tpu.dot_dimension_numbers<[1], [0], [0], [1], [0, 0, 1, 1], [], []>} : vector<16x4096xbf16>, vector<4096x128xbf16>, vector<16x128xf32> -> vector<16x128xf32>
    %c0_44 = arith.constant 0 : index
    %c0_45 = arith.constant 0 : index
    %85 = vector.load %arg9[%c0_44, %c0_45] : memref<1x128xf32, #tpu.memory_space<vmem>>, vector<1x128xf32>
    %86 = vector.broadcast %85 : vector<1x128xf32> to vector<16x128xf32>
    %87 = arith.addf %84, %86 : vector<16x128xf32>
    %cst_46 = arith.constant 0.000000e+00 : f32
    %88 = vector.broadcast %cst_46 : f32 to vector<16x128xf32>
    %89 = arith.cmpf ogt, %87, %88 : vector<16x128xf32>
    %cst_47 = arith.constant 2.000000e-01 : f32
    %90 = vector.broadcast %cst_47 : f32 to vector<16x128xf32>
    %91 = arith.mulf %90, %87 : vector<16x128xf32>
    %92 = arith.select %89, %87, %91 : vector<16x128xi1>, vector<16x128xf32>
    %c0_48 = arith.constant 0 : index
    %c0_49 = arith.constant 0 : index
    %93 = vector.load %arg10[%c0_48, %c0_49] : memref<1x128xf32, #tpu.memory_space<vmem>>, vector<1x128xf32>
    %94 = vector.broadcast %93 : vector<1x128xf32> to vector<16x128xf32>
    %95 = arith.mulf %92, %94 : vector<16x128xf32>
    %cst_50 = arith.constant dense<0.000000e+00> : vector<16xf32>
    %96 = vector.multi_reduction <add>, %95, %cst_50 [1] : vector<16x128xf32> to vector<16xf32>
    %97 = vector.shape_cast %96 : vector<16xf32> to vector<16x1xf32>
    %c0_51 = arith.constant 0 : index
    %c0_52 = arith.constant 0 : index
    %98 = vector.load %arg11[%c0_51, %c0_52] : memref<1x1xf32, #tpu.memory_space<vmem>>, vector<1x1xf32>
    %99 = vector.broadcast %98 : vector<1x1xf32> to vector<16x1xf32>
    %100 = arith.addf %97, %99 : vector<16x1xf32>
    %cst_53 = arith.constant 0.000000e+00 : f32
    %101 = vector.broadcast %cst_53 : f32 to vector<16x1xf32>
    %102 = arith.subf %101, %100 : vector<16x1xf32>
    %103 = math.exp %102 : vector<16x1xf32>
    %cst_54 = arith.constant 1.000000e+00 : f32
    %104 = vector.broadcast %cst_54 : f32 to vector<16x1xf32>
    %105 = arith.addf %104, %103 : vector<16x1xf32>
    %cst_55 = arith.constant 1.000000e+00 : f32
    %106 = vector.broadcast %cst_55 : f32 to vector<16x1xf32>
    %107 = arith.divf %106, %105 : vector<16x1xf32>
    %c0_56 = arith.constant 0 : index
    %c0_57 = arith.constant 0 : index
    %108 = vector.load %arg12[%c0_56, %c0_57] : memref<16x1xf32, #tpu.memory_space<vmem>>, vector<16x1xf32>
    tpu.vector_store %arg12[%c0_56, %c0_57], %107 {strides = array<i32>} : memref<16x1xf32, #tpu.memory_space<vmem>>, vector<16x1xf32>,
    return
  }
  func.func @transform_0(%arg0: i32) -> (i32, i32, i32) {
    %c0_i32 = arith.constant 0 : i32
    %c0_i32_0 = arith.constant 0 : i32
    %c0_i32_1 = arith.constant 0 : i32
    return %arg0, %c0_i32, %c0_i32_0 : i32, i32, i32
  }
  func.func @transform_1(%arg0: i32) -> (i32, i32, i32) {
    %c0_i32 = arith.constant 0 : i32
    %c0_i32_0 = arith.constant 0 : i32
    %c0_i32_1 = arith.constant 0 : i32
    %c0_i32_2 = arith.constant 0 : i32
    return %c0_i32, %c0_i32_0, %c0_i32_1 : i32, i32, i32
  }
  func.func @transform_2(%arg0: i32) -> (i32, i32) {
    %c0_i32 = arith.constant 0 : i32
    %c0_i32_0 = arith.constant 0 : i32
    %c0_i32_1 = arith.constant 0 : i32
    return %c0_i32, %c0_i32_0 : i32, i32
  }
  func.func @transform_3(%arg0: i32) -> (i32, i32, i32) {
    %c0_i32 = arith.constant 0 : i32
    %c0_i32_0 = arith.constant 0 : i32
    %c0_i32_1 = arith.constant 0 : i32
    %c0_i32_2 = arith.constant 0 : i32
    return %c0_i32, %c0_i32_0, %c0_i32_1 : i32, i32, i32
  }
  func.func @transform_4(%arg0: i32) -> (i32, i32) {
    %c0_i32 = arith.constant 0 : i32
    %c0_i32_0 = arith.constant 0 : i32
    %c0_i32_1 = arith.constant 0 : i32
    return %c0_i32, %c0_i32_0 : i32, i32
  }
  func.func @transform_5(%arg0: i32) -> (i32, i32) {
    %c0_i32 = arith.constant 0 : i32
    %c0_i32_0 = arith.constant 0 : i32
    %c0_i32_1 = arith.constant 0 : i32
    return %c0_i32, %c0_i32_0 : i32, i32
  }
  func.func @transform_6(%arg0: i32) -> (i32, i32) {
    %c0_i32 = arith.constant 0 : i32
    %c0_i32_0 = arith.constant 0 : i32
    %c0_i32_1 = arith.constant 0 : i32
    return %c0_i32, %c0_i32_0 : i32, i32
  }
  func.func @transform_7(%arg0: i32) -> (i32, i32) {
    %c0_i32 = arith.constant 0 : i32
    %c0_i32_0 = arith.constant 0 : i32
    %c0_i32_1 = arith.constant 0 : i32
    return %c0_i32, %c0_i32_0 : i32, i32
  }
  func.func @transform_8(%arg0: i32) -> (i32, i32) {
    %c0_i32 = arith.constant 0 : i32
    %c0_i32_0 = arith.constant 0 : i32
    %c0_i32_1 = arith.constant 0 : i32
    return %c0_i32, %c0_i32_0 : i32, i32
  }
  func.func @transform_9(%arg0: i32) -> (i32, i32) {
    %c0_i32 = arith.constant 0 : i32
    %c0_i32_0 = arith.constant 0 : i32
    %c0_i32_1 = arith.constant 0 : i32
    return %c0_i32, %c0_i32_0 : i32, i32
  }
  func.func @transform_10(%arg0: i32) -> (i32, i32) {
    %c0_i32 = arith.constant 0 : i32
    %c0_i32_0 = arith.constant 0 : i32
    %c0_i32_1 = arith.constant 0 : i32
    return %c0_i32, %c0_i32_0 : i32, i32
  }
  func.func @transform_11(%arg0: i32) -> (i32, i32) {
    %c0_i32 = arith.constant 0 : i32
    %c0_i32_0 = arith.constant 0 : i32
    return %arg0, %c0_i32 : i32, i32
  }
}

module attributes {stable_mosaic.version = 11 : i64} {
  func.func @disc_kernel(%arg0: i32, %arg1: memref<16x16x4xf32, #tpu.memory_space<vmem>>, %arg2: memref<3x4x64xbf16, #tpu.memory_space<vmem>>, %arg3: memref<1x64xf32, #tpu.memory_space<vmem>>, %arg4: memref<3x64x128xbf16, #tpu.memory_space<vmem>>, %arg5: memref<1x128xf32, #tpu.memory_space<vmem>>, %arg6: memref<384x256xbf16, #tpu.memory_space<vmem>>, %arg7: memref<1x256xf32, #tpu.memory_space<vmem>>, %arg8: memref<4096x128xbf16, #tpu.memory_space<vmem>>, %arg9: memref<1x128xf32, #tpu.memory_space<vmem>>, %arg10: memref<1x128xf32, #tpu.memory_space<vmem>>, %arg11: memref<1x1xf32, #tpu.memory_space<vmem>>, %arg12: memref<16x1xf32, #tpu.memory_space<vmem>>) attributes {dimension_semantics = [#tpu.dimension_semantics<parallel>], iteration_bounds = array<i64: 1>, scalar_prefetch = 0 : i64, scratch_operands = 0 : i64, tpu.core_type = #tpu.core_type<tc>, window_params = [{transform_indices = @transform_0, window_bounds = array<i64: 16, 16, 4>}, {pipeline_mode = #tpu.pipeline_mode<synchronous>, transform_indices = @transform_1, window_bounds = array<i64: 3, 4, 64>}, {pipeline_mode = #tpu.pipeline_mode<synchronous>, transform_indices = @transform_2, window_bounds = array<i64: 1, 64>}, {pipeline_mode = #tpu.pipeline_mode<synchronous>, transform_indices = @transform_3, window_bounds = array<i64: 3, 64, 128>}, {pipeline_mode = #tpu.pipeline_mode<synchronous>, transform_indices = @transform_4, window_bounds = array<i64: 1, 128>}, {pipeline_mode = #tpu.pipeline_mode<synchronous>, transform_indices = @transform_5, window_bounds = array<i64: 384, 256>}, {pipeline_mode = #tpu.pipeline_mode<synchronous>, transform_indices = @transform_6, window_bounds = array<i64: 1, 256>}, {pipeline_mode = #tpu.pipeline_mode<synchronous>, transform_indices = @transform_7, window_bounds = array<i64: 4096, 128>}, {pipeline_mode = #tpu.pipeline_mode<synchronous>, transform_indices = @transform_8, window_bounds = array<i64: 1, 128>}, {pipeline_mode = #tpu.pipeline_mode<synchronous>, transform_indices = @transform_9, window_bounds = array<i64: 1, 128>}, {pipeline_mode = #tpu.pipeline_mode<synchronous>, transform_indices = @transform_10, window_bounds = array<i64: 1, 1>}, {transform_indices = @transform_11, window_bounds = array<i64: 16, 1>}]} {
    %c0 = arith.constant 0 : index
    %c0_0 = arith.constant 0 : index
    %c0_1 = arith.constant 0 : index
    %0 = vector.load %arg1[%c0, %c0_0, %c0_1] : memref<16x16x4xf32, #tpu.memory_space<vmem>>, vector<16x16x4xf32>
    %1 = arith.truncf %0 : vector<16x16x4xf32> to vector<16x16x4xbf16>
    %cst = arith.constant 0.000000e+00 : bf16
    %2 = vector.broadcast %cst : bf16 to vector<16x1x4xbf16>
    %3 = vector.extract_strided_slice %1 {offsets = [0, 0, 0], sizes = [16, 15, 4], strides = [1, 1, 1]} : vector<16x16x4xbf16> to vector<16x15x4xbf16>
    %4 = tpu.concatenate %2, %3 in 1 : vector<16x1x4xbf16>, vector<16x15x4xbf16> -> vector<16x16x4xbf16>
    %5 = vector.extract_strided_slice %1 {offsets = [0, 1, 0], sizes = [16, 15, 4], strides = [1, 1, 1]} : vector<16x16x4xbf16> to vector<16x15x4xbf16>
    %6 = tpu.concatenate %5, %2 in 1 : vector<16x15x4xbf16>, vector<16x1x4xbf16> -> vector<16x16x4xbf16>
    %7 = vector.shape_cast %4 : vector<16x16x4xbf16> to vector<256x4xbf16>
    %c0_2 = arith.constant 0 : index
    %c0_3 = arith.constant 0 : index
    %c0_4 = arith.constant 0 : index
    %8 = vector.load %arg2[%c0_2, %c0_3, %c0_4] : memref<3x4x64xbf16, #tpu.memory_space<vmem>>, vector<1x4x64xbf16>
    %9 = vector.shape_cast %8 : vector<1x4x64xbf16> to vector<4x64xbf16>
    %cst_5 = arith.constant dense<0.000000e+00> : vector<256x64xf32>
    %10 = tpu.matmul %7, %9, %cst_5 {dimension_numbers = #tpu.dot_dimension_numbers<[1], [0], [0], [1], [0, 0, 1, 1], [], []>} : vector<256x4xbf16>, vector<4x64xbf16>, vector<256x64xf32> -> vector<256x64xf32>
    %11 = vector.shape_cast %1 : vector<16x16x4xbf16> to vector<256x4xbf16>
    %c1 = arith.constant 1 : index
    %c0_6 = arith.constant 0 : index
    %c0_7 = arith.constant 0 : index
    %12 = vector.load %arg2[%c1, %c0_6, %c0_7] : memref<3x4x64xbf16, #tpu.memory_space<vmem>>, vector<1x4x64xbf16>
    %13 = vector.shape_cast %12 : vector<1x4x64xbf16> to vector<4x64xbf16>
    %cst_8 = arith.constant dense<0.000000e+00> : vector<256x64xf32>
    %14 = tpu.matmul %11, %13, %cst_8 {dimension_numbers = #tpu.dot_dimension_numbers<[1], [0], [0], [1], [0, 0, 1, 1], [], []>} : vector<256x4xbf16>, vector<4x64xbf16>, vector<256x64xf32> -> vector<256x64xf32>
    %15 = arith.addf %10, %14 : vector<256x64xf32>
    %16 = vector.shape_cast %6 : vector<16x16x4xbf16> to vector<256x4xbf16>
    %c2 = arith.constant 2 : index
    %c0_9 = arith.constant 0 : index
    %c0_10 = arith.constant 0 : index
    %17 = vector.load %arg2[%c2, %c0_9, %c0_10] : memref<3x4x64xbf16, #tpu.memory_space<vmem>>, vector<1x4x64xbf16>
    %18 = vector.shape_cast %17 : vector<1x4x64xbf16> to vector<4x64xbf16>
    %cst_11 = arith.constant dense<0.000000e+00> : vector<256x64xf32>
    %19 = tpu.matmul %16, %18, %cst_11 {dimension_numbers = #tpu.dot_dimension_numbers<[1], [0], [0], [1], [0, 0, 1, 1], [], []>} : vector<256x4xbf16>, vector<4x64xbf16>, vector<256x64xf32> -> vector<256x64xf32>
    %20 = arith.addf %15, %19 : vector<256x64xf32>
    %21 = vector.shape_cast %20 : vector<256x64xf32> to vector<16x16x64xf32>
    %c0_12 = arith.constant 0 : index
    %c0_13 = arith.constant 0 : index
    %22 = vector.load %arg3[%c0_12, %c0_13] : memref<1x64xf32, #tpu.memory_space<vmem>>, vector<1x64xf32>
    %23 = vector.shape_cast %22 : vector<1x64xf32> to vector<1x1x64xf32>
    %24 = vector.broadcast %23 : vector<1x1x64xf32> to vector<16x16x64xf32>
    %25 = arith.addf %21, %24 : vector<16x16x64xf32>
    %cst_14 = arith.constant 0.000000e+00 : f32
    %26 = vector.broadcast %cst_14 : f32 to vector<16x16x64xf32>
    %27 = arith.cmpf ogt, %25, %26 : vector<16x16x64xf32>
    %cst_15 = arith.constant 2.000000e-01 : f32
    %28 = vector.broadcast %cst_15 : f32 to vector<16x16x64xf32>
    %29 = arith.mulf %28, %25 : vector<16x16x64xf32>
    %30 = arith.select %27, %25, %29 : vector<16x16x64xi1>, vector<16x16x64xf32>
    %31 = arith.truncf %30 : vector<16x16x64xf32> to vector<16x16x64xbf16>
    %cst_16 = arith.constant 0.000000e+00 : bf16
    %32 = vector.broadcast %cst_16 : bf16 to vector<16x1x64xbf16>
    %33 = vector.extract_strided_slice %31 {offsets = [0, 0, 0], sizes = [16, 15, 64], strides = [1, 1, 1]} : vector<16x16x64xbf16> to vector<16x15x64xbf16>
    %34 = tpu.concatenate %32, %33 in 1 : vector<16x1x64xbf16>, vector<16x15x64xbf16> -> vector<16x16x64xbf16>
    %35 = vector.extract_strided_slice %31 {offsets = [0, 1, 0], sizes = [16, 15, 64], strides = [1, 1, 1]} : vector<16x16x64xbf16> to vector<16x15x64xbf16>
    %36 = tpu.concatenate %35, %32 in 1 : vector<16x15x64xbf16>, vector<16x1x64xbf16> -> vector<16x16x64xbf16>
    %37 = vector.shape_cast %34 : vector<16x16x64xbf16> to vector<256x64xbf16>
    %c0_17 = arith.constant 0 : index
    %c0_18 = arith.constant 0 : index
    %c0_19 = arith.constant 0 : index
    %38 = vector.load %arg4[%c0_17, %c0_18, %c0_19] : memref<3x64x128xbf16, #tpu.memory_space<vmem>>, vector<1x64x128xbf16>
    %39 = vector.shape_cast %38 : vector<1x64x128xbf16> to vector<64x128xbf16>
    %cst_20 = arith.constant dense<0.000000e+00> : vector<256x128xf32>
    %40 = tpu.matmul %37, %39, %cst_20 {dimension_numbers = #tpu.dot_dimension_numbers<[1], [0], [0], [1], [0, 0, 1, 1], [], []>} : vector<256x64xbf16>, vector<64x128xbf16>, vector<256x128xf32> -> vector<256x128xf32>
    %41 = vector.shape_cast %31 : vector<16x16x64xbf16> to vector<256x64xbf16>
    %c1_21 = arith.constant 1 : index
    %c0_22 = arith.constant 0 : index
    %c0_23 = arith.constant 0 : index
    %42 = vector.load %arg4[%c1_21, %c0_22, %c0_23] : memref<3x64x128xbf16, #tpu.memory_space<vmem>>, vector<1x64x128xbf16>
    %43 = vector.shape_cast %42 : vector<1x64x128xbf16> to vector<64x128xbf16>
    %cst_24 = arith.constant dense<0.000000e+00> : vector<256x128xf32>
    %44 = tpu.matmul %41, %43, %cst_24 {dimension_numbers = #tpu.dot_dimension_numbers<[1], [0], [0], [1], [0, 0, 1, 1], [], []>} : vector<256x64xbf16>, vector<64x128xbf16>, vector<256x128xf32> -> vector<256x128xf32>
    %45 = arith.addf %40, %44 : vector<256x128xf32>
    %46 = vector.shape_cast %36 : vector<16x16x64xbf16> to vector<256x64xbf16>
    %c2_25 = arith.constant 2 : index
    %c0_26 = arith.constant 0 : index
    %c0_27 = arith.constant 0 : index
    %47 = vector.load %arg4[%c2_25, %c0_26, %c0_27] : memref<3x64x128xbf16, #tpu.memory_space<vmem>>, vector<1x64x128xbf16>
    %48 = vector.shape_cast %47 : vector<1x64x128xbf16> to vector<64x128xbf16>
    %cst_28 = arith.constant dense<0.000000e+00> : vector<256x128xf32>
    %49 = tpu.matmul %46, %48, %cst_28 {dimension_numbers = #tpu.dot_dimension_numbers<[1], [0], [0], [1], [0, 0, 1, 1], [], []>} : vector<256x64xbf16>, vector<64x128xbf16>, vector<256x128xf32> -> vector<256x128xf32>
    %50 = arith.addf %45, %49 : vector<256x128xf32>
    %51 = vector.shape_cast %50 : vector<256x128xf32> to vector<16x16x128xf32>
    %c0_29 = arith.constant 0 : index
    %c0_30 = arith.constant 0 : index
    %52 = vector.load %arg5[%c0_29, %c0_30] : memref<1x128xf32, #tpu.memory_space<vmem>>, vector<1x128xf32>
    %53 = vector.shape_cast %52 : vector<1x128xf32> to vector<1x1x128xf32>
    %54 = vector.broadcast %53 : vector<1x1x128xf32> to vector<16x16x128xf32>
    %55 = arith.addf %51, %54 : vector<16x16x128xf32>
    %cst_31 = arith.constant 0.000000e+00 : f32
    %56 = vector.broadcast %cst_31 : f32 to vector<16x16x128xf32>
    %57 = arith.cmpf ogt, %55, %56 : vector<16x16x128xf32>
    %cst_32 = arith.constant 2.000000e-01 : f32
    %58 = vector.broadcast %cst_32 : f32 to vector<16x16x128xf32>
    %59 = arith.mulf %58, %55 : vector<16x16x128xf32>
    %60 = arith.select %57, %55, %59 : vector<16x16x128xi1>, vector<16x16x128xf32>
    %61 = arith.truncf %60 : vector<16x16x128xf32> to vector<16x16x128xbf16>
    %cst_33 = arith.constant 0.000000e+00 : bf16
    %62 = vector.broadcast %cst_33 : bf16 to vector<16x1x128xbf16>
    %63 = vector.extract_strided_slice %61 {offsets = [0, 0, 0], sizes = [16, 15, 128], strides = [1, 1, 1]} : vector<16x16x128xbf16> to vector<16x15x128xbf16>
    %64 = tpu.concatenate %62, %63 in 1 : vector<16x1x128xbf16>, vector<16x15x128xbf16> -> vector<16x16x128xbf16>
    %65 = vector.extract_strided_slice %61 {offsets = [0, 1, 0], sizes = [16, 15, 128], strides = [1, 1, 1]} : vector<16x16x128xbf16> to vector<16x15x128xbf16>
    %66 = tpu.concatenate %65, %62 in 1 : vector<16x15x128xbf16>, vector<16x1x128xbf16> -> vector<16x16x128xbf16>
    %67 = tpu.concatenate %64, %61, %66 in 2 : vector<16x16x128xbf16>, vector<16x16x128xbf16>, vector<16x16x128xbf16> -> vector<16x16x384xbf16>
    %68 = vector.shape_cast %67 : vector<16x16x384xbf16> to vector<256x384xbf16>
    %c0_34 = arith.constant 0 : index
    %c0_35 = arith.constant 0 : index
    %69 = vector.load %arg6[%c0_34, %c0_35] : memref<384x256xbf16, #tpu.memory_space<vmem>>, vector<384x256xbf16>
    %cst_36 = arith.constant dense<0.000000e+00> : vector<256x256xf32>
    %70 = tpu.matmul %68, %69, %cst_36 {dimension_numbers = #tpu.dot_dimension_numbers<[1], [0], [0], [1], [0, 0, 1, 1], [], []>} : vector<256x384xbf16>, vector<384x256xbf16>, vector<256x256xf32> -> vector<256x256xf32>
    %71 = vector.shape_cast %70 : vector<256x256xf32> to vector<16x16x256xf32>
    %c0_37 = arith.constant 0 : index
    %c0_38 = arith.constant 0 : index
    %72 = vector.load %arg7[%c0_37, %c0_38] : memref<1x256xf32, #tpu.memory_space<vmem>>, vector<1x256xf32>
    %73 = vector.shape_cast %72 : vector<1x256xf32> to vector<1x1x256xf32>
    %74 = vector.broadcast %73 : vector<1x1x256xf32> to vector<16x16x256xf32>
    %75 = arith.addf %71, %74 : vector<16x16x256xf32>
    %cst_39 = arith.constant 0.000000e+00 : f32
    %76 = vector.broadcast %cst_39 : f32 to vector<16x16x256xf32>
    %77 = arith.cmpf ogt, %75, %76 : vector<16x16x256xf32>
    %cst_40 = arith.constant 2.000000e-01 : f32
    %78 = vector.broadcast %cst_40 : f32 to vector<16x16x256xf32>
    %79 = arith.mulf %78, %75 : vector<16x16x256xf32>
    %80 = arith.select %77, %75, %79 : vector<16x16x256xi1>, vector<16x16x256xf32>
    %81 = arith.truncf %80 : vector<16x16x256xf32> to vector<16x16x256xbf16>
    %82 = vector.shape_cast %81 : vector<16x16x256xbf16> to vector<16x4096xbf16>
    %c0_41 = arith.constant 0 : index
    %c0_42 = arith.constant 0 : index
    %83 = vector.load %arg8[%c0_41, %c0_42] : memref<4096x128xbf16, #tpu.memory_space<vmem>>, vector<4096x128xbf16>
    %cst_43 = arith.constant dense<0.000000e+00> : vector<16x128xf32>
    %84 = tpu.matmul %82, %83, %cst_43 {dimension_numbers = #tpu.dot_dimension_numbers<[1], [0], [0], [1], [0, 0, 1, 1], [], []>} : vector<16x4096xbf16>, vector<4096x128xbf16>, vector<16x128xf32> -> vector<16x128xf32>
    %c0_44 = arith.constant 0 : index
    %c0_45 = arith.constant 0 : index
    %85 = vector.load %arg9[%c0_44, %c0_45] : memref<1x128xf32, #tpu.memory_space<vmem>>, vector<1x128xf32>
    %86 = vector.broadcast %85 : vector<1x128xf32> to vector<16x128xf32>
    %87 = arith.addf %84, %86 : vector<16x128xf32>
    %cst_46 = arith.constant 0.000000e+00 : f32
    %88 = vector.broadcast %cst_46 : f32 to vector<16x128xf32>
    %89 = arith.cmpf ogt, %87, %88 : vector<16x128xf32>
    %cst_47 = arith.constant 2.000000e-01 : f32
    %90 = vector.broadcast %cst_47 : f32 to vector<16x128xf32>
    %91 = arith.mulf %90, %87 : vector<16x128xf32>
    %92 = arith.select %89, %87, %91 : vector<16x128xi1>, vector<16x128xf32>
    %c0_48 = arith.constant 0 : index
    %c0_49 = arith.constant 0 : index
    %93 = vector.load %arg10[%c0_48, %c0_49] : memref<1x128xf32, #tpu.memory_space<vmem>>, vector<1x128xf32>
    %94 = vector.broadcast %93 : vector<1x128xf32> to vector<16x128xf32>
    %95 = arith.mulf %92, %94 : vector<16x128xf32>
    %cst_50 = arith.constant dense<0.000000e+00> : vector<16xf32>
    %96 = vector.multi_reduction <add>, %95, %cst_50 [1] : vector<16x128xf32> to vector<16xf32>
    %97 = vector.shape_cast %96 : vector<16xf32> to vector<16x1xf32>
    %c0_51 = arith.constant 0 : index
    %c0_52 = arith.constant 0 : index
    %98 = vector.load %arg11[%c0_51, %c0_52] : memref<1x1xf32, #tpu.memory_space<vmem>>, vector<1x1xf32>
    %99 = vector.broadcast %98 : vector<1x1xf32> to vector<16x1xf32>
    %100 = arith.addf %97, %99 : vector<16x1xf32>
    %cst_53 = arith.constant 0.000000e+00 : f32
    %101 = vector.broadcast %cst_53 : f32 to vector<16x1xf32>
    %102 = arith.subf %101, %100 : vector<16x1xf32>
    %103 = math.exp %102 : vector<16x1xf32>
    %cst_54 = arith.constant 1.000000e+00 : f32
    %104 = vector.broadcast %cst_54 : f32 to vector<16x1xf32>
    %105 = arith.addf %104, %103 : vector<16x1xf32>
    %cst_55 = arith.constant 1.000000e+00 : f32
    %106 = vector.broadcast %cst_55 : f32 to vector<16x1xf32>
    %107 = arith.divf %106, %105 : vector<16x1xf32>
    %c0_56 = arith.constant 0 : index
    %c0_57 = arith.constant 0 : index
    %108 = vector.load %arg12[%c0_56, %c0_57] : memref<16x1xf32, #tpu.memory_space<vmem>>, vector<16x1xf32>
    tpu.vector_store %arg12[%c0_56, %c0_57], %107 {strides = array<i32>} : memref<16x1xf32, #tpu.memory_space<vmem>>, vector<16x1xf32>,
    return
  }
  func.func @transform_0(%arg0: i32) -> (i32, i32, i32) {
    %c0_i32 = arith.constant 0 : i32
    %c0_i32_0 = arith.constant 0 : i32
    %c0_i32_1 = arith.constant 0 : i32
    return %arg0, %c0_i32, %c0_i32_0 : i32, i32, i32
  }
  func.func @transform_1(%arg0: i32) -> (i32, i32, i32) {
    %c0_i32 = arith.constant 0 : i32
    %c0_i32_0 = arith.constant 0 : i32
    %c0_i32_1 = arith.constant 0 : i32
    %c0_i32_2 = arith.constant 0 : i32
    return %c0_i32, %c0_i32_0, %c0_i32_1 : i32, i32, i32
  }
  func.func @transform_2(%arg0: i32) -> (i32, i32) {
    %c0_i32 = arith.constant 0 : i32
    %c0_i32_0 = arith.constant 0 : i32
    %c0_i32_1 = arith.constant 0 : i32
    return %c0_i32, %c0_i32_0 : i32, i32
  }
  func.func @transform_3(%arg0: i32) -> (i32, i32, i32) {
    %c0_i32 = arith.constant 0 : i32
    %c0_i32_0 = arith.constant 0 : i32
    %c0_i32_1 = arith.constant 0 : i32
    %c0_i32_2 = arith.constant 0 : i32
    return %c0_i32, %c0_i32_0, %c0_i32_1 : i32, i32, i32
  }
  func.func @transform_4(%arg0: i32) -> (i32, i32) {
    %c0_i32 = arith.constant 0 : i32
    %c0_i32_0 = arith.constant 0 : i32
    %c0_i32_1 = arith.constant 0 : i32
    return %c0_i32, %c0_i32_0 : i32, i32
  }
  func.func @transform_5(%arg0: i32) -> (i32, i32) {
    %c0_i32 = arith.constant 0 : i32
    %c0_i32_0 = arith.constant 0 : i32
    %c0_i32_1 = arith.constant 0 : i32
    return %c0_i32, %c0_i32_0 : i32, i32
  }
  func.func @transform_6(%arg0: i32) -> (i32, i32) {
    %c0_i32 = arith.constant 0 : i32
    %c0_i32_0 = arith.constant 0 : i32
    %c0_i32_1 = arith.constant 0 : i32
    return %c0_i32, %c0_i32_0 : i32, i32
  }
  func.func @transform_7(%arg0: i32) -> (i32, i32) {
    %c0_i32 = arith.constant 0 : i32
    %c0_i32_0 = arith.constant 0 : i32
    %c0_i32_1 = arith.constant 0 : i32
    return %c0_i32, %c0_i32_0 : i32, i32
  }
  func.func @transform_8(%arg0: i32) -> (i32, i32) {
    %c0_i32 = arith.constant 0 : i32
    %c0_i32_0 = arith.constant 0 : i32
    %c0_i32_1 = arith.constant 0 : i32
    return %c0_i32, %c0_i32_0 : i32, i32
  }
  func.func @transform_9(%arg0: i32) -> (i32, i32) {
    %c0_i32 = arith.constant 0 : i32
    %c0_i32_0 = arith.constant 0 : i32
    %c0_i32_1 = arith.constant 0 : i32
    return %c0_i32, %c0_i32_0 : i32, i32
  }
  func.func @transform_10(%arg0: i32) -> (i32, i32) {
    %c0_i32 = arith.constant 0 : i32
    %c0_i32_0 = arith.constant 0 : i32
    %c0_i32_1 = arith.constant 0 : i32
    return %c0_i32, %c0_i32_0 : i32, i32
  }
  func.func @transform_11(%arg0: i32) -> (i32, i32) {
    %c0_i32 = arith.constant 0 : i32
    %c0_i32_0 = arith.constant 0 : i32
    return %arg0, %c0_i32 : i32, i32
  }
}

</mosaic_0001>

<llo_original>
// kernel: tpu_custom_call.1
$region0: #{tpu_custom_call.1}
  #allocation0 [shape = 'u32[]', space=smem, size = 0x4, offset = 0x4, fixed_abs, tag = 'smem constant byte address 0x4 - core index']
  #allocation1 [shape = 'u32[72,128]{1,0:T(1,128)}', space=vmem, size = 0x9000, scoped, tag = 'internal scratch']
  #allocation2 [shape = 'f32[1,1]{1,0:T(1,128)S(1)}', space=vmem, size = 0x200, scoped, tag = 'scoped memory for tpu_custom_call.1']
  %s0 = inlined_call_operand.vmem [shape: f32[16,16,4], index: 0, kind: input, shape index: {}]
  %s1 = inlined_call_operand.vmem [shape: bf16[3,4,64], index: 1, kind: input, shape index: {}]
  %s2 = inlined_call_operand.vmem [shape: f32[1,64], index: 2, kind: input, shape index: {}]
  %s3 = inlined_call_operand.vmem [shape: bf16[3,64,128], index: 3, kind: input, shape index: {}]
  %s4 = inlined_call_operand.vmem [shape: f32[1,128], index: 4, kind: input, shape index: {}]
  %s5 = inlined_call_operand.hbm [shape: bf16[384,256], index: 5, kind: input, shape index: {}]
  %s6 = inlined_call_operand.vmem [shape: f32[1,256], index: 6, kind: input, shape index: {}]
  %s7 = inlined_call_operand.hbm [shape: bf16[4096,128], index: 7, kind: input, shape index: {}]
  %s8 = inlined_call_operand.vmem [shape: f32[1,128], index: 8, kind: input, shape index: {}]
  %s9 = inlined_call_operand.vmem [shape: f32[1,128], index: 9, kind: input, shape index: {}]
  %s10 = inlined_call_operand.<no memory space> [shape: f32[1,1], index: 10, kind: input, shape index: {}]
  %s11 = inlined_call_operand.vmem [shape: f32[16,1], index: 11, kind: output, shape index: {}]
  %s12 = sld [smem:[#allocation0]]
  $region62: #{tpu_custom_call.1} parent=0
    _
  %s14 = ssub.s32 1, %s12
  %s15 = scalar_select 0, %s14, %s12
  %v16 = vstv %s10
  %17 = vst [vmem:[#allocation2] sm:$0x1] %v16
  $region1: #{tpu_custom_call.1} parent=0
    #allocation3 [shape = 'u8[196608]{0}', space=vmem, size = 0x30000, scoped, tag = 'input window, operand 5, single buffered']
    #allocation4 [shape = 's32[1]{0}', space=sflag, size = 0x4, scoped, tag = 'scoped memory for tpu_custom_call.1']
    #allocation5 [shape = 'u8[1048576]{0}', space=vmem, size = 0x100000, scoped, tag = 'input window, operand 7, single buffered']
    #allocation6 [shape = 's32[1]{0}', space=sflag, size = 0x4, scoped, tag = 'scoped memory for tpu_custom_call.1']
    %18 = vsyncpa [#allocation4], 0
    %19 = vsyncpa [#allocation6], 0
    // Predicated region
    $region2: #{tpu_custom_call.1} parent=1 // pred_check
      _
    $region3: #{tpu_custom_call.1} parent=1 // pred_check_branch
      %21 = sbr.rel (0) target = $region5
    $region4: #{tpu_custom_call.1} parent=1 // pred_region
      _
    $region5: #{tpu_custom_call.1} parent=1 // pred_fallthru
      _
    // Predicated region
    $region6: #{tpu_custom_call.1} parent=1 // pred_check
      _
    $region7: #{tpu_custom_call.1} parent=1 // pred_check_branch
      %23 = sbr.rel (0) target = $region9
    $region8: #{tpu_custom_call.1} parent=1 // pred_region
      _
    $region9: #{tpu_custom_call.1} parent=1 // pred_fallthru
      _
    // Predicated region
    $region10: #{tpu_custom_call.1} parent=1 // pred_check
      _
    $region11: #{tpu_custom_call.1} parent=1 // pred_check_branch
      %25 = sbr.rel (0) target = $region13
    $region12: #{tpu_custom_call.1} parent=1 // pred_region
      _
    $region13: #{tpu_custom_call.1} parent=1 // pred_fallthru
      _
    // Predicated region
    $region14: #{tpu_custom_call.1} parent=1 // pred_check
      _
    $region15: #{tpu_custom_call.1} parent=1 // pred_check_branch
      %27 = sbr.rel (0) target = $region17
    $region16: #{tpu_custom_call.1} parent=1 // pred_region
      _
    $region17: #{tpu_custom_call.1} parent=1 // pred_fallthru
      _
    // Predicated region
    $region18: #{tpu_custom_call.1} parent=1 // pred_check
      _
    $region19: #{tpu_custom_call.1} parent=1 // pred_check_branch
      %29 = sbr.rel (0) target = $region21
    $region20: #{tpu_custom_call.1} parent=1 // pred_region
      _
    $region21: #{tpu_custom_call.1} parent=1 // pred_fallthru
      _
    // Predicated region
    $region22: #{tpu_custom_call.1} parent=1 // pred_check
      _
    $region23: #{tpu_custom_call.1} parent=1 // pred_check_branch
      %31 = sbr.rel (0) target = $region25
    $region24: #{tpu_custom_call.1} parent=1 // pred_region
      %33 = vsyncadd [#allocation4], 0
      %s34 = sshll.u32 %s5, 4
      %s35 = int_to_ptr.hbm [resolvable:$true] %s34
      %s36 = sshll.u32 [#allocation3], 4
      %s37 = int_to_ptr.vmem [resolvable:$true] %s36
      %42 = dma.hbm_to_vmem [thread:$0]  %s35, 6144, %s37, [#allocation4], 128, 128, 8
    $region25: #{tpu_custom_call.1} parent=1 // pred_fallthru
      _
    // Predicated region
    $region26: #{tpu_custom_call.1} parent=1 // pred_check
      _
    $region27: #{tpu_custom_call.1} parent=1 // pred_check_branch
      %44 = sbr.rel (0) target = $region29
    $region28: #{tpu_custom_call.1} parent=1 // pred_region
      _
    $region29: #{tpu_custom_call.1} parent=1 // pred_fallthru
      _
    // Predicated region
    $region30: #{tpu_custom_call.1} parent=1 // pred_check
      _
    $region31: #{tpu_custom_call.1} parent=1 // pred_check_branch
      %46 = sbr.rel (0) target = $region33
    $region32: #{tpu_custom_call.1} parent=1 // pred_region
      %48 = vsyncadd [#allocation6], 0
      %s49 = sshll.u32 %s7, 4
      %s50 = int_to_ptr.hbm [resolvable:$true] %s49
      %s51 = sshll.u32 [#allocation5], 4
      %s52 = int_to_ptr.vmem [resolvable:$true] %s51
      %57 = dma.hbm_to_vmem [thread:$0]  %s50, 32768, %s52, [#allocation6], 64, 64, 4
    $region33: #{tpu_custom_call.1} parent=1 // pred_fallthru
      _
    // Predicated region
    $region34: #{tpu_custom_call.1} parent=1 // pred_check
      _
    $region35: #{tpu_custom_call.1} parent=1 // pred_check_branch
      %59 = sbr.rel (0) target = $region37
    $region36: #{tpu_custom_call.1} parent=1 // pred_region
      _
    $region37: #{tpu_custom_call.1} parent=1 // pred_fallthru
      _
    // Predicated region
    $region38: #{tpu_custom_call.1} parent=1 // pred_check
      _
    $region39: #{tpu_custom_call.1} parent=1 // pred_check_branch
      %61 = sbr.rel (0) target = $region41
    $region40: #{tpu_custom_call.1} parent=1 // pred_region
      _
    $region41: #{tpu_custom_call.1} parent=1 // pred_fallthru
      _
    // Predicated region
    $region42: #{tpu_custom_call.1} parent=1 // pred_check
      _
    $region43: #{tpu_custom_call.1} parent=1 // pred_check_branch
      %63 = sbr.rel (0) target = $region45
    $region44: #{tpu_custom_call.1} parent=1 // pred_region
      _
    $region45: #{tpu_custom_call.1} parent=1 // pred_fallthru
      _
    // Predicated region
    $region46: #{tpu_custom_call.1} parent=1 // pred_check
      _
    $region47: #{tpu_custom_call.1} parent=1 // pred_check_branch
      %65 = sbr.rel (0) target = $region49
    $region48: #{tpu_custom_call.1} parent=1 // pred_region
      %67 = dma.done [#allocation4], 6144
    $region49: #{tpu_custom_call.1} parent=1 // pred_fallthru
      _
    // Predicated region
    $region50: #{tpu_custom_call.1} parent=1 // pred_check
      _
    $region51: #{tpu_custom_call.1} parent=1 // pred_check_branch
      %69 = sbr.rel (0) target = $region53
    $region52: #{tpu_custom_call.1} parent=1 // pred_region
      %71 = dma.done [#allocation6], 32768
    $region53: #{tpu_custom_call.1} parent=1 // pred_fallthru
      _
    %v73 = vld [vmem:[%s0] sm:$0xff]
    %v74 = vld [vmem:[%s0 + $0x8] sm:$0xff]
    %v75 = vld [vmem:[%s0 + $0x10] sm:$0xff]
    %v76 = vld [vmem:[%s0 + $0x18] sm:$0xff]
    %v77 = vld [vmem:[%s0 + $0x20] sm:$0xff]
    %v78 = vld [vmem:[%s0 + $0x28] sm:$0xff]
    %v79 = vld [vmem:[%s0 + $0x30] sm:$0xff]
    %v80 = vld [vmem:[%s0 + $0x38] sm:$0xff]
    %v81 = vld [vmem:[%s0 + $0x40] sm:$0xff]
    %v82 = vld [vmem:[%s0 + $0x48] sm:$0xff]
    %v83 = vld [vmem:[%s0 + $0x50] sm:$0xff]
    %v84 = vld [vmem:[%s0 + $0x58] sm:$0xff]
    %v85 = vld [vmem:[%s0 + $0x60] sm:$0xff]
    %v86 = vld [vmem:[%s0 + $0x68] sm:$0xff]
    %v87 = vld [vmem:[%s0 + $0x70] sm:$0xff]
    %v88 = vld [vmem:[%s0 + $0x78] sm:$0xff]
    %v89 = vld [vmem:[%s0 + $0x80] sm:$0xff]
    %v90 = vld [vmem:[%s0 + $0x88] sm:$0xff]
    %v91 = vld [vmem:[%s0 + $0x90] sm:$0xff]
    %v92 = vld [vmem:[%s0 + $0x98] sm:$0xff]
    %v93 = vld [vmem:[%s0 + $0xa0] sm:$0xff]
    %v94 = vld [vmem:[%s0 + $0xa8] sm:$0xff]
    %v95 = vld [vmem:[%s0 + $0xb0] sm:$0xff]
    %v96 = vld [vmem:[%s0 + $0xb8] sm:$0xff]
    %v97 = vld [vmem:[%s0 + $0xc0] sm:$0xff]
    %v98 = vld [vmem:[%s0 + $0xc8] sm:$0xff]
    %v99 = vld [vmem:[%s0 + $0xd0] sm:$0xff]
    %v100 = vld [vmem:[%s0 + $0xd8] sm:$0xff]
    %v101 = vld [vmem:[%s0 + $0xe0] sm:$0xff]
    %v102 = vld [vmem:[%s0 + $0xe8] sm:$0xff]
    %v103 = vld [vmem:[%s0 + $0xf0] sm:$0xff]
    %v104 = vld [vmem:[%s0 + $0xf8] sm:$0xff]
    %v105 = vpack.c.bf16 %v73, %v73
    %v106 = vpack.c.bf16 %v74, %v74
    %v107 = vpack.c.bf16 %v75, %v75
    %v108 = vpack.c.bf16 %v76, %v76
    %v109 = vpack.c.bf16 %v77, %v77
    %v110 = vpack.c.bf16 %v78, %v78
    %v111 = vpack.c.bf16 %v79, %v79
    %v112 = vpack.c.bf16 %v80, %v80
    %v113 = vpack.c.bf16 %v81, %v81
    %v114 = vpack.c.bf16 %v82, %v82
    %v115 = vpack.c.bf16 %v83, %v83
    %v116 = vpack.c.bf16 %v84, %v84
    %v117 = vpack.c.bf16 %v85, %v85
    %v118 = vpack.c.bf16 %v86, %v86
    %v119 = vpack.c.bf16 %v87, %v87
    %v120 = vpack.c.bf16 %v88, %v88
    %v121 = vpack.c.bf16 %v89, %v89
    %v122 = vpack.c.bf16 %v90, %v90
    %v123 = vpack.c.bf16 %v91, %v91
    %v124 = vpack.c.bf16 %v92, %v92
    %v125 = vpack.c.bf16 %v93, %v93
    %v126 = vpack.c.bf16 %v94, %v94
    %v127 = vpack.c.bf16 %v95, %v95
    %v128 = vpack.c.bf16 %v96, %v96
    %v129 = vpack.c.bf16 %v97, %v97
    %v130 = vpack.c.bf16 %v98, %v98
    %v131 = vpack.c.bf16 %v99, %v99
    %v132 = vpack.c.bf16 %v100, %v100
    %v133 = vpack.c.bf16 %v101, %v101
    %v134 = vpack.c.bf16 %v102, %v102
    %v135 = vpack.c.bf16 %v103, %v103
    %v136 = vpack.c.bf16 %v104, %v104
    %v169 = vunpack.c.l.b16 %v105
    %v170 = vunpack.c.l.b16 %v106
    %v171 = vunpack.c.l.b16 %v107
    %v172 = vunpack.c.l.b16 %v108
    %v173 = vunpack.c.l.b16 %v109
    %v174 = vunpack.c.l.b16 %v110
    %v175 = vunpack.c.l.b16 %v111
    %v176 = vunpack.c.l.b16 %v112
    %v177 = vunpack.c.l.b16 %v113
    %v178 = vunpack.c.l.b16 %v114
    %v179 = vunpack.c.l.b16 %v115
    %v180 = vunpack.c.l.b16 %v116
    %v181 = vunpack.c.l.b16 %v117
    %v182 = vunpack.c.l.b16 %v118
    %v183 = vunpack.c.l.b16 %v119
    %v184 = vunpack.c.l.b16 %v120
    %v185 = vunpack.c.l.b16 %v121
    %v186 = vunpack.c.l.b16 %v122
    %v187 = vunpack.c.l.b16 %v123
    %v188 = vunpack.c.l.b16 %v124
    %v189 = vunpack.c.l.b16 %v125
    %v190 = vunpack.c.l.b16 %v126
    %v191 = vunpack.c.l.b16 %v127
    %v192 = vunpack.c.l.b16 %v128
    %v193 = vunpack.c.l.b16 %v129
    %v194 = vunpack.c.l.b16 %v130
    %v195 = vunpack.c.l.b16 %v131
    %v196 = vunpack.c.l.b16 %v132
    %v197 = vunpack.c.l.b16 %v133
    %v198 = vunpack.c.l.b16 %v134
    %v199 = vunpack.c.l.b16 %v135
    %v200 = vunpack.c.l.b16 %v136
    %v201 = vpack.c.b16 %v170, %v169
    %v202 = vpack.c.b16 %v172, %v171
    %v203 = vpack.c.b16 %v174, %v173
    %v204 = vpack.c.b16 %v176, %v175
    %v205 = vpack.c.b16 %v178, %v177
    %v206 = vpack.c.b16 %v180, %v179
    %v207 = vpack.c.b16 %v182, %v181
    %v208 = vpack.c.b16 %v184, %v183
    %v209 = vpack.c.b16 %v186, %v185
    %v210 = vpack.c.b16 %v188, %v187
    %v211 = vpack.c.b16 %v190, %v189
    %v212 = vpack.c.b16 %v192, %v191
    %v213 = vpack.c.b16 %v194, %v193
    %v214 = vpack.c.b16 %v196, %v195
    %v215 = vpack.c.b16 %v198, %v197
    %v216 = vpack.c.b16 %v200, %v199
    %v218 = vshrl.u32 %v201, 16
    %v220 = vrot.slane %v218, 7
    %v221 = vshll.u32 %v201, 16
    %v223 = vor.u32 %v220, %v221
    %v225 = vshrl.u32 %v202, 16
    %v227 = vrot.slane %v225, 7
    %v228 = vshll.u32 %v202, 16
    %v230 = vor.u32 %v227, %v228
    %v232 = vshrl.u32 %v203, 16
    %v234 = vrot.slane %v232, 7
    %v235 = vshll.u32 %v203, 16
    %v237 = vor.u32 %v234, %v235
    %v239 = vshrl.u32 %v204, 16
    %v241 = vrot.slane %v239, 7
    %v242 = vshll.u32 %v204, 16
    %v244 = vor.u32 %v241, %v242
    %v246 = vshrl.u32 %v205, 16
    %v248 = vrot.slane %v246, 7
    %v249 = vshll.u32 %v205, 16
    %v251 = vor.u32 %v248, %v249
    %v253 = vshrl.u32 %v206, 16
    %v255 = vrot.slane %v253, 7
    %v256 = vshll.u32 %v206, 16
    %v258 = vor.u32 %v255, %v256
    %v260 = vshrl.u32 %v207, 16
    %v262 = vrot.slane %v260, 7
    %v263 = vshll.u32 %v207, 16
    %v265 = vor.u32 %v262, %v263
    %v267 = vshrl.u32 %v208, 16
    %v269 = vrot.slane %v267, 7
    %v270 = vshll.u32 %v208, 16
    %v272 = vor.u32 %v269, %v270
    %v274 = vshrl.u32 %v209, 16
    %v276 = vrot.slane %v274, 7
    %v277 = vshll.u32 %v209, 16
    %v279 = vor.u32 %v276, %v277
    %v281 = vshrl.u32 %v210, 16
    %v283 = vrot.slane %v281, 7
    %v284 = vshll.u32 %v210, 16
    %v286 = vor.u32 %v283, %v284
    %v288 = vshrl.u32 %v211, 16
    %v290 = vrot.slane %v288, 7
    %v291 = vshll.u32 %v211, 16
    %v293 = vor.u32 %v290, %v291
    %v295 = vshrl.u32 %v212, 16
    %v297 = vrot.slane %v295, 7
    %v298 = vshll.u32 %v212, 16
    %v300 = vor.u32 %v297, %v298
    %v302 = vshrl.u32 %v213, 16
    %v304 = vrot.slane %v302, 7
    %v305 = vshll.u32 %v213, 16
    %v307 = vor.u32 %v304, %v305
    %v309 = vshrl.u32 %v214, 16
    %v311 = vrot.slane %v309, 7
    %v312 = vshll.u32 %v214, 16
    %v314 = vor.u32 %v311, %v312
    %v316 = vshrl.u32 %v215, 16
    %v318 = vrot.slane %v316, 7
    %v319 = vshll.u32 %v215, 16
    %v321 = vor.u32 %v318, %v319
    %v323 = vshrl.u32 %v216, 16
    %v325 = vrot.slane %v323, 7
    %v326 = vshll.u32 %v216, 16
    %v328 = vor.u32 %v325, %v326
    %vm345 = vcmask 1040384
    %vm346 = vsmask.f32 256
    %vm347 = vmand %vm345, %vm346
    %v348 = vsel %vm347, 0, %v223
    %v349 = vsel %vm347, 0, %v230
    %v350 = vsel %vm347, 0, %v237
    %v351 = vsel %vm347, 0, %v244
    %v352 = vsel %vm347, 0, %v251
    %v353 = vsel %vm347, 0, %v258
    %v354 = vsel %vm347, 0, %v265
    %v355 = vsel %vm347, 0, %v272
    %v356 = vsel %vm347, 0, %v279
    %v357 = vsel %vm347, 0, %v286
    %v358 = vsel %vm347, 0, %v293
    %v359 = vsel %vm347, 0, %v300
    %v360 = vsel %vm347, 0, %v307
    %v361 = vsel %vm347, 0, %v314
    %v362 = vsel %vm347, 0, %v321
    %v363 = vsel %vm347, 0, %v328
    %v364 = vrot.slane %v221, 1
    %v365 = vor.u32 %v218, %v364
    %v366 = vrot.slane %v228, 1
    %v367 = vor.u32 %v225, %v366
    %v368 = vrot.slane %v235, 1
    %v369 = vor.u32 %v232, %v368
    %v370 = vrot.slane %v242, 1
    %v371 = vor.u32 %v239, %v370
    %v372 = vrot.slane %v249, 1
    %v373 = vor.u32 %v246, %v372
    %v374 = vrot.slane %v256, 1
    %v375 = vor.u32 %v253, %v374
    %v376 = vrot.slane %v263, 1
    %v377 = vor.u32 %v260, %v376
    %v378 = vrot.slane %v270, 1
    %v379 = vor.u32 %v267, %v378
    %v380 = vrot.slane %v277, 1
    %v381 = vor.u32 %v274, %v380
    %v382 = vrot.slane %v284, 1
    %v383 = vor.u32 %v281, %v382
    %v384 = vrot.slane %v291, 1
    %v385 = vor.u32 %v288, %v384
    %v386 = vrot.slane %v298, 1
    %v387 = vor.u32 %v295, %v386
    %v388 = vrot.slane %v305, 1
    %v389 = vor.u32 %v302, %v388
    %v390 = vrot.slane %v312, 1
    %v391 = vor.u32 %v309, %v390
    %v392 = vrot.slane %v319, 1
    %v393 = vor.u32 %v316, %v392
    %v394 = vrot.slane %v326, 1
    %v395 = vor.u32 %v323, %v394
    %vm412 = vcmask 1047552
    %vm413 = vsmask.f32 7424
    %vm414 = vmand %vm412, %vm413
    %v415 = vsel %vm414, %v365, 0
    %v416 = vsel %vm414, %v367, 0
    %v417 = vsel %vm414, %v369, 0
    %v418 = vsel %vm414, %v371, 0
    %v419 = vsel %vm414, %v373, 0
    %v420 = vsel %vm414, %v375, 0
    %v421 = vsel %vm414, %v377, 0
    %v422 = vsel %vm414, %v379, 0
    %v423 = vsel %vm414, %v381, 0
    %v424 = vsel %vm414, %v383, 0
    %v425 = vsel %vm414, %v385, 0
    %v426 = vsel %vm414, %v387, 0
    %v427 = vsel %vm414, %v389, 0
    %v428 = vsel %vm414, %v391, 0
    %v429 = vsel %vm414, %v393, 0
    %v430 = vsel %vm414, %v395, 0
    %v431 = vld [vmem:[%s1] sm:$0x3]
    %s432 = scalar_lea.vmem %s1, 2
    %v433 = vld [vmem:[%s432] sm:$0x3]
    %vm434 = vcmask 31744
    %v435 = vsel %vm434, %v201, 0
    %v437 = vsel %vm434, %v202, 0
    %v439 = vsel %vm434, %v203, 0
    %v441 = vsel %vm434, %v204, 0
    %v443 = vsel %vm434, %v205, 0
    %v445 = vsel %vm434, %v206, 0
    %v447 = vsel %vm434, %v207, 0
    %v449 = vsel %vm434, %v208, 0
    %v451 = vsel %vm434, %v209, 0
    %v453 = vsel %vm434, %v210, 0
    %v455 = vsel %vm434, %v211, 0
    %v457 = vsel %vm434, %v212, 0
    %v459 = vsel %vm434, %v213, 0
    %v461 = vsel %vm434, %v214, 0
    %v463 = vsel %vm434, %v215, 0
    %v465 = vsel %vm434, %v216, 0
    %vm467 = vcmask 1041408
    %v469 = vsel %vm467, %v433, 0
    %471 = vmatpush.bf16.msra.mxu0 0
    %472 = vmatpush.bf16.msra.mxu0 0
    %473 = vmatpush.bf16.msra.mxu0 0
    %474 = vmatpush.bf16.msra.mxu0 0
    %475 = vmatpush.bf16.msra.mxu0 0
    %476 = vmatpush.bf16.msra.mxu0 0
    %477 = vmatpush.bf16.msra.mxu0 0
    %478 = vmatpush.bf16.msra.mxu0 %v469
    %479 = vmatmul.bf16.gmra.mxu0 %v435
    %v480 = vpop.f32.mrf.mxu0
    %v481 = vadd.f32 0.0, %v480
    %v482 = vpop.f32.mrf.mxu0
    %v483 = vadd.f32 0.0, %v482
    %484 = vmatmul.bf16.gmra.mxu0 %v437
    %v485 = vpop.f32.mrf.mxu0
    %v486 = vadd.f32 0.0, %v485
    %v487 = vpop.f32.mrf.mxu0
    %v488 = vadd.f32 0.0, %v487
    %489 = vmatmul.bf16.gmra.mxu0 %v439
    %v490 = vpop.f32.mrf.mxu0
    %v491 = vadd.f32 0.0, %v490
    %v492 = vpop.f32.mrf.mxu0
    %v493 = vadd.f32 0.0, %v492
    %494 = vmatmul.bf16.gmra.mxu0 %v441
    %v495 = vpop.f32.mrf.mxu0
    %v496 = vadd.f32 0.0, %v495
    %v497 = vpop.f32.mrf.mxu0
    %v498 = vadd.f32 0.0, %v497
    %499 = vmatmul.bf16.gmra.mxu0 %v443
    %v500 = vpop.f32.mrf.mxu0
    %v501 = vadd.f32 0.0, %v500
    %v502 = vpop.f32.mrf.mxu0
    %v503 = vadd.f32 0.0, %v502
    %504 = vmatmul.bf16.gmra.mxu0 %v445
    %v505 = vpop.f32.mrf.mxu0
    %v506 = vadd.f32 0.0, %v505
    %v507 = vpop.f32.mrf.mxu0
    %v508 = vadd.f32 0.0, %v507
    %509 = vmatmul.bf16.gmra.mxu0 %v447
    %v510 = vpop.f32.mrf.mxu0
    %v511 = vadd.f32 0.0, %v510
    %v512 = vpop.f32.mrf.mxu0
    %v513 = vadd.f32 0.0, %v512
    %514 = vmatmul.bf16.gmra.mxu0 %v449
    %v515 = vpop.f32.mrf.mxu0
    %v516 = vadd.f32 0.0, %v515
    %v517 = vpop.f32.mrf.mxu0
    %v518 = vadd.f32 0.0, %v517
    %519 = vmatmul.bf16.gmra.mxu0 %v451
    %v520 = vpop.f32.mrf.mxu0
    %v521 = vadd.f32 0.0, %v520
    %v522 = vpop.f32.mrf.mxu0
    %v523 = vadd.f32 0.0, %v522
    %524 = vmatmul.bf16.gmra.mxu0 %v453
    %v525 = vpop.f32.mrf.mxu0
    %v526 = vadd.f32 0.0, %v525
    %v527 = vpop.f32.mrf.mxu0
    %v528 = vadd.f32 0.0, %v527
    %529 = vmatmul.bf16.gmra.mxu0 %v455
    %v530 = vpop.f32.mrf.mxu0
    %v531 = vadd.f32 0.0, %v530
    %v532 = vpop.f32.mrf.mxu0
    %v533 = vadd.f32 0.0, %v532
    %534 = vmatmul.bf16.gmra.mxu0 %v457
    %v535 = vpop.f32.mrf.mxu0
    %v536 = vadd.f32 0.0, %v535
    %v537 = vpop.f32.mrf.mxu0
    %v538 = vadd.f32 0.0, %v537
    %539 = vmatmul.bf16.gmra.mxu0 %v459
    %v540 = vpop.f32.mrf.mxu0
    %v541 = vadd.f32 0.0, %v540
    %v542 = vpop.f32.mrf.mxu0
    %v543 = vadd.f32 0.0, %v542
    %544 = vmatmul.bf16.gmra.mxu0 %v461
    %v545 = vpop.f32.mrf.mxu0
    %v546 = vadd.f32 0.0, %v545
    %v547 = vpop.f32.mrf.mxu0
    %v548 = vadd.f32 0.0, %v547
    %549 = vmatmul.bf16.gmra.mxu0 %v463
    %v550 = vpop.f32.mrf.mxu0
    %v551 = vadd.f32 0.0, %v550
    %v552 = vpop.f32.mrf.mxu0
    %v553 = vadd.f32 0.0, %v552
    %554 = vmatmul.bf16.gmra.mxu0 %v465
    %v555 = vpop.f32.mrf.mxu0
    %v556 = vadd.f32 0.0, %v555
    %v557 = vpop.f32.mrf.mxu0
    %v558 = vadd.f32 0.0, %v557
    %559 = vdwg.mxu0
    %v561 = vsel %vm434, %v348, 0
    %v564 = vsel %vm434, %v349, 0
    %v567 = vsel %vm434, %v350, 0
    %v570 = vsel %vm434, %v351, 0
    %v573 = vsel %vm434, %v352, 0
    %v576 = vsel %vm434, %v353, 0
    %v579 = vsel %vm434, %v354, 0
    %v582 = vsel %vm434, %v355, 0
    %v585 = vsel %vm434, %v356, 0
    %v588 = vsel %vm434, %v357, 0
    %v591 = vsel %vm434, %v358, 0
    %v594 = vsel %vm434, %v359, 0
    %v597 = vsel %vm434, %v360, 0
    %v600 = vsel %vm434, %v361, 0
    %v603 = vsel %vm434, %v362, 0
    %v606 = vsel %vm434, %v363, 0
    %v609 = vsel %vm467, %v431, 0
    %611 = vmatpush.bf16.msra.mxu0 0
    %612 = vmatpush.bf16.msra.mxu0 0
    %613 = vmatpush.bf16.msra.mxu0 0
    %614 = vmatpush.bf16.msra.mxu0 0
    %615 = vmatpush.bf16.msra.mxu0 0
    %616 = vmatpush.bf16.msra.mxu0 0
    %617 = vmatpush.bf16.msra.mxu0 0
    %618 = vmatpush.bf16.msra.mxu0 %v609
    %619 = vmatmul.bf16.gmra.mxu0 %v561
    %v620 = vpop.f32.mrf.mxu0
    %v621 = vadd.f32 %v481, %v620
    %v622 = vpop.f32.mrf.mxu0
    %v623 = vadd.f32 %v483, %v622
    %624 = vmatmul.bf16.gmra.mxu0 %v564
    %v625 = vpop.f32.mrf.mxu0
    %v626 = vadd.f32 %v486, %v625
    %v627 = vpop.f32.mrf.mxu0
    %v628 = vadd.f32 %v488, %v627
    %629 = vmatmul.bf16.gmra.mxu0 %v567
    %v630 = vpop.f32.mrf.mxu0
    %v631 = vadd.f32 %v491, %v630
    %v632 = vpop.f32.mrf.mxu0
    %v633 = vadd.f32 %v493, %v632
    %634 = vmatmul.bf16.gmra.mxu0 %v570
    %v635 = vpop.f32.mrf.mxu0
    %v636 = vadd.f32 %v496, %v635
    %v637 = vpop.f32.mrf.mxu0
    %v638 = vadd.f32 %v498, %v637
    %639 = vmatmul.bf16.gmra.mxu0 %v573
    %v640 = vpop.f32.mrf.mxu0
    %v641 = vadd.f32 %v501, %v640
    %v642 = vpop.f32.mrf.mxu0
    %v643 = vadd.f32 %v503, %v642
    %644 = vmatmul.bf16.gmra.mxu0 %v576
    %v645 = vpop.f32.mrf.mxu0
    %v646 = vadd.f32 %v506, %v645
    %v647 = vpop.f32.mrf.mxu0
    %v648 = vadd.f32 %v508, %v647
    %649 = vmatmul.bf16.gmra.mxu0 %v579
    %v650 = vpop.f32.mrf.mxu0
    %v651 = vadd.f32 %v511, %v650
    %v652 = vpop.f32.mrf.mxu0
    %v653 = vadd.f32 %v513, %v652
    %654 = vmatmul.bf16.gmra.mxu0 %v582
    %v655 = vpop.f32.mrf.mxu0
    %v656 = vadd.f32 %v516, %v655
    %v657 = vpop.f32.mrf.mxu0
    %v658 = vadd.f32 %v518, %v657
    %659 = vmatmul.bf16.gmra.mxu0 %v585
    %v660 = vpop.f32.mrf.mxu0
    %v661 = vadd.f32 %v521, %v660
    %v662 = vpop.f32.mrf.mxu0
    %v663 = vadd.f32 %v523, %v662
    %664 = vmatmul.bf16.gmra.mxu0 %v588
    %v665 = vpop.f32.mrf.mxu0
    %v666 = vadd.f32 %v526, %v665
    %v667 = vpop.f32.mrf.mxu0
    %v668 = vadd.f32 %v528, %v667
    %669 = vmatmul.bf16.gmra.mxu0 %v591
    %v670 = vpop.f32.mrf.mxu0
    %v671 = vadd.f32 %v531, %v670
    %v672 = vpop.f32.mrf.mxu0
    %v673 = vadd.f32 %v533, %v672
    %674 = vmatmul.bf16.gmra.mxu0 %v594
    %v675 = vpop.f32.mrf.mxu0
    %v676 = vadd.f32 %v536, %v675
    %v677 = vpop.f32.mrf.mxu0
    %v678 = vadd.f32 %v538, %v677
    %679 = vmatmul.bf16.gmra.mxu0 %v597
    %v680 = vpop.f32.mrf.mxu0
    %v681 = vadd.f32 %v541, %v680
    %v682 = vpop.f32.mrf.mxu0
    %v683 = vadd.f32 %v543, %v682
    %684 = vmatmul.bf16.gmra.mxu0 %v600
    %v685 = vpop.f32.mrf.mxu0
    %v686 = vadd.f32 %v546, %v685
    %v687 = vpop.f32.mrf.mxu0
    %v688 = vadd.f32 %v548, %v687
    %689 = vmatmul.bf16.gmra.mxu0 %v603
    %v690 = vpop.f32.mrf.mxu0
    %v691 = vadd.f32 %v551, %v690
    %v692 = vpop.f32.mrf.mxu0
    %v693 = vadd.f32 %v553, %v692
    %694 = vmatmul.bf16.gmra.mxu0 %v606
    %v695 = vpop.f32.mrf.mxu0
    %v696 = vadd.f32 %v556, %v695
    %v697 = vpop.f32.mrf.mxu0
    %v698 = vadd.f32 %v558, %v697
    %699 = vdwg.mxu0
    %s700 = scalar_lea.vmem %s1, 4
    %v701 = vld [vmem:[%s700] sm:$0x3]
    %v703 = vsel %vm434, %v415, 0
    %v706 = vsel %vm434, %v416, 0
    %v709 = vsel %vm434, %v417, 0
    %v712 = vsel %vm434, %v418, 0
    %v715 = vsel %vm434, %v419, 0
    %v718 = vsel %vm434, %v420, 0
    %v721 = vsel %vm434, %v421, 0
    %v724 = vsel %vm434, %v422, 0
    %v727 = vsel %vm434, %v423, 0
    %v730 = vsel %vm434, %v424, 0
    %v733 = vsel %vm434, %v425, 0
    %v736 = vsel %vm434, %v426, 0
    %v739 = vsel %vm434, %v427, 0
    %v742 = vsel %vm434, %v428, 0
    %v745 = vsel %vm434, %v429, 0
    %v748 = vsel %vm434, %v430, 0
    %v751 = vsel %vm467, %v701, 0
    %753 = vmatpush.bf16.msra.mxu0 0
    %754 = vmatpush.bf16.msra.mxu0 0
    %755 = vmatpush.bf16.msra.mxu0 0
    %756 = vmatpush.bf16.msra.mxu0 0
    %757 = vmatpush.bf16.msra.mxu0 0
    %758 = vmatpush.bf16.msra.mxu0 0
    %759 = vmatpush.bf16.msra.mxu0 0
    %760 = vmatpush.bf16.msra.mxu0 %v751
    %761 = vmatmul.bf16.gmra.mxu0 %v703
    %v762 = vpop.f32.mrf.mxu0
    %v763 = vadd.f32 0.0, %v762
    %v764 = vpop.f32.mrf.mxu0
    %v765 = vadd.f32 0.0, %v764
    %766 = vmatmul.bf16.gmra.mxu0 %v706
    %v767 = vpop.f32.mrf.mxu0
    %v768 = vadd.f32 0.0, %v767
    %v769 = vpop.f32.mrf.mxu0
    %v770 = vadd.f32 0.0, %v769
    %771 = vmatmul.bf16.gmra.mxu0 %v709
    %v772 = vpop.f32.mrf.mxu0
    %v773 = vadd.f32 0.0, %v772
    %v774 = vpop.f32.mrf.mxu0
    %v775 = vadd.f32 0.0, %v774
    %776 = vmatmul.bf16.gmra.mxu0 %v712
    %v777 = vpop.f32.mrf.mxu0
    %v778 = vadd.f32 0.0, %v777
    %v779 = vpop.f32.mrf.mxu0
    %v780 = vadd.f32 0.0, %v779
    %781 = vmatmul.bf16.gmra.mxu0 %v715
    %v782 = vpop.f32.mrf.mxu0
    %v783 = vadd.f32 0.0, %v782
    %v784 = vpop.f32.mrf.mxu0
    %v785 = vadd.f32 0.0, %v784
    %786 = vmatmul.bf16.gmra.mxu0 %v718
    %v787 = vpop.f32.mrf.mxu0
    %v788 = vadd.f32 0.0, %v787
    %v789 = vpop.f32.mrf.mxu0
    %v790 = vadd.f32 0.0, %v789
    %791 = vmatmul.bf16.gmra.mxu0 %v721
    %v792 = vpop.f32.mrf.mxu0
    %v793 = vadd.f32 0.0, %v792
    %v794 = vpop.f32.mrf.mxu0
    %v795 = vadd.f32 0.0, %v794
    %796 = vmatmul.bf16.gmra.mxu0 %v724
    %v797 = vpop.f32.mrf.mxu0
    %v798 = vadd.f32 0.0, %v797
    %v799 = vpop.f32.mrf.mxu0
    %v800 = vadd.f32 0.0, %v799
    %801 = vmatmul.bf16.gmra.mxu0 %v727
    %v802 = vpop.f32.mrf.mxu0
    %v803 = vadd.f32 0.0, %v802
    %v804 = vpop.f32.mrf.mxu0
    %v805 = vadd.f32 0.0, %v804
    %806 = vmatmul.bf16.gmra.mxu0 %v730
    %v807 = vpop.f32.mrf.mxu0
    %v808 = vadd.f32 0.0, %v807
    %v809 = vpop.f32.mrf.mxu0
    %v810 = vadd.f32 0.0, %v809
    %811 = vmatmul.bf16.gmra.mxu0 %v733
    %v812 = vpop.f32.mrf.mxu0
    %v813 = vadd.f32 0.0, %v812
    %v814 = vpop.f32.mrf.mxu0
    %v815 = vadd.f32 0.0, %v814
    %816 = vmatmul.bf16.gmra.mxu0 %v736
    %v817 = vpop.f32.mrf.mxu0
    %v818 = vadd.f32 0.0, %v817
    %v819 = vpop.f32.mrf.mxu0
    %v820 = vadd.f32 0.0, %v819
    %821 = vmatmul.bf16.gmra.mxu0 %v739
    %v822 = vpop.f32.mrf.mxu0
    %v823 = vadd.f32 0.0, %v822
    %v824 = vpop.f32.mrf.mxu0
    %v825 = vadd.f32 0.0, %v824
    %826 = vmatmul.bf16.gmra.mxu0 %v742
    %v827 = vpop.f32.mrf.mxu0
    %v828 = vadd.f32 0.0, %v827
    %v829 = vpop.f32.mrf.mxu0
    %v830 = vadd.f32 0.0, %v829
    %831 = vmatmul.bf16.gmra.mxu0 %v745
    %v832 = vpop.f32.mrf.mxu0
    %v833 = vadd.f32 0.0, %v832
    %v834 = vpop.f32.mrf.mxu0
    %v835 = vadd.f32 0.0, %v834
    %836 = vmatmul.bf16.gmra.mxu0 %v748
    %v837 = vpop.f32.mrf.mxu0
    %v838 = vadd.f32 0.0, %v837
    %v839 = vpop.f32.mrf.mxu0
    %v840 = vadd.f32 0.0, %v839
    %841 = vdwg.mxu0
    %v842 = vadd.f32 %v621, %v763
    %v843 = vadd.f32 %v623, %v765
    %v844 = vadd.f32 %v626, %v768
    %v845 = vadd.f32 %v628, %v770
    %v846 = vadd.f32 %v631, %v773
    %v847 = vadd.f32 %v633, %v775
    %v848 = vadd.f32 %v636, %v778
    %v849 = vadd.f32 %v638, %v780
    %v850 = vadd.f32 %v641, %v783
    %v851 = vadd.f32 %v643, %v785
    %v852 = vadd.f32 %v646, %v788
    %v853 = vadd.f32 %v648, %v790
    %v854 = vadd.f32 %v651, %v793
    %v855 = vadd.f32 %v653, %v795
    %v856 = vadd.f32 %v656, %v798
    %v857 = vadd.f32 %v658, %v800
    %v858 = vadd.f32 %v661, %v803
    %v859 = vadd.f32 %v663, %v805
    %v860 = vadd.f32 %v666, %v808
    %v861 = vadd.f32 %v668, %v810
    %v862 = vadd.f32 %v671, %v813
    %v863 = vadd.f32 %v673, %v815
    %v864 = vadd.f32 %v676, %v818
    %v865 = vadd.f32 %v678, %v820
    %v866 = vadd.f32 %v681, %v823
    %v867 = vadd.f32 %v683, %v825
    %v868 = vadd.f32 %v686, %v828
    %v869 = vadd.f32 %v688, %v830
    %v870 = vadd.f32 %v691, %v833
    %v871 = vadd.f32 %v693, %v835
    %v872 = vadd.f32 %v696, %v838
    %v873 = vadd.f32 %v698, %v840
    %v874 = vld [vmem:[%s2] sm:$0x1]
    %v876 = vperm.slane %v874, 0
    %v878 = vadd.f32 %v842, %v876
    %v879 = vadd.f32 %v843, %v876
    %v880 = vadd.f32 %v844, %v876
    %v881 = vadd.f32 %v845, %v876
    %v882 = vadd.f32 %v846, %v876
    %v883 = vadd.f32 %v847, %v876
    %v884 = vadd.f32 %v848, %v876
    %v885 = vadd.f32 %v849, %v876
    %v886 = vadd.f32 %v850, %v876
    %v887 = vadd.f32 %v851, %v876
    %v888 = vadd.f32 %v852, %v876
    %v889 = vadd.f32 %v853, %v876
    %v890 = vadd.f32 %v854, %v876
    %v891 = vadd.f32 %v855, %v876
    %v892 = vadd.f32 %v856, %v876
    %v893 = vadd.f32 %v857, %v876
    %v894 = vadd.f32 %v858, %v876
    %v895 = vadd.f32 %v859, %v876
    %v896 = vadd.f32 %v860, %v876
    %v897 = vadd.f32 %v861, %v876
    %v898 = vadd.f32 %v862, %v876
    %v899 = vadd.f32 %v863, %v876
    %v900 = vadd.f32 %v864, %v876
    %v901 = vadd.f32 %v865, %v876
    %v902 = vadd.f32 %v866, %v876
    %v903 = vadd.f32 %v867, %v876
    %v904 = vadd.f32 %v868, %v876
    %v905 = vadd.f32 %v869, %v876
    %v906 = vadd.f32 %v870, %v876
    %v907 = vadd.f32 %v871, %v876
    %v908 = vadd.f32 %v872, %v876
    %v909 = vadd.f32 %v873, %v876
    %vm910 = vcmp.gt.f32.partialorder %v878, 0.0
    %vm911 = vcmp.gt.f32.partialorder %v879, 0.0
    %vm912 = vcmp.gt.f32.partialorder %v880, 0.0
    %vm913 = vcmp.gt.f32.partialorder %v881, 0.0
    %vm914 = vcmp.gt.f32.partialorder %v882, 0.0
    %vm915 = vcmp.gt.f32.partialorder %v883, 0.0
    %vm916 = vcmp.gt.f32.partialorder %v884, 0.0
    %vm917 = vcmp.gt.f32.partialorder %v885, 0.0
    %vm918 = vcmp.gt.f32.partialorder %v886, 0.0
    %vm919 = vcmp.gt.f32.partialorder %v887, 0.0
    %vm920 = vcmp.gt.f32.partialorder %v888, 0.0
    %vm921 = vcmp.gt.f32.partialorder %v889, 0.0
    %vm922 = vcmp.gt.f32.partialorder %v890, 0.0
    %vm923 = vcmp.gt.f32.partialorder %v891, 0.0
    %vm924 = vcmp.gt.f32.partialorder %v892, 0.0
    %vm925 = vcmp.gt.f32.partialorder %v893, 0.0
    %vm926 = vcmp.gt.f32.partialorder %v894, 0.0
    %vm927 = vcmp.gt.f32.partialorder %v895, 0.0
    %vm928 = vcmp.gt.f32.partialorder %v896, 0.0
    %vm929 = vcmp.gt.f32.partialorder %v897, 0.0
    %vm930 = vcmp.gt.f32.partialorder %v898, 0.0
    %vm931 = vcmp.gt.f32.partialorder %v899, 0.0
    %vm932 = vcmp.gt.f32.partialorder %v900, 0.0
    %vm933 = vcmp.gt.f32.partialorder %v901, 0.0
    %vm934 = vcmp.gt.f32.partialorder %v902, 0.0
    %vm935 = vcmp.gt.f32.partialorder %v903, 0.0
    %vm936 = vcmp.gt.f32.partialorder %v904, 0.0
    %vm937 = vcmp.gt.f32.partialorder %v905, 0.0
    %vm938 = vcmp.gt.f32.partialorder %v906, 0.0
    %vm939 = vcmp.gt.f32.partialorder %v907, 0.0
    %vm940 = vcmp.gt.f32.partialorder %v908, 0.0
    %vm941 = vcmp.gt.f32.partialorder %v909, 0.0
    %v942 = vmul.f32 %v878, 0.2
    %v943 = vmul.f32 %v879, 0.2
    %v944 = vmul.f32 %v880, 0.2
    %v945 = vmul.f32 %v881, 0.2
    %v946 = vmul.f32 %v882, 0.2
    %v947 = vmul.f32 %v883, 0.2
    %v948 = vmul.f32 %v884, 0.2
    %v949 = vmul.f32 %v885, 0.2
    %v950 = vmul.f32 %v886, 0.2
    %v951 = vmul.f32 %v887, 0.2
    %v952 = vmul.f32 %v888, 0.2
    %v953 = vmul.f32 %v889, 0.2
    %v954 = vmul.f32 %v890, 0.2
    %v955 = vmul.f32 %v891, 0.2
    %v956 = vmul.f32 %v892, 0.2
    %v957 = vmul.f32 %v893, 0.2
    %v958 = vmul.f32 %v894, 0.2
    %v959 = vmul.f32 %v895, 0.2
    %v960 = vmul.f32 %v896, 0.2
    %v961 = vmul.f32 %v897, 0.2
    %v962 = vmul.f32 %v898, 0.2
    %v963 = vmul.f32 %v899, 0.2
    %v964 = vmul.f32 %v900, 0.2
    %v965 = vmul.f32 %v901, 0.2
    %v966 = vmul.f32 %v902, 0.2
    %v967 = vmul.f32 %v903, 0.2
    %v968 = vmul.f32 %v904, 0.2
    %v969 = vmul.f32 %v905, 0.2
    %v970 = vmul.f32 %v906, 0.2
    %v971 = vmul.f32 %v907, 0.2
    %v972 = vmul.f32 %v908, 0.2
    %v973 = vmul.f32 %v909, 0.2
    %v974 = vsel %vm910, %v878, %v942
    %v975 = vsel %vm911, %v879, %v943
    %v976 = vsel %vm912, %v880, %v944
    %v977 = vsel %vm913, %v881, %v945
    %v978 = vsel %vm914, %v882, %v946
    %v979 = vsel %vm915, %v883, %v947
    %v980 = vsel %vm916, %v884, %v948
    %v981 = vsel %vm917, %v885, %v949
    %v982 = vsel %vm918, %v886, %v950
    %v983 = vsel %vm919, %v887, %v951
    %v984 = vsel %vm920, %v888, %v952
    %v985 = vsel %vm921, %v889, %v953
    %v986 = vsel %vm922, %v890, %v954
    %v987 = vsel %vm923, %v891, %v955
    %v988 = vsel %vm924, %v892, %v956
    %v989 = vsel %vm925, %v893, %v957
    %v990 = vsel %vm926, %v894, %v958
    %v991 = vsel %vm927, %v895, %v959
    %v992 = vsel %vm928, %v896, %v960
    %v993 = vsel %vm929, %v897, %v961
    %v994 = vsel %vm930, %v898, %v962
    %v995 = vsel %vm931, %v899, %v963
    %v996 = vsel %vm932, %v900, %v964
    %v997 = vsel %vm933, %v901, %v965
    %v998 = vsel %vm934, %v902, %v966
    %v999 = vsel %vm935, %v903, %v967
    %v1000 = vsel %vm936, %v904, %v968
    %v1001 = vsel %vm937, %v905, %v969
    %v1002 = vsel %vm938, %v906, %v970
    %v1003 = vsel %vm939, %v907, %v971
    %v1004 = vsel %vm940, %v908, %v972
    %v1005 = vsel %vm941, %v909, %v973
    %v1006 = vpack.c.bf16 %v974, %v974
    %v1007 = vpack.c.bf16 %v975, %v975
    %v1008 = vpack.c.bf16 %v976, %v976
    %v1009 = vpack.c.bf16 %v977, %v977
    %v1010 = vpack.c.bf16 %v978, %v978
    %v1011 = vpack.c.bf16 %v979, %v979
    %v1012 = vpack.c.bf16 %v980, %v980
    %v1013 = vpack.c.bf16 %v981, %v981
    %v1014 = vpack.c.bf16 %v982, %v982
    %v1015 = vpack.c.bf16 %v983, %v983
    %v1016 = vpack.c.bf16 %v984, %v984
    %v1017 = vpack.c.bf16 %v985, %v985
    %v1018 = vpack.c.bf16 %v986, %v986
    %v1019 = vpack.c.bf16 %v987, %v987
    %v1020 = vpack.c.bf16 %v988, %v988
    %v1021 = vpack.c.bf16 %v989, %v989
    %v1022 = vpack.c.bf16 %v990, %v990
    %v1023 = vpack.c.bf16 %v991, %v991
    %v1024 = vpack.c.bf16 %v992, %v992
    %v1025 = vpack.c.bf16 %v993, %v993
    %v1026 = vpack.c.bf16 %v994, %v994
    %v1027 = vpack.c.bf16 %v995, %v995
    %v1028 = vpack.c.bf16 %v996, %v996
    %v1029 = vpack.c.bf16 %v997, %v997
    %v1030 = vpack.c.bf16 %v998, %v998
    %v1031 = vpack.c.bf16 %v999, %v999
    %v1032 = vpack.c.bf16 %v1000, %v1000
    %v1033 = vpack.c.bf16 %v1001, %v1001
    %v1034 = vpack.c.bf16 %v1002, %v1002
    %v1035 = vpack.c.bf16 %v1003, %v1003
    %v1036 = vpack.c.bf16 %v1004, %v1004
    %v1037 = vpack.c.bf16 %v1005, %v1005
    %v1070 = vunpack.c.l.b16 %v1006
    %v1071 = vunpack.c.l.b16 %v1007
    %v1072 = vunpack.c.l.b16 %v1008
    %v1073 = vunpack.c.l.b16 %v1009
    %v1074 = vunpack.c.l.b16 %v1010
    %v1075 = vunpack.c.l.b16 %v1011
    %v1076 = vunpack.c.l.b16 %v1012
    %v1077 = vunpack.c.l.b16 %v1013
    %v1078 = vunpack.c.l.b16 %v1014
    %v1079 = vunpack.c.l.b16 %v1015
    %v1080 = vunpack.c.l.b16 %v1016
    %v1081 = vunpack.c.l.b16 %v1017
    %v1082 = vunpack.c.l.b16 %v1018
    %v1083 = vunpack.c.l.b16 %v1019
    %v1084 = vunpack.c.l.b16 %v1020
    %v1085 = vunpack.c.l.b16 %v1021
    %v1086 = vunpack.c.l.b16 %v1022
    %v1087 = vunpack.c.l.b16 %v1023
    %v1088 = vunpack.c.l.b16 %v1024
    %v1089 = vunpack.c.l.b16 %v1025
    %v1090 = vunpack.c.l.b16 %v1026
    %v1091 = vunpack.c.l.b16 %v1027
    %v1092 = vunpack.c.l.b16 %v1028
    %v1093 = vunpack.c.l.b16 %v1029
    %v1094 = vunpack.c.l.b16 %v1030
    %v1095 = vunpack.c.l.b16 %v1031
    %v1096 = vunpack.c.l.b16 %v1032
    %v1097 = vunpack.c.l.b16 %v1033
    %v1098 = vunpack.c.l.b16 %v1034
    %v1099 = vunpack.c.l.b16 %v1035
    %v1100 = vunpack.c.l.b16 %v1036
    %v1101 = vunpack.c.l.b16 %v1037
    %v1102 = vpack.c.b16 %v1071, %v1070
    %v1103 = vpack.c.b16 %v1073, %v1072
    %v1104 = vpack.c.b16 %v1075, %v1074
    %v1105 = vpack.c.b16 %v1077, %v1076
    %v1106 = vpack.c.b16 %v1079, %v1078
    %v1107 = vpack.c.b16 %v1081, %v1080
    %v1108 = vpack.c.b16 %v1083, %v1082
    %v1109 = vpack.c.b16 %v1085, %v1084
    %v1110 = vpack.c.b16 %v1087, %v1086
    %v1111 = vpack.c.b16 %v1089, %v1088
    %v1112 = vpack.c.b16 %v1091, %v1090
    %v1113 = vpack.c.b16 %v1093, %v1092
    %v1114 = vpack.c.b16 %v1095, %v1094
    %v1115 = vpack.c.b16 %v1097, %v1096
    %v1116 = vpack.c.b16 %v1099, %v1098
    %v1117 = vpack.c.b16 %v1101, %v1100
    %v1119 = vshrl.u32 %v1102, 16
    %v1121 = vrot.slane %v1119, 7
    %v1122 = vshll.u32 %v1102, 16
    %v1124 = vor.u32 %v1121, %v1122
    %v1126 = vshrl.u32 %v1103, 16
    %v1128 = vrot.slane %v1126, 7
    %v1129 = vshll.u32 %v1103, 16
    %v1131 = vor.u32 %v1128, %v1129
    %v1133 = vshrl.u32 %v1104, 16
    %v1135 = vrot.slane %v1133, 7
    %v1136 = vshll.u32 %v1104, 16
    %v1138 = vor.u32 %v1135, %v1136
    %v1140 = vshrl.u32 %v1105, 16
    %v1142 = vrot.slane %v1140, 7
    %v1143 = vshll.u32 %v1105, 16
    %v1145 = vor.u32 %v1142, %v1143
    %v1147 = vshrl.u32 %v1106, 16
    %v1149 = vrot.slane %v1147, 7
    %v1150 = vshll.u32 %v1106, 16
    %v1152 = vor.u32 %v1149, %v1150
    %v1154 = vshrl.u32 %v1107, 16
    %v1156 = vrot.slane %v1154, 7
    %v1157 = vshll.u32 %v1107, 16
    %v1159 = vor.u32 %v1156, %v1157
    %v1161 = vshrl.u32 %v1108, 16
    %v1163 = vrot.slane %v1161, 7
    %v1164 = vshll.u32 %v1108, 16
    %v1166 = vor.u32 %v1163, %v1164
    %v1168 = vshrl.u32 %v1109, 16
    %v1170 = vrot.slane %v1168, 7
    %v1171 = vshll.u32 %v1109, 16
    %v1173 = vor.u32 %v1170, %v1171
    %v1175 = vshrl.u32 %v1110, 16
    %v1177 = vrot.slane %v1175, 7
    %v1178 = vshll.u32 %v1110, 16
    %v1180 = vor.u32 %v1177, %v1178
    %v1182 = vshrl.u32 %v1111, 16
    %v1184 = vrot.slane %v1182, 7
    %v1185 = vshll.u32 %v1111, 16
    %v1187 = vor.u32 %v1184, %v1185
    %v1189 = vshrl.u32 %v1112, 16
    %v1191 = vrot.slane %v1189, 7
    %v1192 = vshll.u32 %v1112, 16
    %v1194 = vor.u32 %v1191, %v1192
    %v1196 = vshrl.u32 %v1113, 16
    %v1198 = vrot.slane %v1196, 7
    %v1199 = vshll.u32 %v1113, 16
    %v1201 = vor.u32 %v1198, %v1199
    %v1203 = vshrl.u32 %v1114, 16
    %v1205 = vrot.slane %v1203, 7
    %v1206 = vshll.u32 %v1114, 16
    %v1208 = vor.u32 %v1205, %v1206
    %v1210 = vshrl.u32 %v1115, 16
    %v1212 = vrot.slane %v1210, 7
    %v1213 = vshll.u32 %v1115, 16
    %v1215 = vor.u32 %v1212, %v1213
    %v1217 = vshrl.u32 %v1116, 16
    %v1219 = vrot.slane %v1217, 7
    %v1220 = vshll.u32 %v1116, 16
    %v1222 = vor.u32 %v1219, %v1220
    %v1224 = vshrl.u32 %v1117, 16
    %v1226 = vrot.slane %v1224, 7
    %v1227 = vshll.u32 %v1117, 16
    %v1229 = vor.u32 %v1226, %v1227
    %v1246 = vsel %vm347, 0, %v1124
    %v1247 = vsel %vm347, 0, %v1131
    %v1248 = vsel %vm347, 0, %v1138
    %v1249 = vsel %vm347, 0, %v1145
    %v1250 = vsel %vm347, 0, %v1152
    %v1251 = vsel %vm347, 0, %v1159
    %v1252 = vsel %vm347, 0, %v1166
    %v1253 = vsel %vm347, 0, %v1173
    %v1254 = vsel %vm347, 0, %v1180
    %v1255 = vsel %vm347, 0, %v1187
    %v1256 = vsel %vm347, 0, %v1194
    %v1257 = vsel %vm347, 0, %v1201
    %v1258 = vsel %vm347, 0, %v1208
    %v1259 = vsel %vm347, 0, %v1215
    %v1260 = vsel %vm347, 0, %v1222
    %v1261 = vsel %vm347, 0, %v1229
    %v1262 = vrot.slane %v1122, 1
    %v1263 = vor.u32 %v1119, %v1262
    %v1264 = vrot.slane %v1129, 1
    %v1265 = vor.u32 %v1126, %v1264
    %v1266 = vrot.slane %v1136, 1
    %v1267 = vor.u32 %v1133, %v1266
    %v1268 = vrot.slane %v1143, 1
    %v1269 = vor.u32 %v1140, %v1268
    %v1270 = vrot.slane %v1150, 1
    %v1271 = vor.u32 %v1147, %v1270
    %v1272 = vrot.slane %v1157, 1
    %v1273 = vor.u32 %v1154, %v1272
    %v1274 = vrot.slane %v1164, 1
    %v1275 = vor.u32 %v1161, %v1274
    %v1276 = vrot.slane %v1171, 1
    %v1277 = vor.u32 %v1168, %v1276
    %v1278 = vrot.slane %v1178, 1
    %v1279 = vor.u32 %v1175, %v1278
    %v1280 = vrot.slane %v1185, 1
    %v1281 = vor.u32 %v1182, %v1280
    %v1282 = vrot.slane %v1192, 1
    %v1283 = vor.u32 %v1189, %v1282
    %v1284 = vrot.slane %v1199, 1
    %v1285 = vor.u32 %v1196, %v1284
    %v1286 = vrot.slane %v1206, 1
    %v1287 = vor.u32 %v1203, %v1286
    %v1288 = vrot.slane %v1213, 1
    %v1289 = vor.u32 %v1210, %v1288
    %v1290 = vrot.slane %v1220, 1
    %v1291 = vor.u32 %v1217, %v1290
    %v1292 = vrot.slane %v1227, 1
    %v1293 = vor.u32 %v1224, %v1292
    %v1310 = vsel %vm414, %v1263, 0
    %v1311 = vsel %vm414, %v1265, 0
    %v1312 = vsel %vm414, %v1267, 0
    %v1313 = vsel %vm414, %v1269, 0
    %v1314 = vsel %vm414, %v1271, 0
    %v1315 = vsel %vm414, %v1273, 0
    %v1316 = vsel %vm414, %v1275, 0
    %v1317 = vsel %vm414, %v1277, 0
    %v1318 = vsel %vm414, %v1279, 0
    %v1319 = vsel %vm414, %v1281, 0
    %v1320 = vsel %vm414, %v1283, 0
    %v1321 = vsel %vm414, %v1285, 0
    %v1322 = vsel %vm414, %v1287, 0
    %v1323 = vsel %vm414, %v1289, 0
    %v1324 = vsel %vm414, %v1291, 0
    %v1325 = vsel %vm414, %v1293, 0
    %v1326 = vld [vmem:[%s3] sm:$0xf]
    %v1327 = vld [vmem:[%s3 + $0x4] sm:$0xf]
    %v1328 = vld [vmem:[%s3 + $0x8] sm:$0xf]
    %v1329 = vld [vmem:[%s3 + $0xc] sm:$0xf]
    %v1330 = vld [vmem:[%s3 + $0x10] sm:$0xf]
    %v1331 = vld [vmem:[%s3 + $0x14] sm:$0xf]
    %v1332 = vld [vmem:[%s3 + $0x18] sm:$0xf]
    %v1333 = vld [vmem:[%s3 + $0x1c] sm:$0xf]
    %s1334 = scalar_lea.vmem %s3, 32
    %v1335 = vld [vmem:[%s1334] sm:$0xf]
    %v1336 = vld [vmem:[%s1334 + $0x4] sm:$0xf]
    %v1337 = vld [vmem:[%s1334 + $0x8] sm:$0xf]
    %v1338 = vld [vmem:[%s1334 + $0xc] sm:$0xf]
    %v1339 = vld [vmem:[%s1334 + $0x10] sm:$0xf]
    %v1340 = vld [vmem:[%s1334 + $0x14] sm:$0xf]
    %v1341 = vld [vmem:[%s1334 + $0x18] sm:$0xf]
    %v1342 = vld [vmem:[%s1334 + $0x1c] sm:$0xf]
    %v1351 = vunpack.c.l.b16 %v1335
    %v1352 = vunpack.c.l.b16 %v1336
    %v1353 = vunpack.c.l.b16 %v1337
    %v1354 = vunpack.c.l.b16 %v1338
    %v1355 = vunpack.c.l.b16 %v1339
    %v1356 = vunpack.c.l.b16 %v1340
    %v1357 = vunpack.c.l.b16 %v1341
    %v1358 = vunpack.c.l.b16 %v1342
    %v1359 = vpack.c.b16 %v1352, %v1351
    %v1360 = vpack.c.b16 %v1354, %v1353
    %v1361 = vpack.c.b16 %v1356, %v1355
    %v1362 = vpack.c.b16 %v1358, %v1357
    %vm1367 = vcmask 523264
    %v1368 = vsel %vm1367, %v1102, 0
    %v1370 = vsel %vm1367, %v1103, 0
    %v1372 = vsel %vm1367, %v1104, 0
    %v1374 = vsel %vm1367, %v1105, 0
    %v1376 = vsel %vm1367, %v1106, 0
    %v1378 = vsel %vm1367, %v1107, 0
    %v1380 = vsel %vm1367, %v1108, 0
    %v1382 = vsel %vm1367, %v1109, 0
    %v1384 = vsel %vm1367, %v1110, 0
    %v1386 = vsel %vm1367, %v1111, 0
    %v1388 = vsel %vm1367, %v1112, 0
    %v1390 = vsel %vm1367, %v1113, 0
    %v1392 = vsel %vm1367, %v1114, 0
    %v1394 = vsel %vm1367, %v1115, 0
    %v1396 = vsel %vm1367, %v1116, 0
    %v1398 = vsel %vm1367, %v1117, 0
    %1400 = vmatpush.bf16.msra.mxu0 0
    %1401 = vmatpush.bf16.msra.mxu0 0
    %1402 = vmatpush.bf16.msra.mxu0 0
    %1403 = vmatpush.bf16.msra.mxu0 0
    %1404 = vmatpush.bf16.msra.mxu0 %v1362
    %1405 = vmatpush.bf16.msra.mxu0 %v1361
    %1406 = vmatpush.bf16.msra.mxu0 %v1360
    %1407 = vmatpush.bf16.msra.mxu0 %v1359
    %1408 = vmatmul.bf16.gmra.mxu0 %v1368
    %v1409 = vpop.f32.mrf.mxu0
    %v1410 = vadd.f32 0.0, %v1409
    %v1411 = vpop.f32.mrf.mxu0
    %v1412 = vadd.f32 0.0, %v1411
    %1413 = vmatmul.bf16.gmra.mxu0 %v1370
    %v1414 = vpop.f32.mrf.mxu0
    %v1415 = vadd.f32 0.0, %v1414
    %v1416 = vpop.f32.mrf.mxu0
    %v1417 = vadd.f32 0.0, %v1416
    %1418 = vmatmul.bf16.gmra.mxu0 %v1372
    %v1419 = vpop.f32.mrf.mxu0
    %v1420 = vadd.f32 0.0, %v1419
    %v1421 = vpop.f32.mrf.mxu0
    %v1422 = vadd.f32 0.0, %v1421
    %1423 = vmatmul.bf16.gmra.mxu0 %v1374
    %v1424 = vpop.f32.mrf.mxu0
    %v1425 = vadd.f32 0.0, %v1424
    %v1426 = vpop.f32.mrf.mxu0
    %v1427 = vadd.f32 0.0, %v1426
    %1428 = vmatmul.bf16.gmra.mxu0 %v1376
    %v1429 = vpop.f32.mrf.mxu0
    %v1430 = vadd.f32 0.0, %v1429
    %v1431 = vpop.f32.mrf.mxu0
    %v1432 = vadd.f32 0.0, %v1431
    %1433 = vmatmul.bf16.gmra.mxu0 %v1378
    %v1434 = vpop.f32.mrf.mxu0
    %v1435 = vadd.f32 0.0, %v1434
    %v1436 = vpop.f32.mrf.mxu0
    %v1437 = vadd.f32 0.0, %v1436
    %1438 = vmatmul.bf16.gmra.mxu0 %v1380
    %v1439 = vpop.f32.mrf.mxu0
    %v1440 = vadd.f32 0.0, %v1439
    %v1441 = vpop.f32.mrf.mxu0
    %v1442 = vadd.f32 0.0, %v1441
    %1443 = vmatmul.bf16.gmra.mxu0 %v1382
    %v1444 = vpop.f32.mrf.mxu0
    %v1445 = vadd.f32 0.0, %v1444
    %v1446 = vpop.f32.mrf.mxu0
    %v1447 = vadd.f32 0.0, %v1446
    %1448 = vmatmul.bf16.gmra.mxu0 %v1384
    %v1449 = vpop.f32.mrf.mxu0
    %v1450 = vadd.f32 0.0, %v1449
    %v1451 = vpop.f32.mrf.mxu0
    %v1452 = vadd.f32 0.0, %v1451
    %1453 = vmatmul.bf16.gmra.mxu0 %v1386
    %v1454 = vpop.f32.mrf.mxu0
    %v1455 = vadd.f32 0.0, %v1454
    %v1456 = vpop.f32.mrf.mxu0
    %v1457 = vadd.f32 0.0, %v1456
    %1458 = vmatmul.bf16.gmra.mxu0 %v1388
    %v1459 = vpop.f32.mrf.mxu0
    %v1460 = vadd.f32 0.0, %v1459
    %v1461 = vpop.f32.mrf.mxu0
    %v1462 = vadd.f32 0.0, %v1461
    %1463 = vmatmul.bf16.gmra.mxu0 %v1390
    %v1464 = vpop.f32.mrf.mxu0
    %v1465 = vadd.f32 0.0, %v1464
    %v1466 = vpop.f32.mrf.mxu0
    %v1467 = vadd.f32 0.0, %v1466
    %1468 = vmatmul.bf16.gmra.mxu0 %v1392
    %v1469 = vpop.f32.mrf.mxu0
    %v1470 = vadd.f32 0.0, %v1469
    %v1471 = vpop.f32.mrf.mxu0
    %v1472 = vadd.f32 0.0, %v1471
    %1473 = vmatmul.bf16.gmra.mxu0 %v1394
    %v1474 = vpop.f32.mrf.mxu0
    %v1475 = vadd.f32 0.0, %v1474
    %v1476 = vpop.f32.mrf.mxu0
    %v1477 = vadd.f32 0.0, %v1476
    %1478 = vmatmul.bf16.gmra.mxu0 %v1396
    %v1479 = vpop.f32.mrf.mxu0
    %v1480 = vadd.f32 0.0, %v1479
    %v1481 = vpop.f32.mrf.mxu0
    %v1482 = vadd.f32 0.0, %v1481
    %1483 = vmatmul.bf16.gmra.mxu0 %v1398
    %v1484 = vpop.f32.mrf.mxu0
    %v1485 = vadd.f32 0.0, %v1484
    %v1486 = vpop.f32.mrf.mxu0
    %v1487 = vadd.f32 0.0, %v1486
    %1488 = vdwg.mxu0
    %v1497 = vunpack.c.l.b16 %v1326
    %v1498 = vunpack.c.l.b16 %v1327
    %v1499 = vunpack.c.l.b16 %v1328
    %v1500 = vunpack.c.l.b16 %v1329
    %v1501 = vunpack.c.l.b16 %v1330
    %v1502 = vunpack.c.l.b16 %v1331
    %v1503 = vunpack.c.l.b16 %v1332
    %v1504 = vunpack.c.l.b16 %v1333
    %v1505 = vpack.c.b16 %v1498, %v1497
    %v1506 = vpack.c.b16 %v1500, %v1499
    %v1507 = vpack.c.b16 %v1502, %v1501
    %v1508 = vpack.c.b16 %v1504, %v1503
    %v1514 = vsel %vm1367, %v1246, 0
    %v1517 = vsel %vm1367, %v1247, 0
    %v1520 = vsel %vm1367, %v1248, 0
    %v1523 = vsel %vm1367, %v1249, 0
    %v1526 = vsel %vm1367, %v1250, 0
    %v1529 = vsel %vm1367, %v1251, 0
    %v1532 = vsel %vm1367, %v1252, 0
    %v1535 = vsel %vm1367, %v1253, 0
    %v1538 = vsel %vm1367, %v1254, 0
    %v1541 = vsel %vm1367, %v1255, 0
    %v1544 = vsel %vm1367, %v1256, 0
    %v1547 = vsel %vm1367, %v1257, 0
    %v1550 = vsel %vm1367, %v1258, 0
    %v1553 = vsel %vm1367, %v1259, 0
    %v1556 = vsel %vm1367, %v1260, 0
    %v1559 = vsel %vm1367, %v1261, 0
    %1561 = vmatpush.bf16.msra.mxu0 0
    %1562 = vmatpush.bf16.msra.mxu0 0
    %1563 = vmatpush.bf16.msra.mxu0 0
    %1564 = vmatpush.bf16.msra.mxu0 0
    %1565 = vmatpush.bf16.msra.mxu0 %v1508
    %1566 = vmatpush.bf16.msra.mxu0 %v1507
    %1567 = vmatpush.bf16.msra.mxu0 %v1506
    %1568 = vmatpush.bf16.msra.mxu0 %v1505
    %1569 = vmatmul.bf16.gmra.mxu0 %v1514
    %v1570 = vpop.f32.mrf.mxu0
    %v1571 = vadd.f32 %v1410, %v1570
    %v1572 = vpop.f32.mrf.mxu0
    %v1573 = vadd.f32 %v1412, %v1572
    %1574 = vmatmul.bf16.gmra.mxu0 %v1517
    %v1575 = vpop.f32.mrf.mxu0
    %v1576 = vadd.f32 %v1415, %v1575
    %v1577 = vpop.f32.mrf.mxu0
    %v1578 = vadd.f32 %v1417, %v1577
    %1579 = vmatmul.bf16.gmra.mxu0 %v1520
    %v1580 = vpop.f32.mrf.mxu0
    %v1581 = vadd.f32 %v1420, %v1580
    %v1582 = vpop.f32.mrf.mxu0
    %v1583 = vadd.f32 %v1422, %v1582
    %1584 = vmatmul.bf16.gmra.mxu0 %v1523
    %v1585 = vpop.f32.mrf.mxu0
    %v1586 = vadd.f32 %v1425, %v1585
    %v1587 = vpop.f32.mrf.mxu0
    %v1588 = vadd.f32 %v1427, %v1587
    %1589 = vmatmul.bf16.gmra.mxu0 %v1526
    %v1590 = vpop.f32.mrf.mxu0
    %v1591 = vadd.f32 %v1430, %v1590
    %v1592 = vpop.f32.mrf.mxu0
    %v1593 = vadd.f32 %v1432, %v1592
    %1594 = vmatmul.bf16.gmra.mxu0 %v1529
    %v1595 = vpop.f32.mrf.mxu0
    %v1596 = vadd.f32 %v1435, %v1595
    %v1597 = vpop.f32.mrf.mxu0
    %v1598 = vadd.f32 %v1437, %v1597
    %1599 = vmatmul.bf16.gmra.mxu0 %v1532
    %v1600 = vpop.f32.mrf.mxu0
    %v1601 = vadd.f32 %v1440, %v1600
    %v1602 = vpop.f32.mrf.mxu0
    %v1603 = vadd.f32 %v1442, %v1602
    %1604 = vmatmul.bf16.gmra.mxu0 %v1535
    %v1605 = vpop.f32.mrf.mxu0
    %v1606 = vadd.f32 %v1445, %v1605
    %v1607 = vpop.f32.mrf.mxu0
    %v1608 = vadd.f32 %v1447, %v1607
    %1609 = vmatmul.bf16.gmra.mxu0 %v1538
    %v1610 = vpop.f32.mrf.mxu0
    %v1611 = vadd.f32 %v1450, %v1610
    %v1612 = vpop.f32.mrf.mxu0
    %v1613 = vadd.f32 %v1452, %v1612
    %1614 = vmatmul.bf16.gmra.mxu0 %v1541
    %v1615 = vpop.f32.mrf.mxu0
    %v1616 = vadd.f32 %v1455, %v1615
    %v1617 = vpop.f32.mrf.mxu0
    %v1618 = vadd.f32 %v1457, %v1617
    %1619 = vmatmul.bf16.gmra.mxu0 %v1544
    %v1620 = vpop.f32.mrf.mxu0
    %v1621 = vadd.f32 %v1460, %v1620
    %v1622 = vpop.f32.mrf.mxu0
    %v1623 = vadd.f32 %v1462, %v1622
    %1624 = vmatmul.bf16.gmra.mxu0 %v1547
    %v1625 = vpop.f32.mrf.mxu0
    %v1626 = vadd.f32 %v1465, %v1625
    %v1627 = vpop.f32.mrf.mxu0
    %v1628 = vadd.f32 %v1467, %v1627
    %1629 = vmatmul.bf16.gmra.mxu0 %v1550
    %v1630 = vpop.f32.mrf.mxu0
    %v1631 = vadd.f32 %v1470, %v1630
    %v1632 = vpop.f32.mrf.mxu0
    %v1633 = vadd.f32 %v1472, %v1632
    %1634 = vmatmul.bf16.gmra.mxu0 %v1553
    %v1635 = vpop.f32.mrf.mxu0
    %v1636 = vadd.f32 %v1475, %v1635
    %v1637 = vpop.f32.mrf.mxu0
    %v1638 = vadd.f32 %v1477, %v1637
    %1639 = vmatmul.bf16.gmra.mxu0 %v1556
    %v1640 = vpop.f32.mrf.mxu0
    %v1641 = vadd.f32 %v1480, %v1640
    %v1642 = vpop.f32.mrf.mxu0
    %v1643 = vadd.f32 %v1482, %v1642
    %1644 = vmatmul.bf16.gmra.mxu0 %v1559
    %v1645 = vpop.f32.mrf.mxu0
    %v1646 = vadd.f32 %v1485, %v1645
    %v1647 = vpop.f32.mrf.mxu0
    %v1648 = vadd.f32 %v1487, %v1647
    %1649 = vdwg.mxu0
    %s1650 = scalar_lea.vmem %s3, 64
    %v1651 = vld [vmem:[%s1650] sm:$0xf]
    %v1652 = vld [vmem:[%s1650 + $0x4] sm:$0xf]
    %v1653 = vld [vmem:[%s1650 + $0x8] sm:$0xf]
    %v1654 = vld [vmem:[%s1650 + $0xc] sm:$0xf]
    %v1655 = vld [vmem:[%s1650 + $0x10] sm:$0xf]
    %v1656 = vld [vmem:[%s1650 + $0x14] sm:$0xf]
    %v1657 = vld [vmem:[%s1650 + $0x18] sm:$0xf]
    %v1658 = vld [vmem:[%s1650 + $0x1c] sm:$0xf]
    %v1667 = vunpack.c.l.b16 %v1651
    %v1668 = vunpack.c.l.b16 %v1652
    %v1669 = vunpack.c.l.b16 %v1653
    %v1670 = vunpack.c.l.b16 %v1654
    %v1671 = vunpack.c.l.b16 %v1655
    %v1672 = vunpack.c.l.b16 %v1656
    %v1673 = vunpack.c.l.b16 %v1657
    %v1674 = vunpack.c.l.b16 %v1658
    %v1675 = vpack.c.b16 %v1668, %v1667
    %v1676 = vpack.c.b16 %v1670, %v1669
    %v1677 = vpack.c.b16 %v1672, %v1671
    %v1678 = vpack.c.b16 %v1674, %v1673
    %v1684 = vsel %vm1367, %v1310, 0
    %v1687 = vsel %vm1367, %v1311, 0
    %v1690 = vsel %vm1367, %v1312, 0
    %v1693 = vsel %vm1367, %v1313, 0
    %v1696 = vsel %vm1367, %v1314, 0
    %v1699 = vsel %vm1367, %v1315, 0
    %v1702 = vsel %vm1367, %v1316, 0
    %v1705 = vsel %vm1367, %v1317, 0
    %v1708 = vsel %vm1367, %v1318, 0
    %v1711 = vsel %vm1367, %v1319, 0
    %v1714 = vsel %vm1367, %v1320, 0
    %v1717 = vsel %vm1367, %v1321, 0
    %v1720 = vsel %vm1367, %v1322, 0
    %v1723 = vsel %vm1367, %v1323, 0
    %v1726 = vsel %vm1367, %v1324, 0
    %v1729 = vsel %vm1367, %v1325, 0
    %1731 = vmatpush.bf16.msra.mxu0 0
    %1732 = vmatpush.bf16.msra.mxu0 0
    %1733 = vmatpush.bf16.msra.mxu0 0
    %1734 = vmatpush.bf16.msra.mxu0 0
    %1735 = vmatpush.bf16.msra.mxu0 %v1678
    %1736 = vmatpush.bf16.msra.mxu0 %v1677
    %1737 = vmatpush.bf16.msra.mxu0 %v1676
    %1738 = vmatpush.bf16.msra.mxu0 %v1675
    %1739 = vmatmul.bf16.gmra.mxu0 %v1684
    %v1740 = vpop.f32.mrf.mxu0
    %v1741 = vadd.f32 0.0, %v1740
    %v1742 = vpop.f32.mrf.mxu0
    %v1743 = vadd.f32 0.0, %v1742
    %1744 = vmatmul.bf16.gmra.mxu0 %v1687
    %v1745 = vpop.f32.mrf.mxu0
    %v1746 = vadd.f32 0.0, %v1745
    %v1747 = vpop.f32.mrf.mxu0
    %v1748 = vadd.f32 0.0, %v1747
    %1749 = vmatmul.bf16.gmra.mxu0 %v1690
    %v1750 = vpop.f32.mrf.mxu0
    %v1751 = vadd.f32 0.0, %v1750
    %v1752 = vpop.f32.mrf.mxu0
    %v1753 = vadd.f32 0.0, %v1752
    %1754 = vmatmul.bf16.gmra.mxu0 %v1693
    %v1755 = vpop.f32.mrf.mxu0
    %v1756 = vadd.f32 0.0, %v1755
    %v1757 = vpop.f32.mrf.mxu0
    %v1758 = vadd.f32 0.0, %v1757
    %1759 = vmatmul.bf16.gmra.mxu0 %v1696
    %v1760 = vpop.f32.mrf.mxu0
    %v1761 = vadd.f32 0.0, %v1760
    %v1762 = vpop.f32.mrf.mxu0
    %v1763 = vadd.f32 0.0, %v1762
    %1764 = vmatmul.bf16.gmra.mxu0 %v1699
    %v1765 = vpop.f32.mrf.mxu0
    %v1766 = vadd.f32 0.0, %v1765
    %v1767 = vpop.f32.mrf.mxu0
    %v1768 = vadd.f32 0.0, %v1767
    %1769 = vmatmul.bf16.gmra.mxu0 %v1702
    %v1770 = vpop.f32.mrf.mxu0
    %v1771 = vadd.f32 0.0, %v1770
    %v1772 = vpop.f32.mrf.mxu0
    %v1773 = vadd.f32 0.0, %v1772
    %1774 = vmatmul.bf16.gmra.mxu0 %v1705
    %v1775 = vpop.f32.mrf.mxu0
    %v1776 = vadd.f32 0.0, %v1775
    %v1777 = vpop.f32.mrf.mxu0
    %v1778 = vadd.f32 0.0, %v1777
    %1779 = vmatmul.bf16.gmra.mxu0 %v1708
    %v1780 = vpop.f32.mrf.mxu0
    %v1781 = vadd.f32 0.0, %v1780
    %v1782 = vpop.f32.mrf.mxu0
    %v1783 = vadd.f32 0.0, %v1782
    %1784 = vmatmul.bf16.gmra.mxu0 %v1711
    %v1785 = vpop.f32.mrf.mxu0
    %v1786 = vadd.f32 0.0, %v1785
    %v1787 = vpop.f32.mrf.mxu0
    %v1788 = vadd.f32 0.0, %v1787
    %1789 = vmatmul.bf16.gmra.mxu0 %v1714
    %v1790 = vpop.f32.mrf.mxu0
    %v1791 = vadd.f32 0.0, %v1790
    %v1792 = vpop.f32.mrf.mxu0
    %v1793 = vadd.f32 0.0, %v1792
    %1794 = vmatmul.bf16.gmra.mxu0 %v1717
    %v1795 = vpop.f32.mrf.mxu0
    %v1796 = vadd.f32 0.0, %v1795
    %v1797 = vpop.f32.mrf.mxu0
    %v1798 = vadd.f32 0.0, %v1797
    %1799 = vmatmul.bf16.gmra.mxu0 %v1720
    %v1800 = vpop.f32.mrf.mxu0
    %v1801 = vadd.f32 0.0, %v1800
    %v1802 = vpop.f32.mrf.mxu0
    %v1803 = vadd.f32 0.0, %v1802
    %1804 = vmatmul.bf16.gmra.mxu0 %v1723
    %v1805 = vpop.f32.mrf.mxu0
    %v1806 = vadd.f32 0.0, %v1805
    %v1807 = vpop.f32.mrf.mxu0
    %v1808 = vadd.f32 0.0, %v1807
    %1809 = vmatmul.bf16.gmra.mxu0 %v1726
    %v1810 = vpop.f32.mrf.mxu0
    %v1811 = vadd.f32 0.0, %v1810
    %v1812 = vpop.f32.mrf.mxu0
    %v1813 = vadd.f32 0.0, %v1812
    %1814 = vmatmul.bf16.gmra.mxu0 %v1729
    %v1815 = vpop.f32.mrf.mxu0
    %v1816 = vadd.f32 0.0, %v1815
    %v1817 = vpop.f32.mrf.mxu0
    %v1818 = vadd.f32 0.0, %v1817
    %1819 = vdwg.mxu0
    %v1820 = vadd.f32 %v1571, %v1741
    %v1821 = vadd.f32 %v1573, %v1743
    %v1822 = vadd.f32 %v1576, %v1746
    %v1823 = vadd.f32 %v1578, %v1748
    %v1824 = vadd.f32 %v1581, %v1751
    %v1825 = vadd.f32 %v1583, %v1753
    %v1826 = vadd.f32 %v1586, %v1756
    %v1827 = vadd.f32 %v1588, %v1758
    %v1828 = vadd.f32 %v1591, %v1761
    %v1829 = vadd.f32 %v1593, %v1763
    %v1830 = vadd.f32 %v1596, %v1766
    %v1831 = vadd.f32 %v1598, %v1768
    %v1832 = vadd.f32 %v1601, %v1771
    %v1833 = vadd.f32 %v1603, %v1773
    %v1834 = vadd.f32 %v1606, %v1776
    %v1835 = vadd.f32 %v1608, %v1778
    %v1836 = vadd.f32 %v1611, %v1781
    %v1837 = vadd.f32 %v1613, %v1783
    %v1838 = vadd.f32 %v1616, %v1786
    %v1839 = vadd.f32 %v1618, %v1788
    %v1840 = vadd.f32 %v1621, %v1791
    %v1841 = vadd.f32 %v1623, %v1793
    %v1842 = vadd.f32 %v1626, %v1796
    %v1843 = vadd.f32 %v1628, %v1798
    %v1844 = vadd.f32 %v1631, %v1801
    %v1845 = vadd.f32 %v1633, %v1803
    %v1846 = vadd.f32 %v1636, %v1806
    %v1847 = vadd.f32 %v1638, %v1808
    %v1848 = vadd.f32 %v1641, %v1811
    %v1849 = vadd.f32 %v1643, %v1813
    %v1850 = vadd.f32 %v1646, %v1816
    %v1851 = vadd.f32 %v1648, %v1818
    %v1852 = vld [vmem:[%s4] sm:$0x1]
    %v1854 = vperm.slane %v1852, 0
    %v1856 = vadd.f32 %v1820, %v1854
    %v1857 = vadd.f32 %v1821, %v1854
    %v1858 = vadd.f32 %v1822, %v1854
    %v1859 = vadd.f32 %v1823, %v1854
    %v1860 = vadd.f32 %v1824, %v1854
    %v1861 = vadd.f32 %v1825, %v1854
    %v1862 = vadd.f32 %v1826, %v1854
    %v1863 = vadd.f32 %v1827, %v1854
    %v1864 = vadd.f32 %v1828, %v1854
    %v1865 = vadd.f32 %v1829, %v1854
    %v1866 = vadd.f32 %v1830, %v1854
    %v1867 = vadd.f32 %v1831, %v1854
    %v1868 = vadd.f32 %v1832, %v1854
    %v1869 = vadd.f32 %v1833, %v1854
    %v1870 = vadd.f32 %v1834, %v1854
    %v1871 = vadd.f32 %v1835, %v1854
    %v1872 = vadd.f32 %v1836, %v1854
    %v1873 = vadd.f32 %v1837, %v1854
    %v1874 = vadd.f32 %v1838, %v1854
    %v1875 = vadd.f32 %v1839, %v1854
    %v1876 = vadd.f32 %v1840, %v1854
    %v1877 = vadd.f32 %v1841, %v1854
    %v1878 = vadd.f32 %v1842, %v1854
    %v1879 = vadd.f32 %v1843, %v1854
    %v1880 = vadd.f32 %v1844, %v1854
    %v1881 = vadd.f32 %v1845, %v1854
    %v1882 = vadd.f32 %v1846, %v1854
    %v1883 = vadd.f32 %v1847, %v1854
    %v1884 = vadd.f32 %v1848, %v1854
    %v1885 = vadd.f32 %v1849, %v1854
    %v1886 = vadd.f32 %v1850, %v1854
    %v1887 = vadd.f32 %v1851, %v1854
    %vm1888 = vcmp.gt.f32.partialorder %v1856, 0.0
    %vm1889 = vcmp.gt.f32.partialorder %v1857, 0.0
    %vm1890 = vcmp.gt.f32.partialorder %v1858, 0.0
    %vm1891 = vcmp.gt.f32.partialorder %v1859, 0.0
    %vm1892 = vcmp.gt.f32.partialorder %v1860, 0.0
    %vm1893 = vcmp.gt.f32.partialorder %v1861, 0.0
    %vm1894 = vcmp.gt.f32.partialorder %v1862, 0.0
    %vm1895 = vcmp.gt.f32.partialorder %v1863, 0.0
    %vm1896 = vcmp.gt.f32.partialorder %v1864, 0.0
    %vm1897 = vcmp.gt.f32.partialorder %v1865, 0.0
    %vm1898 = vcmp.gt.f32.partialorder %v1866, 0.0
    %vm1899 = vcmp.gt.f32.partialorder %v1867, 0.0
    %vm1900 = vcmp.gt.f32.partialorder %v1868, 0.0
    %vm1901 = vcmp.gt.f32.partialorder %v1869, 0.0
    %vm1902 = vcmp.gt.f32.partialorder %v1870, 0.0
    %vm1903 = vcmp.gt.f32.partialorder %v1871, 0.0
    %vm1904 = vcmp.gt.f32.partialorder %v1872, 0.0
    %vm1905 = vcmp.gt.f32.partialorder %v1873, 0.0
    %vm1906 = vcmp.gt.f32.partialorder %v1874, 0.0
    %vm1907 = vcmp.gt.f32.partialorder %v1875, 0.0
    %vm1908 = vcmp.gt.f32.partialorder %v1876, 0.0
    %vm1909 = vcmp.gt.f32.partialorder %v1877, 0.0
    %vm1910 = vcmp.gt.f32.partialorder %v1878, 0.0
    %vm1911 = vcmp.gt.f32.partialorder %v1879, 0.0
    %vm1912 = vcmp.gt.f32.partialorder %v1880, 0.0
    %vm1913 = vcmp.gt.f32.partialorder %v1881, 0.0
    %vm1914 = vcmp.gt.f32.partialorder %v1882, 0.0
    %vm1915 = vcmp.gt.f32.partialorder %v1883, 0.0
    %vm1916 = vcmp.gt.f32.partialorder %v1884, 0.0
    %vm1917 = vcmp.gt.f32.partialorder %v1885, 0.0
    %vm1918 = vcmp.gt.f32.partialorder %v1886, 0.0
    %vm1919 = vcmp.gt.f32.partialorder %v1887, 0.0
    %v1920 = vmul.f32 %v1856, 0.2
    %v1921 = vmul.f32 %v1857, 0.2
    %v1922 = vmul.f32 %v1858, 0.2
    %v1923 = vmul.f32 %v1859, 0.2
    %v1924 = vmul.f32 %v1860, 0.2
    %v1925 = vmul.f32 %v1861, 0.2
    %v1926 = vmul.f32 %v1862, 0.2
    %v1927 = vmul.f32 %v1863, 0.2
    %v1928 = vmul.f32 %v1864, 0.2
    %v1929 = vmul.f32 %v1865, 0.2
    %v1930 = vmul.f32 %v1866, 0.2
    %v1931 = vmul.f32 %v1867, 0.2
    %v1932 = vmul.f32 %v1868, 0.2
    %v1933 = vmul.f32 %v1869, 0.2
    %v1934 = vmul.f32 %v1870, 0.2
    %v1935 = vmul.f32 %v1871, 0.2
    %v1936 = vmul.f32 %v1872, 0.2
    %v1937 = vmul.f32 %v1873, 0.2
    %v1938 = vmul.f32 %v1874, 0.2
    %v1939 = vmul.f32 %v1875, 0.2
    %v1940 = vmul.f32 %v1876, 0.2
    %v1941 = vmul.f32 %v1877, 0.2
    %v1942 = vmul.f32 %v1878, 0.2
    %v1943 = vmul.f32 %v1879, 0.2
    %v1944 = vmul.f32 %v1880, 0.2
    %v1945 = vmul.f32 %v1881, 0.2
    %v1946 = vmul.f32 %v1882, 0.2
    %v1947 = vmul.f32 %v1883, 0.2
    %v1948 = vmul.f32 %v1884, 0.2
    %v1949 = vmul.f32 %v1885, 0.2
    %v1950 = vmul.f32 %v1886, 0.2
    %v1951 = vmul.f32 %v1887, 0.2
    %v1952 = vsel %vm1888, %v1856, %v1920
    %v1953 = vsel %vm1889, %v1857, %v1921
    %v1954 = vsel %vm1890, %v1858, %v1922
    %v1955 = vsel %vm1891, %v1859, %v1923
    %v1956 = vsel %vm1892, %v1860, %v1924
    %v1957 = vsel %vm1893, %v1861, %v1925
    %v1958 = vsel %vm1894, %v1862, %v1926
    %v1959 = vsel %vm1895, %v1863, %v1927
    %v1960 = vsel %vm1896, %v1864, %v1928
    %v1961 = vsel %vm1897, %v1865, %v1929
    %v1962 = vsel %vm1898, %v1866, %v1930
    %v1963 = vsel %vm1899, %v1867, %v1931
    %v1964 = vsel %vm1900, %v1868, %v1932
    %v1965 = vsel %vm1901, %v1869, %v1933
    %v1966 = vsel %vm1902, %v1870, %v1934
    %v1967 = vsel %vm1903, %v1871, %v1935
    %v1968 = vsel %vm1904, %v1872, %v1936
    %v1969 = vsel %vm1905, %v1873, %v1937
    %v1970 = vsel %vm1906, %v1874, %v1938
    %v1971 = vsel %vm1907, %v1875, %v1939
    %v1972 = vsel %vm1908, %v1876, %v1940
    %v1973 = vsel %vm1909, %v1877, %v1941
    %v1974 = vsel %vm1910, %v1878, %v1942
    %v1975 = vsel %vm1911, %v1879, %v1943
    %v1976 = vsel %vm1912, %v1880, %v1944
    %v1977 = vsel %vm1913, %v1881, %v1945
    %v1978 = vsel %vm1914, %v1882, %v1946
    %v1979 = vsel %vm1915, %v1883, %v1947
    %v1980 = vsel %vm1916, %v1884, %v1948
    %v1981 = vsel %vm1917, %v1885, %v1949
    %v1982 = vsel %vm1918, %v1886, %v1950
    %v1983 = vsel %vm1919, %v1887, %v1951
    %v1984 = vpack.c.bf16 %v1952, %v1952
    %v1985 = vpack.c.bf16 %v1953, %v1953
    %v1986 = vpack.c.bf16 %v1954, %v1954
    %v1987 = vpack.c.bf16 %v1955, %v1955
    %v1988 = vpack.c.bf16 %v1956, %v1956
    %v1989 = vpack.c.bf16 %v1957, %v1957
    %v1990 = vpack.c.bf16 %v1958, %v1958
    %v1991 = vpack.c.bf16 %v1959, %v1959
    %v1992 = vpack.c.bf16 %v1960, %v1960
    %v1993 = vpack.c.bf16 %v1961, %v1961
    %v1994 = vpack.c.bf16 %v1962, %v1962
    %v1995 = vpack.c.bf16 %v1963, %v1963
    %v1996 = vpack.c.bf16 %v1964, %v1964
    %v1997 = vpack.c.bf16 %v1965, %v1965
    %v1998 = vpack.c.bf16 %v1966, %v1966
    %v1999 = vpack.c.bf16 %v1967, %v1967
    %v2000 = vpack.c.bf16 %v1968, %v1968
    %v2001 = vpack.c.bf16 %v1969, %v1969
    %v2002 = vpack.c.bf16 %v1970, %v1970
    %v2003 = vpack.c.bf16 %v1971, %v1971
    %v2004 = vpack.c.bf16 %v1972, %v1972
    %v2005 = vpack.c.bf16 %v1973, %v1973
    %v2006 = vpack.c.bf16 %v1974, %v1974
    %v2007 = vpack.c.bf16 %v1975, %v1975
    %v2008 = vpack.c.bf16 %v1976, %v1976
    %v2009 = vpack.c.bf16 %v1977, %v1977
    %v2010 = vpack.c.bf16 %v1978, %v1978
    %v2011 = vpack.c.bf16 %v1979, %v1979
    %v2012 = vpack.c.bf16 %v1980, %v1980
    %v2013 = vpack.c.bf16 %v1981, %v1981
    %v2014 = vpack.c.bf16 %v1982, %v1982
    %v2015 = vpack.c.bf16 %v1983, %v1983
    %v2048 = vunpack.c.l.b16 %v1984
    %v2049 = vunpack.c.l.b16 %v1985
    %v2050 = vunpack.c.l.b16 %v1986
    %v2051 = vunpack.c.l.b16 %v1987
    %v2052 = vunpack.c.l.b16 %v1988
    %v2053 = vunpack.c.l.b16 %v1989
    %v2054 = vunpack.c.l.b16 %v1990
    %v2055 = vunpack.c.l.b16 %v1991
    %v2056 = vunpack.c.l.b16 %v1992
    %v2057 = vunpack.c.l.b16 %v1993
    %v2058 = vunpack.c.l.b16 %v1994
    %v2059 = vunpack.c.l.b16 %v1995
    %v2060 = vunpack.c.l.b16 %v1996
    %v2061 = vunpack.c.l.b16 %v1997
    %v2062 = vunpack.c.l.b16 %v1998
    %v2063 = vunpack.c.l.b16 %v1999
    %v2064 = vunpack.c.l.b16 %v2000
    %v2065 = vunpack.c.l.b16 %v2001
    %v2066 = vunpack.c.l.b16 %v2002
    %v2067 = vunpack.c.l.b16 %v2003
    %v2068 = vunpack.c.l.b16 %v2004
    %v2069 = vunpack.c.l.b16 %v2005
    %v2070 = vunpack.c.l.b16 %v2006
    %v2071 = vunpack.c.l.b16 %v2007
    %v2072 = vunpack.c.l.b16 %v2008
    %v2073 = vunpack.c.l.b16 %v2009
    %v2074 = vunpack.c.l.b16 %v2010
    %v2075 = vunpack.c.l.b16 %v2011
    %v2076 = vunpack.c.l.b16 %v2012
    %v2077 = vunpack.c.l.b16 %v2013
    %v2078 = vunpack.c.l.b16 %v2014
    %v2079 = vunpack.c.l.b16 %v2015
    %v2080 = vpack.c.b16 %v2049, %v2048
    %v2081 = vpack.c.b16 %v2051, %v2050
    %v2082 = vpack.c.b16 %v2053, %v2052
    %v2083 = vpack.c.b16 %v2055, %v2054
    %v2084 = vpack.c.b16 %v2057, %v2056
    %v2085 = vpack.c.b16 %v2059, %v2058
    %v2086 = vpack.c.b16 %v2061, %v2060
    %v2087 = vpack.c.b16 %v2063, %v2062
    %v2088 = vpack.c.b16 %v2065, %v2064
    %v2089 = vpack.c.b16 %v2067, %v2066
    %v2090 = vpack.c.b16 %v2069, %v2068
    %v2091 = vpack.c.b16 %v2071, %v2070
    %v2092 = vpack.c.b16 %v2073, %v2072
    %v2093 = vpack.c.b16 %v2075, %v2074
    %v2094 = vpack.c.b16 %v2077, %v2076
    %v2095 = vpack.c.b16 %v2079, %v2078
    %v2097 = vshrl.u32 %v2080, 16
    %v2099 = vrot.slane %v2097, 7
    %v2100 = vshll.u32 %v2080, 16
    %v2102 = vor.u32 %v2099, %v2100
    %v2104 = vshrl.u32 %v2081, 16
    %v2106 = vrot.slane %v2104, 7
    %v2107 = vshll.u32 %v2081, 16
    %v2109 = vor.u32 %v2106, %v2107
    %v2111 = vshrl.u32 %v2082, 16
    %v2113 = vrot.slane %v2111, 7
    %v2114 = vshll.u32 %v2082, 16
    %v2116 = vor.u32 %v2113, %v2114
    %v2118 = vshrl.u32 %v2083, 16
    %v2120 = vrot.slane %v2118, 7
    %v2121 = vshll.u32 %v2083, 16
    %v2123 = vor.u32 %v2120, %v2121
    %v2125 = vshrl.u32 %v2084, 16
    %v2127 = vrot.slane %v2125, 7
    %v2128 = vshll.u32 %v2084, 16
    %v2130 = vor.u32 %v2127, %v2128
    %v2132 = vshrl.u32 %v2085, 16
    %v2134 = vrot.slane %v2132, 7
    %v2135 = vshll.u32 %v2085, 16
    %v2137 = vor.u32 %v2134, %v2135
    %v2139 = vshrl.u32 %v2086, 16
    %v2141 = vrot.slane %v2139, 7
    %v2142 = vshll.u32 %v2086, 16
    %v2144 = vor.u32 %v2141, %v2142
    %v2146 = vshrl.u32 %v2087, 16
    %v2148 = vrot.slane %v2146, 7
    %v2149 = vshll.u32 %v2087, 16
    %v2151 = vor.u32 %v2148, %v2149
    %v2153 = vshrl.u32 %v2088, 16
    %v2155 = vrot.slane %v2153, 7
    %v2156 = vshll.u32 %v2088, 16
    %v2158 = vor.u32 %v2155, %v2156
    %v2160 = vshrl.u32 %v2089, 16
    %v2162 = vrot.slane %v2160, 7
    %v2163 = vshll.u32 %v2089, 16
    %v2165 = vor.u32 %v2162, %v2163
    %v2167 = vshrl.u32 %v2090, 16
    %v2169 = vrot.slane %v2167, 7
    %v2170 = vshll.u32 %v2090, 16
    %v2172 = vor.u32 %v2169, %v2170
    %v2174 = vshrl.u32 %v2091, 16
    %v2176 = vrot.slane %v2174, 7
    %v2177 = vshll.u32 %v2091, 16
    %v2179 = vor.u32 %v2176, %v2177
    %v2181 = vshrl.u32 %v2092, 16
    %v2183 = vrot.slane %v2181, 7
    %v2184 = vshll.u32 %v2092, 16
    %v2186 = vor.u32 %v2183, %v2184
    %v2188 = vshrl.u32 %v2093, 16
    %v2190 = vrot.slane %v2188, 7
    %v2191 = vshll.u32 %v2093, 16
    %v2193 = vor.u32 %v2190, %v2191
    %v2195 = vshrl.u32 %v2094, 16
    %v2197 = vrot.slane %v2195, 7
    %v2198 = vshll.u32 %v2094, 16
    %v2200 = vor.u32 %v2197, %v2198
    %v2202 = vshrl.u32 %v2095, 16
    %v2204 = vrot.slane %v2202, 7
    %v2205 = vshll.u32 %v2095, 16
    %v2207 = vor.u32 %v2204, %v2205
    %v2224 = vsel %vm347, 0, %v2102
    %v2225 = vsel %vm347, 0, %v2109
    %v2226 = vsel %vm347, 0, %v2116
    %v2227 = vsel %vm347, 0, %v2123
    %v2228 = vsel %vm347, 0, %v2130
    %v2229 = vsel %vm347, 0, %v2137
    %v2230 = vsel %vm347, 0, %v2144
    %v2231 = vsel %vm347, 0, %v2151
    %v2232 = vsel %vm347, 0, %v2158
    %v2233 = vsel %vm347, 0, %v2165
    %v2234 = vsel %vm347, 0, %v2172
    %v2235 = vsel %vm347, 0, %v2179
    %v2236 = vsel %vm347, 0, %v2186
    %v2237 = vsel %vm347, 0, %v2193
    %v2238 = vsel %vm347, 0, %v2200
    %v2239 = vsel %vm347, 0, %v2207
    %v2240 = vrot.slane %v2100, 1
    %v2241 = vor.u32 %v2097, %v2240
    %v2242 = vrot.slane %v2107, 1
    %v2243 = vor.u32 %v2104, %v2242
    %v2244 = vrot.slane %v2114, 1
    %v2245 = vor.u32 %v2111, %v2244
    %v2246 = vrot.slane %v2121, 1
    %v2247 = vor.u32 %v2118, %v2246
    %v2248 = vrot.slane %v2128, 1
    %v2249 = vor.u32 %v2125, %v2248
    %v2250 = vrot.slane %v2135, 1
    %v2251 = vor.u32 %v2132, %v2250
    %v2252 = vrot.slane %v2142, 1
    %v2253 = vor.u32 %v2139, %v2252
    %v2254 = vrot.slane %v2149, 1
    %v2255 = vor.u32 %v2146, %v2254
    %v2256 = vrot.slane %v2156, 1
    %v2257 = vor.u32 %v2153, %v2256
    %v2258 = vrot.slane %v2163, 1
    %v2259 = vor.u32 %v2160, %v2258
    %v2260 = vrot.slane %v2170, 1
    %v2261 = vor.u32 %v2167, %v2260
    %v2262 = vrot.slane %v2177, 1
    %v2263 = vor.u32 %v2174, %v2262
    %v2264 = vrot.slane %v2184, 1
    %v2265 = vor.u32 %v2181, %v2264
    %v2266 = vrot.slane %v2191, 1
    %v2267 = vor.u32 %v2188, %v2266
    %v2268 = vrot.slane %v2198, 1
    %v2269 = vor.u32 %v2195, %v2268
    %v2270 = vrot.slane %v2205, 1
    %v2271 = vor.u32 %v2202, %v2270
    %v2288 = vsel %vm414, %v2241, 0
    %v2289 = vsel %vm414, %v2243, 0
    %v2290 = vsel %vm414, %v2245, 0
    %v2291 = vsel %vm414, %v2247, 0
    %v2292 = vsel %vm414, %v2249, 0
    %v2293 = vsel %vm414, %v2251, 0
    %v2294 = vsel %vm414, %v2253, 0
    %v2295 = vsel %vm414, %v2255, 0
    %v2296 = vsel %vm414, %v2257, 0
    %v2297 = vsel %vm414, %v2259, 0
    %v2298 = vsel %vm414, %v2261, 0
    %v2299 = vsel %vm414, %v2263, 0
    %v2300 = vsel %vm414, %v2265, 0
    %v2301 = vsel %vm414, %v2267, 0
    %v2302 = vsel %vm414, %v2269, 0
    %v2303 = vsel %vm414, %v2271, 0
    %v2320 = vld [vmem:[#allocation3] sm:$0xff]
    %v2321 = vld [vmem:[#allocation3 + $0x8] sm:$0xff]
    %v2322 = vld [vmem:[#allocation3 + $0x10] sm:$0xff]
    %v2323 = vld [vmem:[#allocation3 + $0x18] sm:$0xff]
    %v2324 = vld [vmem:[#allocation3 + $0x20] sm:$0xff]
    %v2325 = vld [vmem:[#allocation3 + $0x28] sm:$0xff]
    %v2326 = vld [vmem:[#allocation3 + $0x30] sm:$0xff]
    %v2327 = vld [vmem:[#allocation3 + $0x38] sm:$0xff]
    %v2328 = vld [vmem:[#allocation3 + $0x40] sm:$0xff]
    %v2329 = vld [vmem:[#allocation3 + $0x48] sm:$0xff]
    %v2330 = vld [vmem:[#allocation3 + $0x50] sm:$0xff]
    %v2331 = vld [vmem:[#allocation3 + $0x58] sm:$0xff]
    %v2332 = vld [vmem:[#allocation3 + $0x60] sm:$0xff]
    %v2333 = vld [vmem:[#allocation3 + $0x68] sm:$0xff]
    %v2334 = vld [vmem:[#allocation3 + $0x70] sm:$0xff]
    %v2335 = vld [vmem:[#allocation3 + $0x78] sm:$0xff]
    %v2336 = vld [vmem:[#allocation3 + $0x80] sm:$0xff]
    %v2337 = vld [vmem:[#allocation3 + $0x88] sm:$0xff]
    %v2338 = vld [vmem:[#allocation3 + $0x90] sm:$0xff]
    %v2339 = vld [vmem:[#allocation3 + $0x98] sm:$0xff]
    %v2340 = vld [vmem:[#allocation3 + $0xa0] sm:$0xff]
    %v2341 = vld [vmem:[#allocation3 + $0xa8] sm:$0xff]
    %v2342 = vld [vmem:[#allocation3 + $0xb0] sm:$0xff]
    %v2343 = vld [vmem:[#allocation3 + $0xb8] sm:$0xff]
    %v2344 = vld [vmem:[#allocation3 + $0xc0] sm:$0xff]
    %v2345 = vld [vmem:[#allocation3 + $0xc8] sm:$0xff]
    %v2346 = vld [vmem:[#allocation3 + $0xd0] sm:$0xff]
    %v2347 = vld [vmem:[#allocation3 + $0xd8] sm:$0xff]
    %v2348 = vld [vmem:[#allocation3 + $0xe0] sm:$0xff]
    %v2349 = vld [vmem:[#allocation3 + $0xe8] sm:$0xff]
    %v2350 = vld [vmem:[#allocation3 + $0xf0] sm:$0xff]
    %v2351 = vld [vmem:[#allocation3 + $0xf8] sm:$0xff]
    %v2352 = vld [vmem:[#allocation3 + $0x100] sm:$0xff]
    %v2353 = vld [vmem:[#allocation3 + $0x108] sm:$0xff]
    %v2354 = vld [vmem:[#allocation3 + $0x110] sm:$0xff]
    %v2355 = vld [vmem:[#allocation3 + $0x118] sm:$0xff]
    %v2356 = vld [vmem:[#allocation3 + $0x120] sm:$0xff]
    %v2357 = vld [vmem:[#allocation3 + $0x128] sm:$0xff]
    %v2358 = vld [vmem:[#allocation3 + $0x130] sm:$0xff]
    %v2359 = vld [vmem:[#allocation3 + $0x138] sm:$0xff]
    %v2360 = vld [vmem:[#allocation3 + $0x140] sm:$0xff]
    %v2361 = vld [vmem:[#allocation3 + $0x148] sm:$0xff]
    %v2362 = vld [vmem:[#allocation3 + $0x150] sm:$0xff]
    %v2363 = vld [vmem:[#allocation3 + $0x158] sm:$0xff]
    %v2364 = vld [vmem:[#allocation3 + $0x160] sm:$0xff]
    %v2365 = vld [vmem:[#allocation3 + $0x168] sm:$0xff]
    %v2366 = vld [vmem:[#allocation3 + $0x170] sm:$0xff]
    %v2367 = vld [vmem:[#allocation3 + $0x178] sm:$0xff]
    %v2416 = vunpack.c.l.b16 %v2320
    %v2417 = vunpack.c.h.b16 %v2320
    %v2418 = vunpack.c.l.b16 %v2321
    %v2419 = vunpack.c.h.b16 %v2321
    %v2420 = vunpack.c.l.b16 %v2322
    %v2421 = vunpack.c.h.b16 %v2322
    %v2422 = vunpack.c.l.b16 %v2323
    %v2423 = vunpack.c.h.b16 %v2323
    %v2424 = vunpack.c.l.b16 %v2324
    %v2425 = vunpack.c.h.b16 %v2324
    %v2426 = vunpack.c.l.b16 %v2325
    %v2427 = vunpack.c.h.b16 %v2325
    %v2428 = vunpack.c.l.b16 %v2326
    %v2429 = vunpack.c.h.b16 %v2326
    %v2430 = vunpack.c.l.b16 %v2327
    %v2431 = vunpack.c.h.b16 %v2327
    %v2432 = vunpack.c.l.b16 %v2328
    %v2433 = vunpack.c.h.b16 %v2328
    %v2434 = vunpack.c.l.b16 %v2329
    %v2435 = vunpack.c.h.b16 %v2329
    %v2436 = vunpack.c.l.b16 %v2330
    %v2437 = vunpack.c.h.b16 %v2330
    %v2438 = vunpack.c.l.b16 %v2331
    %v2439 = vunpack.c.h.b16 %v2331
    %v2440 = vunpack.c.l.b16 %v2332
    %v2441 = vunpack.c.h.b16 %v2332
    %v2442 = vunpack.c.l.b16 %v2333
    %v2443 = vunpack.c.h.b16 %v2333
    %v2444 = vunpack.c.l.b16 %v2334
    %v2445 = vunpack.c.h.b16 %v2334
    %v2446 = vunpack.c.l.b16 %v2335
    %v2447 = vunpack.c.h.b16 %v2335
    %v2448 = vunpack.c.l.b16 %v2336
    %v2449 = vunpack.c.h.b16 %v2336
    %v2450 = vunpack.c.l.b16 %v2337
    %v2451 = vunpack.c.h.b16 %v2337
    %v2452 = vunpack.c.l.b16 %v2338
    %v2453 = vunpack.c.h.b16 %v2338
    %v2454 = vunpack.c.l.b16 %v2339
    %v2455 = vunpack.c.h.b16 %v2339
    %v2456 = vunpack.c.l.b16 %v2340
    %v2457 = vunpack.c.h.b16 %v2340
    %v2458 = vunpack.c.l.b16 %v2341
    %v2459 = vunpack.c.h.b16 %v2341
    %v2460 = vunpack.c.l.b16 %v2342
    %v2461 = vunpack.c.h.b16 %v2342
    %v2462 = vunpack.c.l.b16 %v2343
    %v2463 = vunpack.c.h.b16 %v2343
    %v2464 = vunpack.c.l.b16 %v2344
    %v2465 = vunpack.c.h.b16 %v2344
    %v2466 = vunpack.c.l.b16 %v2345
    %v2467 = vunpack.c.h.b16 %v2345
    %v2468 = vunpack.c.l.b16 %v2346
    %v2469 = vunpack.c.h.b16 %v2346
    %v2470 = vunpack.c.l.b16 %v2347
    %v2471 = vunpack.c.h.b16 %v2347
    %v2472 = vunpack.c.l.b16 %v2348
    %v2473 = vunpack.c.h.b16 %v2348
    %v2474 = vunpack.c.l.b16 %v2349
    %v2475 = vunpack.c.h.b16 %v2349
    %v2476 = vunpack.c.l.b16 %v2350
    %v2477 = vunpack.c.h.b16 %v2350
    %v2478 = vunpack.c.l.b16 %v2351
    %v2479 = vunpack.c.h.b16 %v2351
    %v2480 = vunpack.c.l.b16 %v2352
    %v2481 = vunpack.c.h.b16 %v2352
    %v2482 = vunpack.c.l.b16 %v2353
    %v2483 = vunpack.c.h.b16 %v2353
    %v2484 = vunpack.c.l.b16 %v2354
    %v2485 = vunpack.c.h.b16 %v2354
    %v2486 = vunpack.c.l.b16 %v2355
    %v2487 = vunpack.c.h.b16 %v2355
    %v2488 = vunpack.c.l.b16 %v2356
    %v2489 = vunpack.c.h.b16 %v2356
    %v2490 = vunpack.c.l.b16 %v2357
    %v2491 = vunpack.c.h.b16 %v2357
    %v2492 = vunpack.c.l.b16 %v2358
    %v2493 = vunpack.c.h.b16 %v2358
    %v2494 = vunpack.c.l.b16 %v2359
    %v2495 = vunpack.c.h.b16 %v2359
    %v2496 = vunpack.c.l.b16 %v2360
    %v2497 = vunpack.c.h.b16 %v2360
    %v2498 = vunpack.c.l.b16 %v2361
    %v2499 = vunpack.c.h.b16 %v2361
    %v2500 = vunpack.c.l.b16 %v2362
    %v2501 = vunpack.c.h.b16 %v2362
    %v2502 = vunpack.c.l.b16 %v2363
    %v2503 = vunpack.c.h.b16 %v2363
    %v2504 = vunpack.c.l.b16 %v2364
    %v2505 = vunpack.c.h.b16 %v2364
    %v2506 = vunpack.c.l.b16 %v2365
    %v2507 = vunpack.c.h.b16 %v2365
    %v2508 = vunpack.c.l.b16 %v2366
    %v2509 = vunpack.c.h.b16 %v2366
    %v2510 = vunpack.c.l.b16 %v2367
    %v2511 = vunpack.c.h.b16 %v2367
    %v2512 = vpack.c.b16 %v2418, %v2416
    %v2513 = vpack.c.b16 %v2419, %v2417
    %v2514 = vpack.c.b16 %v2422, %v2420
    %v2515 = vpack.c.b16 %v2423, %v2421
    %v2516 = vpack.c.b16 %v2426, %v2424
    %v2517 = vpack.c.b16 %v2427, %v2425
    %v2518 = vpack.c.b16 %v2430, %v2428
    %v2519 = vpack.c.b16 %v2431, %v2429
    %v2520 = vpack.c.b16 %v2434, %v2432
    %v2521 = vpack.c.b16 %v2435, %v2433
    %v2522 = vpack.c.b16 %v2438, %v2436
    %v2523 = vpack.c.b16 %v2439, %v2437
    %v2524 = vpack.c.b16 %v2442, %v2440
    %v2525 = vpack.c.b16 %v2443, %v2441
    %v2526 = vpack.c.b16 %v2446, %v2444
    %v2527 = vpack.c.b16 %v2447, %v2445
    %v2528 = vpack.c.b16 %v2450, %v2448
    %v2529 = vpack.c.b16 %v2451, %v2449
    %v2530 = vpack.c.b16 %v2454, %v2452
    %v2531 = vpack.c.b16 %v2455, %v2453
    %v2532 = vpack.c.b16 %v2458, %v2456
    %v2533 = vpack.c.b16 %v2459, %v2457
    %v2534 = vpack.c.b16 %v2462, %v2460
    %v2535 = vpack.c.b16 %v2463, %v2461
    %v2536 = vpack.c.b16 %v2466, %v2464
    %v2537 = vpack.c.b16 %v2467, %v2465
    %v2538 = vpack.c.b16 %v2470, %v2468
    %v2539 = vpack.c.b16 %v2471, %v2469
    %v2540 = vpack.c.b16 %v2474, %v2472
    %v2541 = vpack.c.b16 %v2475, %v2473
    %v2542 = vpack.c.b16 %v2478, %v2476
    %v2543 = vpack.c.b16 %v2479, %v2477
    %v2544 = vpack.c.b16 %v2482, %v2480
    %v2545 = vpack.c.b16 %v2483, %v2481
    %v2546 = vpack.c.b16 %v2486, %v2484
    %v2547 = vpack.c.b16 %v2487, %v2485
    %v2548 = vpack.c.b16 %v2490, %v2488
    %v2549 = vpack.c.b16 %v2491, %v2489
    %v2550 = vpack.c.b16 %v2494, %v2492
    %v2551 = vpack.c.b16 %v2495, %v2493
    %v2552 = vpack.c.b16 %v2498, %v2496
    %v2553 = vpack.c.b16 %v2499, %v2497
    %v2554 = vpack.c.b16 %v2502, %v2500
    %v2555 = vpack.c.b16 %v2503, %v2501
    %v2556 = vpack.c.b16 %v2506, %v2504
    %v2557 = vpack.c.b16 %v2507, %v2505
    %v2558 = vpack.c.b16 %v2510, %v2508
    %v2559 = vpack.c.b16 %v2511, %v2509
    %2608 = vmatpush.bf16.msra.mxu0 %v2526
    %2609 = vmatpush.bf16.msra.mxu0 %v2524
    %2610 = vmatpush.bf16.msra.mxu0 %v2522
    %2611 = vmatpush.bf16.msra.mxu0 %v2520
    %2612 = vmatpush.bf16.msra.mxu0 %v2518
    %2613 = vmatpush.bf16.msra.mxu0 %v2516
    %2614 = vmatpush.bf16.msra.mxu0 %v2514
    %2615 = vmatpush.bf16.msra.mxu0 %v2512
    %2616 = vmatmul.bf16.gmra.mxu0 %v2224
    %v2617 = vpop.f32.mrf.mxu0
    %v2618 = vadd.f32 0.0, %v2617
    %v2619 = vpop.f32.mrf.mxu0
    %v2620 = vadd.f32 0.0, %v2619
    %2621 = vmatmul.bf16.gmra.mxu0 %v2225
    %v2622 = vpop.f32.mrf.mxu0
    %v2623 = vadd.f32 0.0, %v2622
    %v2624 = vpop.f32.mrf.mxu0
    %v2625 = vadd.f32 0.0, %v2624
    %2626 = vmatmul.bf16.gmra.mxu0 %v2226
    %v2627 = vpop.f32.mrf.mxu0
    %v2628 = vadd.f32 0.0, %v2627
    %v2629 = vpop.f32.mrf.mxu0
    %v2630 = vadd.f32 0.0, %v2629
    %2631 = vmatmul.bf16.gmra.mxu0 %v2227
    %v2632 = vpop.f32.mrf.mxu0
    %v2633 = vadd.f32 0.0, %v2632
    %v2634 = vpop.f32.mrf.mxu0
    %v2635 = vadd.f32 0.0, %v2634
    %2636 = vmatmul.bf16.gmra.mxu0 %v2228
    %v2637 = vpop.f32.mrf.mxu0
    %v2638 = vadd.f32 0.0, %v2637
    %v2639 = vpop.f32.mrf.mxu0
    %v2640 = vadd.f32 0.0, %v2639
    %2641 = vmatmul.bf16.gmra.mxu0 %v2229
    %v2642 = vpop.f32.mrf.mxu0
    %v2643 = vadd.f32 0.0, %v2642
    %v2644 = vpop.f32.mrf.mxu0
    %v2645 = vadd.f32 0.0, %v2644
    %2646 = vmatmul.bf16.gmra.mxu0 %v2230
    %v2647 = vpop.f32.mrf.mxu0
    %v2648 = vadd.f32 0.0, %v2647
    %v2649 = vpop.f32.mrf.mxu0
    %v2650 = vadd.f32 0.0, %v2649
    %2651 = vmatmul.bf16.gmra.mxu0 %v2231
    %v2652 = vpop.f32.mrf.mxu0
    %v2653 = vadd.f32 0.0, %v2652
    %v2654 = vpop.f32.mrf.mxu0
    %v2655 = vadd.f32 0.0, %v2654
    %2656 = vmatmul.bf16.gmra.mxu0 %v2232
    %v2657 = vpop.f32.mrf.mxu0
    %v2658 = vadd.f32 0.0, %v2657
    %v2659 = vpop.f32.mrf.mxu0
    %v2660 = vadd.f32 0.0, %v2659
    %2661 = vmatmul.bf16.gmra.mxu0 %v2233
    %v2662 = vpop.f32.mrf.mxu0
    %v2663 = vadd.f32 0.0, %v2662
    %v2664 = vpop.f32.mrf.mxu0
    %v2665 = vadd.f32 0.0, %v2664
    %2666 = vmatmul.bf16.gmra.mxu0 %v2234
    %v2667 = vpop.f32.mrf.mxu0
    %v2668 = vadd.f32 0.0, %v2667
    %v2669 = vpop.f32.mrf.mxu0
    %v2670 = vadd.f32 0.0, %v2669
    %2671 = vmatmul.bf16.gmra.mxu0 %v2235
    %v2672 = vpop.f32.mrf.mxu0
    %v2673 = vadd.f32 0.0, %v2672
    %v2674 = vpop.f32.mrf.mxu0
    %v2675 = vadd.f32 0.0, %v2674
    %2676 = vmatmul.bf16.gmra.mxu0 %v2236
    %v2677 = vpop.f32.mrf.mxu0
    %v2678 = vadd.f32 0.0, %v2677
    %v2679 = vpop.f32.mrf.mxu0
    %v2680 = vadd.f32 0.0, %v2679
    %2681 = vmatmul.bf16.gmra.mxu0 %v2237
    %v2682 = vpop.f32.mrf.mxu0
    %v2683 = vadd.f32 0.0, %v2682
    %v2684 = vpop.f32.mrf.mxu0
    %v2685 = vadd.f32 0.0, %v2684
    %2686 = vmatmul.bf16.gmra.mxu0 %v2238
    %v2687 = vpop.f32.mrf.mxu0
    %v2688 = vadd.f32 0.0, %v2687
    %v2689 = vpop.f32.mrf.mxu0
    %v2690 = vadd.f32 0.0, %v2689
    %2691 = vmatmul.bf16.gmra.mxu0 %v2239
    %v2692 = vpop.f32.mrf.mxu0
    %v2693 = vadd.f32 0.0, %v2692
    %v2694 = vpop.f32.mrf.mxu0
    %v2695 = vadd.f32 0.0, %v2694
    %2696 = vdwg.mxu0
    %2697 = vmatpush.bf16.msra.mxu0 %v2542
    %2698 = vmatpush.bf16.msra.mxu0 %v2540
    %2699 = vmatpush.bf16.msra.mxu0 %v2538
    %2700 = vmatpush.bf16.msra.mxu0 %v2536
    %2701 = vmatpush.bf16.msra.mxu0 %v2534
    %2702 = vmatpush.bf16.msra.mxu0 %v2532
    %2703 = vmatpush.bf16.msra.mxu0 %v2530
    %2704 = vmatpush.bf16.msra.mxu0 %v2528
    %2705 = vmatmul.bf16.gmra.mxu0 %v2080
    %v2706 = vpop.f32.mrf.mxu0
    %v2707 = vadd.f32 %v2618, %v2706
    %v2708 = vpop.f32.mrf.mxu0
    %v2709 = vadd.f32 %v2620, %v2708
    %2710 = vmatmul.bf16.gmra.mxu0 %v2081
    %v2711 = vpop.f32.mrf.mxu0
    %v2712 = vadd.f32 %v2623, %v2711
    %v2713 = vpop.f32.mrf.mxu0
    %v2714 = vadd.f32 %v2625, %v2713
    %2715 = vmatmul.bf16.gmra.mxu0 %v2082
    %v2716 = vpop.f32.mrf.mxu0
    %v2717 = vadd.f32 %v2628, %v2716
    %v2718 = vpop.f32.mrf.mxu0
    %v2719 = vadd.f32 %v2630, %v2718
    %2720 = vmatmul.bf16.gmra.mxu0 %v2083
    %v2721 = vpop.f32.mrf.mxu0
    %v2722 = vadd.f32 %v2633, %v2721
    %v2723 = vpop.f32.mrf.mxu0
    %v2724 = vadd.f32 %v2635, %v2723
    %2725 = vmatmul.bf16.gmra.mxu0 %v2084
    %v2726 = vpop.f32.mrf.mxu0
    %v2727 = vadd.f32 %v2638, %v2726
    %v2728 = vpop.f32.mrf.mxu0
    %v2729 = vadd.f32 %v2640, %v2728
    %2730 = vmatmul.bf16.gmra.mxu0 %v2085
    %v2731 = vpop.f32.mrf.mxu0
    %v2732 = vadd.f32 %v2643, %v2731
    %v2733 = vpop.f32.mrf.mxu0
    %v2734 = vadd.f32 %v2645, %v2733
    %2735 = vmatmul.bf16.gmra.mxu0 %v2086
    %v2736 = vpop.f32.mrf.mxu0
    %v2737 = vadd.f32 %v2648, %v2736
    %v2738 = vpop.f32.mrf.mxu0
    %v2739 = vadd.f32 %v2650, %v2738
    %2740 = vmatmul.bf16.gmra.mxu0 %v2087
    %v2741 = vpop.f32.mrf.mxu0
    %v2742 = vadd.f32 %v2653, %v2741
    %v2743 = vpop.f32.mrf.mxu0
    %v2744 = vadd.f32 %v2655, %v2743
    %2745 = vmatmul.bf16.gmra.mxu0 %v2088
    %v2746 = vpop.f32.mrf.mxu0
    %v2747 = vadd.f32 %v2658, %v2746
    %v2748 = vpop.f32.mrf.mxu0
    %v2749 = vadd.f32 %v2660, %v2748
    %2750 = vmatmul.bf16.gmra.mxu0 %v2089
    %v2751 = vpop.f32.mrf.mxu0
    %v2752 = vadd.f32 %v2663, %v2751
    %v2753 = vpop.f32.mrf.mxu0
    %v2754 = vadd.f32 %v2665, %v2753
    %2755 = vmatmul.bf16.gmra.mxu0 %v2090
    %v2756 = vpop.f32.mrf.mxu0
    %v2757 = vadd.f32 %v2668, %v2756
    %v2758 = vpop.f32.mrf.mxu0
    %v2759 = vadd.f32 %v2670, %v2758
    %2760 = vmatmul.bf16.gmra.mxu0 %v2091
    %v2761 = vpop.f32.mrf.mxu0
    %v2762 = vadd.f32 %v2673, %v2761
    %v2763 = vpop.f32.mrf.mxu0
    %v2764 = vadd.f32 %v2675, %v2763
    %2765 = vmatmul.bf16.gmra.mxu0 %v2092
    %v2766 = vpop.f32.mrf.mxu0
    %v2767 = vadd.f32 %v2678, %v2766
    %v2768 = vpop.f32.mrf.mxu0
    %v2769 = vadd.f32 %v2680, %v2768
    %2770 = vmatmul.bf16.gmra.mxu0 %v2093
    %v2771 = vpop.f32.mrf.mxu0
    %v2772 = vadd.f32 %v2683, %v2771
    %v2773 = vpop.f32.mrf.mxu0
    %v2774 = vadd.f32 %v2685, %v2773
    %2775 = vmatmul.bf16.gmra.mxu0 %v2094
    %v2776 = vpop.f32.mrf.mxu0
    %v2777 = vadd.f32 %v2688, %v2776
    %v2778 = vpop.f32.mrf.mxu0
    %v2779 = vadd.f32 %v2690, %v2778
    %2780 = vmatmul.bf16.gmra.mxu0 %v2095
    %v2781 = vpop.f32.mrf.mxu0
    %v2782 = vadd.f32 %v2693, %v2781
    %v2783 = vpop.f32.mrf.mxu0
    %v2784 = vadd.f32 %v2695, %v2783
    %2785 = vdwg.mxu0
    %2786 = vmatpush.bf16.msra.mxu0 %v2558
    %2787 = vmatpush.bf16.msra.mxu0 %v2556
    %2788 = vmatpush.bf16.msra.mxu0 %v2554
    %2789 = vmatpush.bf16.msra.mxu0 %v2552
    %2790 = vmatpush.bf16.msra.mxu0 %v2550
    %2791 = vmatpush.bf16.msra.mxu0 %v2548
    %2792 = vmatpush.bf16.msra.mxu0 %v2546
    %2793 = vmatpush.bf16.msra.mxu0 %v2544
    %2794 = vmatmul.bf16.gmra.mxu0 %v2288
    %v2795 = vpop.f32.mrf.mxu0
    %v2796 = vadd.f32 %v2707, %v2795
    %v2797 = vpop.f32.mrf.mxu0
    %v2798 = vadd.f32 %v2709, %v2797
    %2799 = vmatmul.bf16.gmra.mxu0 %v2289
    %v2800 = vpop.f32.mrf.mxu0
    %v2801 = vadd.f32 %v2712, %v2800
    %v2802 = vpop.f32.mrf.mxu0
    %v2803 = vadd.f32 %v2714, %v2802
    %2804 = vmatmul.bf16.gmra.mxu0 %v2290
    %v2805 = vpop.f32.mrf.mxu0
    %v2806 = vadd.f32 %v2717, %v2805
    %v2807 = vpop.f32.mrf.mxu0
    %v2808 = vadd.f32 %v2719, %v2807
    %2809 = vmatmul.bf16.gmra.mxu0 %v2291
    %v2810 = vpop.f32.mrf.mxu0
    %v2811 = vadd.f32 %v2722, %v2810
    %v2812 = vpop.f32.mrf.mxu0
    %v2813 = vadd.f32 %v2724, %v2812
    %2814 = vmatmul.bf16.gmra.mxu0 %v2292
    %v2815 = vpop.f32.mrf.mxu0
    %v2816 = vadd.f32 %v2727, %v2815
    %v2817 = vpop.f32.mrf.mxu0
    %v2818 = vadd.f32 %v2729, %v2817
    %2819 = vmatmul.bf16.gmra.mxu0 %v2293
    %v2820 = vpop.f32.mrf.mxu0
    %v2821 = vadd.f32 %v2732, %v2820
    %v2822 = vpop.f32.mrf.mxu0
    %v2823 = vadd.f32 %v2734, %v2822
    %2824 = vmatmul.bf16.gmra.mxu0 %v2294
    %v2825 = vpop.f32.mrf.mxu0
    %v2826 = vadd.f32 %v2737, %v2825
    %v2827 = vpop.f32.mrf.mxu0
    %v2828 = vadd.f32 %v2739, %v2827
    %2829 = vmatmul.bf16.gmra.mxu0 %v2295
    %v2830 = vpop.f32.mrf.mxu0
    %v2831 = vadd.f32 %v2742, %v2830
    %v2832 = vpop.f32.mrf.mxu0
    %v2833 = vadd.f32 %v2744, %v2832
    %2834 = vmatmul.bf16.gmra.mxu0 %v2296
    %v2835 = vpop.f32.mrf.mxu0
    %v2836 = vadd.f32 %v2747, %v2835
    %v2837 = vpop.f32.mrf.mxu0
    %v2838 = vadd.f32 %v2749, %v2837
    %2839 = vmatmul.bf16.gmra.mxu0 %v2297
    %v2840 = vpop.f32.mrf.mxu0
    %v2841 = vadd.f32 %v2752, %v2840
    %v2842 = vpop.f32.mrf.mxu0
    %v2843 = vadd.f32 %v2754, %v2842
    %2844 = vmatmul.bf16.gmra.mxu0 %v2298
    %v2845 = vpop.f32.mrf.mxu0
    %v2846 = vadd.f32 %v2757, %v2845
    %v2847 = vpop.f32.mrf.mxu0
    %v2848 = vadd.f32 %v2759, %v2847
    %2849 = vmatmul.bf16.gmra.mxu0 %v2299
    %v2850 = vpop.f32.mrf.mxu0
    %v2851 = vadd.f32 %v2762, %v2850
    %v2852 = vpop.f32.mrf.mxu0
    %v2853 = vadd.f32 %v2764, %v2852
    %2854 = vmatmul.bf16.gmra.mxu0 %v2300
    %v2855 = vpop.f32.mrf.mxu0
    %v2856 = vadd.f32 %v2767, %v2855
    %v2857 = vpop.f32.mrf.mxu0
    %v2858 = vadd.f32 %v2769, %v2857
    %2859 = vmatmul.bf16.gmra.mxu0 %v2301
    %v2860 = vpop.f32.mrf.mxu0
    %v2861 = vadd.f32 %v2772, %v2860
    %v2862 = vpop.f32.mrf.mxu0
    %v2863 = vadd.f32 %v2774, %v2862
    %2864 = vmatmul.bf16.gmra.mxu0 %v2302
    %v2865 = vpop.f32.mrf.mxu0
    %v2866 = vadd.f32 %v2777, %v2865
    %v2867 = vpop.f32.mrf.mxu0
    %v2868 = vadd.f32 %v2779, %v2867
    %2869 = vmatmul.bf16.gmra.mxu0 %v2303
    %v2870 = vpop.f32.mrf.mxu0
    %v2871 = vadd.f32 %v2782, %v2870
    %v2872 = vpop.f32.mrf.mxu0
    %v2873 = vadd.f32 %v2784, %v2872
    %2874 = vdwg.mxu0
    %2875 = vmatpush.bf16.msra.mxu0 %v2527
    %2876 = vmatpush.bf16.msra.mxu0 %v2525
    %2877 = vmatpush.bf16.msra.mxu0 %v2523
    %2878 = vmatpush.bf16.msra.mxu0 %v2521
    %2879 = vmatpush.bf16.msra.mxu0 %v2519
    %2880 = vmatpush.bf16.msra.mxu0 %v2517
    %2881 = vmatpush.bf16.msra.mxu0 %v2515
    %2882 = vmatpush.bf16.msra.mxu0 %v2513
    %2883 = vmatmul.bf16.gmra.mxu0 %v2224
    %v2884 = vpop.f32.mrf.mxu0
    %v2885 = vadd.f32 0.0, %v2884
    %v2886 = vpop.f32.mrf.mxu0
    %v2887 = vadd.f32 0.0, %v2886
    %2888 = vmatmul.bf16.gmra.mxu0 %v2225
    %v2889 = vpop.f32.mrf.mxu0
    %v2890 = vadd.f32 0.0, %v2889
    %v2891 = vpop.f32.mrf.mxu0
    %v2892 = vadd.f32 0.0, %v2891
    %2893 = vmatmul.bf16.gmra.mxu0 %v2226
    %v2894 = vpop.f32.mrf.mxu0
    %v2895 = vadd.f32 0.0, %v2894
    %v2896 = vpop.f32.mrf.mxu0
    %v2897 = vadd.f32 0.0, %v2896
    %2898 = vmatmul.bf16.gmra.mxu0 %v2227
    %v2899 = vpop.f32.mrf.mxu0
    %v2900 = vadd.f32 0.0, %v2899
    %v2901 = vpop.f32.mrf.mxu0
    %v2902 = vadd.f32 0.0, %v2901
    %2903 = vmatmul.bf16.gmra.mxu0 %v2228
    %v2904 = vpop.f32.mrf.mxu0
    %v2905 = vadd.f32 0.0, %v2904
    %v2906 = vpop.f32.mrf.mxu0
    %v2907 = vadd.f32 0.0, %v2906
    %2908 = vmatmul.bf16.gmra.mxu0 %v2229
    %v2909 = vpop.f32.mrf.mxu0
    %v2910 = vadd.f32 0.0, %v2909
    %v2911 = vpop.f32.mrf.mxu0
    %v2912 = vadd.f32 0.0, %v2911
    %2913 = vmatmul.bf16.gmra.mxu0 %v2230
    %v2914 = vpop.f32.mrf.mxu0
    %v2915 = vadd.f32 0.0, %v2914
    %v2916 = vpop.f32.mrf.mxu0
    %v2917 = vadd.f32 0.0, %v2916
    %2918 = vmatmul.bf16.gmra.mxu0 %v2231
    %v2919 = vpop.f32.mrf.mxu0
    %v2920 = vadd.f32 0.0, %v2919
    %v2921 = vpop.f32.mrf.mxu0
    %v2922 = vadd.f32 0.0, %v2921
    %2923 = vmatmul.bf16.gmra.mxu0 %v2232
    %v2924 = vpop.f32.mrf.mxu0
    %v2925 = vadd.f32 0.0, %v2924
    %v2926 = vpop.f32.mrf.mxu0
    %v2927 = vadd.f32 0.0, %v2926
    %2928 = vmatmul.bf16.gmra.mxu0 %v2233
    %v2929 = vpop.f32.mrf.mxu0
    %v2930 = vadd.f32 0.0, %v2929
    %v2931 = vpop.f32.mrf.mxu0
    %v2932 = vadd.f32 0.0, %v2931
    %2933 = vmatmul.bf16.gmra.mxu0 %v2234
    %v2934 = vpop.f32.mrf.mxu0
    %v2935 = vadd.f32 0.0, %v2934
    %v2936 = vpop.f32.mrf.mxu0
    %v2937 = vadd.f32 0.0, %v2936
    %2938 = vmatmul.bf16.gmra.mxu0 %v2235
    %v2939 = vpop.f32.mrf.mxu0
    %v2940 = vadd.f32 0.0, %v2939
    %v2941 = vpop.f32.mrf.mxu0
    %v2942 = vadd.f32 0.0, %v2941
    %2943 = vmatmul.bf16.gmra.mxu0 %v2236
    %v2944 = vpop.f32.mrf.mxu0
    %v2945 = vadd.f32 0.0, %v2944
    %v2946 = vpop.f32.mrf.mxu0
    %v2947 = vadd.f32 0.0, %v2946
    %2948 = vmatmul.bf16.gmra.mxu0 %v2237
    %v2949 = vpop.f32.mrf.mxu0
    %v2950 = vadd.f32 0.0, %v2949
    %v2951 = vpop.f32.mrf.mxu0
    %v2952 = vadd.f32 0.0, %v2951
    %2953 = vmatmul.bf16.gmra.mxu0 %v2238
    %v2954 = vpop.f32.mrf.mxu0
    %v2955 = vadd.f32 0.0, %v2954
    %v2956 = vpop.f32.mrf.mxu0
    %v2957 = vadd.f32 0.0, %v2956
    %2958 = vmatmul.bf16.gmra.mxu0 %v2239
    %v2959 = vpop.f32.mrf.mxu0
    %v2960 = vadd.f32 0.0, %v2959
    %v2961 = vpop.f32.mrf.mxu0
    %v2962 = vadd.f32 0.0, %v2961
    %2963 = vdwg.mxu0
    %2964 = vmatpush.bf16.msra.mxu0 %v2543
    %2965 = vmatpush.bf16.msra.mxu0 %v2541
    %2966 = vmatpush.bf16.msra.mxu0 %v2539
    %2967 = vmatpush.bf16.msra.mxu0 %v2537
    %2968 = vmatpush.bf16.msra.mxu0 %v2535
    %2969 = vmatpush.bf16.msra.mxu0 %v2533
    %2970 = vmatpush.bf16.msra.mxu0 %v2531
    %2971 = vmatpush.bf16.msra.mxu0 %v2529
    %2972 = vmatmul.bf16.gmra.mxu0 %v2080
    %v2973 = vpop.f32.mrf.mxu0
    %v2974 = vadd.f32 %v2885, %v2973
    %v2975 = vpop.f32.mrf.mxu0
    %v2976 = vadd.f32 %v2887, %v2975
    %2977 = vmatmul.bf16.gmra.mxu0 %v2081
    %v2978 = vpop.f32.mrf.mxu0
    %v2979 = vadd.f32 %v2890, %v2978
    %v2980 = vpop.f32.mrf.mxu0
    %v2981 = vadd.f32 %v2892, %v2980
    %2982 = vmatmul.bf16.gmra.mxu0 %v2082
    %v2983 = vpop.f32.mrf.mxu0
    %v2984 = vadd.f32 %v2895, %v2983
    %v2985 = vpop.f32.mrf.mxu0
    %v2986 = vadd.f32 %v2897, %v2985
    %2987 = vmatmul.bf16.gmra.mxu0 %v2083
    %v2988 = vpop.f32.mrf.mxu0
    %v2989 = vadd.f32 %v2900, %v2988
    %v2990 = vpop.f32.mrf.mxu0
    %v2991 = vadd.f32 %v2902, %v2990
    %2992 = vmatmul.bf16.gmra.mxu0 %v2084
    %v2993 = vpop.f32.mrf.mxu0
    %v2994 = vadd.f32 %v2905, %v2993
    %v2995 = vpop.f32.mrf.mxu0
    %v2996 = vadd.f32 %v2907, %v2995
    %2997 = vmatmul.bf16.gmra.mxu0 %v2085
    %v2998 = vpop.f32.mrf.mxu0
    %v2999 = vadd.f32 %v2910, %v2998
    %v3000 = vpop.f32.mrf.mxu0
    %v3001 = vadd.f32 %v2912, %v3000
    %3002 = vmatmul.bf16.gmra.mxu0 %v2086
    %v3003 = vpop.f32.mrf.mxu0
    %v3004 = vadd.f32 %v2915, %v3003
    %v3005 = vpop.f32.mrf.mxu0
    %v3006 = vadd.f32 %v2917, %v3005
    %3007 = vmatmul.bf16.gmra.mxu0 %v2087
    %v3008 = vpop.f32.mrf.mxu0
    %v3009 = vadd.f32 %v2920, %v3008
    %v3010 = vpop.f32.mrf.mxu0
    %v3011 = vadd.f32 %v2922, %v3010
    %3012 = vmatmul.bf16.gmra.mxu0 %v2088
    %v3013 = vpop.f32.mrf.mxu0
    %v3014 = vadd.f32 %v2925, %v3013
    %v3015 = vpop.f32.mrf.mxu0
    %v3016 = vadd.f32 %v2927, %v3015
    %3017 = vmatmul.bf16.gmra.mxu0 %v2089
    %v3018 = vpop.f32.mrf.mxu0
    %v3019 = vadd.f32 %v2930, %v3018
    %v3020 = vpop.f32.mrf.mxu0
    %v3021 = vadd.f32 %v2932, %v3020
    %3022 = vmatmul.bf16.gmra.mxu0 %v2090
    %v3023 = vpop.f32.mrf.mxu0
    %v3024 = vadd.f32 %v2935, %v3023
    %v3025 = vpop.f32.mrf.mxu0
    %v3026 = vadd.f32 %v2937, %v3025
    %3027 = vmatmul.bf16.gmra.mxu0 %v2091
    %v3028 = vpop.f32.mrf.mxu0
    %v3029 = vadd.f32 %v2940, %v3028
    %v3030 = vpop.f32.mrf.mxu0
    %v3031 = vadd.f32 %v2942, %v3030
    %3032 = vmatmul.bf16.gmra.mxu0 %v2092
    %v3033 = vpop.f32.mrf.mxu0
    %v3034 = vadd.f32 %v2945, %v3033
    %v3035 = vpop.f32.mrf.mxu0
    %v3036 = vadd.f32 %v2947, %v3035
    %3037 = vmatmul.bf16.gmra.mxu0 %v2093
    %v3038 = vpop.f32.mrf.mxu0
    %v3039 = vadd.f32 %v2950, %v3038
    %v3040 = vpop.f32.mrf.mxu0
    %v3041 = vadd.f32 %v2952, %v3040
    %3042 = vmatmul.bf16.gmra.mxu0 %v2094
    %v3043 = vpop.f32.mrf.mxu0
    %v3044 = vadd.f32 %v2955, %v3043
    %v3045 = vpop.f32.mrf.mxu0
    %v3046 = vadd.f32 %v2957, %v3045
    %3047 = vmatmul.bf16.gmra.mxu0 %v2095
    %v3048 = vpop.f32.mrf.mxu0
    %v3049 = vadd.f32 %v2960, %v3048
    %v3050 = vpop.f32.mrf.mxu0
    %v3051 = vadd.f32 %v2962, %v3050
    %3052 = vdwg.mxu0
    %3053 = vmatpush.bf16.msra.mxu0 %v2559
    %3054 = vmatpush.bf16.msra.mxu0 %v2557
    %3055 = vmatpush.bf16.msra.mxu0 %v2555
    %3056 = vmatpush.bf16.msra.mxu0 %v2553
    %3057 = vmatpush.bf16.msra.mxu0 %v2551
    %3058 = vmatpush.bf16.msra.mxu0 %v2549
    %3059 = vmatpush.bf16.msra.mxu0 %v2547
    %3060 = vmatpush.bf16.msra.mxu0 %v2545
    %3061 = vmatmul.bf16.gmra.mxu0 %v2288
    %v3062 = vpop.f32.mrf.mxu0
    %v3063 = vadd.f32 %v2974, %v3062
    %v3064 = vpop.f32.mrf.mxu0
    %v3065 = vadd.f32 %v2976, %v3064
    %3066 = vmatmul.bf16.gmra.mxu0 %v2289
    %v3067 = vpop.f32.mrf.mxu0
    %v3068 = vadd.f32 %v2979, %v3067
    %v3069 = vpop.f32.mrf.mxu0
    %v3070 = vadd.f32 %v2981, %v3069
    %3071 = vmatmul.bf16.gmra.mxu0 %v2290
    %v3072 = vpop.f32.mrf.mxu0
    %v3073 = vadd.f32 %v2984, %v3072
    %v3074 = vpop.f32.mrf.mxu0
    %v3075 = vadd.f32 %v2986, %v3074
    %3076 = vmatmul.bf16.gmra.mxu0 %v2291
    %v3077 = vpop.f32.mrf.mxu0
    %v3078 = vadd.f32 %v2989, %v3077
    %v3079 = vpop.f32.mrf.mxu0
    %v3080 = vadd.f32 %v2991, %v3079
    %3081 = vmatmul.bf16.gmra.mxu0 %v2292
    %v3082 = vpop.f32.mrf.mxu0
    %v3083 = vadd.f32 %v2994, %v3082
    %v3084 = vpop.f32.mrf.mxu0
    %v3085 = vadd.f32 %v2996, %v3084
    %3086 = vmatmul.bf16.gmra.mxu0 %v2293
    %v3087 = vpop.f32.mrf.mxu0
    %v3088 = vadd.f32 %v2999, %v3087
    %v3089 = vpop.f32.mrf.mxu0
    %v3090 = vadd.f32 %v3001, %v3089
    %3091 = vmatmul.bf16.gmra.mxu0 %v2294
    %v3092 = vpop.f32.mrf.mxu0
    %v3093 = vadd.f32 %v3004, %v3092
    %v3094 = vpop.f32.mrf.mxu0
    %v3095 = vadd.f32 %v3006, %v3094
    %3096 = vmatmul.bf16.gmra.mxu0 %v2295
    %v3097 = vpop.f32.mrf.mxu0
    %v3098 = vadd.f32 %v3009, %v3097
    %v3099 = vpop.f32.mrf.mxu0
    %v3100 = vadd.f32 %v3011, %v3099
    %3101 = vmatmul.bf16.gmra.mxu0 %v2296
    %v3102 = vpop.f32.mrf.mxu0
    %v3103 = vadd.f32 %v3014, %v3102
    %v3104 = vpop.f32.mrf.mxu0
    %v3105 = vadd.f32 %v3016, %v3104
    %3106 = vmatmul.bf16.gmra.mxu0 %v2297
    %v3107 = vpop.f32.mrf.mxu0
    %v3108 = vadd.f32 %v3019, %v3107
    %v3109 = vpop.f32.mrf.mxu0
    %v3110 = vadd.f32 %v3021, %v3109
    %3111 = vmatmul.bf16.gmra.mxu0 %v2298
    %v3112 = vpop.f32.mrf.mxu0
    %v3113 = vadd.f32 %v3024, %v3112
    %v3114 = vpop.f32.mrf.mxu0
    %v3115 = vadd.f32 %v3026, %v3114
    %3116 = vmatmul.bf16.gmra.mxu0 %v2299
    %v3117 = vpop.f32.mrf.mxu0
    %v3118 = vadd.f32 %v3029, %v3117
    %v3119 = vpop.f32.mrf.mxu0
    %v3120 = vadd.f32 %v3031, %v3119
    %3121 = vmatmul.bf16.gmra.mxu0 %v2300
    %v3122 = vpop.f32.mrf.mxu0
    %v3123 = vadd.f32 %v3034, %v3122
    %v3124 = vpop.f32.mrf.mxu0
    %v3125 = vadd.f32 %v3036, %v3124
    %3126 = vmatmul.bf16.gmra.mxu0 %v2301
    %v3127 = vpop.f32.mrf.mxu0
    %v3128 = vadd.f32 %v3039, %v3127
    %v3129 = vpop.f32.mrf.mxu0
    %v3130 = vadd.f32 %v3041, %v3129
    %3131 = vmatmul.bf16.gmra.mxu0 %v2302
    %v3132 = vpop.f32.mrf.mxu0
    %v3133 = vadd.f32 %v3044, %v3132
    %v3134 = vpop.f32.mrf.mxu0
    %v3135 = vadd.f32 %v3046, %v3134
    %3136 = vmatmul.bf16.gmra.mxu0 %v2303
    %v3137 = vpop.f32.mrf.mxu0
    %v3138 = vadd.f32 %v3049, %v3137
    %v3139 = vpop.f32.mrf.mxu0
    %v3140 = vadd.f32 %v3051, %v3139
    %3141 = vdwg.mxu0
    %v3142 = vld [vmem:[%s6] sm:$0x3]
    %v3144 = vperm.slane %v3142, 0
    %v3145 = vperm.slane %v3142, 1
    %v3148 = vadd.f32 %v2796, %v3144
    %v3149 = vadd.f32 %v3063, %v3145
    %v3150 = vadd.f32 %v2798, %v3144
    %v3151 = vadd.f32 %v3065, %v3145
    %v3152 = vadd.f32 %v2801, %v3144
    %v3153 = vadd.f32 %v3068, %v3145
    %v3154 = vadd.f32 %v2803, %v3144
    %v3155 = vadd.f32 %v3070, %v3145
    %v3156 = vadd.f32 %v2806, %v3144
    %v3157 = vadd.f32 %v3073, %v3145
    %v3158 = vadd.f32 %v2808, %v3144
    %v3159 = vadd.f32 %v3075, %v3145
    %v3160 = vadd.f32 %v2811, %v3144
    %v3161 = vadd.f32 %v3078, %v3145
    %v3162 = vadd.f32 %v2813, %v3144
    %v3163 = vadd.f32 %v3080, %v3145
    %v3164 = vadd.f32 %v2816, %v3144
    %v3165 = vadd.f32 %v3083, %v3145
    %v3166 = vadd.f32 %v2818, %v3144
    %v3167 = vadd.f32 %v3085, %v3145
    %v3168 = vadd.f32 %v2821, %v3144
    %v3169 = vadd.f32 %v3088, %v3145
    %v3170 = vadd.f32 %v2823, %v3144
    %v3171 = vadd.f32 %v3090, %v3145
    %v3172 = vadd.f32 %v2826, %v3144
    %v3173 = vadd.f32 %v3093, %v3145
    %v3174 = vadd.f32 %v2828, %v3144
    %v3175 = vadd.f32 %v3095, %v3145
    %v3176 = vadd.f32 %v2831, %v3144
    %v3177 = vadd.f32 %v3098, %v3145
    %v3178 = vadd.f32 %v2833, %v3144
    %v3179 = vadd.f32 %v3100, %v3145
    %v3180 = vadd.f32 %v2836, %v3144
    %v3181 = vadd.f32 %v3103, %v3145
    %v3182 = vadd.f32 %v2838, %v3144
    %v3183 = vadd.f32 %v3105, %v3145
    %v3184 = vadd.f32 %v2841, %v3144
    %v3185 = vadd.f32 %v3108, %v3145
    %v3186 = vadd.f32 %v2843, %v3144
    %v3187 = vadd.f32 %v3110, %v3145
    %v3188 = vadd.f32 %v2846, %v3144
    %v3189 = vadd.f32 %v3113, %v3145
    %v3190 = vadd.f32 %v2848, %v3144
    %v3191 = vadd.f32 %v3115, %v3145
    %v3192 = vadd.f32 %v2851, %v3144
    %v3193 = vadd.f32 %v3118, %v3145
    %v3194 = vadd.f32 %v2853, %v3144
    %v3195 = vadd.f32 %v3120, %v3145
    %v3196 = vadd.f32 %v2856, %v3144
    %v3197 = vadd.f32 %v3123, %v3145
    %v3198 = vadd.f32 %v2858, %v3144
    %v3199 = vadd.f32 %v3125, %v3145
    %v3200 = vadd.f32 %v2861, %v3144
    %v3201 = vadd.f32 %v3128, %v3145
    %v3202 = vadd.f32 %v2863, %v3144
    %v3203 = vadd.f32 %v3130, %v3145
    %v3204 = vadd.f32 %v2866, %v3144
    %v3205 = vadd.f32 %v3133, %v3145
    %v3206 = vadd.f32 %v2868, %v3144
    %v3207 = vadd.f32 %v3135, %v3145
    %v3208 = vadd.f32 %v2871, %v3144
    %v3209 = vadd.f32 %v3138, %v3145
    %v3210 = vadd.f32 %v2873, %v3144
    %v3211 = vadd.f32 %v3140, %v3145
    %vm3212 = vcmp.gt.f32.partialorder %v3148, 0.0
    %vm3213 = vcmp.gt.f32.partialorder %v3149, 0.0
    %vm3214 = vcmp.gt.f32.partialorder %v3150, 0.0
    %vm3215 = vcmp.gt.f32.partialorder %v3151, 0.0
    %vm3216 = vcmp.gt.f32.partialorder %v3152, 0.0
    %vm3217 = vcmp.gt.f32.partialorder %v3153, 0.0
    %vm3218 = vcmp.gt.f32.partialorder %v3154, 0.0
    %vm3219 = vcmp.gt.f32.partialorder %v3155, 0.0
    %vm3220 = vcmp.gt.f32.partialorder %v3156, 0.0
    %vm3221 = vcmp.gt.f32.partialorder %v3157, 0.0
    %vm3222 = vcmp.gt.f32.partialorder %v3158, 0.0
    %vm3223 = vcmp.gt.f32.partialorder %v3159, 0.0
    %vm3224 = vcmp.gt.f32.partialorder %v3160, 0.0
    %vm3225 = vcmp.gt.f32.partialorder %v3161, 0.0
    %vm3226 = vcmp.gt.f32.partialorder %v3162, 0.0
    %vm3227 = vcmp.gt.f32.partialorder %v3163, 0.0
    %vm3228 = vcmp.gt.f32.partialorder %v3164, 0.0
    %vm3229 = vcmp.gt.f32.partialorder %v3165, 0.0
    %vm3230 = vcmp.gt.f32.partialorder %v3166, 0.0
    %vm3231 = vcmp.gt.f32.partialorder %v3167, 0.0
    %vm3232 = vcmp.gt.f32.partialorder %v3168, 0.0
    %vm3233 = vcmp.gt.f32.partialorder %v3169, 0.0
    %vm3234 = vcmp.gt.f32.partialorder %v3170, 0.0
    %vm3235 = vcmp.gt.f32.partialorder %v3171, 0.0
    %vm3236 = vcmp.gt.f32.partialorder %v3172, 0.0
    %vm3237 = vcmp.gt.f32.partialorder %v3173, 0.0
    %vm3238 = vcmp.gt.f32.partialorder %v3174, 0.0
    %vm3239 = vcmp.gt.f32.partialorder %v3175, 0.0
    %vm3240 = vcmp.gt.f32.partialorder %v3176, 0.0
    %vm3241 = vcmp.gt.f32.partialorder %v3177, 0.0
    %vm3242 = vcmp.gt.f32.partialorder %v3178, 0.0
    %vm3243 = vcmp.gt.f32.partialorder %v3179, 0.0
    %vm3244 = vcmp.gt.f32.partialorder %v3180, 0.0
    %vm3245 = vcmp.gt.f32.partialorder %v3181, 0.0
    %vm3246 = vcmp.gt.f32.partialorder %v3182, 0.0
    %vm3247 = vcmp.gt.f32.partialorder %v3183, 0.0
    %vm3248 = vcmp.gt.f32.partialorder %v3184, 0.0
    %vm3249 = vcmp.gt.f32.partialorder %v3185, 0.0
    %vm3250 = vcmp.gt.f32.partialorder %v3186, 0.0
    %vm3251 = vcmp.gt.f32.partialorder %v3187, 0.0
    %vm3252 = vcmp.gt.f32.partialorder %v3188, 0.0
    %vm3253 = vcmp.gt.f32.partialorder %v3189, 0.0
    %vm3254 = vcmp.gt.f32.partialorder %v3190, 0.0
    %vm3255 = vcmp.gt.f32.partialorder %v3191, 0.0
    %vm3256 = vcmp.gt.f32.partialorder %v3192, 0.0
    %vm3257 = vcmp.gt.f32.partialorder %v3193, 0.0
    %vm3258 = vcmp.gt.f32.partialorder %v3194, 0.0
    %vm3259 = vcmp.gt.f32.partialorder %v3195, 0.0
    %vm3260 = vcmp.gt.f32.partialorder %v3196, 0.0
    %vm3261 = vcmp.gt.f32.partialorder %v3197, 0.0
    %vm3262 = vcmp.gt.f32.partialorder %v3198, 0.0
    %vm3263 = vcmp.gt.f32.partialorder %v3199, 0.0
    %vm3264 = vcmp.gt.f32.partialorder %v3200, 0.0
    %vm3265 = vcmp.gt.f32.partialorder %v3201, 0.0
    %vm3266 = vcmp.gt.f32.partialorder %v3202, 0.0
    %vm3267 = vcmp.gt.f32.partialorder %v3203, 0.0
    %vm3268 = vcmp.gt.f32.partialorder %v3204, 0.0
    %vm3269 = vcmp.gt.f32.partialorder %v3205, 0.0
    %vm3270 = vcmp.gt.f32.partialorder %v3206, 0.0
    %vm3271 = vcmp.gt.f32.partialorder %v3207, 0.0
    %vm3272 = vcmp.gt.f32.partialorder %v3208, 0.0
    %vm3273 = vcmp.gt.f32.partialorder %v3209, 0.0
    %vm3274 = vcmp.gt.f32.partialorder %v3210, 0.0
    %vm3275 = vcmp.gt.f32.partialorder %v3211, 0.0
    %v3276 = vmul.f32 %v3148, 0.2
    %v3277 = vmul.f32 %v3149, 0.2
    %v3278 = vmul.f32 %v3150, 0.2
    %v3279 = vmul.f32 %v3151, 0.2
    %v3280 = vmul.f32 %v3152, 0.2
    %v3281 = vmul.f32 %v3153, 0.2
    %v3282 = vmul.f32 %v3154, 0.2
    %v3283 = vmul.f32 %v3155, 0.2
    %v3284 = vmul.f32 %v3156, 0.2
    %v3285 = vmul.f32 %v3157, 0.2
    %v3286 = vmul.f32 %v3158, 0.2
    %v3287 = vmul.f32 %v3159, 0.2
    %v3288 = vmul.f32 %v3160, 0.2
    %v3289 = vmul.f32 %v3161, 0.2
    %v3290 = vmul.f32 %v3162, 0.2
    %v3291 = vmul.f32 %v3163, 0.2
    %v3292 = vmul.f32 %v3164, 0.2
    %v3293 = vmul.f32 %v3165, 0.2
    %v3294 = vmul.f32 %v3166, 0.2
    %v3295 = vmul.f32 %v3167, 0.2
    %v3296 = vmul.f32 %v3168, 0.2
    %v3297 = vmul.f32 %v3169, 0.2
    %v3298 = vmul.f32 %v3170, 0.2
    %v3299 = vmul.f32 %v3171, 0.2
    %v3300 = vmul.f32 %v3172, 0.2
    %v3301 = vmul.f32 %v3173, 0.2
    %v3302 = vmul.f32 %v3174, 0.2
    %v3303 = vmul.f32 %v3175, 0.2
    %v3304 = vmul.f32 %v3176, 0.2
    %v3305 = vmul.f32 %v3177, 0.2
    %v3306 = vmul.f32 %v3178, 0.2
    %v3307 = vmul.f32 %v3179, 0.2
    %v3308 = vmul.f32 %v3180, 0.2
    %v3309 = vmul.f32 %v3181, 0.2
    %v3310 = vmul.f32 %v3182, 0.2
    %v3311 = vmul.f32 %v3183, 0.2
    %v3312 = vmul.f32 %v3184, 0.2
    %v3313 = vmul.f32 %v3185, 0.2
    %v3314 = vmul.f32 %v3186, 0.2
    %v3315 = vmul.f32 %v3187, 0.2
    %v3316 = vmul.f32 %v3188, 0.2
    %v3317 = vmul.f32 %v3189, 0.2
    %v3318 = vmul.f32 %v3190, 0.2
    %v3319 = vmul.f32 %v3191, 0.2
    %v3320 = vmul.f32 %v3192, 0.2
    %v3321 = vmul.f32 %v3193, 0.2
    %v3322 = vmul.f32 %v3194, 0.2
    %v3323 = vmul.f32 %v3195, 0.2
    %v3324 = vmul.f32 %v3196, 0.2
    %v3325 = vmul.f32 %v3197, 0.2
    %v3326 = vmul.f32 %v3198, 0.2
    %v3327 = vmul.f32 %v3199, 0.2
    %v3328 = vmul.f32 %v3200, 0.2
    %v3329 = vmul.f32 %v3201, 0.2
    %v3330 = vmul.f32 %v3202, 0.2
    %v3331 = vmul.f32 %v3203, 0.2
    %v3332 = vmul.f32 %v3204, 0.2
    %v3333 = vmul.f32 %v3205, 0.2
    %v3334 = vmul.f32 %v3206, 0.2
    %v3335 = vmul.f32 %v3207, 0.2
    %v3336 = vmul.f32 %v3208, 0.2
    %v3337 = vmul.f32 %v3209, 0.2
    %v3338 = vmul.f32 %v3210, 0.2
    %v3339 = vmul.f32 %v3211, 0.2
    %v3340 = vsel %vm3212, %v3148, %v3276
    %v3341 = vsel %vm3213, %v3149, %v3277
    %v3342 = vsel %vm3214, %v3150, %v3278
    %v3343 = vsel %vm3215, %v3151, %v3279
    %v3344 = vsel %vm3216, %v3152, %v3280
    %v3345 = vsel %vm3217, %v3153, %v3281
    %v3346 = vsel %vm3218, %v3154, %v3282
    %v3347 = vsel %vm3219, %v3155, %v3283
    %v3348 = vsel %vm3220, %v3156, %v3284
    %v3349 = vsel %vm3221, %v3157, %v3285
    %v3350 = vsel %vm3222, %v3158, %v3286
    %v3351 = vsel %vm3223, %v3159, %v3287
    %v3352 = vsel %vm3224, %v3160, %v3288
    %v3353 = vsel %vm3225, %v3161, %v3289
    %v3354 = vsel %vm3226, %v3162, %v3290
    %v3355 = vsel %vm3227, %v3163, %v3291
    %v3356 = vsel %vm3228, %v3164, %v3292
    %v3357 = vsel %vm3229, %v3165, %v3293
    %v3358 = vsel %vm3230, %v3166, %v3294
    %v3359 = vsel %vm3231, %v3167, %v3295
    %v3360 = vsel %vm3232, %v3168, %v3296
    %v3361 = vsel %vm3233, %v3169, %v3297
    %v3362 = vsel %vm3234, %v3170, %v3298
    %v3363 = vsel %vm3235, %v3171, %v3299
    %v3364 = vsel %vm3236, %v3172, %v3300
    %v3365 = vsel %vm3237, %v3173, %v3301
    %v3366 = vsel %vm3238, %v3174, %v3302
    %v3367 = vsel %vm3239, %v3175, %v3303
    %v3368 = vsel %vm3240, %v3176, %v3304
    %v3369 = vsel %vm3241, %v3177, %v3305
    %v3370 = vsel %vm3242, %v3178, %v3306
    %v3371 = vsel %vm3243, %v3179, %v3307
    %v3372 = vsel %vm3244, %v3180, %v3308
    %v3373 = vsel %vm3245, %v3181, %v3309
    %v3374 = vsel %vm3246, %v3182, %v3310
    %v3375 = vsel %vm3247, %v3183, %v3311
    %v3376 = vsel %vm3248, %v3184, %v3312
    %v3377 = vsel %vm3249, %v3185, %v3313
    %v3378 = vsel %vm3250, %v3186, %v3314
    %v3379 = vsel %vm3251, %v3187, %v3315
    %v3380 = vsel %vm3252, %v3188, %v3316
    %v3381 = vsel %vm3253, %v3189, %v3317
    %v3382 = vsel %vm3254, %v3190, %v3318
    %v3383 = vsel %vm3255, %v3191, %v3319
    %v3384 = vsel %vm3256, %v3192, %v3320
    %v3385 = vsel %vm3257, %v3193, %v3321
    %v3386 = vsel %vm3258, %v3194, %v3322
    %v3387 = vsel %vm3259, %v3195, %v3323
    %v3388 = vsel %vm3260, %v3196, %v3324
    %v3389 = vsel %vm3261, %v3197, %v3325
    %v3390 = vsel %vm3262, %v3198, %v3326
    %v3391 = vsel %vm3263, %v3199, %v3327
    %v3392 = vsel %vm3264, %v3200, %v3328
    %v3393 = vsel %vm3265, %v3201, %v3329
    %v3394 = vsel %vm3266, %v3202, %v3330
    %v3395 = vsel %vm3267, %v3203, %v3331
    %v3396 = vsel %vm3268, %v3204, %v3332
    %v3397 = vsel %vm3269, %v3205, %v3333
    %v3398 = vsel %vm3270, %v3206, %v3334
    %v3399 = vsel %vm3271, %v3207, %v3335
    %v3400 = vsel %vm3272, %v3208, %v3336
    %v3401 = vsel %vm3273, %v3209, %v3337
    %v3402 = vsel %vm3274, %v3210, %v3338
    %v3403 = vsel %vm3275, %v3211, %v3339
    %v3404 = vpack.c.bf16 %v3341, %v3340
    %v3405 = vpack.c.bf16 %v3343, %v3342
    %v3406 = vpack.c.bf16 %v3345, %v3344
    %v3407 = vpack.c.bf16 %v3347, %v3346
    %v3408 = vpack.c.bf16 %v3349, %v3348
    %v3409 = vpack.c.bf16 %v3351, %v3350
    %v3410 = vpack.c.bf16 %v3353, %v3352
    %v3411 = vpack.c.bf16 %v3355, %v3354
    %v3412 = vpack.c.bf16 %v3357, %v3356
    %v3413 = vpack.c.bf16 %v3359, %v3358
    %v3414 = vpack.c.bf16 %v3361, %v3360
    %v3415 = vpack.c.bf16 %v3363, %v3362
    %v3416 = vpack.c.bf16 %v3365, %v3364
    %v3417 = vpack.c.bf16 %v3367, %v3366
    %v3418 = vpack.c.bf16 %v3369, %v3368
    %v3419 = vpack.c.bf16 %v3371, %v3370
    %v3420 = vpack.c.bf16 %v3373, %v3372
    %v3421 = vpack.c.bf16 %v3375, %v3374
    %v3422 = vpack.c.bf16 %v3377, %v3376
    %v3423 = vpack.c.bf16 %v3379, %v3378
    %v3424 = vpack.c.bf16 %v3381, %v3380
    %v3425 = vpack.c.bf16 %v3383, %v3382
    %v3426 = vpack.c.bf16 %v3385, %v3384
    %v3427 = vpack.c.bf16 %v3387, %v3386
    %v3428 = vpack.c.bf16 %v3389, %v3388
    %v3429 = vpack.c.bf16 %v3391, %v3390
    %v3430 = vpack.c.bf16 %v3393, %v3392
    %v3431 = vpack.c.bf16 %v3395, %v3394
    %v3432 = vpack.c.bf16 %v3397, %v3396
    %v3433 = vpack.c.bf16 %v3399, %v3398
    %v3434 = vpack.c.bf16 %v3401, %v3400
    %v3435 = vpack.c.bf16 %v3403, %v3402
    %v3436 = vrot.slane %v3412, 4
    %vm3437 = vcmask 1047556
    %v3438 = vsel %vm3437, %v3436, %v3404
    %v3439 = vrot.slane %v3404, 4
    %v3440 = vsel %vm3437, %v3412, %v3439
    %v3442 = vunpack.c.l.s4 1983009808
    %v3443 = vunpack.c.0.s8 %v3442
    %v3444 = vperm.slane %v3438, %v3443
    %v3446 = vunpack.c.l.s4 1983009808
    %v3447 = vunpack.c.0.s8 %v3446
    %v3448 = vperm.slane %v3440, %v3447
    %v3449 = vrot.slane %v3416, 4
    %v3450 = vsel %vm3437, %v3449, %v3408
    %v3451 = vrot.slane %v3408, 4
    %v3452 = vsel %vm3437, %v3416, %v3451
    %v3454 = vunpack.c.l.s4 1983009808
    %v3455 = vunpack.c.0.s8 %v3454
    %v3456 = vperm.slane %v3450, %v3455
    %v3458 = vunpack.c.l.s4 1983009808
    %v3459 = vunpack.c.0.s8 %v3458
    %v3460 = vperm.slane %v3452, %v3459
    %v3461 = vrot.slane %v3456, 4
    %v3462 = vsel %vm3437, %v3461, %v3444
    %v3463 = vrot.slane %v3444, 4
    %v3464 = vsel %vm3437, %v3456, %v3463
    %v3466 = vunpack.c.l.s4 1934713408
    %v3467 = vunpack.c.0.s8 %v3466
    %v3468 = vperm.slane %v3462, %v3467
    %v3470 = vunpack.c.l.s4 1934713408
    %v3471 = vunpack.c.0.s8 %v3470
    %v3472 = vperm.slane %v3464, %v3471
    %v3473 = vrot.slane %v3460, 4
    %v3474 = vsel %vm3437, %v3473, %v3448
    %v3475 = vrot.slane %v3448, 4
    %v3476 = vsel %vm3437, %v3460, %v3475
    %v3478 = vunpack.c.l.s4 1934713408
    %v3479 = vunpack.c.0.s8 %v3478
    %v3480 = vperm.slane %v3474, %v3479
    %v3482 = vunpack.c.l.s4 1934713408
    %v3483 = vunpack.c.0.s8 %v3482
    %v3484 = vperm.slane %v3476, %v3483
    %v3485 = vrot.slane %v3480, 4
    %v3486 = vsel %vm3437, %v3485, %v3468
    %v3487 = vrot.slane %v3468, 4
    %v3488 = vsel %vm3437, %v3480, %v3487
    %v3489 = vrot.slane %v3484, 4
    %v3490 = vsel %vm3437, %v3489, %v3472
    %v3491 = vrot.slane %v3472, 4
    %v3492 = vsel %vm3437, %v3484, %v3491
    %v3493 = vrot.slane %v3414, 4
    %v3494 = vsel %vm3437, %v3493, %v3406
    %v3495 = vrot.slane %v3406, 4
    %v3496 = vsel %vm3437, %v3414, %v3495
    %v3498 = vunpack.c.l.s4 1983009808
    %v3499 = vunpack.c.0.s8 %v3498
    %v3500 = vperm.slane %v3494, %v3499
    %v3502 = vunpack.c.l.s4 1983009808
    %v3503 = vunpack.c.0.s8 %v3502
    %v3504 = vperm.slane %v3496, %v3503
    %v3505 = vrot.slane %v3418, 4
    %v3506 = vsel %vm3437, %v3505, %v3410
    %v3507 = vrot.slane %v3410, 4
    %v3508 = vsel %vm3437, %v3418, %v3507
    %v3510 = vunpack.c.l.s4 1983009808
    %v3511 = vunpack.c.0.s8 %v3510
    %v3512 = vperm.slane %v3506, %v3511
    %v3514 = vunpack.c.l.s4 1983009808
    %v3515 = vunpack.c.0.s8 %v3514
    %v3516 = vperm.slane %v3508, %v3515
    %v3517 = vrot.slane %v3512, 4
    %v3518 = vsel %vm3437, %v3517, %v3500
    %v3519 = vrot.slane %v3500, 4
    %v3520 = vsel %vm3437, %v3512, %v3519
    %v3522 = vunpack.c.l.s4 1934713408
    %v3523 = vunpack.c.0.s8 %v3522
    %v3524 = vperm.slane %v3518, %v3523
    %v3526 = vunpack.c.l.s4 1934713408
    %v3527 = vunpack.c.0.s8 %v3526
    %v3528 = vperm.slane %v3520, %v3527
    %v3529 = vrot.slane %v3516, 4
    %v3530 = vsel %vm3437, %v3529, %v3504
    %v3531 = vrot.slane %v3504, 4
    %v3532 = vsel %vm3437, %v3516, %v3531
    %v3534 = vunpack.c.l.s4 1934713408
    %v3535 = vunpack.c.0.s8 %v3534
    %v3536 = vperm.slane %v3530, %v3535
    %v3538 = vunpack.c.l.s4 1934713408
    %v3539 = vunpack.c.0.s8 %v3538
    %v3540 = vperm.slane %v3532, %v3539
    %v3541 = vrot.slane %v3536, 4
    %v3542 = vsel %vm3437, %v3541, %v3524
    %v3543 = vrot.slane %v3524, 4
    %v3544 = vsel %vm3437, %v3536, %v3543
    %v3545 = vrot.slane %v3540, 4
    %v3546 = vsel %vm3437, %v3545, %v3528
    %v3547 = vrot.slane %v3528, 4
    %v3548 = vsel %vm3437, %v3540, %v3547
    %v3549 = vrot.slane %v3428, 4
    %v3550 = vsel %vm3437, %v3549, %v3420
    %v3551 = vrot.slane %v3420, 4
    %v3552 = vsel %vm3437, %v3428, %v3551
    %v3554 = vunpack.c.l.s4 1983009808
    %v3555 = vunpack.c.0.s8 %v3554
    %v3556 = vperm.slane %v3550, %v3555
    %v3558 = vunpack.c.l.s4 1983009808
    %v3559 = vunpack.c.0.s8 %v3558
    %v3560 = vperm.slane %v3552, %v3559
    %v3561 = vrot.slane %v3432, 4
    %v3562 = vsel %vm3437, %v3561, %v3424
    %v3563 = vrot.slane %v3424, 4
    %v3564 = vsel %vm3437, %v3432, %v3563
    %v3566 = vunpack.c.l.s4 1983009808
    %v3567 = vunpack.c.0.s8 %v3566
    %v3568 = vperm.slane %v3562, %v3567
    %v3570 = vunpack.c.l.s4 1983009808
    %v3571 = vunpack.c.0.s8 %v3570
    %v3572 = vperm.slane %v3564, %v3571
    %v3573 = vrot.slane %v3568, 4
    %v3574 = vsel %vm3437, %v3573, %v3556
    %v3575 = vrot.slane %v3556, 4
    %v3576 = vsel %vm3437, %v3568, %v3575
    %v3578 = vunpack.c.l.s4 1934713408
    %v3579 = vunpack.c.0.s8 %v3578
    %v3580 = vperm.slane %v3574, %v3579
    %v3582 = vunpack.c.l.s4 1934713408
    %v3583 = vunpack.c.0.s8 %v3582
    %v3584 = vperm.slane %v3576, %v3583
    %v3585 = vrot.slane %v3572, 4
    %v3586 = vsel %vm3437, %v3585, %v3560
    %v3587 = vrot.slane %v3560, 4
    %v3588 = vsel %vm3437, %v3572, %v3587
    %v3590 = vunpack.c.l.s4 1934713408
    %v3591 = vunpack.c.0.s8 %v3590
    %v3592 = vperm.slane %v3586, %v3591
    %v3594 = vunpack.c.l.s4 1934713408
    %v3595 = vunpack.c.0.s8 %v3594
    %v3596 = vperm.slane %v3588, %v3595
    %v3597 = vrot.slane %v3592, 4
    %v3598 = vsel %vm3437, %v3597, %v3580
    %v3599 = vrot.slane %v3580, 4
    %v3600 = vsel %vm3437, %v3592, %v3599
    %v3601 = vrot.slane %v3596, 4
    %v3602 = vsel %vm3437, %v3601, %v3584
    %v3603 = vrot.slane %v3584, 4
    %v3604 = vsel %vm3437, %v3596, %v3603
    %v3605 = vrot.slane %v3430, 4
    %v3606 = vsel %vm3437, %v3605, %v3422
    %v3607 = vrot.slane %v3422, 4
    %v3608 = vsel %vm3437, %v3430, %v3607
    %v3610 = vunpack.c.l.s4 1983009808
    %v3611 = vunpack.c.0.s8 %v3610
    %v3612 = vperm.slane %v3606, %v3611
    %v3614 = vunpack.c.l.s4 1983009808
    %v3615 = vunpack.c.0.s8 %v3614
    %v3616 = vperm.slane %v3608, %v3615
    %v3617 = vrot.slane %v3434, 4
    %v3618 = vsel %vm3437, %v3617, %v3426
    %v3619 = vrot.slane %v3426, 4
    %v3620 = vsel %vm3437, %v3434, %v3619
    %v3622 = vunpack.c.l.s4 1983009808
    %v3623 = vunpack.c.0.s8 %v3622
    %v3624 = vperm.slane %v3618, %v3623
    %v3626 = vunpack.c.l.s4 1983009808
    %v3627 = vunpack.c.0.s8 %v3626
    %v3628 = vperm.slane %v3620, %v3627
    %v3629 = vrot.slane %v3624, 4
    %v3630 = vsel %vm3437, %v3629, %v3612
    %v3631 = vrot.slane %v3612, 4
    %v3632 = vsel %vm3437, %v3624, %v3631
    %v3634 = vunpack.c.l.s4 1934713408
    %v3635 = vunpack.c.0.s8 %v3634
    %v3636 = vperm.slane %v3630, %v3635
    %v3638 = vunpack.c.l.s4 1934713408
    %v3639 = vunpack.c.0.s8 %v3638
    %v3640 = vperm.slane %v3632, %v3639
    %v3641 = vrot.slane %v3628, 4
    %v3642 = vsel %vm3437, %v3641, %v3616
    %v3643 = vrot.slane %v3616, 4
    %v3644 = vsel %vm3437, %v3628, %v3643
    %v3646 = vunpack.c.l.s4 1934713408
    %v3647 = vunpack.c.0.s8 %v3646
    %v3648 = vperm.slane %v3642, %v3647
    %v3650 = vunpack.c.l.s4 1934713408
    %v3651 = vunpack.c.0.s8 %v3650
    %v3652 = vperm.slane %v3644, %v3651
    %v3653 = vrot.slane %v3648, 4
    %v3654 = vsel %vm3437, %v3653, %v3636
    %v3655 = vrot.slane %v3636, 4
    %v3656 = vsel %vm3437, %v3648, %v3655
    %v3657 = vrot.slane %v3652, 4
    %v3658 = vsel %vm3437, %v3657, %v3640
    %v3659 = vrot.slane %v3640, 4
    %v3660 = vsel %vm3437, %v3652, %v3659
    %v3661 = vrot.slane %v3413, 4
    %v3662 = vsel %vm3437, %v3661, %v3405
    %v3663 = vrot.slane %v3405, 4
    %v3664 = vsel %vm3437, %v3413, %v3663
    %v3666 = vunpack.c.l.s4 1983009808
    %v3667 = vunpack.c.0.s8 %v3666
    %v3668 = vperm.slane %v3662, %v3667
    %v3670 = vunpack.c.l.s4 1983009808
    %v3671 = vunpack.c.0.s8 %v3670
    %v3672 = vperm.slane %v3664, %v3671
    %v3673 = vrot.slane %v3417, 4
    %v3674 = vsel %vm3437, %v3673, %v3409
    %v3675 = vrot.slane %v3409, 4
    %v3676 = vsel %vm3437, %v3417, %v3675
    %v3678 = vunpack.c.l.s4 1983009808
    %v3679 = vunpack.c.0.s8 %v3678
    %v3680 = vperm.slane %v3674, %v3679
    %v3682 = vunpack.c.l.s4 1983009808
    %v3683 = vunpack.c.0.s8 %v3682
    %v3684 = vperm.slane %v3676, %v3683
    %v3685 = vrot.slane %v3680, 4
    %v3686 = vsel %vm3437, %v3685, %v3668
    %v3687 = vrot.slane %v3668, 4
    %v3688 = vsel %vm3437, %v3680, %v3687
    %v3690 = vunpack.c.l.s4 1934713408
    %v3691 = vunpack.c.0.s8 %v3690
    %v3692 = vperm.slane %v3686, %v3691
    %v3694 = vunpack.c.l.s4 1934713408
    %v3695 = vunpack.c.0.s8 %v3694
    %v3696 = vperm.slane %v3688, %v3695
    %v3697 = vrot.slane %v3684, 4
    %v3698 = vsel %vm3437, %v3697, %v3672
    %v3699 = vrot.slane %v3672, 4
    %v3700 = vsel %vm3437, %v3684, %v3699
    %v3702 = vunpack.c.l.s4 1934713408
    %v3703 = vunpack.c.0.s8 %v3702
    %v3704 = vperm.slane %v3698, %v3703
    %v3706 = vunpack.c.l.s4 1934713408
    %v3707 = vunpack.c.0.s8 %v3706
    %v3708 = vperm.slane %v3700, %v3707
    %v3709 = vrot.slane %v3704, 4
    %v3710 = vsel %vm3437, %v3709, %v3692
    %v3711 = vrot.slane %v3692, 4
    %v3712 = vsel %vm3437, %v3704, %v3711
    %v3713 = vrot.slane %v3708, 4
    %v3714 = vsel %vm3437, %v3713, %v3696
    %v3715 = vrot.slane %v3696, 4
    %v3716 = vsel %vm3437, %v3708, %v3715
    %v3717 = vrot.slane %v3415, 4
    %v3718 = vsel %vm3437, %v3717, %v3407
    %v3719 = vrot.slane %v3407, 4
    %v3720 = vsel %vm3437, %v3415, %v3719
    %v3722 = vunpack.c.l.s4 1983009808
    %v3723 = vunpack.c.0.s8 %v3722
    %v3724 = vperm.slane %v3718, %v3723
    %v3726 = vunpack.c.l.s4 1983009808
    %v3727 = vunpack.c.0.s8 %v3726
    %v3728 = vperm.slane %v3720, %v3727
    %v3729 = vrot.slane %v3419, 4
    %v3730 = vsel %vm3437, %v3729, %v3411
    %v3731 = vrot.slane %v3411, 4
    %v3732 = vsel %vm3437, %v3419, %v3731
    %v3734 = vunpack.c.l.s4 1983009808
    %v3735 = vunpack.c.0.s8 %v3734
    %v3736 = vperm.slane %v3730, %v3735
    %v3738 = vunpack.c.l.s4 1983009808
    %v3739 = vunpack.c.0.s8 %v3738
    %v3740 = vperm.slane %v3732, %v3739
    %v3741 = vrot.slane %v3736, 4
    %v3742 = vsel %vm3437, %v3741, %v3724
    %v3743 = vrot.slane %v3724, 4
    %v3744 = vsel %vm3437, %v3736, %v3743
    %v3746 = vunpack.c.l.s4 1934713408
    %v3747 = vunpack.c.0.s8 %v3746
    %v3748 = vperm.slane %v3742, %v3747
    %v3750 = vunpack.c.l.s4 1934713408
    %v3751 = vunpack.c.0.s8 %v3750
    %v3752 = vperm.slane %v3744, %v3751
    %v3753 = vrot.slane %v3740, 4
    %v3754 = vsel %vm3437, %v3753, %v3728
    %v3755 = vrot.slane %v3728, 4
    %v3756 = vsel %vm3437, %v3740, %v3755
    %v3758 = vunpack.c.l.s4 1934713408
    %v3759 = vunpack.c.0.s8 %v3758
    %v3760 = vperm.slane %v3754, %v3759
    %v3762 = vunpack.c.l.s4 1934713408
    %v3763 = vunpack.c.0.s8 %v3762
    %v3764 = vperm.slane %v3756, %v3763
    %v3765 = vrot.slane %v3760, 4
    %v3766 = vsel %vm3437, %v3765, %v3748
    %v3767 = vrot.slane %v3748, 4
    %v3768 = vsel %vm3437, %v3760, %v3767
    %v3769 = vrot.slane %v3764, 4
    %v3770 = vsel %vm3437, %v3769, %v3752
    %v3771 = vrot.slane %v3752, 4
    %v3772 = vsel %vm3437, %v3764, %v3771
    %v3773 = vrot.slane %v3429, 4
    %v3774 = vsel %vm3437, %v3773, %v3421
    %v3775 = vrot.slane %v3421, 4
    %v3776 = vsel %vm3437, %v3429, %v3775
    %v3778 = vunpack.c.l.s4 1983009808
    %v3779 = vunpack.c.0.s8 %v3778
    %v3780 = vperm.slane %v3774, %v3779
    %v3782 = vunpack.c.l.s4 1983009808
    %v3783 = vunpack.c.0.s8 %v3782
    %v3784 = vperm.slane %v3776, %v3783
    %v3785 = vrot.slane %v3433, 4
    %v3786 = vsel %vm3437, %v3785, %v3425
    %v3787 = vrot.slane %v3425, 4
    %v3788 = vsel %vm3437, %v3433, %v3787
    %v3790 = vunpack.c.l.s4 1983009808
    %v3791 = vunpack.c.0.s8 %v3790
    %v3792 = vperm.slane %v3786, %v3791
    %v3794 = vunpack.c.l.s4 1983009808
    %v3795 = vunpack.c.0.s8 %v3794
    %v3796 = vperm.slane %v3788, %v3795
    %v3797 = vrot.slane %v3792, 4
    %v3798 = vsel %vm3437, %v3797, %v3780
    %v3799 = vrot.slane %v3780, 4
    %v3800 = vsel %vm3437, %v3792, %v3799
    %v3802 = vunpack.c.l.s4 1934713408
    %v3803 = vunpack.c.0.s8 %v3802
    %v3804 = vperm.slane %v3798, %v3803
    %v3806 = vunpack.c.l.s4 1934713408
    %v3807 = vunpack.c.0.s8 %v3806
    %v3808 = vperm.slane %v3800, %v3807
    %v3809 = vrot.slane %v3796, 4
    %v3810 = vsel %vm3437, %v3809, %v3784
    %v3811 = vrot.slane %v3784, 4
    %v3812 = vsel %vm3437, %v3796, %v3811
    %v3814 = vunpack.c.l.s4 1934713408
    %v3815 = vunpack.c.0.s8 %v3814
    %v3816 = vperm.slane %v3810, %v3815
    %v3818 = vunpack.c.l.s4 1934713408
    %v3819 = vunpack.c.0.s8 %v3818
    %v3820 = vperm.slane %v3812, %v3819
    %v3821 = vrot.slane %v3816, 4
    %v3822 = vsel %vm3437, %v3821, %v3804
    %v3823 = vrot.slane %v3804, 4
    %v3824 = vsel %vm3437, %v3816, %v3823
    %v3825 = vrot.slane %v3820, 4
    %v3826 = vsel %vm3437, %v3825, %v3808
    %v3827 = vrot.slane %v3808, 4
    %v3828 = vsel %vm3437, %v3820, %v3827
    %v3829 = vrot.slane %v3431, 4
    %v3830 = vsel %vm3437, %v3829, %v3423
    %v3831 = vrot.slane %v3423, 4
    %v3832 = vsel %vm3437, %v3431, %v3831
    %v3834 = vunpack.c.l.s4 1983009808
    %v3835 = vunpack.c.0.s8 %v3834
    %v3836 = vperm.slane %v3830, %v3835
    %v3838 = vunpack.c.l.s4 1983009808
    %v3839 = vunpack.c.0.s8 %v3838
    %v3840 = vperm.slane %v3832, %v3839
    %v3841 = vrot.slane %v3435, 4
    %v3842 = vsel %vm3437, %v3841, %v3427
    %v3843 = vrot.slane %v3427, 4
    %v3844 = vsel %vm3437, %v3435, %v3843
    %v3846 = vunpack.c.l.s4 1983009808
    %v3847 = vunpack.c.0.s8 %v3846
    %v3848 = vperm.slane %v3842, %v3847
    %v3850 = vunpack.c.l.s4 1983009808
    %v3851 = vunpack.c.0.s8 %v3850
    %v3852 = vperm.slane %v3844, %v3851
    %v3853 = vrot.slane %v3848, 4
    %v3854 = vsel %vm3437, %v3853, %v3836
    %v3855 = vrot.slane %v3836, 4
    %v3856 = vsel %vm3437, %v3848, %v3855
    %v3858 = vunpack.c.l.s4 1934713408
    %v3859 = vunpack.c.0.s8 %v3858
    %v3860 = vperm.slane %v3854, %v3859
    %v3862 = vunpack.c.l.s4 1934713408
    %v3863 = vunpack.c.0.s8 %v3862
    %v3864 = vperm.slane %v3856, %v3863
    %v3865 = vrot.slane %v3852, 4
    %v3866 = vsel %vm3437, %v3865, %v3840
    %v3867 = vrot.slane %v3840, 4
    %v3868 = vsel %vm3437, %v3852, %v3867
    %v3870 = vunpack.c.l.s4 1934713408
    %v3871 = vunpack.c.0.s8 %v3870
    %v3872 = vperm.slane %v3866, %v3871
    %v3874 = vunpack.c.l.s4 1934713408
    %v3875 = vunpack.c.0.s8 %v3874
    %v3876 = vperm.slane %v3868, %v3875
    %v3877 = vrot.slane %v3872, 4
    %v3878 = vsel %vm3437, %v3877, %v3860
    %v3879 = vrot.slane %v3860, 4
    %v3880 = vsel %vm3437, %v3872, %v3879
    %v3881 = vrot.slane %v3876, 4
    %v3882 = vsel %vm3437, %v3881, %v3864
    %v3883 = vrot.slane %v3864, 4
    %v3884 = vsel %vm3437, %v3876, %v3883
    %v3887 = vpack.i.b16 %v3542, %v3486
    %v3888 = vshrl.u32 %v3486, 16
    %v3889 = vshrl.u32 %v3542, 16
    %v3890 = vpack.i.b16 %v3889, %v3888
    %v3893 = vpack.i.b16 %v3544, %v3488
    %v3894 = vshrl.u32 %v3488, 16
    %v3895 = vshrl.u32 %v3544, 16
    %v3896 = vpack.i.b16 %v3895, %v3894
    %v3899 = vpack.i.b16 %v3546, %v3490
    %v3900 = vshrl.u32 %v3490, 16
    %v3901 = vshrl.u32 %v3546, 16
    %v3902 = vpack.i.b16 %v3901, %v3900
    %v3905 = vpack.i.b16 %v3548, %v3492
    %v3906 = vshrl.u32 %v3492, 16
    %v3907 = vshrl.u32 %v3548, 16
    %v3908 = vpack.i.b16 %v3907, %v3906
    %v3911 = vpack.i.b16 %v3766, %v3710
    %v3912 = vshrl.u32 %v3710, 16
    %v3913 = vshrl.u32 %v3766, 16
    %v3914 = vpack.i.b16 %v3913, %v3912
    %v3917 = vpack.i.b16 %v3768, %v3712
    %v3918 = vshrl.u32 %v3712, 16
    %v3919 = vshrl.u32 %v3768, 16
    %v3920 = vpack.i.b16 %v3919, %v3918
    %v3923 = vpack.i.b16 %v3770, %v3714
    %v3924 = vshrl.u32 %v3714, 16
    %v3925 = vshrl.u32 %v3770, 16
    %v3926 = vpack.i.b16 %v3925, %v3924
    %v3929 = vpack.i.b16 %v3772, %v3716
    %v3930 = vshrl.u32 %v3716, 16
    %v3931 = vshrl.u32 %v3772, 16
    %v3932 = vpack.i.b16 %v3931, %v3930
    %v3935 = vpack.i.b16 %v3654, %v3598
    %v3936 = vshrl.u32 %v3598, 16
    %v3937 = vshrl.u32 %v3654, 16
    %v3938 = vpack.i.b16 %v3937, %v3936
    %v3941 = vpack.i.b16 %v3656, %v3600
    %v3942 = vshrl.u32 %v3600, 16
    %v3943 = vshrl.u32 %v3656, 16
    %v3944 = vpack.i.b16 %v3943, %v3942
    %v3947 = vpack.i.b16 %v3658, %v3602
    %v3948 = vshrl.u32 %v3602, 16
    %v3949 = vshrl.u32 %v3658, 16
    %v3950 = vpack.i.b16 %v3949, %v3948
    %v3953 = vpack.i.b16 %v3660, %v3604
    %v3954 = vshrl.u32 %v3604, 16
    %v3955 = vshrl.u32 %v3660, 16
    %v3956 = vpack.i.b16 %v3955, %v3954
    %v3959 = vpack.i.b16 %v3878, %v3822
    %v3960 = vshrl.u32 %v3822, 16
    %v3961 = vshrl.u32 %v3878, 16
    %v3962 = vpack.i.b16 %v3961, %v3960
    %v3965 = vpack.i.b16 %v3880, %v3824
    %v3966 = vshrl.u32 %v3824, 16
    %v3967 = vshrl.u32 %v3880, 16
    %v3968 = vpack.i.b16 %v3967, %v3966
    %v3971 = vpack.i.b16 %v3882, %v3826
    %v3972 = vshrl.u32 %v3826, 16
    %v3973 = vshrl.u32 %v3882, 16
    %v3974 = vpack.i.b16 %v3973, %v3972
    %v3977 = vpack.i.b16 %v3884, %v3828
    %v3978 = vshrl.u32 %v3828, 16
    %v3979 = vshrl.u32 %v3884, 16
    %v3980 = vpack.i.b16 %v3979, %v3978
    %v3981 = vunpack.c.l.b16 %v3887
    %v3982 = vunpack.c.h.b16 %v3887
    %v3983 = vunpack.c.l.b16 %v3935
    %v3984 = vunpack.c.h.b16 %v3935
    %v3985 = vpack.c.b16 %v3983, %v3981
    %v3986 = vpack.c.b16 %v3984, %v3982
    %v3989 = vunpack.c.l.b16 %v3890
    %v3990 = vunpack.c.h.b16 %v3890
    %v3991 = vunpack.c.l.b16 %v3938
    %v3992 = vunpack.c.h.b16 %v3938
    %v3993 = vpack.c.b16 %v3991, %v3989
    %v3994 = vpack.c.b16 %v3992, %v3990
    %v3997 = vunpack.c.l.b16 %v3893
    %v3998 = vunpack.c.h.b16 %v3893
    %v3999 = vunpack.c.l.b16 %v3941
    %v4000 = vunpack.c.h.b16 %v3941
    %v4001 = vpack.c.b16 %v3999, %v3997
    %v4002 = vpack.c.b16 %v4000, %v3998
    %v4005 = vunpack.c.l.b16 %v3896
    %v4006 = vunpack.c.h.b16 %v3896
    %v4007 = vunpack.c.l.b16 %v3944
    %v4008 = vunpack.c.h.b16 %v3944
    %v4009 = vpack.c.b16 %v4007, %v4005
    %v4010 = vpack.c.b16 %v4008, %v4006
    %v4013 = vunpack.c.l.b16 %v3899
    %v4014 = vunpack.c.h.b16 %v3899
    %v4015 = vunpack.c.l.b16 %v3947
    %v4016 = vunpack.c.h.b16 %v3947
    %v4017 = vpack.c.b16 %v4015, %v4013
    %v4018 = vpack.c.b16 %v4016, %v4014
    %v4021 = vunpack.c.l.b16 %v3902
    %v4022 = vunpack.c.h.b16 %v3902
    %v4023 = vunpack.c.l.b16 %v3950
    %v4024 = vunpack.c.h.b16 %v3950
    %v4025 = vpack.c.b16 %v4023, %v4021
    %v4026 = vpack.c.b16 %v4024, %v4022
    %v4029 = vunpack.c.l.b16 %v3905
    %v4030 = vunpack.c.h.b16 %v3905
    %v4031 = vunpack.c.l.b16 %v3953
    %v4032 = vunpack.c.h.b16 %v3953
    %v4033 = vpack.c.b16 %v4031, %v4029
    %v4034 = vpack.c.b16 %v4032, %v4030
    %v4037 = vunpack.c.l.b16 %v3908
    %v4038 = vunpack.c.h.b16 %v3908
    %v4039 = vunpack.c.l.b16 %v3956
    %v4040 = vunpack.c.h.b16 %v3956
    %v4041 = vpack.c.b16 %v4039, %v4037
    %v4042 = vpack.c.b16 %v4040, %v4038
    %v4045 = vunpack.c.l.b16 %v3911
    %v4046 = vunpack.c.h.b16 %v3911
    %v4047 = vunpack.c.l.b16 %v3959
    %v4048 = vunpack.c.h.b16 %v3959
    %v4049 = vpack.c.b16 %v4047, %v4045
    %v4050 = vpack.c.b16 %v4048, %v4046
    %v4053 = vunpack.c.l.b16 %v3914
    %v4054 = vunpack.c.h.b16 %v3914
    %v4055 = vunpack.c.l.b16 %v3962
    %v4056 = vunpack.c.h.b16 %v3962
    %v4057 = vpack.c.b16 %v4055, %v4053
    %v4058 = vpack.c.b16 %v4056, %v4054
    %v4061 = vunpack.c.l.b16 %v3917
    %v4062 = vunpack.c.h.b16 %v3917
    %v4063 = vunpack.c.l.b16 %v3965
    %v4064 = vunpack.c.h.b16 %v3965
    %v4065 = vpack.c.b16 %v4063, %v4061
    %v4066 = vpack.c.b16 %v4064, %v4062
    %v4069 = vunpack.c.l.b16 %v3920
    %v4070 = vunpack.c.h.b16 %v3920
    %v4071 = vunpack.c.l.b16 %v3968
    %v4072 = vunpack.c.h.b16 %v3968
    %v4073 = vpack.c.b16 %v4071, %v4069
    %v4074 = vpack.c.b16 %v4072, %v4070
    %v4077 = vunpack.c.l.b16 %v3923
    %v4078 = vunpack.c.h.b16 %v3923
    %v4079 = vunpack.c.l.b16 %v3971
    %v4080 = vunpack.c.h.b16 %v3971
    %v4081 = vpack.c.b16 %v4079, %v4077
    %v4082 = vpack.c.b16 %v4080, %v4078
    %v4085 = vunpack.c.l.b16 %v3926
    %v4086 = vunpack.c.h.b16 %v3926
    %v4087 = vunpack.c.l.b16 %v3974
    %v4088 = vunpack.c.h.b16 %v3974
    %v4089 = vpack.c.b16 %v4087, %v4085
    %v4090 = vpack.c.b16 %v4088, %v4086
    %v4093 = vunpack.c.l.b16 %v3929
    %v4094 = vunpack.c.h.b16 %v3929
    %v4095 = vunpack.c.l.b16 %v3977
    %v4096 = vunpack.c.h.b16 %v3977
    %v4097 = vpack.c.b16 %v4095, %v4093
    %v4098 = vpack.c.b16 %v4096, %v4094
    %v4101 = vunpack.c.l.b16 %v3932
    %v4102 = vunpack.c.h.b16 %v3932
    %v4103 = vunpack.c.l.b16 %v3980
    %v4104 = vunpack.c.h.b16 %v3980
    %v4105 = vpack.c.b16 %v4103, %v4101
    %v4106 = vpack.c.b16 %v4104, %v4102
    %v4109 = vld [vmem:[#allocation5] sm:$0xf]
    %v4110 = vld [vmem:[#allocation5 + $0x4] sm:$0xf]
    %v4111 = vld [vmem:[#allocation5 + $0x8] sm:$0xf]
    %v4112 = vld [vmem:[#allocation5 + $0xc] sm:$0xf]
    %v4113 = vld [vmem:[#allocation5 + $0x10] sm:$0xf]
    %v4114 = vld [vmem:[#allocation5 + $0x14] sm:$0xf]
    %v4115 = vld [vmem:[#allocation5 + $0x18] sm:$0xf]
    %v4116 = vld [vmem:[#allocation5 + $0x1c] sm:$0xf]
    %v4117 = vld [vmem:[#allocation5 + $0x20] sm:$0xf]
    %v4118 = vld [vmem:[#allocation5 + $0x24] sm:$0xf]
    %v4119 = vld [vmem:[#allocation5 + $0x28] sm:$0xf]
    %v4120 = vld [vmem:[#allocation5 + $0x2c] sm:$0xf]
    %v4121 = vld [vmem:[#allocation5 + $0x30] sm:$0xf]
    %v4122 = vld [vmem:[#allocation5 + $0x34] sm:$0xf]
    %v4123 = vld [vmem:[#allocation5 + $0x38] sm:$0xf]
    %v4124 = vld [vmem:[#allocation5 + $0x3c] sm:$0xf]
    %v4125 = vld [vmem:[#allocation5 + $0x40] sm:$0xf]
    %v4126 = vld [vmem:[#allocation5 + $0x44] sm:$0xf]
    %v4127 = vld [vmem:[#allocation5 + $0x48] sm:$0xf]
    %v4128 = vld [vmem:[#allocation5 + $0x4c] sm:$0xf]
    %v4129 = vld [vmem:[#allocation5 + $0x50] sm:$0xf]
    %v4130 = vld [vmem:[#allocation5 + $0x54] sm:$0xf]
    %v4131 = vld [vmem:[#allocation5 + $0x58] sm:$0xf]
    %v4132 = vld [vmem:[#allocation5 + $0x5c] sm:$0xf]
    %v4133 = vld [vmem:[#allocation5 + $0x60] sm:$0xf]
    %v4134 = vld [vmem:[#allocation5 + $0x64] sm:$0xf]
    %v4135 = vld [vmem:[#allocation5 + $0x68] sm:$0xf]
    %v4136 = vld [vmem:[#allocation5 + $0x6c] sm:$0xf]
    %v4137 = vld [vmem:[#allocation5 + $0x70] sm:$0xf]
    %v4138 = vld [vmem:[#allocation5 + $0x74] sm:$0xf]
    %v4139 = vld [vmem:[#allocation5 + $0x78] sm:$0xf]
    %v4140 = vld [vmem:[#allocation5 + $0x7c] sm:$0xf]
    %v4141 = vld [vmem:[#allocation5 + $0x80] sm:$0xf]
    %v4142 = vld [vmem:[#allocation5 + $0x84] sm:$0xf]
    %v4143 = vld [vmem:[#allocation5 + $0x88] sm:$0xf]
    %v4144 = vld [vmem:[#allocation5 + $0x8c] sm:$0xf]
    %v4145 = vld [vmem:[#allocation5 + $0x90] sm:$0xf]
    %v4146 = vld [vmem:[#allocation5 + $0x94] sm:$0xf]
    %v4147 = vld [vmem:[#allocation5 + $0x98] sm:$0xf]
    %v4148 = vld [vmem:[#allocation5 + $0x9c] sm:$0xf]
    %v4149 = vld [vmem:[#allocation5 + $0xa0] sm:$0xf]
    %v4150 = vld [vmem:[#allocation5 + $0xa4] sm:$0xf]
    %v4151 = vld [vmem:[#allocation5 + $0xa8] sm:$0xf]
    %v4152 = vld [vmem:[#allocation5 + $0xac] sm:$0xf]
    %v4153 = vld [vmem:[#allocation5 + $0xb0] sm:$0xf]
    %v4154 = vld [vmem:[#allocation5 + $0xb4] sm:$0xf]
    %v4155 = vld [vmem:[#allocation5 + $0xb8] sm:$0xf]
    %v4156 = vld [vmem:[#allocation5 + $0xbc] sm:$0xf]
    %v4157 = vld [vmem:[#allocation5 + $0xc0] sm:$0xf]
    %v4158 = vld [vmem:[#allocation5 + $0xc4] sm:$0xf]
    %v4159 = vld [vmem:[#allocation5 + $0xc8] sm:$0xf]
    %v4160 = vld [vmem:[#allocation5 + $0xcc] sm:$0xf]
    %v4161 = vld [vmem:[#allocation5 + $0xd0] sm:$0xf]
    %v4162 = vld [vmem:[#allocation5 + $0xd4] sm:$0xf]
    %v4163 = vld [vmem:[#allocation5 + $0xd8] sm:$0xf]
    %v4164 = vld [vmem:[#allocation5 + $0xdc] sm:$0xf]
    %v4165 = vld [vmem:[#allocation5 + $0xe0] sm:$0xf]
    %v4166 = vld [vmem:[#allocation5 + $0xe4] sm:$0xf]
    %v4167 = vld [vmem:[#allocation5 + $0xe8] sm:$0xf]
    %v4168 = vld [vmem:[#allocation5 + $0xec] sm:$0xf]
    %v4169 = vld [vmem:[#allocation5 + $0xf0] sm:$0xf]
    %v4170 = vld [vmem:[#allocation5 + $0xf4] sm:$0xf]
    %v4171 = vld [vmem:[#allocation5 + $0xf8] sm:$0xf]
    %v4172 = vld [vmem:[#allocation5 + $0xfc] sm:$0xf]
    %v4173 = vld [vmem:[#allocation5 + $0x100] sm:$0xf]
    %v4174 = vld [vmem:[#allocation5 + $0x104] sm:$0xf]
    %v4175 = vld [vmem:[#allocation5 + $0x108] sm:$0xf]
    %v4176 = vld [vmem:[#allocation5 + $0x10c] sm:$0xf]
    %v4177 = vld [vmem:[#allocation5 + $0x110] sm:$0xf]
    %v4178 = vld [vmem:[#allocation5 + $0x114] sm:$0xf]
    %v4179 = vld [vmem:[#allocation5 + $0x118] sm:$0xf]
    %v4180 = vld [vmem:[#allocation5 + $0x11c] sm:$0xf]
    %v4181 = vld [vmem:[#allocation5 + $0x120] sm:$0xf]
    %v4182 = vld [vmem:[#allocation5 + $0x124] sm:$0xf]
    %v4183 = vld [vmem:[#allocation5 + $0x128] sm:$0xf]
    %v4184 = vld [vmem:[#allocation5 + $0x12c] sm:$0xf]
    %v4185 = vld [vmem:[#allocation5 + $0x130] sm:$0xf]
    %v4186 = vld [vmem:[#allocation5 + $0x134] sm:$0xf]
    %v4187 = vld [vmem:[#allocation5 + $0x138] sm:$0xf]
    %v4188 = vld [vmem:[#allocation5 + $0x13c] sm:$0xf]
    %v4189 = vld [vmem:[#allocation5 + $0x140] sm:$0xf]
    %v4190 = vld [vmem:[#allocation5 + $0x144] sm:$0xf]
    %v4191 = vld [vmem:[#allocation5 + $0x148] sm:$0xf]
    %v4192 = vld [vmem:[#allocation5 + $0x14c] sm:$0xf]
    %v4193 = vld [vmem:[#allocation5 + $0x150] sm:$0xf]
    %v4194 = vld [vmem:[#allocation5 + $0x154] sm:$0xf]
    %v4195 = vld [vmem:[#allocation5 + $0x158] sm:$0xf]
    %v4196 = vld [vmem:[#allocation5 + $0x15c] sm:$0xf]
    %v4197 = vld [vmem:[#allocation5 + $0x160] sm:$0xf]
    %v4198 = vld [vmem:[#allocation5 + $0x164] sm:$0xf]
    %v4199 = vld [vmem:[#allocation5 + $0x168] sm:$0xf]
    %v4200 = vld [vmem:[#allocation5 + $0x16c] sm:$0xf]
    %v4201 = vld [vmem:[#allocation5 + $0x170] sm:$0xf]
    %v4202 = vld [vmem:[#allocation5 + $0x174] sm:$0xf]
    %v4203 = vld [vmem:[#allocation5 + $0x178] sm:$0xf]
    %v4204 = vld [vmem:[#allocation5 + $0x17c] sm:$0xf]
    %v4205 = vld [vmem:[#allocation5 + $0x180] sm:$0xf]
    %v4206 = vld [vmem:[#allocation5 + $0x184] sm:$0xf]
    %v4207 = vld [vmem:[#allocation5 + $0x188] sm:$0xf]
    %v4208 = vld [vmem:[#allocation5 + $0x18c] sm:$0xf]
    %v4209 = vld [vmem:[#allocation5 + $0x190] sm:$0xf]
    %v4210 = vld [vmem:[#allocation5 + $0x194] sm:$0xf]
    %v4211 = vld [vmem:[#allocation5 + $0x198] sm:$0xf]
    %v4212 = vld [vmem:[#allocation5 + $0x19c] sm:$0xf]
    %v4213 = vld [vmem:[#allocation5 + $0x1a0] sm:$0xf]
    %v4214 = vld [vmem:[#allocation5 + $0x1a4] sm:$0xf]
    %v4215 = vld [vmem:[#allocation5 + $0x1a8] sm:$0xf]
    %v4216 = vld [vmem:[#allocation5 + $0x1ac] sm:$0xf]
    %v4217 = vld [vmem:[#allocation5 + $0x1b0] sm:$0xf]
    %v4218 = vld [vmem:[#allocation5 + $0x1b4] sm:$0xf]
    %v4219 = vld [vmem:[#allocation5 + $0x1b8] sm:$0xf]
    %v4220 = vld [vmem:[#allocation5 + $0x1bc] sm:$0xf]
    %v4221 = vld [vmem:[#allocation5 + $0x1c0] sm:$0xf]
    %v4222 = vld [vmem:[#allocation5 + $0x1c4] sm:$0xf]
    %v4223 = vld [vmem:[#allocation5 + $0x1c8] sm:$0xf]
    %v4224 = vld [vmem:[#allocation5 + $0x1cc] sm:$0xf]
    %v4225 = vld [vmem:[#allocation5 + $0x1d0] sm:$0xf]
    %v4226 = vld [vmem:[#allocation5 + $0x1d4] sm:$0xf]
    %v4227 = vld [vmem:[#allocation5 + $0x1d8] sm:$0xf]
    %v4228 = vld [vmem:[#allocation5 + $0x1dc] sm:$0xf]
    %v4229 = vld [vmem:[#allocation5 + $0x1e0] sm:$0xf]
    %v4230 = vld [vmem:[#allocation5 + $0x1e4] sm:$0xf]
    %v4231 = vld [vmem:[#allocation5 + $0x1e8] sm:$0xf]
    %v4232 = vld [vmem:[#allocation5 + $0x1ec] sm:$0xf]
    %v4233 = vld [vmem:[#allocation5 + $0x1f0] sm:$0xf]
    %v4234 = vld [vmem:[#allocation5 + $0x1f4] sm:$0xf]
    %v4235 = vld [vmem:[#allocation5 + $0x1f8] sm:$0xf]
    %v4236 = vld [vmem:[#allocation5 + $0x1fc] sm:$0xf]
    %v4237 = vld [vmem:[#allocation5 + $0x200] sm:$0xf]
    %v4238 = vld [vmem:[#allocation5 + $0x204] sm:$0xf]
    %v4239 = vld [vmem:[#allocation5 + $0x208] sm:$0xf]
    %v4240 = vld [vmem:[#allocation5 + $0x20c] sm:$0xf]
    %v4241 = vld [vmem:[#allocation5 + $0x210] sm:$0xf]
    %v4242 = vld [vmem:[#allocation5 + $0x214] sm:$0xf]
    %v4243 = vld [vmem:[#allocation5 + $0x218] sm:$0xf]
    %v4244 = vld [vmem:[#allocation5 + $0x21c] sm:$0xf]
    %v4245 = vld [vmem:[#allocation5 + $0x220] sm:$0xf]
    %v4246 = vld [vmem:[#allocation5 + $0x224] sm:$0xf]
    %v4247 = vld [vmem:[#allocation5 + $0x228] sm:$0xf]
    %v4248 = vld [vmem:[#allocation5 + $0x22c] sm:$0xf]
    %v4249 = vld [vmem:[#allocation5 + $0x230] sm:$0xf]
    %v4250 = vld [vmem:[#allocation5 + $0x234] sm:$0xf]
    %v4251 = vld [vmem:[#allocation5 + $0x238] sm:$0xf]
    %v4252 = vld [vmem:[#allocation5 + $0x23c] sm:$0xf]
    %v4253 = vld [vmem:[#allocation5 + $0x240] sm:$0xf]
    %v4254 = vld [vmem:[#allocation5 + $0x244] sm:$0xf]
    %v4255 = vld [vmem:[#allocation5 + $0x248] sm:$0xf]
    %v4256 = vld [vmem:[#allocation5 + $0x24c] sm:$0xf]
    %v4257 = vld [vmem:[#allocation5 + $0x250] sm:$0xf]
    %v4258 = vld [vmem:[#allocation5 + $0x254] sm:$0xf]
    %v4259 = vld [vmem:[#allocation5 + $0x258] sm:$0xf]
    %v4260 = vld [vmem:[#allocation5 + $0x25c] sm:$0xf]
    %v4261 = vld [vmem:[#allocation5 + $0x260] sm:$0xf]
    %v4262 = vld [vmem:[#allocation5 + $0x264] sm:$0xf]
    %v4263 = vld [vmem:[#allocation5 + $0x268] sm:$0xf]
    %v4264 = vld [vmem:[#allocation5 + $0x26c] sm:$0xf]
    %v4265 = vld [vmem:[#allocation5 + $0x270] sm:$0xf]
    %v4266 = vld [vmem:[#allocation5 + $0x274] sm:$0xf]
    %v4267 = vld [vmem:[#allocation5 + $0x278] sm:$0xf]
    %v4268 = vld [vmem:[#allocation5 + $0x27c] sm:$0xf]
    %v4269 = vld [vmem:[#allocation5 + $0x280] sm:$0xf]
    %v4270 = vld [vmem:[#allocation5 + $0x284] sm:$0xf]
    %v4271 = vld [vmem:[#allocation5 + $0x288] sm:$0xf]
    %v4272 = vld [vmem:[#allocation5 + $0x28c] sm:$0xf]
    %v4273 = vld [vmem:[#allocation5 + $0x290] sm:$0xf]
    %v4274 = vld [vmem:[#allocation5 + $0x294] sm:$0xf]
    %v4275 = vld [vmem:[#allocation5 + $0x298] sm:$0xf]
    %v4276 = vld [vmem:[#allocation5 + $0x29c] sm:$0xf]
    %v4277 = vld [vmem:[#allocation5 + $0x2a0] sm:$0xf]
    %v4278 = vld [vmem:[#allocation5 + $0x2a4] sm:$0xf]
    %v4279 = vld [vmem:[#allocation5 + $0x2a8] sm:$0xf]
    %v4280 = vld [vmem:[#allocation5 + $0x2ac] sm:$0xf]
    %v4281 = vld [vmem:[#allocation5 + $0x2b0] sm:$0xf]
    %v4282 = vld [vmem:[#allocation5 + $0x2b4] sm:$0xf]
    %v4283 = vld [vmem:[#allocation5 + $0x2b8] sm:$0xf]
    %v4284 = vld [vmem:[#allocation5 + $0x2bc] sm:$0xf]
    %v4285 = vld [vmem:[#allocation5 + $0x2c0] sm:$0xf]
    %v4286 = vld [vmem:[#allocation5 + $0x2c4] sm:$0xf]
    %v4287 = vld [vmem:[#allocation5 + $0x2c8] sm:$0xf]
    %v4288 = vld [vmem:[#allocation5 + $0x2cc] sm:$0xf]
    %v4289 = vld [vmem:[#allocation5 + $0x2d0] sm:$0xf]
    %v4290 = vld [vmem:[#allocation5 + $0x2d4] sm:$0xf]
    %v4291 = vld [vmem:[#allocation5 + $0x2d8] sm:$0xf]
    %v4292 = vld [vmem:[#allocation5 + $0x2dc] sm:$0xf]
    %v4293 = vld [vmem:[#allocation5 + $0x2e0] sm:$0xf]
    %v4294 = vld [vmem:[#allocation5 + $0x2e4] sm:$0xf]
    %v4295 = vld [vmem:[#allocation5 + $0x2e8] sm:$0xf]
    %v4296 = vld [vmem:[#allocation5 + $0x2ec] sm:$0xf]
    %v4297 = vld [vmem:[#allocation5 + $0x2f0] sm:$0xf]
    %v4298 = vld [vmem:[#allocation5 + $0x2f4] sm:$0xf]
    %v4299 = vld [vmem:[#allocation5 + $0x2f8] sm:$0xf]
    %v4300 = vld [vmem:[#allocation5 + $0x2fc] sm:$0xf]
    %v4301 = vld [vmem:[#allocation5 + $0x300] sm:$0xf]
    %v4302 = vld [vmem:[#allocation5 + $0x304] sm:$0xf]
    %v4303 = vld [vmem:[#allocation5 + $0x308] sm:$0xf]
    %v4304 = vld [vmem:[#allocation5 + $0x30c] sm:$0xf]
    %v4305 = vld [vmem:[#allocation5 + $0x310] sm:$0xf]
    %v4306 = vld [vmem:[#allocation5 + $0x314] sm:$0xf]
    %v4307 = vld [vmem:[#allocation5 + $0x318] sm:$0xf]
    %v4308 = vld [vmem:[#allocation5 + $0x31c] sm:$0xf]
    %v4309 = vld [vmem:[#allocation5 + $0x320] sm:$0xf]
    %v4310 = vld [vmem:[#allocation5 + $0x324] sm:$0xf]
    %v4311 = vld [vmem:[#allocation5 + $0x328] sm:$0xf]
    %v4312 = vld [vmem:[#allocation5 + $0x32c] sm:$0xf]
    %v4313 = vld [vmem:[#allocation5 + $0x330] sm:$0xf]
    %v4314 = vld [vmem:[#allocation5 + $0x334] sm:$0xf]
    %v4315 = vld [vmem:[#allocation5 + $0x338] sm:$0xf]
    %v4316 = vld [vmem:[#allocation5 + $0x33c] sm:$0xf]
    %v4317 = vld [vmem:[#allocation5 + $0x340] sm:$0xf]
    %v4318 = vld [vmem:[#allocation5 + $0x344] sm:$0xf]
    %v4319 = vld [vmem:[#allocation5 + $0x348] sm:$0xf]
    %v4320 = vld [vmem:[#allocation5 + $0x34c] sm:$0xf]
    %v4321 = vld [vmem:[#allocation5 + $0x350] sm:$0xf]
    %v4322 = vld [vmem:[#allocation5 + $0x354] sm:$0xf]
    %v4323 = vld [vmem:[#allocation5 + $0x358] sm:$0xf]
    %v4324 = vld [vmem:[#allocation5 + $0x35c] sm:$0xf]
    %v4325 = vld [vmem:[#allocation5 + $0x360] sm:$0xf]
    %v4326 = vld [vmem:[#allocation5 + $0x364] sm:$0xf]
    %v4327 = vld [vmem:[#allocation5 + $0x368] sm:$0xf]
    %v4328 = vld [vmem:[#allocation5 + $0x36c] sm:$0xf]
    %v4329 = vld [vmem:[#allocation5 + $0x370] sm:$0xf]
    %v4330 = vld [vmem:[#allocation5 + $0x374] sm:$0xf]
    %v4331 = vld [vmem:[#allocation5 + $0x378] sm:$0xf]
    %v4332 = vld [vmem:[#allocation5 + $0x37c] sm:$0xf]
    %v4333 = vld [vmem:[#allocation5 + $0x380] sm:$0xf]
    %v4334 = vld [vmem:[#allocation5 + $0x384] sm:$0xf]
    %v4335 = vld [vmem:[#allocation5 + $0x388] sm:$0xf]
    %v4336 = vld [vmem:[#allocation5 + $0x38c] sm:$0xf]
    %v4337 = vld [vmem:[#allocation5 + $0x390] sm:$0xf]
    %v4338 = vld [vmem:[#allocation5 + $0x394] sm:$0xf]
    %v4339 = vld [vmem:[#allocation5 + $0x398] sm:$0xf]
    %v4340 = vld [vmem:[#allocation5 + $0x39c] sm:$0xf]
    %v4341 = vld [vmem:[#allocation5 + $0x3a0] sm:$0xf]
    %v4342 = vld [vmem:[#allocation5 + $0x3a4] sm:$0xf]
    %v4343 = vld [vmem:[#allocation5 + $0x3a8] sm:$0xf]
    %v4344 = vld [vmem:[#allocation5 + $0x3ac] sm:$0xf]
    %v4345 = vld [vmem:[#allocation5 + $0x3b0] sm:$0xf]
    %v4346 = vld [vmem:[#allocation5 + $0x3b4] sm:$0xf]
    %v4347 = vld [vmem:[#allocation5 + $0x3b8] sm:$0xf]
    %v4348 = vld [vmem:[#allocation5 + $0x3bc] sm:$0xf]
    %v4349 = vld [vmem:[#allocation5 + $0x3c0] sm:$0xf]
    %v4350 = vld [vmem:[#allocation5 + $0x3c4] sm:$0xf]
    %v4351 = vld [vmem:[#allocation5 + $0x3c8] sm:$0xf]
    %v4352 = vld [vmem:[#allocation5 + $0x3cc] sm:$0xf]
    %v4353 = vld [vmem:[#allocation5 + $0x3d0] sm:$0xf]
    %v4354 = vld [vmem:[#allocation5 + $0x3d4] sm:$0xf]
    %v4355 = vld [vmem:[#allocation5 + $0x3d8] sm:$0xf]
    %v4356 = vld [vmem:[#allocation5 + $0x3dc] sm:$0xf]
    %v4357 = vld [vmem:[#allocation5 + $0x3e0] sm:$0xf]
    %v4358 = vld [vmem:[#allocation5 + $0x3e4] sm:$0xf]
    %v4359 = vld [vmem:[#allocation5 + $0x3e8] sm:$0xf]
    %v4360 = vld [vmem:[#allocation5 + $0x3ec] sm:$0xf]
    %v4361 = vld [vmem:[#allocation5 + $0x3f0] sm:$0xf]
    %v4362 = vld [vmem:[#allocation5 + $0x3f4] sm:$0xf]
    %v4363 = vld [vmem:[#allocation5 + $0x3f8] sm:$0xf]
    %v4364 = vld [vmem:[#allocation5 + $0x3fc] sm:$0xf]
    %v4365 = vld [vmem:[#allocation5 + $0x400] sm:$0xf]
    %v4366 = vld [vmem:[#allocation5 + $0x404] sm:$0xf]
    %v4367 = vld [vmem:[#allocation5 + $0x408] sm:$0xf]
    %v4368 = vld [vmem:[#allocation5 + $0x40c] sm:$0xf]
    %v4369 = vld [vmem:[#allocation5 + $0x410] sm:$0xf]
    %v4370 = vld [vmem:[#allocation5 + $0x414] sm:$0xf]
    %v4371 = vld [vmem:[#allocation5 + $0x418] sm:$0xf]
    %v4372 = vld [vmem:[#allocation5 + $0x41c] sm:$0xf]
    %v4373 = vld [vmem:[#allocation5 + $0x420] sm:$0xf]
    %v4374 = vld [vmem:[#allocation5 + $0x424] sm:$0xf]
    %v4375 = vld [vmem:[#allocation5 + $0x428] sm:$0xf]
    %v4376 = vld [vmem:[#allocation5 + $0x42c] sm:$0xf]
    %v4377 = vld [vmem:[#allocation5 + $0x430] sm:$0xf]
    %v4378 = vld [vmem:[#allocation5 + $0x434] sm:$0xf]
    %v4379 = vld [vmem:[#allocation5 + $0x438] sm:$0xf]
    %v4380 = vld [vmem:[#allocation5 + $0x43c] sm:$0xf]
    %v4381 = vld [vmem:[#allocation5 + $0x440] sm:$0xf]
    %v4382 = vld [vmem:[#allocation5 + $0x444] sm:$0xf]
    %v4383 = vld [vmem:[#allocation5 + $0x448] sm:$0xf]
    %v4384 = vld [vmem:[#allocation5 + $0x44c] sm:$0xf]
    %v4385 = vld [vmem:[#allocation5 + $0x450] sm:$0xf]
    %v4386 = vld [vmem:[#allocation5 + $0x454] sm:$0xf]
    %v4387 = vld [vmem:[#allocation5 + $0x458] sm:$0xf]
    %v4388 = vld [vmem:[#allocation5 + $0x45c] sm:$0xf]
    %v4389 = vld [vmem:[#allocation5 + $0x460] sm:$0xf]
    %v4390 = vld [vmem:[#allocation5 + $0x464] sm:$0xf]
    %v4391 = vld [vmem:[#allocation5 + $0x468] sm:$0xf]
    %v4392 = vld [vmem:[#allocation5 + $0x46c] sm:$0xf]
    %v4393 = vld [vmem:[#allocation5 + $0x470] sm:$0xf]
    %v4394 = vld [vmem:[#allocation5 + $0x474] sm:$0xf]
    %v4395 = vld [vmem:[#allocation5 + $0x478] sm:$0xf]
    %v4396 = vld [vmem:[#allocation5 + $0x47c] sm:$0xf]
    %v4397 = vld [vmem:[#allocation5 + $0x480] sm:$0xf]
    %v4398 = vld [vmem:[#allocation5 + $0x484] sm:$0xf]
    %v4399 = vld [vmem:[#allocation5 + $0x488] sm:$0xf]
    %v4400 = vld [vmem:[#allocation5 + $0x48c] sm:$0xf]
    %v4401 = vld [vmem:[#allocation5 + $0x490] sm:$0xf]
    %v4402 = vld [vmem:[#allocation5 + $0x494] sm:$0xf]
    %v4403 = vld [vmem:[#allocation5 + $0x498] sm:$0xf]
    %v4404 = vld [vmem:[#allocation5 + $0x49c] sm:$0xf]
    %v4405 = vld [vmem:[#allocation5 + $0x4a0] sm:$0xf]
    %v4406 = vld [vmem:[#allocation5 + $0x4a4] sm:$0xf]
    %v4407 = vld [vmem:[#allocation5 + $0x4a8] sm:$0xf]
    %v4408 = vld [vmem:[#allocation5 + $0x4ac] sm:$0xf]
    %v4409 = vld [vmem:[#allocation5 + $0x4b0] sm:$0xf]
    %v4410 = vld [vmem:[#allocation5 + $0x4b4] sm:$0xf]
    %v4411 = vld [vmem:[#allocation5 + $0x4b8] sm:$0xf]
    %v4412 = vld [vmem:[#allocation5 + $0x4bc] sm:$0xf]
    %v4413 = vld [vmem:[#allocation5 + $0x4c0] sm:$0xf]
    %v4414 = vld [vmem:[#allocation5 + $0x4c4] sm:$0xf]
    %v4415 = vld [vmem:[#allocation5 + $0x4c8] sm:$0xf]
    %v4416 = vld [vmem:[#allocation5 + $0x4cc] sm:$0xf]
    %v4417 = vld [vmem:[#allocation5 + $0x4d0] sm:$0xf]
    %v4418 = vld [vmem:[#allocation5 + $0x4d4] sm:$0xf]
    %v4419 = vld [vmem:[#allocation5 + $0x4d8] sm:$0xf]
    %v4420 = vld [vmem:[#allocation5 + $0x4dc] sm:$0xf]
    %v4421 = vld [vmem:[#allocation5 + $0x4e0] sm:$0xf]
    %v4422 = vld [vmem:[#allocation5 + $0x4e4] sm:$0xf]
    %v4423 = vld [vmem:[#allocation5 + $0x4e8] sm:$0xf]
    %v4424 = vld [vmem:[#allocation5 + $0x4ec] sm:$0xf]
    %v4425 = vld [vmem:[#allocation5 + $0x4f0] sm:$0xf]
    %v4426 = vld [vmem:[#allocation5 + $0x4f4] sm:$0xf]
    %v4427 = vld [vmem:[#allocation5 + $0x4f8] sm:$0xf]
    %v4428 = vld [vmem:[#allocation5 + $0x4fc] sm:$0xf]
    %v4429 = vld [vmem:[#allocation5 + $0x500] sm:$0xf]
    %v4430 = vld [vmem:[#allocation5 + $0x504] sm:$0xf]
    %v4431 = vld [vmem:[#allocation5 + $0x508] sm:$0xf]
    %v4432 = vld [vmem:[#allocation5 + $0x50c] sm:$0xf]
    %v4433 = vld [vmem:[#allocation5 + $0x510] sm:$0xf]
    %v4434 = vld [vmem:[#allocation5 + $0x514] sm:$0xf]
    %v4435 = vld [vmem:[#allocation5 + $0x518] sm:$0xf]
    %v4436 = vld [vmem:[#allocation5 + $0x51c] sm:$0xf]
    %v4437 = vld [vmem:[#allocation5 + $0x520] sm:$0xf]
    %v4438 = vld [vmem:[#allocation5 + $0x524] sm:$0xf]
    %v4439 = vld [vmem:[#allocation5 + $0x528] sm:$0xf]
    %v4440 = vld [vmem:[#allocation5 + $0x52c] sm:$0xf]
    %v4441 = vld [vmem:[#allocation5 + $0x530] sm:$0xf]
    %v4442 = vld [vmem:[#allocation5 + $0x534] sm:$0xf]
    %v4443 = vld [vmem:[#allocation5 + $0x538] sm:$0xf]
    %v4444 = vld [vmem:[#allocation5 + $0x53c] sm:$0xf]
    %v4445 = vld [vmem:[#allocation5 + $0x540] sm:$0xf]
    %v4446 = vld [vmem:[#allocation5 + $0x544] sm:$0xf]
    %v4447 = vld [vmem:[#allocation5 + $0x548] sm:$0xf]
    %v4448 = vld [vmem:[#allocation5 + $0x54c] sm:$0xf]
    %v4449 = vld [vmem:[#allocation5 + $0x550] sm:$0xf]
    %v4450 = vld [vmem:[#allocation5 + $0x554] sm:$0xf]
    %v4451 = vld [vmem:[#allocation5 + $0x558] sm:$0xf]
    %v4452 = vld [vmem:[#allocation5 + $0x55c] sm:$0xf]
    %v4453 = vld [vmem:[#allocation5 + $0x560] sm:$0xf]
    %v4454 = vld [vmem:[#allocation5 + $0x564] sm:$0xf]
    %v4455 = vld [vmem:[#allocation5 + $0x568] sm:$0xf]
    %v4456 = vld [vmem:[#allocation5 + $0x56c] sm:$0xf]
    %v4457 = vld [vmem:[#allocation5 + $0x570] sm:$0xf]
    %v4458 = vld [vmem:[#allocation5 + $0x574] sm:$0xf]
    %v4459 = vld [vmem:[#allocation5 + $0x578] sm:$0xf]
    %v4460 = vld [vmem:[#allocation5 + $0x57c] sm:$0xf]
    %v4461 = vld [vmem:[#allocation5 + $0x580] sm:$0xf]
    %v4462 = vld [vmem:[#allocation5 + $0x584] sm:$0xf]
    %v4463 = vld [vmem:[#allocation5 + $0x588] sm:$0xf]
    %v4464 = vld [vmem:[#allocation5 + $0x58c] sm:$0xf]
    %v4465 = vld [vmem:[#allocation5 + $0x590] sm:$0xf]
    %v4466 = vld [vmem:[#allocation5 + $0x594] sm:$0xf]
    %v4467 = vld [vmem:[#allocation5 + $0x598] sm:$0xf]
    %v4468 = vld [vmem:[#allocation5 + $0x59c] sm:$0xf]
    %v4469 = vld [vmem:[#allocation5 + $0x5a0] sm:$0xf]
    %v4470 = vld [vmem:[#allocation5 + $0x5a4] sm:$0xf]
    %v4471 = vld [vmem:[#allocation5 + $0x5a8] sm:$0xf]
    %v4472 = vld [vmem:[#allocation5 + $0x5ac] sm:$0xf]
    %v4473 = vld [vmem:[#allocation5 + $0x5b0] sm:$0xf]
    %v4474 = vld [vmem:[#allocation5 + $0x5b4] sm:$0xf]
    %v4475 = vld [vmem:[#allocation5 + $0x5b8] sm:$0xf]
    %v4476 = vld [vmem:[#allocation5 + $0x5bc] sm:$0xf]
    %v4477 = vld [vmem:[#allocation5 + $0x5c0] sm:$0xf]
    %v4478 = vld [vmem:[#allocation5 + $0x5c4] sm:$0xf]
    %v4479 = vld [vmem:[#allocation5 + $0x5c8] sm:$0xf]
    %v4480 = vld [vmem:[#allocation5 + $0x5cc] sm:$0xf]
    %v4481 = vld [vmem:[#allocation5 + $0x5d0] sm:$0xf]
    %v4482 = vld [vmem:[#allocation5 + $0x5d4] sm:$0xf]
    %v4483 = vld [vmem:[#allocation5 + $0x5d8] sm:$0xf]
    %v4484 = vld [vmem:[#allocation5 + $0x5dc] sm:$0xf]
    %v4485 = vld [vmem:[#allocation5 + $0x5e0] sm:$0xf]
    %v4486 = vld [vmem:[#allocation5 + $0x5e4] sm:$0xf]
    %v4487 = vld [vmem:[#allocation5 + $0x5e8] sm:$0xf]
    %v4488 = vld [vmem:[#allocation5 + $0x5ec] sm:$0xf]
    %v4489 = vld [vmem:[#allocation5 + $0x5f0] sm:$0xf]
    %v4490 = vld [vmem:[#allocation5 + $0x5f4] sm:$0xf]
    %v4491 = vld [vmem:[#allocation5 + $0x5f8] sm:$0xf]
    %v4492 = vld [vmem:[#allocation5 + $0x5fc] sm:$0xf]
    %v4493 = vld [vmem:[#allocation5 + $0x600] sm:$0xf]
    %v4494 = vld [vmem:[#allocation5 + $0x604] sm:$0xf]
    %v4495 = vld [vmem:[#allocation5 + $0x608] sm:$0xf]
    %v4496 = vld [vmem:[#allocation5 + $0x60c] sm:$0xf]
    %v4497 = vld [vmem:[#allocation5 + $0x610] sm:$0xf]
    %v4498 = vld [vmem:[#allocation5 + $0x614] sm:$0xf]
    %v4499 = vld [vmem:[#allocation5 + $0x618] sm:$0xf]
    %v4500 = vld [vmem:[#allocation5 + $0x61c] sm:$0xf]
    %v4501 = vld [vmem:[#allocation5 + $0x620] sm:$0xf]
    %v4502 = vld [vmem:[#allocation5 + $0x624] sm:$0xf]
    %v4503 = vld [vmem:[#allocation5 + $0x628] sm:$0xf]
    %v4504 = vld [vmem:[#allocation5 + $0x62c] sm:$0xf]
    %v4505 = vld [vmem:[#allocation5 + $0x630] sm:$0xf]
    %v4506 = vld [vmem:[#allocation5 + $0x634] sm:$0xf]
    %v4507 = vld [vmem:[#allocation5 + $0x638] sm:$0xf]
    %v4508 = vld [vmem:[#allocation5 + $0x63c] sm:$0xf]
    %v4509 = vld [vmem:[#allocation5 + $0x640] sm:$0xf]
    %v4510 = vld [vmem:[#allocation5 + $0x644] sm:$0xf]
    %v4511 = vld [vmem:[#allocation5 + $0x648] sm:$0xf]
    %v4512 = vld [vmem:[#allocation5 + $0x64c] sm:$0xf]
    %v4513 = vld [vmem:[#allocation5 + $0x650] sm:$0xf]
    %v4514 = vld [vmem:[#allocation5 + $0x654] sm:$0xf]
    %v4515 = vld [vmem:[#allocation5 + $0x658] sm:$0xf]
    %v4516 = vld [vmem:[#allocation5 + $0x65c] sm:$0xf]
    %v4517 = vld [vmem:[#allocation5 + $0x660] sm:$0xf]
    %v4518 = vld [vmem:[#allocation5 + $0x664] sm:$0xf]
    %v4519 = vld [vmem:[#allocation5 + $0x668] sm:$0xf]
    %v4520 = vld [vmem:[#allocation5 + $0x66c] sm:$0xf]
    %v4521 = vld [vmem:[#allocation5 + $0x670] sm:$0xf]
    %v4522 = vld [vmem:[#allocation5 + $0x674] sm:$0xf]
    %v4523 = vld [vmem:[#allocation5 + $0x678] sm:$0xf]
    %v4524 = vld [vmem:[#allocation5 + $0x67c] sm:$0xf]
    %v4525 = vld [vmem:[#allocation5 + $0x680] sm:$0xf]
    %v4526 = vld [vmem:[#allocation5 + $0x684] sm:$0xf]
    %v4527 = vld [vmem:[#allocation5 + $0x688] sm:$0xf]
    %v4528 = vld [vmem:[#allocation5 + $0x68c] sm:$0xf]
    %v4529 = vld [vmem:[#allocation5 + $0x690] sm:$0xf]
    %v4530 = vld [vmem:[#allocation5 + $0x694] sm:$0xf]
    %v4531 = vld [vmem:[#allocation5 + $0x698] sm:$0xf]
    %v4532 = vld [vmem:[#allocation5 + $0x69c] sm:$0xf]
    %v4533 = vld [vmem:[#allocation5 + $0x6a0] sm:$0xf]
    %v4534 = vld [vmem:[#allocation5 + $0x6a4] sm:$0xf]
    %v4535 = vld [vmem:[#allocation5 + $0x6a8] sm:$0xf]
    %v4536 = vld [vmem:[#allocation5 + $0x6ac] sm:$0xf]
    %v4537 = vld [vmem:[#allocation5 + $0x6b0] sm:$0xf]
    %v4538 = vld [vmem:[#allocation5 + $0x6b4] sm:$0xf]
    %v4539 = vld [vmem:[#allocation5 + $0x6b8] sm:$0xf]
    %v4540 = vld [vmem:[#allocation5 + $0x6bc] sm:$0xf]
    %v4541 = vld [vmem:[#allocation5 + $0x6c0] sm:$0xf]
    %v4542 = vld [vmem:[#allocation5 + $0x6c4] sm:$0xf]
    %v4543 = vld [vmem:[#allocation5 + $0x6c8] sm:$0xf]
    %v4544 = vld [vmem:[#allocation5 + $0x6cc] sm:$0xf]
    %v4545 = vld [vmem:[#allocation5 + $0x6d0] sm:$0xf]
    %v4546 = vld [vmem:[#allocation5 + $0x6d4] sm:$0xf]
    %v4547 = vld [vmem:[#allocation5 + $0x6d8] sm:$0xf]
    %v4548 = vld [vmem:[#allocation5 + $0x6dc] sm:$0xf]
    %v4549 = vld [vmem:[#allocation5 + $0x6e0] sm:$0xf]
    %v4550 = vld [vmem:[#allocation5 + $0x6e4] sm:$0xf]
    %v4551 = vld [vmem:[#allocation5 + $0x6e8] sm:$0xf]
    %v4552 = vld [vmem:[#allocation5 + $0x6ec] sm:$0xf]
    %v4553 = vld [vmem:[#allocation5 + $0x6f0] sm:$0xf]
    %v4554 = vld [vmem:[#allocation5 + $0x6f4] sm:$0xf]
    %v4555 = vld [vmem:[#allocation5 + $0x6f8] sm:$0xf]
    %v4556 = vld [vmem:[#allocation5 + $0x6fc] sm:$0xf]
    %v4557 = vld [vmem:[#allocation5 + $0x700] sm:$0xf]
    %v4558 = vld [vmem:[#allocation5 + $0x704] sm:$0xf]
    %v4559 = vld [vmem:[#allocation5 + $0x708] sm:$0xf]
    %v4560 = vld [vmem:[#allocation5 + $0x70c] sm:$0xf]
    %v4561 = vld [vmem:[#allocation5 + $0x710] sm:$0xf]
    %v4562 = vld [vmem:[#allocation5 + $0x714] sm:$0xf]
    %v4563 = vld [vmem:[#allocation5 + $0x718] sm:$0xf]
    %v4564 = vld [vmem:[#allocation5 + $0x71c] sm:$0xf]
    %v4565 = vld [vmem:[#allocation5 + $0x720] sm:$0xf]
    %v4566 = vld [vmem:[#allocation5 + $0x724] sm:$0xf]
    %v4567 = vld [vmem:[#allocation5 + $0x728] sm:$0xf]
    %v4568 = vld [vmem:[#allocation5 + $0x72c] sm:$0xf]
    %v4569 = vld [vmem:[#allocation5 + $0x730] sm:$0xf]
    %v4570 = vld [vmem:[#allocation5 + $0x734] sm:$0xf]
    %v4571 = vld [vmem:[#allocation5 + $0x738] sm:$0xf]
    %v4572 = vld [vmem:[#allocation5 + $0x73c] sm:$0xf]
    %v4573 = vld [vmem:[#allocation5 + $0x740] sm:$0xf]
    %v4574 = vld [vmem:[#allocation5 + $0x744] sm:$0xf]
    %v4575 = vld [vmem:[#allocation5 + $0x748] sm:$0xf]
    %v4576 = vld [vmem:[#allocation5 + $0x74c] sm:$0xf]
    %v4577 = vld [vmem:[#allocation5 + $0x750] sm:$0xf]
    %v4578 = vld [vmem:[#allocation5 + $0x754] sm:$0xf]
    %v4579 = vld [vmem:[#allocation5 + $0x758] sm:$0xf]
    %v4580 = vld [vmem:[#allocation5 + $0x75c] sm:$0xf]
    %v4581 = vld [vmem:[#allocation5 + $0x760] sm:$0xf]
    %v4582 = vld [vmem:[#allocation5 + $0x764] sm:$0xf]
    %v4583 = vld [vmem:[#allocation5 + $0x768] sm:$0xf]
    %v4584 = vld [vmem:[#allocation5 + $0x76c] sm:$0xf]
    %v4585 = vld [vmem:[#allocation5 + $0x770] sm:$0xf]
    %v4586 = vld [vmem:[#allocation5 + $0x774] sm:$0xf]
    %v4587 = vld [vmem:[#allocation5 + $0x778] sm:$0xf]
    %v4588 = vld [vmem:[#allocation5 + $0x77c] sm:$0xf]
    %v4589 = vld [vmem:[#allocation5 + $0x780] sm:$0xf]
    %v4590 = vld [vmem:[#allocation5 + $0x784] sm:$0xf]
    %v4591 = vld [vmem:[#allocation5 + $0x788] sm:$0xf]
    %v4592 = vld [vmem:[#allocation5 + $0x78c] sm:$0xf]
    %v4593 = vld [vmem:[#allocation5 + $0x790] sm:$0xf]
    %v4594 = vld [vmem:[#allocation5 + $0x794] sm:$0xf]
    %v4595 = vld [vmem:[#allocation5 + $0x798] sm:$0xf]
    %v4596 = vld [vmem:[#allocation5 + $0x79c] sm:$0xf]
    %v4597 = vld [vmem:[#allocation5 + $0x7a0] sm:$0xf]
    %v4598 = vld [vmem:[#allocation5 + $0x7a4] sm:$0xf]
    %v4599 = vld [vmem:[#allocation5 + $0x7a8] sm:$0xf]
    %v4600 = vld [vmem:[#allocation5 + $0x7ac] sm:$0xf]
    %v4601 = vld [vmem:[#allocation5 + $0x7b0] sm:$0xf]
    %v4602 = vld [vmem:[#allocation5 + $0x7b4] sm:$0xf]
    %v4603 = vld [vmem:[#allocation5 + $0x7b8] sm:$0xf]
    %v4604 = vld [vmem:[#allocation5 + $0x7bc] sm:$0xf]
    %v4605 = vld [vmem:[#allocation5 + $0x7c0] sm:$0xf]
    %v4606 = vld [vmem:[#allocation5 + $0x7c4] sm:$0xf]
    %v4607 = vld [vmem:[#allocation5 + $0x7c8] sm:$0xf]
    %v4608 = vld [vmem:[#allocation5 + $0x7cc] sm:$0xf]
    %v4609 = vld [vmem:[#allocation5 + $0x7d0] sm:$0xf]
    %v4610 = vld [vmem:[#allocation5 + $0x7d4] sm:$0xf]
    %v4611 = vld [vmem:[#allocation5 + $0x7d8] sm:$0xf]
    %v4612 = vld [vmem:[#allocation5 + $0x7dc] sm:$0xf]
    %v4613 = vld [vmem:[#allocation5 + $0x7e0] sm:$0xf]
    %v4614 = vld [vmem:[#allocation5 + $0x7e4] sm:$0xf]
    %v4615 = vld [vmem:[#allocation5 + $0x7e8] sm:$0xf]
    %v4616 = vld [vmem:[#allocation5 + $0x7ec] sm:$0xf]
    %v4617 = vld [vmem:[#allocation5 + $0x7f0] sm:$0xf]
    %v4618 = vld [vmem:[#allocation5 + $0x7f4] sm:$0xf]
    %v4619 = vld [vmem:[#allocation5 + $0x7f8] sm:$0xf]
    %v4620 = vld [vmem:[#allocation5 + $0x7fc] sm:$0xf]
    %v4621 = vld [vmem:[%s8] sm:$0x1]
    %v4623 = vperm.slane %v4621, 0
    %v5137 = vunpack.c.l.b16 %v4109
    %v5138 = vunpack.c.l.b16 %v4110
    %v5139 = vunpack.c.l.b16 %v4111
    %v5140 = vunpack.c.l.b16 %v4112
    %v5141 = vunpack.c.l.b16 %v4113
    %v5142 = vunpack.c.l.b16 %v4114
    %v5143 = vunpack.c.l.b16 %v4115
    %v5144 = vunpack.c.l.b16 %v4116
    %v5145 = vunpack.c.l.b16 %v4117
    %v5146 = vunpack.c.l.b16 %v4118
    %v5147 = vunpack.c.l.b16 %v4119
    %v5148 = vunpack.c.l.b16 %v4120
    %v5149 = vunpack.c.l.b16 %v4121
    %v5150 = vunpack.c.l.b16 %v4122
    %v5151 = vunpack.c.l.b16 %v4123
    %v5152 = vunpack.c.l.b16 %v4124
    %v5153 = vunpack.c.l.b16 %v4125
    %v5154 = vunpack.c.l.b16 %v4126
    %v5155 = vunpack.c.l.b16 %v4127
    %v5156 = vunpack.c.l.b16 %v4128
    %v5157 = vunpack.c.l.b16 %v4129
    %v5158 = vunpack.c.l.b16 %v4130
    %v5159 = vunpack.c.l.b16 %v4131
    %v5160 = vunpack.c.l.b16 %v4132
    %v5161 = vunpack.c.l.b16 %v4133
    %v5162 = vunpack.c.l.b16 %v4134
    %v5163 = vunpack.c.l.b16 %v4135
    %v5164 = vunpack.c.l.b16 %v4136
    %v5165 = vunpack.c.l.b16 %v4137
    %v5166 = vunpack.c.l.b16 %v4138
    %v5167 = vunpack.c.l.b16 %v4139
    %v5168 = vunpack.c.l.b16 %v4140
    %v5169 = vunpack.c.l.b16 %v4141
    %v5170 = vunpack.c.l.b16 %v4142
    %v5171 = vunpack.c.l.b16 %v4143
    %v5172 = vunpack.c.l.b16 %v4144
    %v5173 = vunpack.c.l.b16 %v4145
    %v5174 = vunpack.c.l.b16 %v4146
    %v5175 = vunpack.c.l.b16 %v4147
    %v5176 = vunpack.c.l.b16 %v4148
    %v5177 = vunpack.c.l.b16 %v4149
    %v5178 = vunpack.c.l.b16 %v4150
    %v5179 = vunpack.c.l.b16 %v4151
    %v5180 = vunpack.c.l.b16 %v4152
    %v5181 = vunpack.c.l.b16 %v4153
    %v5182 = vunpack.c.l.b16 %v4154
    %v5183 = vunpack.c.l.b16 %v4155
    %v5184 = vunpack.c.l.b16 %v4156
    %v5185 = vunpack.c.l.b16 %v4157
    %v5186 = vunpack.c.l.b16 %v4158
    %v5187 = vunpack.c.l.b16 %v4159
    %v5188 = vunpack.c.l.b16 %v4160
    %v5189 = vunpack.c.l.b16 %v4161
    %v5190 = vunpack.c.l.b16 %v4162
    %v5191 = vunpack.c.l.b16 %v4163
    %v5192 = vunpack.c.l.b16 %v4164
    %v5193 = vunpack.c.l.b16 %v4165
    %v5194 = vunpack.c.l.b16 %v4166
    %v5195 = vunpack.c.l.b16 %v4167
    %v5196 = vunpack.c.l.b16 %v4168
    %v5197 = vunpack.c.l.b16 %v4169
    %v5198 = vunpack.c.l.b16 %v4170
    %v5199 = vunpack.c.l.b16 %v4171
    %v5200 = vunpack.c.l.b16 %v4172
    %v5201 = vunpack.c.l.b16 %v4173
    %v5202 = vunpack.c.l.b16 %v4174
    %v5203 = vunpack.c.l.b16 %v4175
    %v5204 = vunpack.c.l.b16 %v4176
    %v5205 = vunpack.c.l.b16 %v4177
    %v5206 = vunpack.c.l.b16 %v4178
    %v5207 = vunpack.c.l.b16 %v4179
    %v5208 = vunpack.c.l.b16 %v4180
    %v5209 = vunpack.c.l.b16 %v4181
    %v5210 = vunpack.c.l.b16 %v4182
    %v5211 = vunpack.c.l.b16 %v4183
    %v5212 = vunpack.c.l.b16 %v4184
    %v5213 = vunpack.c.l.b16 %v4185
    %v5214 = vunpack.c.l.b16 %v4186
    %v5215 = vunpack.c.l.b16 %v4187
    %v5216 = vunpack.c.l.b16 %v4188
    %v5217 = vunpack.c.l.b16 %v4189
    %v5218 = vunpack.c.l.b16 %v4190
    %v5219 = vunpack.c.l.b16 %v4191
    %v5220 = vunpack.c.l.b16 %v4192
    %v5221 = vunpack.c.l.b16 %v4193
    %v5222 = vunpack.c.l.b16 %v4194
    %v5223 = vunpack.c.l.b16 %v4195
    %v5224 = vunpack.c.l.b16 %v4196
    %v5225 = vunpack.c.l.b16 %v4197
    %v5226 = vunpack.c.l.b16 %v4198
    %v5227 = vunpack.c.l.b16 %v4199
    %v5228 = vunpack.c.l.b16 %v4200
    %v5229 = vunpack.c.l.b16 %v4201
    %v5230 = vunpack.c.l.b16 %v4202
    %v5231 = vunpack.c.l.b16 %v4203
    %v5232 = vunpack.c.l.b16 %v4204
    %v5233 = vunpack.c.l.b16 %v4205
    %v5234 = vunpack.c.l.b16 %v4206
    %v5235 = vunpack.c.l.b16 %v4207
    %v5236 = vunpack.c.l.b16 %v4208
    %v5237 = vunpack.c.l.b16 %v4209
    %v5238 = vunpack.c.l.b16 %v4210
    %v5239 = vunpack.c.l.b16 %v4211
    %v5240 = vunpack.c.l.b16 %v4212
    %v5241 = vunpack.c.l.b16 %v4213
    %v5242 = vunpack.c.l.b16 %v4214
    %v5243 = vunpack.c.l.b16 %v4215
    %v5244 = vunpack.c.l.b16 %v4216
    %v5245 = vunpack.c.l.b16 %v4217
    %v5246 = vunpack.c.l.b16 %v4218
    %v5247 = vunpack.c.l.b16 %v4219
    %v5248 = vunpack.c.l.b16 %v4220
    %v5249 = vunpack.c.l.b16 %v4221
    %v5250 = vunpack.c.l.b16 %v4222
    %v5251 = vunpack.c.l.b16 %v4223
    %v5252 = vunpack.c.l.b16 %v4224
    %v5253 = vunpack.c.l.b16 %v4225
    %v5254 = vunpack.c.l.b16 %v4226
    %v5255 = vunpack.c.l.b16 %v4227
    %v5256 = vunpack.c.l.b16 %v4228
    %v5257 = vunpack.c.l.b16 %v4229
    %v5258 = vunpack.c.l.b16 %v4230
    %v5259 = vunpack.c.l.b16 %v4231
    %v5260 = vunpack.c.l.b16 %v4232
    %v5261 = vunpack.c.l.b16 %v4233
    %v5262 = vunpack.c.l.b16 %v4234
    %v5263 = vunpack.c.l.b16 %v4235
    %v5264 = vunpack.c.l.b16 %v4236
    %v5265 = vunpack.c.l.b16 %v4237
    %v5266 = vunpack.c.l.b16 %v4238
    %v5267 = vunpack.c.l.b16 %v4239
    %v5268 = vunpack.c.l.b16 %v4240
    %v5269 = vunpack.c.l.b16 %v4241
    %v5270 = vunpack.c.l.b16 %v4242
    %v5271 = vunpack.c.l.b16 %v4243
    %v5272 = vunpack.c.l.b16 %v4244
    %v5273 = vunpack.c.l.b16 %v4245
    %v5274 = vunpack.c.l.b16 %v4246
    %v5275 = vunpack.c.l.b16 %v4247
    %v5276 = vunpack.c.l.b16 %v4248
    %v5277 = vunpack.c.l.b16 %v4249
    %v5278 = vunpack.c.l.b16 %v4250
    %v5279 = vunpack.c.l.b16 %v4251
    %v5280 = vunpack.c.l.b16 %v4252
    %v5281 = vunpack.c.l.b16 %v4253
    %v5282 = vunpack.c.l.b16 %v4254
    %v5283 = vunpack.c.l.b16 %v4255
    %v5284 = vunpack.c.l.b16 %v4256
    %v5285 = vunpack.c.l.b16 %v4257
    %v5286 = vunpack.c.l.b16 %v4258
    %v5287 = vunpack.c.l.b16 %v4259
    %v5288 = vunpack.c.l.b16 %v4260
    %v5289 = vunpack.c.l.b16 %v4261
    %v5290 = vunpack.c.l.b16 %v4262
    %v5291 = vunpack.c.l.b16 %v4263
    %v5292 = vunpack.c.l.b16 %v4264
    %v5293 = vunpack.c.l.b16 %v4265
    %v5294 = vunpack.c.l.b16 %v4266
    %v5295 = vunpack.c.l.b16 %v4267
    %v5296 = vunpack.c.l.b16 %v4268
    %v5297 = vunpack.c.l.b16 %v4269
    %v5298 = vunpack.c.l.b16 %v4270
    %v5299 = vunpack.c.l.b16 %v4271
    %v5300 = vunpack.c.l.b16 %v4272
    %v5301 = vunpack.c.l.b16 %v4273
    %v5302 = vunpack.c.l.b16 %v4274
    %v5303 = vunpack.c.l.b16 %v4275
    %v5304 = vunpack.c.l.b16 %v4276
    %v5305 = vunpack.c.l.b16 %v4277
    %v5306 = vunpack.c.l.b16 %v4278
    %v5307 = vunpack.c.l.b16 %v4279
    %v5308 = vunpack.c.l.b16 %v4280
    %v5309 = vunpack.c.l.b16 %v4281
    %v5310 = vunpack.c.l.b16 %v4282
    %v5311 = vunpack.c.l.b16 %v4283
    %v5312 = vunpack.c.l.b16 %v4284
    %v5313 = vunpack.c.l.b16 %v4285
    %v5314 = vunpack.c.l.b16 %v4286
    %v5315 = vunpack.c.l.b16 %v4287
    %v5316 = vunpack.c.l.b16 %v4288
    %v5317 = vunpack.c.l.b16 %v4289
    %v5318 = vunpack.c.l.b16 %v4290
    %v5319 = vunpack.c.l.b16 %v4291
    %v5320 = vunpack.c.l.b16 %v4292
    %v5321 = vunpack.c.l.b16 %v4293
    %v5322 = vunpack.c.l.b16 %v4294
    %v5323 = vunpack.c.l.b16 %v4295
    %v5324 = vunpack.c.l.b16 %v4296
    %v5325 = vunpack.c.l.b16 %v4297
    %v5326 = vunpack.c.l.b16 %v4298
    %v5327 = vunpack.c.l.b16 %v4299
    %v5328 = vunpack.c.l.b16 %v4300
    %v5329 = vunpack.c.l.b16 %v4301
    %v5330 = vunpack.c.l.b16 %v4302
    %v5331 = vunpack.c.l.b16 %v4303
    %v5332 = vunpack.c.l.b16 %v4304
    %v5333 = vunpack.c.l.b16 %v4305
    %v5334 = vunpack.c.l.b16 %v4306
    %v5335 = vunpack.c.l.b16 %v4307
    %v5336 = vunpack.c.l.b16 %v4308
    %v5337 = vunpack.c.l.b16 %v4309
    %v5338 = vunpack.c.l.b16 %v4310
    %v5339 = vunpack.c.l.b16 %v4311
    %v5340 = vunpack.c.l.b16 %v4312
    %v5341 = vunpack.c.l.b16 %v4313
    %v5342 = vunpack.c.l.b16 %v4314
    %v5343 = vunpack.c.l.b16 %v4315
    %v5344 = vunpack.c.l.b16 %v4316
    %v5345 = vunpack.c.l.b16 %v4317
    %v5346 = vunpack.c.l.b16 %v4318
    %v5347 = vunpack.c.l.b16 %v4319
    %v5348 = vunpack.c.l.b16 %v4320
    %v5349 = vunpack.c.l.b16 %v4321
    %v5350 = vunpack.c.l.b16 %v4322
    %v5351 = vunpack.c.l.b16 %v4323
    %v5352 = vunpack.c.l.b16 %v4324
    %v5353 = vunpack.c.l.b16 %v4325
    %v5354 = vunpack.c.l.b16 %v4326
    %v5355 = vunpack.c.l.b16 %v4327
    %v5356 = vunpack.c.l.b16 %v4328
    %v5357 = vunpack.c.l.b16 %v4329
    %v5358 = vunpack.c.l.b16 %v4330
    %v5359 = vunpack.c.l.b16 %v4331
    %v5360 = vunpack.c.l.b16 %v4332
    %v5361 = vunpack.c.l.b16 %v4333
    %v5362 = vunpack.c.l.b16 %v4334
    %v5363 = vunpack.c.l.b16 %v4335
    %v5364 = vunpack.c.l.b16 %v4336
    %v5365 = vunpack.c.l.b16 %v4337
    %v5366 = vunpack.c.l.b16 %v4338
    %v5367 = vunpack.c.l.b16 %v4339
    %v5368 = vunpack.c.l.b16 %v4340
    %v5369 = vunpack.c.l.b16 %v4341
    %v5370 = vunpack.c.l.b16 %v4342
    %v5371 = vunpack.c.l.b16 %v4343
    %v5372 = vunpack.c.l.b16 %v4344
    %v5373 = vunpack.c.l.b16 %v4345
    %v5374 = vunpack.c.l.b16 %v4346
    %v5375 = vunpack.c.l.b16 %v4347
    %v5376 = vunpack.c.l.b16 %v4348
    %v5377 = vunpack.c.l.b16 %v4349
    %v5378 = vunpack.c.l.b16 %v4350
    %v5379 = vunpack.c.l.b16 %v4351
    %v5380 = vunpack.c.l.b16 %v4352
    %v5381 = vunpack.c.l.b16 %v4353
    %v5382 = vunpack.c.l.b16 %v4354
    %v5383 = vunpack.c.l.b16 %v4355
    %v5384 = vunpack.c.l.b16 %v4356
    %v5385 = vunpack.c.l.b16 %v4357
    %v5386 = vunpack.c.l.b16 %v4358
    %v5387 = vunpack.c.l.b16 %v4359
    %v5388 = vunpack.c.l.b16 %v4360
    %v5389 = vunpack.c.l.b16 %v4361
    %v5390 = vunpack.c.l.b16 %v4362
    %v5391 = vunpack.c.l.b16 %v4363
    %v5392 = vunpack.c.l.b16 %v4364
    %v5393 = vunpack.c.l.b16 %v4365
    %v5394 = vunpack.c.l.b16 %v4366
    %v5395 = vunpack.c.l.b16 %v4367
    %v5396 = vunpack.c.l.b16 %v4368
    %v5397 = vunpack.c.l.b16 %v4369
    %v5398 = vunpack.c.l.b16 %v4370
    %v5399 = vunpack.c.l.b16 %v4371
    %v5400 = vunpack.c.l.b16 %v4372
    %v5401 = vunpack.c.l.b16 %v4373
    %v5402 = vunpack.c.l.b16 %v4374
    %v5403 = vunpack.c.l.b16 %v4375
    %v5404 = vunpack.c.l.b16 %v4376
    %v5405 = vunpack.c.l.b16 %v4377
    %v5406 = vunpack.c.l.b16 %v4378
    %v5407 = vunpack.c.l.b16 %v4379
    %v5408 = vunpack.c.l.b16 %v4380
    %v5409 = vunpack.c.l.b16 %v4381
    %v5410 = vunpack.c.l.b16 %v4382
    %v5411 = vunpack.c.l.b16 %v4383
    %v5412 = vunpack.c.l.b16 %v4384
    %v5413 = vunpack.c.l.b16 %v4385
    %v5414 = vunpack.c.l.b16 %v4386
    %v5415 = vunpack.c.l.b16 %v4387
    %v5416 = vunpack.c.l.b16 %v4388
    %v5417 = vunpack.c.l.b16 %v4389
    %v5418 = vunpack.c.l.b16 %v4390
    %v5419 = vunpack.c.l.b16 %v4391
    %v5420 = vunpack.c.l.b16 %v4392
    %v5421 = vunpack.c.l.b16 %v4393
    %v5422 = vunpack.c.l.b16 %v4394
    %v5423 = vunpack.c.l.b16 %v4395
    %v5424 = vunpack.c.l.b16 %v4396
    %v5425 = vunpack.c.l.b16 %v4397
    %v5426 = vunpack.c.l.b16 %v4398
    %v5427 = vunpack.c.l.b16 %v4399
    %v5428 = vunpack.c.l.b16 %v4400
    %v5429 = vunpack.c.l.b16 %v4401
    %v5430 = vunpack.c.l.b16 %v4402
    %v5431 = vunpack.c.l.b16 %v4403
    %v5432 = vunpack.c.l.b16 %v4404
    %v5433 = vunpack.c.l.b16 %v4405
    %v5434 = vunpack.c.l.b16 %v4406
    %v5435 = vunpack.c.l.b16 %v4407
    %v5436 = vunpack.c.l.b16 %v4408
    %v5437 = vunpack.c.l.b16 %v4409
    %v5438 = vunpack.c.l.b16 %v4410
    %v5439 = vunpack.c.l.b16 %v4411
    %v5440 = vunpack.c.l.b16 %v4412
    %v5441 = vunpack.c.l.b16 %v4413
    %v5442 = vunpack.c.l.b16 %v4414
    %v5443 = vunpack.c.l.b16 %v4415
    %v5444 = vunpack.c.l.b16 %v4416
    %v5445 = vunpack.c.l.b16 %v4417
    %v5446 = vunpack.c.l.b16 %v4418
    %v5447 = vunpack.c.l.b16 %v4419
    %v5448 = vunpack.c.l.b16 %v4420
    %v5449 = vunpack.c.l.b16 %v4421
    %v5450 = vunpack.c.l.b16 %v4422
    %v5451 = vunpack.c.l.b16 %v4423
    %v5452 = vunpack.c.l.b16 %v4424
    %v5453 = vunpack.c.l.b16 %v4425
    %v5454 = vunpack.c.l.b16 %v4426
    %v5455 = vunpack.c.l.b16 %v4427
    %v5456 = vunpack.c.l.b16 %v4428
    %v5457 = vunpack.c.l.b16 %v4429
    %v5458 = vunpack.c.l.b16 %v4430
    %v5459 = vunpack.c.l.b16 %v4431
    %v5460 = vunpack.c.l.b16 %v4432
    %v5461 = vunpack.c.l.b16 %v4433
    %v5462 = vunpack.c.l.b16 %v4434
    %v5463 = vunpack.c.l.b16 %v4435
    %v5464 = vunpack.c.l.b16 %v4436
    %v5465 = vunpack.c.l.b16 %v4437
    %v5466 = vunpack.c.l.b16 %v4438
    %v5467 = vunpack.c.l.b16 %v4439
    %v5468 = vunpack.c.l.b16 %v4440
    %v5469 = vunpack.c.l.b16 %v4441
    %v5470 = vunpack.c.l.b16 %v4442
    %v5471 = vunpack.c.l.b16 %v4443
    %v5472 = vunpack.c.l.b16 %v4444
    %v5473 = vunpack.c.l.b16 %v4445
    %v5474 = vunpack.c.l.b16 %v4446
    %v5475 = vunpack.c.l.b16 %v4447
    %v5476 = vunpack.c.l.b16 %v4448
    %v5477 = vunpack.c.l.b16 %v4449
    %v5478 = vunpack.c.l.b16 %v4450
    %v5479 = vunpack.c.l.b16 %v4451
    %v5480 = vunpack.c.l.b16 %v4452
    %v5481 = vunpack.c.l.b16 %v4453
    %v5482 = vunpack.c.l.b16 %v4454
    %v5483 = vunpack.c.l.b16 %v4455
    %v5484 = vunpack.c.l.b16 %v4456
    %v5485 = vunpack.c.l.b16 %v4457
    %v5486 = vunpack.c.l.b16 %v4458
    %v5487 = vunpack.c.l.b16 %v4459
    %v5488 = vunpack.c.l.b16 %v4460
    %v5489 = vunpack.c.l.b16 %v4461
    %v5490 = vunpack.c.l.b16 %v4462
    %v5491 = vunpack.c.l.b16 %v4463
    %v5492 = vunpack.c.l.b16 %v4464
    %v5493 = vunpack.c.l.b16 %v4465
    %v5494 = vunpack.c.l.b16 %v4466
    %v5495 = vunpack.c.l.b16 %v4467
    %v5496 = vunpack.c.l.b16 %v4468
    %v5497 = vunpack.c.l.b16 %v4469
    %v5498 = vunpack.c.l.b16 %v4470
    %v5499 = vunpack.c.l.b16 %v4471
    %v5500 = vunpack.c.l.b16 %v4472
    %v5501 = vunpack.c.l.b16 %v4473
    %v5502 = vunpack.c.l.b16 %v4474
    %v5503 = vunpack.c.l.b16 %v4475
    %v5504 = vunpack.c.l.b16 %v4476
    %v5505 = vunpack.c.l.b16 %v4477
    %v5506 = vunpack.c.l.b16 %v4478
    %v5507 = vunpack.c.l.b16 %v4479
    %v5508 = vunpack.c.l.b16 %v4480
    %v5509 = vunpack.c.l.b16 %v4481
    %v5510 = vunpack.c.l.b16 %v4482
    %v5511 = vunpack.c.l.b16 %v4483
    %v5512 = vunpack.c.l.b16 %v4484
    %v5513 = vunpack.c.l.b16 %v4485
    %v5514 = vunpack.c.l.b16 %v4486
    %v5515 = vunpack.c.l.b16 %v4487
    %v5516 = vunpack.c.l.b16 %v4488
    %v5517 = vunpack.c.l.b16 %v4489
    %v5518 = vunpack.c.l.b16 %v4490
    %v5519 = vunpack.c.l.b16 %v4491
    %v5520 = vunpack.c.l.b16 %v4492
    %v5521 = vunpack.c.l.b16 %v4493
    %v5522 = vunpack.c.l.b16 %v4494
    %v5523 = vunpack.c.l.b16 %v4495
    %v5524 = vunpack.c.l.b16 %v4496
    %v5525 = vunpack.c.l.b16 %v4497
    %v5526 = vunpack.c.l.b16 %v4498
    %v5527 = vunpack.c.l.b16 %v4499
    %v5528 = vunpack.c.l.b16 %v4500
    %v5529 = vunpack.c.l.b16 %v4501
    %v5530 = vunpack.c.l.b16 %v4502
    %v5531 = vunpack.c.l.b16 %v4503
    %v5532 = vunpack.c.l.b16 %v4504
    %v5533 = vunpack.c.l.b16 %v4505
    %v5534 = vunpack.c.l.b16 %v4506
    %v5535 = vunpack.c.l.b16 %v4507
    %v5536 = vunpack.c.l.b16 %v4508
    %v5537 = vunpack.c.l.b16 %v4509
    %v5538 = vunpack.c.l.b16 %v4510
    %v5539 = vunpack.c.l.b16 %v4511
    %v5540 = vunpack.c.l.b16 %v4512
    %v5541 = vunpack.c.l.b16 %v4513
    %v5542 = vunpack.c.l.b16 %v4514
    %v5543 = vunpack.c.l.b16 %v4515
    %v5544 = vunpack.c.l.b16 %v4516
    %v5545 = vunpack.c.l.b16 %v4517
    %v5546 = vunpack.c.l.b16 %v4518
    %v5547 = vunpack.c.l.b16 %v4519
    %v5548 = vunpack.c.l.b16 %v4520
    %v5549 = vunpack.c.l.b16 %v4521
    %v5550 = vunpack.c.l.b16 %v4522
    %v5551 = vunpack.c.l.b16 %v4523
    %v5552 = vunpack.c.l.b16 %v4524
    %v5553 = vunpack.c.l.b16 %v4525
    %v5554 = vunpack.c.l.b16 %v4526
    %v5555 = vunpack.c.l.b16 %v4527
    %v5556 = vunpack.c.l.b16 %v4528
    %v5557 = vunpack.c.l.b16 %v4529
    %v5558 = vunpack.c.l.b16 %v4530
    %v5559 = vunpack.c.l.b16 %v4531
    %v5560 = vunpack.c.l.b16 %v4532
    %v5561 = vunpack.c.l.b16 %v4533
    %v5562 = vunpack.c.l.b16 %v4534
    %v5563 = vunpack.c.l.b16 %v4535
    %v5564 = vunpack.c.l.b16 %v4536
    %v5565 = vunpack.c.l.b16 %v4537
    %v5566 = vunpack.c.l.b16 %v4538
    %v5567 = vunpack.c.l.b16 %v4539
    %v5568 = vunpack.c.l.b16 %v4540
    %v5569 = vunpack.c.l.b16 %v4541
    %v5570 = vunpack.c.l.b16 %v4542
    %v5571 = vunpack.c.l.b16 %v4543
    %v5572 = vunpack.c.l.b16 %v4544
    %v5573 = vunpack.c.l.b16 %v4545
    %v5574 = vunpack.c.l.b16 %v4546
    %v5575 = vunpack.c.l.b16 %v4547
    %v5576 = vunpack.c.l.b16 %v4548
    %v5577 = vunpack.c.l.b16 %v4549
    %v5578 = vunpack.c.l.b16 %v4550
    %v5579 = vunpack.c.l.b16 %v4551
    %v5580 = vunpack.c.l.b16 %v4552
    %v5581 = vunpack.c.l.b16 %v4553
    %v5582 = vunpack.c.l.b16 %v4554
    %v5583 = vunpack.c.l.b16 %v4555
    %v5584 = vunpack.c.l.b16 %v4556
    %v5585 = vunpack.c.l.b16 %v4557
    %v5586 = vunpack.c.l.b16 %v4558
    %v5587 = vunpack.c.l.b16 %v4559
    %v5588 = vunpack.c.l.b16 %v4560
    %v5589 = vunpack.c.l.b16 %v4561
    %v5590 = vunpack.c.l.b16 %v4562
    %v5591 = vunpack.c.l.b16 %v4563
    %v5592 = vunpack.c.l.b16 %v4564
    %v5593 = vunpack.c.l.b16 %v4565
    %v5594 = vunpack.c.l.b16 %v4566
    %v5595 = vunpack.c.l.b16 %v4567
    %v5596 = vunpack.c.l.b16 %v4568
    %v5597 = vunpack.c.l.b16 %v4569
    %v5598 = vunpack.c.l.b16 %v4570
    %v5599 = vunpack.c.l.b16 %v4571
    %v5600 = vunpack.c.l.b16 %v4572
    %v5601 = vunpack.c.l.b16 %v4573
    %v5602 = vunpack.c.l.b16 %v4574
    %v5603 = vunpack.c.l.b16 %v4575
    %v5604 = vunpack.c.l.b16 %v4576
    %v5605 = vunpack.c.l.b16 %v4577
    %v5606 = vunpack.c.l.b16 %v4578
    %v5607 = vunpack.c.l.b16 %v4579
    %v5608 = vunpack.c.l.b16 %v4580
    %v5609 = vunpack.c.l.b16 %v4581
    %v5610 = vunpack.c.l.b16 %v4582
    %v5611 = vunpack.c.l.b16 %v4583
    %v5612 = vunpack.c.l.b16 %v4584
    %v5613 = vunpack.c.l.b16 %v4585
    %v5614 = vunpack.c.l.b16 %v4586
    %v5615 = vunpack.c.l.b16 %v4587
    %v5616 = vunpack.c.l.b16 %v4588
    %v5617 = vunpack.c.l.b16 %v4589
    %v5618 = vunpack.c.l.b16 %v4590
    %v5619 = vunpack.c.l.b16 %v4591
    %v5620 = vunpack.c.l.b16 %v4592
    %v5621 = vunpack.c.l.b16 %v4593
    %v5622 = vunpack.c.l.b16 %v4594
    %v5623 = vunpack.c.l.b16 %v4595
    %v5624 = vunpack.c.l.b16 %v4596
    %v5625 = vunpack.c.l.b16 %v4597
    %v5626 = vunpack.c.l.b16 %v4598
    %v5627 = vunpack.c.l.b16 %v4599
    %v5628 = vunpack.c.l.b16 %v4600
    %v5629 = vunpack.c.l.b16 %v4601
    %v5630 = vunpack.c.l.b16 %v4602
    %v5631 = vunpack.c.l.b16 %v4603
    %v5632 = vunpack.c.l.b16 %v4604
    %v5633 = vunpack.c.l.b16 %v4605
    %v5634 = vunpack.c.l.b16 %v4606
    %v5635 = vunpack.c.l.b16 %v4607
    %v5636 = vunpack.c.l.b16 %v4608
    %v5637 = vunpack.c.l.b16 %v4609
    %v5638 = vunpack.c.l.b16 %v4610
    %v5639 = vunpack.c.l.b16 %v4611
    %v5640 = vunpack.c.l.b16 %v4612
    %v5641 = vunpack.c.l.b16 %v4613
    %v5642 = vunpack.c.l.b16 %v4614
    %v5643 = vunpack.c.l.b16 %v4615
    %v5644 = vunpack.c.l.b16 %v4616
    %v5645 = vunpack.c.l.b16 %v4617
    %v5646 = vunpack.c.l.b16 %v4618
    %v5647 = vunpack.c.l.b16 %v4619
    %v5648 = vunpack.c.l.b16 %v4620
    %v5649 = vpack.c.b16 %v5138, %v5137
    %v5650 = vpack.c.b16 %v5140, %v5139
    %v5651 = vpack.c.b16 %v5142, %v5141
    %v5652 = vpack.c.b16 %v5144, %v5143
    %v5653 = vpack.c.b16 %v5146, %v5145
    %v5654 = vpack.c.b16 %v5148, %v5147
    %v5655 = vpack.c.b16 %v5150, %v5149
    %v5656 = vpack.c.b16 %v5152, %v5151
    %v5657 = vpack.c.b16 %v5154, %v5153
    %v5658 = vpack.c.b16 %v5156, %v5155
    %v5659 = vpack.c.b16 %v5158, %v5157
    %v5660 = vpack.c.b16 %v5160, %v5159
    %v5661 = vpack.c.b16 %v5162, %v5161
    %v5662 = vpack.c.b16 %v5164, %v5163
    %v5663 = vpack.c.b16 %v5166, %v5165
    %v5664 = vpack.c.b16 %v5168, %v5167
    %v5665 = vpack.c.b16 %v5170, %v5169
    %v5666 = vpack.c.b16 %v5172, %v5171
    %v5667 = vpack.c.b16 %v5174, %v5173
    %v5668 = vpack.c.b16 %v5176, %v5175
    %v5669 = vpack.c.b16 %v5178, %v5177
    %v5670 = vpack.c.b16 %v5180, %v5179
    %v5671 = vpack.c.b16 %v5182, %v5181
    %v5672 = vpack.c.b16 %v5184, %v5183
    %v5673 = vpack.c.b16 %v5186, %v5185
    %v5674 = vpack.c.b16 %v5188, %v5187
    %v5675 = vpack.c.b16 %v5190, %v5189
    %v5676 = vpack.c.b16 %v5192, %v5191
    %v5677 = vpack.c.b16 %v5194, %v5193
    %v5678 = vpack.c.b16 %v5196, %v5195
    %v5679 = vpack.c.b16 %v5198, %v5197
    %v5680 = vpack.c.b16 %v5200, %v5199
    %v5681 = vpack.c.b16 %v5202, %v5201
    %v5682 = vpack.c.b16 %v5204, %v5203
    %v5683 = vpack.c.b16 %v5206, %v5205
    %v5684 = vpack.c.b16 %v5208, %v5207
    %v5685 = vpack.c.b16 %v5210, %v5209
    %v5686 = vpack.c.b16 %v5212, %v5211
    %v5687 = vpack.c.b16 %v5214, %v5213
    %v5688 = vpack.c.b16 %v5216, %v5215
    %v5689 = vpack.c.b16 %v5218, %v5217
    %v5690 = vpack.c.b16 %v5220, %v5219
    %v5691 = vpack.c.b16 %v5222, %v5221
    %v5692 = vpack.c.b16 %v5224, %v5223
    %v5693 = vpack.c.b16 %v5226, %v5225
    %v5694 = vpack.c.b16 %v5228, %v5227
    %v5695 = vpack.c.b16 %v5230, %v5229
    %v5696 = vpack.c.b16 %v5232, %v5231
    %v5697 = vpack.c.b16 %v5234, %v5233
    %v5698 = vpack.c.b16 %v5236, %v5235
    %v5699 = vpack.c.b16 %v5238, %v5237
    %v5700 = vpack.c.b16 %v5240, %v5239
    %v5701 = vpack.c.b16 %v5242, %v5241
    %v5702 = vpack.c.b16 %v5244, %v5243
    %v5703 = vpack.c.b16 %v5246, %v5245
    %v5704 = vpack.c.b16 %v5248, %v5247
    %v5705 = vpack.c.b16 %v5250, %v5249
    %v5706 = vpack.c.b16 %v5252, %v5251
    %v5707 = vpack.c.b16 %v5254, %v5253
    %v5708 = vpack.c.b16 %v5256, %v5255
    %v5709 = vpack.c.b16 %v5258, %v5257
    %v5710 = vpack.c.b16 %v5260, %v5259
    %v5711 = vpack.c.b16 %v5262, %v5261
    %v5712 = vpack.c.b16 %v5264, %v5263
    %v5713 = vpack.c.b16 %v5266, %v5265
    %v5714 = vpack.c.b16 %v5268, %v5267
    %v5715 = vpack.c.b16 %v5270, %v5269
    %v5716 = vpack.c.b16 %v5272, %v5271
    %v5717 = vpack.c.b16 %v5274, %v5273
    %v5718 = vpack.c.b16 %v5276, %v5275
    %v5719 = vpack.c.b16 %v5278, %v5277
    %v5720 = vpack.c.b16 %v5280, %v5279
    %v5721 = vpack.c.b16 %v5282, %v5281
    %v5722 = vpack.c.b16 %v5284, %v5283
    %v5723 = vpack.c.b16 %v5286, %v5285
    %v5724 = vpack.c.b16 %v5288, %v5287
    %v5725 = vpack.c.b16 %v5290, %v5289
    %v5726 = vpack.c.b16 %v5292, %v5291
    %v5727 = vpack.c.b16 %v5294, %v5293
    %v5728 = vpack.c.b16 %v5296, %v5295
    %v5729 = vpack.c.b16 %v5298, %v5297
    %v5730 = vpack.c.b16 %v5300, %v5299
    %v5731 = vpack.c.b16 %v5302, %v5301
    %v5732 = vpack.c.b16 %v5304, %v5303
    %v5733 = vpack.c.b16 %v5306, %v5305
    %v5734 = vpack.c.b16 %v5308, %v5307
    %v5735 = vpack.c.b16 %v5310, %v5309
    %v5736 = vpack.c.b16 %v5312, %v5311
    %v5737 = vpack.c.b16 %v5314, %v5313
    %v5738 = vpack.c.b16 %v5316, %v5315
    %v5739 = vpack.c.b16 %v5318, %v5317
    %v5740 = vpack.c.b16 %v5320, %v5319
    %v5741 = vpack.c.b16 %v5322, %v5321
    %v5742 = vpack.c.b16 %v5324, %v5323
    %v5743 = vpack.c.b16 %v5326, %v5325
    %v5744 = vpack.c.b16 %v5328, %v5327
    %v5745 = vpack.c.b16 %v5330, %v5329
    %v5746 = vpack.c.b16 %v5332, %v5331
    %v5747 = vpack.c.b16 %v5334, %v5333
    %v5748 = vpack.c.b16 %v5336, %v5335
    %v5749 = vpack.c.b16 %v5338, %v5337
    %v5750 = vpack.c.b16 %v5340, %v5339
    %v5751 = vpack.c.b16 %v5342, %v5341
    %v5752 = vpack.c.b16 %v5344, %v5343
    %v5753 = vpack.c.b16 %v5346, %v5345
    %v5754 = vpack.c.b16 %v5348, %v5347
    %v5755 = vpack.c.b16 %v5350, %v5349
    %v5756 = vpack.c.b16 %v5352, %v5351
    %v5757 = vpack.c.b16 %v5354, %v5353
    %v5758 = vpack.c.b16 %v5356, %v5355
    %v5759 = vpack.c.b16 %v5358, %v5357
    %v5760 = vpack.c.b16 %v5360, %v5359
    %v5761 = vpack.c.b16 %v5362, %v5361
    %v5762 = vpack.c.b16 %v5364, %v5363
    %v5763 = vpack.c.b16 %v5366, %v5365
    %v5764 = vpack.c.b16 %v5368, %v5367
    %v5765 = vpack.c.b16 %v5370, %v5369
    %v5766 = vpack.c.b16 %v5372, %v5371
    %v5767 = vpack.c.b16 %v5374, %v5373
    %v5768 = vpack.c.b16 %v5376, %v5375
    %v5769 = vpack.c.b16 %v5378, %v5377
    %v5770 = vpack.c.b16 %v5380, %v5379
    %v5771 = vpack.c.b16 %v5382, %v5381
    %v5772 = vpack.c.b16 %v5384, %v5383
    %v5773 = vpack.c.b16 %v5386, %v5385
    %v5774 = vpack.c.b16 %v5388, %v5387
    %v5775 = vpack.c.b16 %v5390, %v5389
    %v5776 = vpack.c.b16 %v5392, %v5391
    %v5777 = vpack.c.b16 %v5394, %v5393
    %v5778 = vpack.c.b16 %v5396, %v5395
    %v5779 = vpack.c.b16 %v5398, %v5397
    %v5780 = vpack.c.b16 %v5400, %v5399
    %v5781 = vpack.c.b16 %v5402, %v5401
    %v5782 = vpack.c.b16 %v5404, %v5403
    %v5783 = vpack.c.b16 %v5406, %v5405
    %v5784 = vpack.c.b16 %v5408, %v5407
    %v5785 = vpack.c.b16 %v5410, %v5409
    %v5786 = vpack.c.b16 %v5412, %v5411
    %v5787 = vpack.c.b16 %v5414, %v5413
    %v5788 = vpack.c.b16 %v5416, %v5415
    %v5789 = vpack.c.b16 %v5418, %v5417
    %v5790 = vpack.c.b16 %v5420, %v5419
    %v5791 = vpack.c.b16 %v5422, %v5421
    %v5792 = vpack.c.b16 %v5424, %v5423
    %v5793 = vpack.c.b16 %v5426, %v5425
    %v5794 = vpack.c.b16 %v5428, %v5427
    %v5795 = vpack.c.b16 %v5430, %v5429
    %v5796 = vpack.c.b16 %v5432, %v5431
    %v5797 = vpack.c.b16 %v5434, %v5433
    %v5798 = vpack.c.b16 %v5436, %v5435
    %v5799 = vpack.c.b16 %v5438, %v5437
    %v5800 = vpack.c.b16 %v5440, %v5439
    %v5801 = vpack.c.b16 %v5442, %v5441
    %v5802 = vpack.c.b16 %v5444, %v5443
    %v5803 = vpack.c.b16 %v5446, %v5445
    %v5804 = vpack.c.b16 %v5448, %v5447
    %v5805 = vpack.c.b16 %v5450, %v5449
    %v5806 = vpack.c.b16 %v5452, %v5451
    %v5807 = vpack.c.b16 %v5454, %v5453
    %v5808 = vpack.c.b16 %v5456, %v5455
    %v5809 = vpack.c.b16 %v5458, %v5457
    %v5810 = vpack.c.b16 %v5460, %v5459
    %v5811 = vpack.c.b16 %v5462, %v5461
    %v5812 = vpack.c.b16 %v5464, %v5463
    %v5813 = vpack.c.b16 %v5466, %v5465
    %v5814 = vpack.c.b16 %v5468, %v5467
    %v5815 = vpack.c.b16 %v5470, %v5469
    %v5816 = vpack.c.b16 %v5472, %v5471
    %v5817 = vpack.c.b16 %v5474, %v5473
    %v5818 = vpack.c.b16 %v5476, %v5475
    %v5819 = vpack.c.b16 %v5478, %v5477
    %v5820 = vpack.c.b16 %v5480, %v5479
    %v5821 = vpack.c.b16 %v5482, %v5481
    %v5822 = vpack.c.b16 %v5484, %v5483
    %v5823 = vpack.c.b16 %v5486, %v5485
    %v5824 = vpack.c.b16 %v5488, %v5487
    %v5825 = vpack.c.b16 %v5490, %v5489
    %v5826 = vpack.c.b16 %v5492, %v5491
    %v5827 = vpack.c.b16 %v5494, %v5493
    %v5828 = vpack.c.b16 %v5496, %v5495
    %v5829 = vpack.c.b16 %v5498, %v5497
    %v5830 = vpack.c.b16 %v5500, %v5499
    %v5831 = vpack.c.b16 %v5502, %v5501
    %v5832 = vpack.c.b16 %v5504, %v5503
    %v5833 = vpack.c.b16 %v5506, %v5505
    %v5834 = vpack.c.b16 %v5508, %v5507
    %v5835 = vpack.c.b16 %v5510, %v5509
    %v5836 = vpack.c.b16 %v5512, %v5511
    %v5837 = vpack.c.b16 %v5514, %v5513
    %v5838 = vpack.c.b16 %v5516, %v5515
    %v5839 = vpack.c.b16 %v5518, %v5517
    %v5840 = vpack.c.b16 %v5520, %v5519
    %v5841 = vpack.c.b16 %v5522, %v5521
    %v5842 = vpack.c.b16 %v5524, %v5523
    %v5843 = vpack.c.b16 %v5526, %v5525
    %v5844 = vpack.c.b16 %v5528, %v5527
    %v5845 = vpack.c.b16 %v5530, %v5529
    %v5846 = vpack.c.b16 %v5532, %v5531
    %v5847 = vpack.c.b16 %v5534, %v5533
    %v5848 = vpack.c.b16 %v5536, %v5535
    %v5849 = vpack.c.b16 %v5538, %v5537
    %v5850 = vpack.c.b16 %v5540, %v5539
    %v5851 = vpack.c.b16 %v5542, %v5541
    %v5852 = vpack.c.b16 %v5544, %v5543
    %v5853 = vpack.c.b16 %v5546, %v5545
    %v5854 = vpack.c.b16 %v5548, %v5547
    %v5855 = vpack.c.b16 %v5550, %v5549
    %v5856 = vpack.c.b16 %v5552, %v5551
    %v5857 = vpack.c.b16 %v5554, %v5553
    %v5858 = vpack.c.b16 %v5556, %v5555
    %v5859 = vpack.c.b16 %v5558, %v5557
    %v5860 = vpack.c.b16 %v5560, %v5559
    %v5861 = vpack.c.b16 %v5562, %v5561
    %v5862 = vpack.c.b16 %v5564, %v5563
    %v5863 = vpack.c.b16 %v5566, %v5565
    %v5864 = vpack.c.b16 %v5568, %v5567
    %v5865 = vpack.c.b16 %v5570, %v5569
    %v5866 = vpack.c.b16 %v5572, %v5571
    %v5867 = vpack.c.b16 %v5574, %v5573
    %v5868 = vpack.c.b16 %v5576, %v5575
    %v5869 = vpack.c.b16 %v5578, %v5577
    %v5870 = vpack.c.b16 %v5580, %v5579
    %v5871 = vpack.c.b16 %v5582, %v5581
    %v5872 = vpack.c.b16 %v5584, %v5583
    %v5873 = vpack.c.b16 %v5586, %v5585
    %v5874 = vpack.c.b16 %v5588, %v5587
    %v5875 = vpack.c.b16 %v5590, %v5589
    %v5876 = vpack.c.b16 %v5592, %v5591
    %v5877 = vpack.c.b16 %v5594, %v5593
    %v5878 = vpack.c.b16 %v5596, %v5595
    %v5879 = vpack.c.b16 %v5598, %v5597
    %v5880 = vpack.c.b16 %v5600, %v5599
    %v5881 = vpack.c.b16 %v5602, %v5601
    %v5882 = vpack.c.b16 %v5604, %v5603
    %v5883 = vpack.c.b16 %v5606, %v5605
    %v5884 = vpack.c.b16 %v5608, %v5607
    %v5885 = vpack.c.b16 %v5610, %v5609
    %v5886 = vpack.c.b16 %v5612, %v5611
    %v5887 = vpack.c.b16 %v5614, %v5613
    %v5888 = vpack.c.b16 %v5616, %v5615
    %v5889 = vpack.c.b16 %v5618, %v5617
    %v5890 = vpack.c.b16 %v5620, %v5619
    %v5891 = vpack.c.b16 %v5622, %v5621
    %v5892 = vpack.c.b16 %v5624, %v5623
    %v5893 = vpack.c.b16 %v5626, %v5625
    %v5894 = vpack.c.b16 %v5628, %v5627
    %v5895 = vpack.c.b16 %v5630, %v5629
    %v5896 = vpack.c.b16 %v5632, %v5631
    %v5897 = vpack.c.b16 %v5634, %v5633
    %v5898 = vpack.c.b16 %v5636, %v5635
    %v5899 = vpack.c.b16 %v5638, %v5637
    %v5900 = vpack.c.b16 %v5640, %v5639
    %v5901 = vpack.c.b16 %v5642, %v5641
    %v5902 = vpack.c.b16 %v5644, %v5643
    %v5903 = vpack.c.b16 %v5646, %v5645
    %v5904 = vpack.c.b16 %v5648, %v5647
    %6161 = vmatpush.bf16.msra.mxu0 %v5656
    %6162 = vmatpush.bf16.msra.mxu0 %v5655
    %6163 = vmatpush.bf16.msra.mxu0 %v5654
    %6164 = vmatpush.bf16.msra.mxu0 %v5653
    %6165 = vmatpush.bf16.msra.mxu0 %v5652
    %6166 = vmatpush.bf16.msra.mxu0 %v5651
    %6167 = vmatpush.bf16.msra.mxu0 %v5650
    %6168 = vmatpush.bf16.msra.mxu0 %v5649
    %6169 = vmatmul.bf16.gmra.mxu0 %v3985
    %v6170 = vpop.f32.mrf.mxu0
    %v6171 = vadd.f32 %v4623, %v6170
    %v6172 = vpop.f32.mrf.mxu0
    %v6173 = vadd.f32 %v4623, %v6172
    %6174 = vdwg.mxu0
    %6175 = vmatpush.bf16.msra.mxu0 %v5664
    %6176 = vmatpush.bf16.msra.mxu0 %v5663
    %6177 = vmatpush.bf16.msra.mxu0 %v5662
    %6178 = vmatpush.bf16.msra.mxu0 %v5661
    %6179 = vmatpush.bf16.msra.mxu0 %v5660
    %6180 = vmatpush.bf16.msra.mxu0 %v5659
    %6181 = vmatpush.bf16.msra.mxu0 %v5658
    %6182 = vmatpush.bf16.msra.mxu0 %v5657
    %6183 = vmatmul.bf16.gmra.mxu0 %v3986
    %v6184 = vpop.f32.mrf.mxu0
    %v6185 = vadd.f32 %v6171, %v6184
    %v6186 = vpop.f32.mrf.mxu0
    %v6187 = vadd.f32 %v6173, %v6186
    %6188 = vdwg.mxu0
    %6189 = vmatpush.bf16.msra.mxu0 %v5672
    %6190 = vmatpush.bf16.msra.mxu0 %v5671
    %6191 = vmatpush.bf16.msra.mxu0 %v5670
    %6192 = vmatpush.bf16.msra.mxu0 %v5669
    %6193 = vmatpush.bf16.msra.mxu0 %v5668
    %6194 = vmatpush.bf16.msra.mxu0 %v5667
    %6195 = vmatpush.bf16.msra.mxu0 %v5666
    %6196 = vmatpush.bf16.msra.mxu0 %v5665
    %6197 = vmatmul.bf16.gmra.mxu0 %v3993
    %v6198 = vpop.f32.mrf.mxu0
    %v6199 = vadd.f32 %v6185, %v6198
    %v6200 = vpop.f32.mrf.mxu0
    %v6201 = vadd.f32 %v6187, %v6200
    %6202 = vdwg.mxu0
    %6203 = vmatpush.bf16.msra.mxu0 %v5680
    %6204 = vmatpush.bf16.msra.mxu0 %v5679
    %6205 = vmatpush.bf16.msra.mxu0 %v5678
    %6206 = vmatpush.bf16.msra.mxu0 %v5677
    %6207 = vmatpush.bf16.msra.mxu0 %v5676
    %6208 = vmatpush.bf16.msra.mxu0 %v5675
    %6209 = vmatpush.bf16.msra.mxu0 %v5674
    %6210 = vmatpush.bf16.msra.mxu0 %v5673
    %6211 = vmatmul.bf16.gmra.mxu0 %v3994
    %v6212 = vpop.f32.mrf.mxu0
    %v6213 = vadd.f32 %v6199, %v6212
    %v6214 = vpop.f32.mrf.mxu0
    %v6215 = vadd.f32 %v6201, %v6214
    %6216 = vdwg.mxu0
    %6217 = vmatpush.bf16.msra.mxu0 %v5688
    %6218 = vmatpush.bf16.msra.mxu0 %v5687
    %6219 = vmatpush.bf16.msra.mxu0 %v5686
    %6220 = vmatpush.bf16.msra.mxu0 %v5685
    %6221 = vmatpush.bf16.msra.mxu0 %v5684
    %6222 = vmatpush.bf16.msra.mxu0 %v5683
    %6223 = vmatpush.bf16.msra.mxu0 %v5682
    %6224 = vmatpush.bf16.msra.mxu0 %v5681
    %6225 = vmatmul.bf16.gmra.mxu0 %v4001
    %v6226 = vpop.f32.mrf.mxu0
    %v6227 = vadd.f32 %v6213, %v6226
    %v6228 = vpop.f32.mrf.mxu0
    %v6229 = vadd.f32 %v6215, %v6228
    %6230 = vdwg.mxu0
    %6231 = vmatpush.bf16.msra.mxu0 %v5696
    %6232 = vmatpush.bf16.msra.mxu0 %v5695
    %6233 = vmatpush.bf16.msra.mxu0 %v5694
    %6234 = vmatpush.bf16.msra.mxu0 %v5693
    %6235 = vmatpush.bf16.msra.mxu0 %v5692
    %6236 = vmatpush.bf16.msra.mxu0 %v5691
    %6237 = vmatpush.bf16.msra.mxu0 %v5690
    %6238 = vmatpush.bf16.msra.mxu0 %v5689
    %6239 = vmatmul.bf16.gmra.mxu0 %v4002
    %v6240 = vpop.f32.mrf.mxu0
    %v6241 = vadd.f32 %v6227, %v6240
    %v6242 = vpop.f32.mrf.mxu0
    %v6243 = vadd.f32 %v6229, %v6242
    %6244 = vdwg.mxu0
    %6245 = vmatpush.bf16.msra.mxu0 %v5704
    %6246 = vmatpush.bf16.msra.mxu0 %v5703
    %6247 = vmatpush.bf16.msra.mxu0 %v5702
    %6248 = vmatpush.bf16.msra.mxu0 %v5701
    %6249 = vmatpush.bf16.msra.mxu0 %v5700
    %6250 = vmatpush.bf16.msra.mxu0 %v5699
    %6251 = vmatpush.bf16.msra.mxu0 %v5698
    %6252 = vmatpush.bf16.msra.mxu0 %v5697
    %6253 = vmatmul.bf16.gmra.mxu0 %v4009
    %v6254 = vpop.f32.mrf.mxu0
    %v6255 = vadd.f32 %v6241, %v6254
    %v6256 = vpop.f32.mrf.mxu0
    %v6257 = vadd.f32 %v6243, %v6256
    %6258 = vdwg.mxu0
    %6259 = vmatpush.bf16.msra.mxu0 %v5712
    %6260 = vmatpush.bf16.msra.mxu0 %v5711
    %6261 = vmatpush.bf16.msra.mxu0 %v5710
    %6262 = vmatpush.bf16.msra.mxu0 %v5709
    %6263 = vmatpush.bf16.msra.mxu0 %v5708
    %6264 = vmatpush.bf16.msra.mxu0 %v5707
    %6265 = vmatpush.bf16.msra.mxu0 %v5706
    %6266 = vmatpush.bf16.msra.mxu0 %v5705
    %6267 = vmatmul.bf16.gmra.mxu0 %v4010
    %v6268 = vpop.f32.mrf.mxu0
    %v6269 = vadd.f32 %v6255, %v6268
    %v6270 = vpop.f32.mrf.mxu0
    %v6271 = vadd.f32 %v6257, %v6270
    %6272 = vdwg.mxu0
    %6273 = vmatpush.bf16.msra.mxu0 %v5720
    %6274 = vmatpush.bf16.msra.mxu0 %v5719
    %6275 = vmatpush.bf16.msra.mxu0 %v5718
    %6276 = vmatpush.bf16.msra.mxu0 %v5717
    %6277 = vmatpush.bf16.msra.mxu0 %v5716
    %6278 = vmatpush.bf16.msra.mxu0 %v5715
    %6279 = vmatpush.bf16.msra.mxu0 %v5714
    %6280 = vmatpush.bf16.msra.mxu0 %v5713
    %6281 = vmatmul.bf16.gmra.mxu0 %v4017
    %v6282 = vpop.f32.mrf.mxu0
    %v6283 = vadd.f32 %v6269, %v6282
    %v6284 = vpop.f32.mrf.mxu0
    %v6285 = vadd.f32 %v6271, %v6284
    %6286 = vdwg.mxu0
    %6287 = vmatpush.bf16.msra.mxu0 %v5728
    %6288 = vmatpush.bf16.msra.mxu0 %v5727
    %6289 = vmatpush.bf16.msra.mxu0 %v5726
    %6290 = vmatpush.bf16.msra.mxu0 %v5725
    %6291 = vmatpush.bf16.msra.mxu0 %v5724
    %6292 = vmatpush.bf16.msra.mxu0 %v5723
    %6293 = vmatpush.bf16.msra.mxu0 %v5722
    %6294 = vmatpush.bf16.msra.mxu0 %v5721
    %6295 = vmatmul.bf16.gmra.mxu0 %v4018
    %v6296 = vpop.f32.mrf.mxu0
    %v6297 = vadd.f32 %v6283, %v6296
    %v6298 = vpop.f32.mrf.mxu0
    %v6299 = vadd.f32 %v6285, %v6298
    %6300 = vdwg.mxu0
    %6301 = vmatpush.bf16.msra.mxu0 %v5736
    %6302 = vmatpush.bf16.msra.mxu0 %v5735
    %6303 = vmatpush.bf16.msra.mxu0 %v5734
    %6304 = vmatpush.bf16.msra.mxu0 %v5733
    %6305 = vmatpush.bf16.msra.mxu0 %v5732
    %6306 = vmatpush.bf16.msra.mxu0 %v5731
    %6307 = vmatpush.bf16.msra.mxu0 %v5730
    %6308 = vmatpush.bf16.msra.mxu0 %v5729
    %6309 = vmatmul.bf16.gmra.mxu0 %v4025
    %v6310 = vpop.f32.mrf.mxu0
    %v6311 = vadd.f32 %v6297, %v6310
    %v6312 = vpop.f32.mrf.mxu0
    %v6313 = vadd.f32 %v6299, %v6312
    %6314 = vdwg.mxu0
    %6315 = vmatpush.bf16.msra.mxu0 %v5744
    %6316 = vmatpush.bf16.msra.mxu0 %v5743
    %6317 = vmatpush.bf16.msra.mxu0 %v5742
    %6318 = vmatpush.bf16.msra.mxu0 %v5741
    %6319 = vmatpush.bf16.msra.mxu0 %v5740
    %6320 = vmatpush.bf16.msra.mxu0 %v5739
    %6321 = vmatpush.bf16.msra.mxu0 %v5738
    %6322 = vmatpush.bf16.msra.mxu0 %v5737
    %6323 = vmatmul.bf16.gmra.mxu0 %v4026
    %v6324 = vpop.f32.mrf.mxu0
    %v6325 = vadd.f32 %v6311, %v6324
    %v6326 = vpop.f32.mrf.mxu0
    %v6327 = vadd.f32 %v6313, %v6326
    %6328 = vdwg.mxu0
    %6329 = vmatpush.bf16.msra.mxu0 %v5752
    %6330 = vmatpush.bf16.msra.mxu0 %v5751
    %6331 = vmatpush.bf16.msra.mxu0 %v5750
    %6332 = vmatpush.bf16.msra.mxu0 %v5749
    %6333 = vmatpush.bf16.msra.mxu0 %v5748
    %6334 = vmatpush.bf16.msra.mxu0 %v5747
    %6335 = vmatpush.bf16.msra.mxu0 %v5746
    %6336 = vmatpush.bf16.msra.mxu0 %v5745
    %6337 = vmatmul.bf16.gmra.mxu0 %v4033
    %v6338 = vpop.f32.mrf.mxu0
    %v6339 = vadd.f32 %v6325, %v6338
    %v6340 = vpop.f32.mrf.mxu0
    %v6341 = vadd.f32 %v6327, %v6340
    %6342 = vdwg.mxu0
    %6343 = vmatpush.bf16.msra.mxu0 %v5760
    %6344 = vmatpush.bf16.msra.mxu0 %v5759
    %6345 = vmatpush.bf16.msra.mxu0 %v5758
    %6346 = vmatpush.bf16.msra.mxu0 %v5757
    %6347 = vmatpush.bf16.msra.mxu0 %v5756
    %6348 = vmatpush.bf16.msra.mxu0 %v5755
    %6349 = vmatpush.bf16.msra.mxu0 %v5754
    %6350 = vmatpush.bf16.msra.mxu0 %v5753
    %6351 = vmatmul.bf16.gmra.mxu0 %v4034
    %v6352 = vpop.f32.mrf.mxu0
    %v6353 = vadd.f32 %v6339, %v6352
    %v6354 = vpop.f32.mrf.mxu0
    %v6355 = vadd.f32 %v6341, %v6354
    %6356 = vdwg.mxu0
    %6357 = vmatpush.bf16.msra.mxu0 %v5768
    %6358 = vmatpush.bf16.msra.mxu0 %v5767
    %6359 = vmatpush.bf16.msra.mxu0 %v5766
    %6360 = vmatpush.bf16.msra.mxu0 %v5765
    %6361 = vmatpush.bf16.msra.mxu0 %v5764
    %6362 = vmatpush.bf16.msra.mxu0 %v5763
    %6363 = vmatpush.bf16.msra.mxu0 %v5762
    %6364 = vmatpush.bf16.msra.mxu0 %v5761
    %6365 = vmatmul.bf16.gmra.mxu0 %v4041
    %v6366 = vpop.f32.mrf.mxu0
    %v6367 = vadd.f32 %v6353, %v6366
    %v6368 = vpop.f32.mrf.mxu0
    %v6369 = vadd.f32 %v6355, %v6368
    %6370 = vdwg.mxu0
    %6371 = vmatpush.bf16.msra.mxu0 %v5776
    %6372 = vmatpush.bf16.msra.mxu0 %v5775
    %6373 = vmatpush.bf16.msra.mxu0 %v5774
    %6374 = vmatpush.bf16.msra.mxu0 %v5773
    %6375 = vmatpush.bf16.msra.mxu0 %v5772
    %6376 = vmatpush.bf16.msra.mxu0 %v5771
    %6377 = vmatpush.bf16.msra.mxu0 %v5770
    %6378 = vmatpush.bf16.msra.mxu0 %v5769
    %6379 = vmatmul.bf16.gmra.mxu0 %v4042
    %v6380 = vpop.f32.mrf.mxu0
    %v6381 = vadd.f32 %v6367, %v6380
    %v6382 = vpop.f32.mrf.mxu0
    %v6383 = vadd.f32 %v6369, %v6382
    %6384 = vdwg.mxu0
    %6385 = vmatpush.bf16.msra.mxu0 %v5784
    %6386 = vmatpush.bf16.msra.mxu0 %v5783
    %6387 = vmatpush.bf16.msra.mxu0 %v5782
    %6388 = vmatpush.bf16.msra.mxu0 %v5781
    %6389 = vmatpush.bf16.msra.mxu0 %v5780
    %6390 = vmatpush.bf16.msra.mxu0 %v5779
    %6391 = vmatpush.bf16.msra.mxu0 %v5778
    %6392 = vmatpush.bf16.msra.mxu0 %v5777
    %6393 = vmatmul.bf16.gmra.mxu0 %v4049
    %v6394 = vpop.f32.mrf.mxu0
    %v6395 = vadd.f32 %v6381, %v6394
    %v6396 = vpop.f32.mrf.mxu0
    %v6397 = vadd.f32 %v6383, %v6396
    %6398 = vdwg.mxu0
    %6399 = vmatpush.bf16.msra.mxu0 %v5792
    %6400 = vmatpush.bf16.msra.mxu0 %v5791
    %6401 = vmatpush.bf16.msra.mxu0 %v5790
    %6402 = vmatpush.bf16.msra.mxu0 %v5789
    %6403 = vmatpush.bf16.msra.mxu0 %v5788
    %6404 = vmatpush.bf16.msra.mxu0 %v5787
    %6405 = vmatpush.bf16.msra.mxu0 %v5786
    %6406 = vmatpush.bf16.msra.mxu0 %v5785
    %6407 = vmatmul.bf16.gmra.mxu0 %v4050
    %v6408 = vpop.f32.mrf.mxu0
    %v6409 = vadd.f32 %v6395, %v6408
    %v6410 = vpop.f32.mrf.mxu0
    %v6411 = vadd.f32 %v6397, %v6410
    %6412 = vdwg.mxu0
    %6413 = vmatpush.bf16.msra.mxu0 %v5800
    %6414 = vmatpush.bf16.msra.mxu0 %v5799
    %6415 = vmatpush.bf16.msra.mxu0 %v5798
    %6416 = vmatpush.bf16.msra.mxu0 %v5797
    %6417 = vmatpush.bf16.msra.mxu0 %v5796
    %6418 = vmatpush.bf16.msra.mxu0 %v5795
    %6419 = vmatpush.bf16.msra.mxu0 %v5794
    %6420 = vmatpush.bf16.msra.mxu0 %v5793
    %6421 = vmatmul.bf16.gmra.mxu0 %v4057
    %v6422 = vpop.f32.mrf.mxu0
    %v6423 = vadd.f32 %v6409, %v6422
    %v6424 = vpop.f32.mrf.mxu0
    %v6425 = vadd.f32 %v6411, %v6424
    %6426 = vdwg.mxu0
    %6427 = vmatpush.bf16.msra.mxu0 %v5808
    %6428 = vmatpush.bf16.msra.mxu0 %v5807
    %6429 = vmatpush.bf16.msra.mxu0 %v5806
    %6430 = vmatpush.bf16.msra.mxu0 %v5805
    %6431 = vmatpush.bf16.msra.mxu0 %v5804
    %6432 = vmatpush.bf16.msra.mxu0 %v5803
    %6433 = vmatpush.bf16.msra.mxu0 %v5802
    %6434 = vmatpush.bf16.msra.mxu0 %v5801
    %6435 = vmatmul.bf16.gmra.mxu0 %v4058
    %v6436 = vpop.f32.mrf.mxu0
    %v6437 = vadd.f32 %v6423, %v6436
    %v6438 = vpop.f32.mrf.mxu0
    %v6439 = vadd.f32 %v6425, %v6438
    %6440 = vdwg.mxu0
    %6441 = vmatpush.bf16.msra.mxu0 %v5816
    %6442 = vmatpush.bf16.msra.mxu0 %v5815
    %6443 = vmatpush.bf16.msra.mxu0 %v5814
    %6444 = vmatpush.bf16.msra.mxu0 %v5813
    %6445 = vmatpush.bf16.msra.mxu0 %v5812
    %6446 = vmatpush.bf16.msra.mxu0 %v5811
    %6447 = vmatpush.bf16.msra.mxu0 %v5810
    %6448 = vmatpush.bf16.msra.mxu0 %v5809
    %6449 = vmatmul.bf16.gmra.mxu0 %v4065
    %v6450 = vpop.f32.mrf.mxu0
    %v6451 = vadd.f32 %v6437, %v6450
    %v6452 = vpop.f32.mrf.mxu0
    %v6453 = vadd.f32 %v6439, %v6452
    %6454 = vdwg.mxu0
    %6455 = vmatpush.bf16.msra.mxu0 %v5824
    %6456 = vmatpush.bf16.msra.mxu0 %v5823
    %6457 = vmatpush.bf16.msra.mxu0 %v5822
    %6458 = vmatpush.bf16.msra.mxu0 %v5821
    %6459 = vmatpush.bf16.msra.mxu0 %v5820
    %6460 = vmatpush.bf16.msra.mxu0 %v5819
    %6461 = vmatpush.bf16.msra.mxu0 %v5818
    %6462 = vmatpush.bf16.msra.mxu0 %v5817
    %6463 = vmatmul.bf16.gmra.mxu0 %v4066
    %v6464 = vpop.f32.mrf.mxu0
    %v6465 = vadd.f32 %v6451, %v6464
    %v6466 = vpop.f32.mrf.mxu0
    %v6467 = vadd.f32 %v6453, %v6466
    %6468 = vdwg.mxu0
    %6469 = vmatpush.bf16.msra.mxu0 %v5832
    %6470 = vmatpush.bf16.msra.mxu0 %v5831
    %6471 = vmatpush.bf16.msra.mxu0 %v5830
    %6472 = vmatpush.bf16.msra.mxu0 %v5829
    %6473 = vmatpush.bf16.msra.mxu0 %v5828
    %6474 = vmatpush.bf16.msra.mxu0 %v5827
    %6475 = vmatpush.bf16.msra.mxu0 %v5826
    %6476 = vmatpush.bf16.msra.mxu0 %v5825
    %6477 = vmatmul.bf16.gmra.mxu0 %v4073
    %v6478 = vpop.f32.mrf.mxu0
    %v6479 = vadd.f32 %v6465, %v6478
    %v6480 = vpop.f32.mrf.mxu0
    %v6481 = vadd.f32 %v6467, %v6480
    %6482 = vdwg.mxu0
    %6483 = vmatpush.bf16.msra.mxu0 %v5840
    %6484 = vmatpush.bf16.msra.mxu0 %v5839
    %6485 = vmatpush.bf16.msra.mxu0 %v5838
    %6486 = vmatpush.bf16.msra.mxu0 %v5837
    %6487 = vmatpush.bf16.msra.mxu0 %v5836
    %6488 = vmatpush.bf16.msra.mxu0 %v5835
    %6489 = vmatpush.bf16.msra.mxu0 %v5834
    %6490 = vmatpush.bf16.msra.mxu0 %v5833
    %6491 = vmatmul.bf16.gmra.mxu0 %v4074
    %v6492 = vpop.f32.mrf.mxu0
    %v6493 = vadd.f32 %v6479, %v6492
    %v6494 = vpop.f32.mrf.mxu0
    %v6495 = vadd.f32 %v6481, %v6494
    %6496 = vdwg.mxu0
    %6497 = vmatpush.bf16.msra.mxu0 %v5848
    %6498 = vmatpush.bf16.msra.mxu0 %v5847
    %6499 = vmatpush.bf16.msra.mxu0 %v5846
    %6500 = vmatpush.bf16.msra.mxu0 %v5845
    %6501 = vmatpush.bf16.msra.mxu0 %v5844
    %6502 = vmatpush.bf16.msra.mxu0 %v5843
    %6503 = vmatpush.bf16.msra.mxu0 %v5842
    %6504 = vmatpush.bf16.msra.mxu0 %v5841
    %6505 = vmatmul.bf16.gmra.mxu0 %v4081
    %v6506 = vpop.f32.mrf.mxu0
    %v6507 = vadd.f32 %v6493, %v6506
    %v6508 = vpop.f32.mrf.mxu0
    %v6509 = vadd.f32 %v6495, %v6508
    %6510 = vdwg.mxu0
    %6511 = vmatpush.bf16.msra.mxu0 %v5856
    %6512 = vmatpush.bf16.msra.mxu0 %v5855
    %6513 = vmatpush.bf16.msra.mxu0 %v5854
    %6514 = vmatpush.bf16.msra.mxu0 %v5853
    %6515 = vmatpush.bf16.msra.mxu0 %v5852
    %6516 = vmatpush.bf16.msra.mxu0 %v5851
    %6517 = vmatpush.bf16.msra.mxu0 %v5850
    %6518 = vmatpush.bf16.msra.mxu0 %v5849
    %6519 = vmatmul.bf16.gmra.mxu0 %v4082
    %v6520 = vpop.f32.mrf.mxu0
    %v6521 = vadd.f32 %v6507, %v6520
    %v6522 = vpop.f32.mrf.mxu0
    %v6523 = vadd.f32 %v6509, %v6522
    %6524 = vdwg.mxu0
    %6525 = vmatpush.bf16.msra.mxu0 %v5864
    %6526 = vmatpush.bf16.msra.mxu0 %v5863
    %6527 = vmatpush.bf16.msra.mxu0 %v5862
    %6528 = vmatpush.bf16.msra.mxu0 %v5861
    %6529 = vmatpush.bf16.msra.mxu0 %v5860
    %6530 = vmatpush.bf16.msra.mxu0 %v5859
    %6531 = vmatpush.bf16.msra.mxu0 %v5858
    %6532 = vmatpush.bf16.msra.mxu0 %v5857
    %6533 = vmatmul.bf16.gmra.mxu0 %v4089
    %v6534 = vpop.f32.mrf.mxu0
    %v6535 = vadd.f32 %v6521, %v6534
    %v6536 = vpop.f32.mrf.mxu0
    %v6537 = vadd.f32 %v6523, %v6536
    %6538 = vdwg.mxu0
    %6539 = vmatpush.bf16.msra.mxu0 %v5872
    %6540 = vmatpush.bf16.msra.mxu0 %v5871
    %6541 = vmatpush.bf16.msra.mxu0 %v5870
    %6542 = vmatpush.bf16.msra.mxu0 %v5869
    %6543 = vmatpush.bf16.msra.mxu0 %v5868
    %6544 = vmatpush.bf16.msra.mxu0 %v5867
    %6545 = vmatpush.bf16.msra.mxu0 %v5866
    %6546 = vmatpush.bf16.msra.mxu0 %v5865
    %6547 = vmatmul.bf16.gmra.mxu0 %v4090
    %v6548 = vpop.f32.mrf.mxu0
    %v6549 = vadd.f32 %v6535, %v6548
    %v6550 = vpop.f32.mrf.mxu0
    %v6551 = vadd.f32 %v6537, %v6550
    %6552 = vdwg.mxu0
    %6553 = vmatpush.bf16.msra.mxu0 %v5880
    %6554 = vmatpush.bf16.msra.mxu0 %v5879
    %6555 = vmatpush.bf16.msra.mxu0 %v5878
    %6556 = vmatpush.bf16.msra.mxu0 %v5877
    %6557 = vmatpush.bf16.msra.mxu0 %v5876
    %6558 = vmatpush.bf16.msra.mxu0 %v5875
    %6559 = vmatpush.bf16.msra.mxu0 %v5874
    %6560 = vmatpush.bf16.msra.mxu0 %v5873
    %6561 = vmatmul.bf16.gmra.mxu0 %v4097
    %v6562 = vpop.f32.mrf.mxu0
    %v6563 = vadd.f32 %v6549, %v6562
    %v6564 = vpop.f32.mrf.mxu0
    %v6565 = vadd.f32 %v6551, %v6564
    %6566 = vdwg.mxu0
    %6567 = vmatpush.bf16.msra.mxu0 %v5888
    %6568 = vmatpush.bf16.msra.mxu0 %v5887
    %6569 = vmatpush.bf16.msra.mxu0 %v5886
    %6570 = vmatpush.bf16.msra.mxu0 %v5885
    %6571 = vmatpush.bf16.msra.mxu0 %v5884
    %6572 = vmatpush.bf16.msra.mxu0 %v5883
    %6573 = vmatpush.bf16.msra.mxu0 %v5882
    %6574 = vmatpush.bf16.msra.mxu0 %v5881
    %6575 = vmatmul.bf16.gmra.mxu0 %v4098
    %v6576 = vpop.f32.mrf.mxu0
    %v6577 = vadd.f32 %v6563, %v6576
    %v6578 = vpop.f32.mrf.mxu0
    %v6579 = vadd.f32 %v6565, %v6578
    %6580 = vdwg.mxu0
    %6581 = vmatpush.bf16.msra.mxu0 %v5896
    %6582 = vmatpush.bf16.msra.mxu0 %v5895
    %6583 = vmatpush.bf16.msra.mxu0 %v5894
    %6584 = vmatpush.bf16.msra.mxu0 %v5893
    %6585 = vmatpush.bf16.msra.mxu0 %v5892
    %6586 = vmatpush.bf16.msra.mxu0 %v5891
    %6587 = vmatpush.bf16.msra.mxu0 %v5890
    %6588 = vmatpush.bf16.msra.mxu0 %v5889
    %6589 = vmatmul.bf16.gmra.mxu0 %v4105
    %v6590 = vpop.f32.mrf.mxu0
    %v6591 = vadd.f32 %v6577, %v6590
    %v6592 = vpop.f32.mrf.mxu0
    %v6593 = vadd.f32 %v6579, %v6592
    %6594 = vdwg.mxu0
    %6595 = vmatpush.bf16.msra.mxu0 %v5904
    %6596 = vmatpush.bf16.msra.mxu0 %v5903
    %6597 = vmatpush.bf16.msra.mxu0 %v5902
    %6598 = vmatpush.bf16.msra.mxu0 %v5901
    %6599 = vmatpush.bf16.msra.mxu0 %v5900
    %6600 = vmatpush.bf16.msra.mxu0 %v5899
    %6601 = vmatpush.bf16.msra.mxu0 %v5898
    %6602 = vmatpush.bf16.msra.mxu0 %v5897
    %6603 = vmatmul.bf16.gmra.mxu0 %v4106
    %v6604 = vpop.f32.mrf.mxu0
    %v6605 = vadd.f32 %v6591, %v6604
    %v6606 = vpop.f32.mrf.mxu0
    %v6607 = vadd.f32 %v6593, %v6606
    %6608 = vdwg.mxu0
    %vm6609 = vcmp.gt.f32.partialorder %v6605, 0.0
    %vm6610 = vcmp.gt.f32.partialorder %v6607, 0.0
    %v6611 = vmul.f32 %v6605, 0.2
    %v6612 = vmul.f32 %v6607, 0.2
    %v6613 = vsel %vm6609, %v6605, %v6611
    %v6614 = vsel %vm6610, %v6607, %v6612
    %v6615 = vld [vmem:[%s9] sm:$0x1]
    %v6617 = vperm.slane %v6615, 0
    %v6619 = vmul.f32 %v6613, %v6617
    %v6620 = vmul.f32 %v6614, %v6617
    %6621 = vadd.xlane.f32.xlu0 %v6619
    %v6622 = vpop.xlane.xlu0 %6621
    %6623 = vadd.xlane.f32.xlu0 %v6620
    %v6624 = vpop.xlane.xlu0 %6623
    %v6625 = vld [vmem:[#allocation2] sm:$0x1]
    %v6627 = vperm.slane %v6625, 0
    %v6629 = vadd.f32 %v6622, %v6627
    %v6630 = vadd.f32 %v6624, %v6627
    %v6631 = vsub.f32 0.0, %v6629
    %v6632 = vsub.f32 0.0, %v6630
    %v6633 = vmul.f32 %v6631, 1.442695
    %v6634 = vpow.pop %v6633
    %v6635 = vmul.f32 %v6632, 1.442695
    %v6636 = vpow.pop %v6635
    %v6637 = vadd.f32 %v6634, 1.0
    %v6638 = vadd.f32 %v6636, 1.0
    %v6639 = vrcp.pop %v6637
    %v6640 = vmul.f32 %v6637, %v6639
    %v6641 = vsub.f32 1.0, %v6640
    %v6642 = vmul.f32 %v6639, %v6641
    %v6643 = vadd.f32 %v6639, %v6642
    %vm6644 = vweird.f32 %v6637
    %vm6645 = vweird.f32 %v6639
    %vm6646 = vmor %vm6644, %vm6645
    %v6647 = vsel %vm6646, %v6639, %v6643
    %v6648 = vand.u32 2147483647, %v6637
    %vm6649 = vcmp.eq.f32.partialorder %v6648, 8.507059e+37
    %v6650 = vand.u32 %v6637, 2147483648
    %v6651 = vor.u32 1.1754944e-38, %v6650
    %v6652 = vsel %vm6649, %v6651, %v6647
    %v6653 = vmul.f32 1.0, %v6652
    %v6654 = vrcp.pop %v6638
    %v6655 = vmul.f32 %v6638, %v6654
    %v6656 = vsub.f32 1.0, %v6655
    %v6657 = vmul.f32 %v6654, %v6656
    %v6658 = vadd.f32 %v6654, %v6657
    %vm6659 = vweird.f32 %v6638
    %vm6660 = vweird.f32 %v6654
    %vm6661 = vmor %vm6659, %vm6660
    %v6662 = vsel %vm6661, %v6654, %v6658
    %v6663 = vand.u32 2147483647, %v6638
    %vm6664 = vcmp.eq.f32.partialorder %v6663, 8.507059e+37
    %v6665 = vand.u32 %v6638, 2147483648
    %v6666 = vor.u32 1.1754944e-38, %v6665
    %v6667 = vsel %vm6664, %v6666, %v6662
    %v6668 = vmul.f32 1.0, %v6667
    %vm6669 = vcmask 7168
    %6670 = vst.msk [vmem:[%s11] sm:$0xff] %vm6669, %v6653
    %6671 = vst.msk [vmem:[%s11 + $0x8] sm:$0xff] %vm6669, %v6668
    // Predicated region
    $region54: #{tpu_custom_call.1} parent=1 // pred_check
      _
    $region55: #{tpu_custom_call.1} parent=1 // pred_check_branch
      %6673 = sbr.rel (0) target = $region57
    $region56: #{tpu_custom_call.1} parent=1 // pred_region
      _
    $region57: #{tpu_custom_call.1} parent=1 // pred_fallthru
      _
    // Predicated region
    $region58: #{tpu_custom_call.1} parent=1 // pred_check
      _
    $region59: #{tpu_custom_call.1} parent=1 // pred_check_branch
      %6675 = sbr.rel (0) target = $region61
    $region60: #{tpu_custom_call.1} parent=1 // pred_region
      _
    $region61: #{tpu_custom_call.1} parent=1 // pred_fallthru
      _
    %6676 = vsyncpa [#allocation4], 1
    %6677 = vsyncpa [#allocation6], 1

// kernel: tpu_custom_call.1
$region0: #{tpu_custom_call.1}
  #allocation0 [shape = 'u32[]', space=smem, size = 0x4, offset = 0x4, fixed_abs, tag = 'smem constant byte address 0x4 - core index']
  #allocation1 [shape = 'u32[72,128]{1,0:T(1,128)}', space=vmem, size = 0x9000, scoped, tag = 'internal scratch']
  #allocation2 [shape = 'f32[1,1]{1,0:T(1,128)S(1)}', space=vmem, size = 0x200, scoped, tag = 'scoped memory for tpu_custom_call.1']
  %s0 = inlined_call_operand.vmem [shape: f32[16,16,4], index: 0, kind: input, shape index: {}]
  %s1 = inlined_call_operand.vmem [shape: bf16[3,4,64], index: 1, kind: input, shape index: {}]
  %s2 = inlined_call_operand.vmem [shape: f32[1,64], index: 2, kind: input, shape index: {}]
  %s3 = inlined_call_operand.vmem [shape: bf16[3,64,128], index: 3, kind: input, shape index: {}]
  %s4 = inlined_call_operand.vmem [shape: f32[1,128], index: 4, kind: input, shape index: {}]
  %s5 = inlined_call_operand.hbm [shape: bf16[384,256], index: 5, kind: input, shape index: {}]
  %s6 = inlined_call_operand.vmem [shape: f32[1,256], index: 6, kind: input, shape index: {}]
  %s7 = inlined_call_operand.hbm [shape: bf16[4096,128], index: 7, kind: input, shape index: {}]
  %s8 = inlined_call_operand.vmem [shape: f32[1,128], index: 8, kind: input, shape index: {}]
  %s9 = inlined_call_operand.vmem [shape: f32[1,128], index: 9, kind: input, shape index: {}]
  %s10 = inlined_call_operand.<no memory space> [shape: f32[1,1], index: 10, kind: input, shape index: {}]
  %s11 = inlined_call_operand.vmem [shape: f32[16,1], index: 11, kind: output, shape index: {}]
  %s12 = sld [smem:[#allocation0]]
  $region62: #{tpu_custom_call.1} parent=0
    _
  %s14 = ssub.s32 1, %s12
  %s15 = scalar_select 0, %s14, %s12
  %v16 = vstv %s10
  %17 = vst [vmem:[#allocation2] sm:$0x1] %v16
  $region1: #{tpu_custom_call.1} parent=0
    #allocation3 [shape = 'u8[196608]{0}', space=vmem, size = 0x30000, scoped, tag = 'input window, operand 5, single buffered']
    #allocation4 [shape = 's32[1]{0}', space=sflag, size = 0x4, scoped, tag = 'scoped memory for tpu_custom_call.1']
    #allocation5 [shape = 'u8[1048576]{0}', space=vmem, size = 0x100000, scoped, tag = 'input window, operand 7, single buffered']
    #allocation6 [shape = 's32[1]{0}', space=sflag, size = 0x4, scoped, tag = 'scoped memory for tpu_custom_call.1']
    %18 = vsyncpa [#allocation4], 0
    %19 = vsyncpa [#allocation6], 0
    // Predicated region
    $region2: #{tpu_custom_call.1} parent=1 // pred_check
      _
    $region3: #{tpu_custom_call.1} parent=1 // pred_check_branch
      %21 = sbr.rel (0) target = $region5
    $region4: #{tpu_custom_call.1} parent=1 // pred_region
      _
    $region5: #{tpu_custom_call.1} parent=1 // pred_fallthru
      _
    // Predicated region
    $region6: #{tpu_custom_call.1} parent=1 // pred_check
      _
    $region7: #{tpu_custom_call.1} parent=1 // pred_check_branch
      %23 = sbr.rel (0) target = $region9
    $region8: #{tpu_custom_call.1} parent=1 // pred_region
      _
    $region9: #{tpu_custom_call.1} parent=1 // pred_fallthru
      _
    // Predicated region
    $region10: #{tpu_custom_call.1} parent=1 // pred_check
      _
    $region11: #{tpu_custom_call.1} parent=1 // pred_check_branch
      %25 = sbr.rel (0) target = $region13
    $region12: #{tpu_custom_call.1} parent=1 // pred_region
      _
    $region13: #{tpu_custom_call.1} parent=1 // pred_fallthru
      _
    // Predicated region
    $region14: #{tpu_custom_call.1} parent=1 // pred_check
      _
    $region15: #{tpu_custom_call.1} parent=1 // pred_check_branch
      %27 = sbr.rel (0) target = $region17
    $region16: #{tpu_custom_call.1} parent=1 // pred_region
      _
    $region17: #{tpu_custom_call.1} parent=1 // pred_fallthru
      _
    // Predicated region
    $region18: #{tpu_custom_call.1} parent=1 // pred_check
      _
    $region19: #{tpu_custom_call.1} parent=1 // pred_check_branch
      %29 = sbr.rel (0) target = $region21
    $region20: #{tpu_custom_call.1} parent=1 // pred_region
      _
    $region21: #{tpu_custom_call.1} parent=1 // pred_fallthru
      _
    // Predicated region
    $region22: #{tpu_custom_call.1} parent=1 // pred_check
      _
    $region23: #{tpu_custom_call.1} parent=1 // pred_check_branch
      %31 = sbr.rel (0) target = $region25
    $region24: #{tpu_custom_call.1} parent=1 // pred_region
      %33 = vsyncadd [#allocation4], 0
      %s34 = sshll.u32 %s5, 4
      %s35 = int_to_ptr.hbm [resolvable:$true] %s34
      %s36 = sshll.u32 [#allocation3], 4
      %s37 = int_to_ptr.vmem [resolvable:$true] %s36
      %42 = dma.hbm_to_vmem [thread:$0]  %s35, 6144, %s37, [#allocation4], 128, 128, 8
    $region25: #{tpu_custom_call.1} parent=1 // pred_fallthru
      _
    // Predicated region
    $region26: #{tpu_custom_call.1} parent=1 // pred_check
      _
    $region27: #{tpu_custom_call.1} parent=1 // pred_check_branch
      %44 = sbr.rel (0) target = $region29
    $region28: #{tpu_custom_call.1} parent=1 // pred_region
      _
    $region29: #{tpu_custom_call.1} parent=1 // pred_fallthru
      _
    // Predicated region
    $region30: #{tpu_custom_call.1} parent=1 // pred_check
      _
    $region31: #{tpu_custom_call.1} parent=1 // pred_check_branch
      %46 = sbr.rel (0) target = $region33
    $region32: #{tpu_custom_call.1} parent=1 // pred_region
      %48 = vsyncadd [#allocation6], 0
      %s49 = sshll.u32 %s7, 4
      %s50 = int_to_ptr.hbm [resolvable:$true] %s49
      %s51 = sshll.u32 [#allocation5], 4
      %s52 = int_to_ptr.vmem [resolvable:$true] %s51
      %57 = dma.hbm_to_vmem [thread:$0]  %s50, 32768, %s52, [#allocation6], 64, 64, 4
    $region33: #{tpu_custom_call.1} parent=1 // pred_fallthru
      _
    // Predicated region
    $region34: #{tpu_custom_call.1} parent=1 // pred_check
      _
    $region35: #{tpu_custom_call.1} parent=1 // pred_check_branch
      %59 = sbr.rel (0) target = $region37
    $region36: #{tpu_custom_call.1} parent=1 // pred_region
      _
    $region37: #{tpu_custom_call.1} parent=1 // pred_fallthru
      _
    // Predicated region
    $region38: #{tpu_custom_call.1} parent=1 // pred_check
      _
    $region39: #{tpu_custom_call.1} parent=1 // pred_check_branch
      %61 = sbr.rel (0) target = $region41
    $region40: #{tpu_custom_call.1} parent=1 // pred_region
      _
    $region41: #{tpu_custom_call.1} parent=1 // pred_fallthru
      _
    // Predicated region
    $region42: #{tpu_custom_call.1} parent=1 // pred_check
      _
    $region43: #{tpu_custom_call.1} parent=1 // pred_check_branch
      %63 = sbr.rel (0) target = $region45
    $region44: #{tpu_custom_call.1} parent=1 // pred_region
      _
    $region45: #{tpu_custom_call.1} parent=1 // pred_fallthru
      _
    // Predicated region
    $region46: #{tpu_custom_call.1} parent=1 // pred_check
      _
    $region47: #{tpu_custom_call.1} parent=1 // pred_check_branch
      %65 = sbr.rel (0) target = $region49
    $region48: #{tpu_custom_call.1} parent=1 // pred_region
      %67 = dma.done [#allocation4], 6144
    $region49: #{tpu_custom_call.1} parent=1 // pred_fallthru
      _
    // Predicated region
    $region50: #{tpu_custom_call.1} parent=1 // pred_check
      _
    $region51: #{tpu_custom_call.1} parent=1 // pred_check_branch
      %69 = sbr.rel (0) target = $region53
    $region52: #{tpu_custom_call.1} parent=1 // pred_region
      %71 = dma.done [#allocation6], 32768
    $region53: #{tpu_custom_call.1} parent=1 // pred_fallthru
      _
    %v73 = vld [vmem:[%s0] sm:$0xff]
    %v74 = vld [vmem:[%s0 + $0x8] sm:$0xff]
    %v75 = vld [vmem:[%s0 + $0x10] sm:$0xff]
    %v76 = vld [vmem:[%s0 + $0x18] sm:$0xff]
    %v77 = vld [vmem:[%s0 + $0x20] sm:$0xff]
    %v78 = vld [vmem:[%s0 + $0x28] sm:$0xff]
    %v79 = vld [vmem:[%s0 + $0x30] sm:$0xff]
    %v80 = vld [vmem:[%s0 + $0x38] sm:$0xff]
    %v81 = vld [vmem:[%s0 + $0x40] sm:$0xff]
    %v82 = vld [vmem:[%s0 + $0x48] sm:$0xff]
    %v83 = vld [vmem:[%s0 + $0x50] sm:$0xff]
    %v84 = vld [vmem:[%s0 + $0x58] sm:$0xff]
    %v85 = vld [vmem:[%s0 + $0x60] sm:$0xff]
    %v86 = vld [vmem:[%s0 + $0x68] sm:$0xff]
    %v87 = vld [vmem:[%s0 + $0x70] sm:$0xff]
    %v88 = vld [vmem:[%s0 + $0x78] sm:$0xff]
    %v89 = vld [vmem:[%s0 + $0x80] sm:$0xff]
    %v90 = vld [vmem:[%s0 + $0x88] sm:$0xff]
    %v91 = vld [vmem:[%s0 + $0x90] sm:$0xff]
    %v92 = vld [vmem:[%s0 + $0x98] sm:$0xff]
    %v93 = vld [vmem:[%s0 + $0xa0] sm:$0xff]
    %v94 = vld [vmem:[%s0 + $0xa8] sm:$0xff]
    %v95 = vld [vmem:[%s0 + $0xb0] sm:$0xff]
    %v96 = vld [vmem:[%s0 + $0xb8] sm:$0xff]
    %v97 = vld [vmem:[%s0 + $0xc0] sm:$0xff]
    %v98 = vld [vmem:[%s0 + $0xc8] sm:$0xff]
    %v99 = vld [vmem:[%s0 + $0xd0] sm:$0xff]
    %v100 = vld [vmem:[%s0 + $0xd8] sm:$0xff]
    %v101 = vld [vmem:[%s0 + $0xe0] sm:$0xff]
    %v102 = vld [vmem:[%s0 + $0xe8] sm:$0xff]
    %v103 = vld [vmem:[%s0 + $0xf0] sm:$0xff]
    %v104 = vld [vmem:[%s0 + $0xf8] sm:$0xff]
    %v105 = vpack.c.bf16 %v73, %v73
    %v106 = vpack.c.bf16 %v74, %v74
    %v107 = vpack.c.bf16 %v75, %v75
    %v108 = vpack.c.bf16 %v76, %v76
    %v109 = vpack.c.bf16 %v77, %v77
    %v110 = vpack.c.bf16 %v78, %v78
    %v111 = vpack.c.bf16 %v79, %v79
    %v112 = vpack.c.bf16 %v80, %v80
    %v113 = vpack.c.bf16 %v81, %v81
    %v114 = vpack.c.bf16 %v82, %v82
    %v115 = vpack.c.bf16 %v83, %v83
    %v116 = vpack.c.bf16 %v84, %v84
    %v117 = vpack.c.bf16 %v85, %v85
    %v118 = vpack.c.bf16 %v86, %v86
    %v119 = vpack.c.bf16 %v87, %v87
    %v120 = vpack.c.bf16 %v88, %v88
    %v121 = vpack.c.bf16 %v89, %v89
    %v122 = vpack.c.bf16 %v90, %v90
    %v123 = vpack.c.bf16 %v91, %v91
    %v124 = vpack.c.bf16 %v92, %v92
    %v125 = vpack.c.bf16 %v93, %v93
    %v126 = vpack.c.bf16 %v94, %v94
    %v127 = vpack.c.bf16 %v95, %v95
    %v128 = vpack.c.bf16 %v96, %v96
    %v129 = vpack.c.bf16 %v97, %v97
    %v130 = vpack.c.bf16 %v98, %v98
    %v131 = vpack.c.bf16 %v99, %v99
    %v132 = vpack.c.bf16 %v100, %v100
    %v133 = vpack.c.bf16 %v101, %v101
    %v134 = vpack.c.bf16 %v102, %v102
    %v135 = vpack.c.bf16 %v103, %v103
    %v136 = vpack.c.bf16 %v104, %v104
    %v169 = vunpack.c.l.b16 %v105
    %v170 = vunpack.c.l.b16 %v106
    %v171 = vunpack.c.l.b16 %v107
    %v172 = vunpack.c.l.b16 %v108
    %v173 = vunpack.c.l.b16 %v109
    %v174 = vunpack.c.l.b16 %v110
    %v175 = vunpack.c.l.b16 %v111
    %v176 = vunpack.c.l.b16 %v112
    %v177 = vunpack.c.l.b16 %v113
    %v178 = vunpack.c.l.b16 %v114
    %v179 = vunpack.c.l.b16 %v115
    %v180 = vunpack.c.l.b16 %v116
    %v181 = vunpack.c.l.b16 %v117
    %v182 = vunpack.c.l.b16 %v118
    %v183 = vunpack.c.l.b16 %v119
    %v184 = vunpack.c.l.b16 %v120
    %v185 = vunpack.c.l.b16 %v121
    %v186 = vunpack.c.l.b16 %v122
    %v187 = vunpack.c.l.b16 %v123
    %v188 = vunpack.c.l.b16 %v124
    %v189 = vunpack.c.l.b16 %v125
    %v190 = vunpack.c.l.b16 %v126
    %v191 = vunpack.c.l.b16 %v127
    %v192 = vunpack.c.l.b16 %v128
    %v193 = vunpack.c.l.b16 %v129
    %v194 = vunpack.c.l.b16 %v130
    %v195 = vunpack.c.l.b16 %v131
    %v196 = vunpack.c.l.b16 %v132
    %v197 = vunpack.c.l.b16 %v133
    %v198 = vunpack.c.l.b16 %v134
    %v199 = vunpack.c.l.b16 %v135
    %v200 = vunpack.c.l.b16 %v136
    %v201 = vpack.c.b16 %v170, %v169
    %v202 = vpack.c.b16 %v172, %v171
    %v203 = vpack.c.b16 %v174, %v173
    %v204 = vpack.c.b16 %v176, %v175
    %v205 = vpack.c.b16 %v178, %v177
    %v206 = vpack.c.b16 %v180, %v179
    %v207 = vpack.c.b16 %v182, %v181
    %v208 = vpack.c.b16 %v184, %v183
    %v209 = vpack.c.b16 %v186, %v185
    %v210 = vpack.c.b16 %v188, %v187
    %v211 = vpack.c.b16 %v190, %v189
    %v212 = vpack.c.b16 %v192, %v191
    %v213 = vpack.c.b16 %v194, %v193
    %v214 = vpack.c.b16 %v196, %v195
    %v215 = vpack.c.b16 %v198, %v197
    %v216 = vpack.c.b16 %v200, %v199
    %v218 = vshrl.u32 %v201, 16
    %v220 = vrot.slane %v218, 7
    %v221 = vshll.u32 %v201, 16
    %v223 = vor.u32 %v220, %v221
    %v225 = vshrl.u32 %v202, 16
    %v227 = vrot.slane %v225, 7
    %v228 = vshll.u32 %v202, 16
    %v230 = vor.u32 %v227, %v228
    %v232 = vshrl.u32 %v203, 16
    %v234 = vrot.slane %v232, 7
    %v235 = vshll.u32 %v203, 16
    %v237 = vor.u32 %v234, %v235
    %v239 = vshrl.u32 %v204, 16
    %v241 = vrot.slane %v239, 7
    %v242 = vshll.u32 %v204, 16
    %v244 = vor.u32 %v241, %v242
    %v246 = vshrl.u32 %v205, 16
    %v248 = vrot.slane %v246, 7
    %v249 = vshll.u32 %v205, 16
    %v251 = vor.u32 %v248, %v249
    %v253 = vshrl.u32 %v206, 16
    %v255 = vrot.slane %v253, 7
    %v256 = vshll.u32 %v206, 16
    %v258 = vor.u32 %v255, %v256
    %v260 = vshrl.u32 %v207, 16
    %v262 = vrot.slane %v260, 7
    %v263 = vshll.u32 %v207, 16
    %v265 = vor.u32 %v262, %v263
    %v267 = vshrl.u32 %v208, 16
    %v269 = vrot.slane %v267, 7
    %v270 = vshll.u32 %v208, 16
    %v272 = vor.u32 %v269, %v270
    %v274 = vshrl.u32 %v209, 16
    %v276 = vrot.slane %v274, 7
    %v277 = vshll.u32 %v209, 16
    %v279 = vor.u32 %v276, %v277
    %v281 = vshrl.u32 %v210, 16
    %v283 = vrot.slane %v281, 7
    %v284 = vshll.u32 %v210, 16
    %v286 = vor.u32 %v283, %v284
    %v288 = vshrl.u32 %v211, 16
    %v290 = vrot.slane %v288, 7
    %v291 = vshll.u32 %v211, 16
    %v293 = vor.u32 %v290, %v291
    %v295 = vshrl.u32 %v212, 16
    %v297 = vrot.slane %v295, 7
    %v298 = vshll.u32 %v212, 16
    %v300 = vor.u32 %v297, %v298
    %v302 = vshrl.u32 %v213, 16
    %v304 = vrot.slane %v302, 7
    %v305 = vshll.u32 %v213, 16
    %v307 = vor.u32 %v304, %v305
    %v309 = vshrl.u32 %v214, 16
    %v311 = vrot.slane %v309, 7
    %v312 = vshll.u32 %v214, 16
    %v314 = vor.u32 %v311, %v312
    %v316 = vshrl.u32 %v215, 16
    %v318 = vrot.slane %v316, 7
    %v319 = vshll.u32 %v215, 16
    %v321 = vor.u32 %v318, %v319
    %v323 = vshrl.u32 %v216, 16
    %v325 = vrot.slane %v323, 7
    %v326 = vshll.u32 %v216, 16
    %v328 = vor.u32 %v325, %v326
    %vm345 = vcmask 1040384
    %vm346 = vsmask.f32 256
    %vm347 = vmand %vm345, %vm346
    %v348 = vsel %vm347, 0, %v223
    %v349 = vsel %vm347, 0, %v230
    %v350 = vsel %vm347, 0, %v237
    %v351 = vsel %vm347, 0, %v244
    %v352 = vsel %vm347, 0, %v251
    %v353 = vsel %vm347, 0, %v258
    %v354 = vsel %vm347, 0, %v265
    %v355 = vsel %vm347, 0, %v272
    %v356 = vsel %vm347, 0, %v279
    %v357 = vsel %vm347, 0, %v286
    %v358 = vsel %vm347, 0, %v293
    %v359 = vsel %vm347, 0, %v300
    %v360 = vsel %vm347, 0, %v307
    %v361 = vsel %vm347, 0, %v314
    %v362 = vsel %vm347, 0, %v321
    %v363 = vsel %vm347, 0, %v328
    %v364 = vrot.slane %v221, 1
    %v365 = vor.u32 %v218, %v364
    %v366 = vrot.slane %v228, 1
    %v367 = vor.u32 %v225, %v366
    %v368 = vrot.slane %v235, 1
    %v369 = vor.u32 %v232, %v368
    %v370 = vrot.slane %v242, 1
    %v371 = vor.u32 %v239, %v370
    %v372 = vrot.slane %v249, 1
    %v373 = vor.u32 %v246, %v372
    %v374 = vrot.slane %v256, 1
    %v375 = vor.u32 %v253, %v374
    %v376 = vrot.slane %v263, 1
    %v377 = vor.u32 %v260, %v376
    %v378 = vrot.slane %v270, 1
    %v379 = vor.u32 %v267, %v378
    %v380 = vrot.slane %v277, 1
    %v381 = vor.u32 %v274, %v380
    %v382 = vrot.slane %v284, 1
    %v383 = vor.u32 %v281, %v382
    %v384 = vrot.slane %v291, 1
    %v385 = vor.u32 %v288, %v384
    %v386 = vrot.slane %v298, 1
    %v387 = vor.u32 %v295, %v386
    %v388 = vrot.slane %v305, 1
    %v389 = vor.u32 %v302, %v388
    %v390 = vrot.slane %v312, 1
    %v391 = vor.u32 %v309, %v390
    %v392 = vrot.slane %v319, 1
    %v393 = vor.u32 %v316, %v392
    %v394 = vrot.slane %v326, 1
    %v395 = vor.u32 %v323, %v394
    %vm412 = vcmask 1047552
    %vm413 = vsmask.f32 7424
    %vm414 = vmand %vm412, %vm413
    %v415 = vsel %vm414, %v365, 0
    %v416 = vsel %vm414, %v367, 0
    %v417 = vsel %vm414, %v369, 0
    %v418 = vsel %vm414, %v371, 0
    %v419 = vsel %vm414, %v373, 0
    %v420 = vsel %vm414, %v375, 0
    %v421 = vsel %vm414, %v377, 0
    %v422 = vsel %vm414, %v379, 0
    %v423 = vsel %vm414, %v381, 0
    %v424 = vsel %vm414, %v383, 0
    %v425 = vsel %vm414, %v385, 0
    %v426 = vsel %vm414, %v387, 0
    %v427 = vsel %vm414, %v389, 0
    %v428 = vsel %vm414, %v391, 0
    %v429 = vsel %vm414, %v393, 0
    %v430 = vsel %vm414, %v395, 0
    %v431 = vld [vmem:[%s1] sm:$0x3]
    %s432 = scalar_lea.vmem %s1, 2
    %v433 = vld [vmem:[%s432] sm:$0x3]
    %vm434 = vcmask 31744
    %v435 = vsel %vm434, %v201, 0
    %v437 = vsel %vm434, %v202, 0
    %v439 = vsel %vm434, %v203, 0
    %v441 = vsel %vm434, %v204, 0
    %v443 = vsel %vm434, %v205, 0
    %v445 = vsel %vm434, %v206, 0
    %v447 = vsel %vm434, %v207, 0
    %v449 = vsel %vm434, %v208, 0
    %v451 = vsel %vm434, %v209, 0
    %v453 = vsel %vm434, %v210, 0
    %v455 = vsel %vm434, %v211, 0
    %v457 = vsel %vm434, %v212, 0
    %v459 = vsel %vm434, %v213, 0
    %v461 = vsel %vm434, %v214, 0
    %v463 = vsel %vm434, %v215, 0
    %v465 = vsel %vm434, %v216, 0
    %vm467 = vcmask 1041408
    %v469 = vsel %vm467, %v433, 0
    %471 = vmatpush.bf16.msra.mxu0 0
    %472 = vmatpush.bf16.msra.mxu0 0
    %473 = vmatpush.bf16.msra.mxu0 0
    %474 = vmatpush.bf16.msra.mxu0 0
    %475 = vmatpush.bf16.msra.mxu0 0
    %476 = vmatpush.bf16.msra.mxu0 0
    %477 = vmatpush.bf16.msra.mxu0 0
    %478 = vmatpush.bf16.msra.mxu0 %v469
    %479 = vmatmul.bf16.gmra.mxu0 %v435
    %v480 = vpop.f32.mrf.mxu0
    %v481 = vadd.f32 0.0, %v480
    %v482 = vpop.f32.mrf.mxu0
    %v483 = vadd.f32 0.0, %v482
    %484 = vmatmul.bf16.gmra.mxu0 %v437
    %v485 = vpop.f32.mrf.mxu0
    %v486 = vadd.f32 0.0, %v485
    %v487 = vpop.f32.mrf.mxu0
    %v488 = vadd.f32 0.0, %v487
    %489 = vmatmul.bf16.gmra.mxu0 %v439
    %v490 = vpop.f32.mrf.mxu0
    %v491 = vadd.f32 0.0, %v490
    %v492 = vpop.f32.mrf.mxu0
    %v493 = vadd.f32 0.0, %v492
    %494 = vmatmul.bf16.gmra.mxu0 %v441
    %v495 = vpop.f32.mrf.mxu0
    %v496 = vadd.f32 0.0, %v495
    %v497 = vpop.f32.mrf.mxu0
    %v498 = vadd.f32 0.0, %v497
    %499 = vmatmul.bf16.gmra.mxu0 %v443
    %v500 = vpop.f32.mrf.mxu0
    %v501 = vadd.f32 0.0, %v500
    %v502 = vpop.f32.mrf.mxu0
    %v503 = vadd.f32 0.0, %v502
    %504 = vmatmul.bf16.gmra.mxu0 %v445
    %v505 = vpop.f32.mrf.mxu0
    %v506 = vadd.f32 0.0, %v505
    %v507 = vpop.f32.mrf.mxu0
    %v508 = vadd.f32 0.0, %v507
    %509 = vmatmul.bf16.gmra.mxu0 %v447
    %v510 = vpop.f32.mrf.mxu0
    %v511 = vadd.f32 0.0, %v510
    %v512 = vpop.f32.mrf.mxu0
    %v513 = vadd.f32 0.0, %v512
    %514 = vmatmul.bf16.gmra.mxu0 %v449
    %v515 = vpop.f32.mrf.mxu0
    %v516 = vadd.f32 0.0, %v515
    %v517 = vpop.f32.mrf.mxu0
    %v518 = vadd.f32 0.0, %v517
    %519 = vmatmul.bf16.gmra.mxu0 %v451
    %v520 = vpop.f32.mrf.mxu0
    %v521 = vadd.f32 0.0, %v520
    %v522 = vpop.f32.mrf.mxu0
    %v523 = vadd.f32 0.0, %v522
    %524 = vmatmul.bf16.gmra.mxu0 %v453
    %v525 = vpop.f32.mrf.mxu0
    %v526 = vadd.f32 0.0, %v525
    %v527 = vpop.f32.mrf.mxu0
    %v528 = vadd.f32 0.0, %v527
    %529 = vmatmul.bf16.gmra.mxu0 %v455
    %v530 = vpop.f32.mrf.mxu0
    %v531 = vadd.f32 0.0, %v530
    %v532 = vpop.f32.mrf.mxu0
    %v533 = vadd.f32 0.0, %v532
    %534 = vmatmul.bf16.gmra.mxu0 %v457
    %v535 = vpop.f32.mrf.mxu0
    %v536 = vadd.f32 0.0, %v535
    %v537 = vpop.f32.mrf.mxu0
    %v538 = vadd.f32 0.0, %v537
    %539 = vmatmul.bf16.gmra.mxu0 %v459
    %v540 = vpop.f32.mrf.mxu0
    %v541 = vadd.f32 0.0, %v540
    %v542 = vpop.f32.mrf.mxu0
    %v543 = vadd.f32 0.0, %v542
    %544 = vmatmul.bf16.gmra.mxu0 %v461
    %v545 = vpop.f32.mrf.mxu0
    %v546 = vadd.f32 0.0, %v545
    %v547 = vpop.f32.mrf.mxu0
    %v548 = vadd.f32 0.0, %v547
    %549 = vmatmul.bf16.gmra.mxu0 %v463
    %v550 = vpop.f32.mrf.mxu0
    %v551 = vadd.f32 0.0, %v550
    %v552 = vpop.f32.mrf.mxu0
    %v553 = vadd.f32 0.0, %v552
    %554 = vmatmul.bf16.gmra.mxu0 %v465
    %v555 = vpop.f32.mrf.mxu0
    %v556 = vadd.f32 0.0, %v555
    %v557 = vpop.f32.mrf.mxu0
    %v558 = vadd.f32 0.0, %v557
    %559 = vdwg.mxu0
    %v561 = vsel %vm434, %v348, 0
    %v564 = vsel %vm434, %v349, 0
    %v567 = vsel %vm434, %v350, 0
    %v570 = vsel %vm434, %v351, 0
    %v573 = vsel %vm434, %v352, 0
    %v576 = vsel %vm434, %v353, 0
    %v579 = vsel %vm434, %v354, 0
    %v582 = vsel %vm434, %v355, 0
    %v585 = vsel %vm434, %v356, 0
    %v588 = vsel %vm434, %v357, 0
    %v591 = vsel %vm434, %v358, 0
    %v594 = vsel %vm434, %v359, 0
    %v597 = vsel %vm434, %v360, 0
    %v600 = vsel %vm434, %v361, 0
    %v603 = vsel %vm434, %v362, 0
    %v606 = vsel %vm434, %v363, 0
    %v609 = vsel %vm467, %v431, 0
    %611 = vmatpush.bf16.msra.mxu0 0
    %612 = vmatpush.bf16.msra.mxu0 0
    %613 = vmatpush.bf16.msra.mxu0 0
    %614 = vmatpush.bf16.msra.mxu0 0
    %615 = vmatpush.bf16.msra.mxu0 0
    %616 = vmatpush.bf16.msra.mxu0 0
    %617 = vmatpush.bf16.msra.mxu0 0
    %618 = vmatpush.bf16.msra.mxu0 %v609
    %619 = vmatmul.bf16.gmra.mxu0 %v561
    %v620 = vpop.f32.mrf.mxu0
    %v621 = vadd.f32 %v481, %v620
    %v622 = vpop.f32.mrf.mxu0
    %v623 = vadd.f32 %v483, %v622
    %624 = vmatmul.bf16.gmra.mxu0 %v564
    %v625 = vpop.f32.mrf.mxu0
    %v626 = vadd.f32 %v486, %v625
    %v627 = vpop.f32.mrf.mxu0
    %v628 = vadd.f32 %v488, %v627
    %629 = vmatmul.bf16.gmra.mxu0 %v567
    %v630 = vpop.f32.mrf.mxu0
    %v631 = vadd.f32 %v491, %v630
    %v632 = vpop.f32.mrf.mxu0
    %v633 = vadd.f32 %v493, %v632
    %634 = vmatmul.bf16.gmra.mxu0 %v570
    %v635 = vpop.f32.mrf.mxu0
    %v636 = vadd.f32 %v496, %v635
    %v637 = vpop.f32.mrf.mxu0
    %v638 = vadd.f32 %v498, %v637
    %639 = vmatmul.bf16.gmra.mxu0 %v573
    %v640 = vpop.f32.mrf.mxu0
    %v641 = vadd.f32 %v501, %v640
    %v642 = vpop.f32.mrf.mxu0
    %v643 = vadd.f32 %v503, %v642
    %644 = vmatmul.bf16.gmra.mxu0 %v576
    %v645 = vpop.f32.mrf.mxu0
    %v646 = vadd.f32 %v506, %v645
    %v647 = vpop.f32.mrf.mxu0
    %v648 = vadd.f32 %v508, %v647
    %649 = vmatmul.bf16.gmra.mxu0 %v579
    %v650 = vpop.f32.mrf.mxu0
    %v651 = vadd.f32 %v511, %v650
    %v652 = vpop.f32.mrf.mxu0
    %v653 = vadd.f32 %v513, %v652
    %654 = vmatmul.bf16.gmra.mxu0 %v582
    %v655 = vpop.f32.mrf.mxu0
    %v656 = vadd.f32 %v516, %v655
    %v657 = vpop.f32.mrf.mxu0
    %v658 = vadd.f32 %v518, %v657
    %659 = vmatmul.bf16.gmra.mxu0 %v585
    %v660 = vpop.f32.mrf.mxu0
    %v661 = vadd.f32 %v521, %v660
    %v662 = vpop.f32.mrf.mxu0
    %v663 = vadd.f32 %v523, %v662
    %664 = vmatmul.bf16.gmra.mxu0 %v588
    %v665 = vpop.f32.mrf.mxu0
    %v666 = vadd.f32 %v526, %v665
    %v667 = vpop.f32.mrf.mxu0
    %v668 = vadd.f32 %v528, %v667
    %669 = vmatmul.bf16.gmra.mxu0 %v591
    %v670 = vpop.f32.mrf.mxu0
    %v671 = vadd.f32 %v531, %v670
    %v672 = vpop.f32.mrf.mxu0
    %v673 = vadd.f32 %v533, %v672
    %674 = vmatmul.bf16.gmra.mxu0 %v594
    %v675 = vpop.f32.mrf.mxu0
    %v676 = vadd.f32 %v536, %v675
    %v677 = vpop.f32.mrf.mxu0
    %v678 = vadd.f32 %v538, %v677
    %679 = vmatmul.bf16.gmra.mxu0 %v597
    %v680 = vpop.f32.mrf.mxu0
    %v681 = vadd.f32 %v541, %v680
    %v682 = vpop.f32.mrf.mxu0
    %v683 = vadd.f32 %v543, %v682
    %684 = vmatmul.bf16.gmra.mxu0 %v600
    %v685 = vpop.f32.mrf.mxu0
    %v686 = vadd.f32 %v546, %v685
    %v687 = vpop.f32.mrf.mxu0
    %v688 = vadd.f32 %v548, %v687
    %689 = vmatmul.bf16.gmra.mxu0 %v603
    %v690 = vpop.f32.mrf.mxu0
    %v691 = vadd.f32 %v551, %v690
    %v692 = vpop.f32.mrf.mxu0
    %v693 = vadd.f32 %v553, %v692
    %694 = vmatmul.bf16.gmra.mxu0 %v606
    %v695 = vpop.f32.mrf.mxu0
    %v696 = vadd.f32 %v556, %v695
    %v697 = vpop.f32.mrf.mxu0
    %v698 = vadd.f32 %v558, %v697
    %699 = vdwg.mxu0
    %s700 = scalar_lea.vmem %s1, 4
    %v701 = vld [vmem:[%s700] sm:$0x3]
    %v703 = vsel %vm434, %v415, 0
    %v706 = vsel %vm434, %v416, 0
    %v709 = vsel %vm434, %v417, 0
    %v712 = vsel %vm434, %v418, 0
    %v715 = vsel %vm434, %v419, 0
    %v718 = vsel %vm434, %v420, 0
    %v721 = vsel %vm434, %v421, 0
    %v724 = vsel %vm434, %v422, 0
    %v727 = vsel %vm434, %v423, 0
    %v730 = vsel %vm434, %v424, 0
    %v733 = vsel %vm434, %v425, 0
    %v736 = vsel %vm434, %v426, 0
    %v739 = vsel %vm434, %v427, 0
    %v742 = vsel %vm434, %v428, 0
    %v745 = vsel %vm434, %v429, 0
    %v748 = vsel %vm434, %v430, 0
    %v751 = vsel %vm467, %v701, 0
    %753 = vmatpush.bf16.msra.mxu0 0
    %754 = vmatpush.bf16.msra.mxu0 0
    %755 = vmatpush.bf16.msra.mxu0 0
    %756 = vmatpush.bf16.msra.mxu0 0
    %757 = vmatpush.bf16.msra.mxu0 0
    %758 = vmatpush.bf16.msra.mxu0 0
    %759 = vmatpush.bf16.msra.mxu0 0
    %760 = vmatpush.bf16.msra.mxu0 %v751
    %761 = vmatmul.bf16.gmra.mxu0 %v703
    %v762 = vpop.f32.mrf.mxu0
    %v763 = vadd.f32 0.0, %v762
    %v764 = vpop.f32.mrf.mxu0
    %v765 = vadd.f32 0.0, %v764
    %766 = vmatmul.bf16.gmra.mxu0 %v706
    %v767 = vpop.f32.mrf.mxu0
    %v768 = vadd.f32 0.0, %v767
    %v769 = vpop.f32.mrf.mxu0
    %v770 = vadd.f32 0.0, %v769
    %771 = vmatmul.bf16.gmra.mxu0 %v709
    %v772 = vpop.f32.mrf.mxu0
    %v773 = vadd.f32 0.0, %v772
    %v774 = vpop.f32.mrf.mxu0
    %v775 = vadd.f32 0.0, %v774
    %776 = vmatmul.bf16.gmra.mxu0 %v712
    %v777 = vpop.f32.mrf.mxu0
    %v778 = vadd.f32 0.0, %v777
    %v779 = vpop.f32.mrf.mxu0
    %v780 = vadd.f32 0.0, %v779
    %781 = vmatmul.bf16.gmra.mxu0 %v715
    %v782 = vpop.f32.mrf.mxu0
    %v783 = vadd.f32 0.0, %v782
    %v784 = vpop.f32.mrf.mxu0
    %v785 = vadd.f32 0.0, %v784
    %786 = vmatmul.bf16.gmra.mxu0 %v718
    %v787 = vpop.f32.mrf.mxu0
    %v788 = vadd.f32 0.0, %v787
    %v789 = vpop.f32.mrf.mxu0
    %v790 = vadd.f32 0.0, %v789
    %791 = vmatmul.bf16.gmra.mxu0 %v721
    %v792 = vpop.f32.mrf.mxu0
    %v793 = vadd.f32 0.0, %v792
    %v794 = vpop.f32.mrf.mxu0
    %v795 = vadd.f32 0.0, %v794
    %796 = vmatmul.bf16.gmra.mxu0 %v724
    %v797 = vpop.f32.mrf.mxu0
    %v798 = vadd.f32 0.0, %v797
    %v799 = vpop.f32.mrf.mxu0
    %v800 = vadd.f32 0.0, %v799
    %801 = vmatmul.bf16.gmra.mxu0 %v727
    %v802 = vpop.f32.mrf.mxu0
    %v803 = vadd.f32 0.0, %v802
    %v804 = vpop.f32.mrf.mxu0
    %v805 = vadd.f32 0.0, %v804
    %806 = vmatmul.bf16.gmra.mxu0 %v730
    %v807 = vpop.f32.mrf.mxu0
    %v808 = vadd.f32 0.0, %v807
    %v809 = vpop.f32.mrf.mxu0
    %v810 = vadd.f32 0.0, %v809
    %811 = vmatmul.bf16.gmra.mxu0 %v733
    %v812 = vpop.f32.mrf.mxu0
    %v813 = vadd.f32 0.0, %v812
    %v814 = vpop.f32.mrf.mxu0
    %v815 = vadd.f32 0.0, %v814
    %816 = vmatmul.bf16.gmra.mxu0 %v736
    %v817 = vpop.f32.mrf.mxu0
    %v818 = vadd.f32 0.0, %v817
    %v819 = vpop.f32.mrf.mxu0
    %v820 = vadd.f32 0.0, %v819
    %821 = vmatmul.bf16.gmra.mxu0 %v739
    %v822 = vpop.f32.mrf.mxu0
    %v823 = vadd.f32 0.0, %v822
    %v824 = vpop.f32.mrf.mxu0
    %v825 = vadd.f32 0.0, %v824
    %826 = vmatmul.bf16.gmra.mxu0 %v742
    %v827 = vpop.f32.mrf.mxu0
    %v828 = vadd.f32 0.0, %v827
    %v829 = vpop.f32.mrf.mxu0
    %v830 = vadd.f32 0.0, %v829
    %831 = vmatmul.bf16.gmra.mxu0 %v745
    %v832 = vpop.f32.mrf.mxu0
    %v833 = vadd.f32 0.0, %v832
    %v834 = vpop.f32.mrf.mxu0
    %v835 = vadd.f32 0.0, %v834
    %836 = vmatmul.bf16.gmra.mxu0 %v748
    %v837 = vpop.f32.mrf.mxu0
    %v838 = vadd.f32 0.0, %v837
    %v839 = vpop.f32.mrf.mxu0
    %v840 = vadd.f32 0.0, %v839
    %841 = vdwg.mxu0
    %v842 = vadd.f32 %v621, %v763
    %v843 = vadd.f32 %v623, %v765
    %v844 = vadd.f32 %v626, %v768
    %v845 = vadd.f32 %v628, %v770
    %v846 = vadd.f32 %v631, %v773
    %v847 = vadd.f32 %v633, %v775
    %v848 = vadd.f32 %v636, %v778
    %v849 = vadd.f32 %v638, %v780
    %v850 = vadd.f32 %v641, %v783
    %v851 = vadd.f32 %v643, %v785
    %v852 = vadd.f32 %v646, %v788
    %v853 = vadd.f32 %v648, %v790
    %v854 = vadd.f32 %v651, %v793
    %v855 = vadd.f32 %v653, %v795
    %v856 = vadd.f32 %v656, %v798
    %v857 = vadd.f32 %v658, %v800
    %v858 = vadd.f32 %v661, %v803
    %v859 = vadd.f32 %v663, %v805
    %v860 = vadd.f32 %v666, %v808
    %v861 = vadd.f32 %v668, %v810
    %v862 = vadd.f32 %v671, %v813
    %v863 = vadd.f32 %v673, %v815
    %v864 = vadd.f32 %v676, %v818
    %v865 = vadd.f32 %v678, %v820
    %v866 = vadd.f32 %v681, %v823
    %v867 = vadd.f32 %v683, %v825
    %v868 = vadd.f32 %v686, %v828
    %v869 = vadd.f32 %v688, %v830
    %v870 = vadd.f32 %v691, %v833
    %v871 = vadd.f32 %v693, %v835
    %v872 = vadd.f32 %v696, %v838
    %v873 = vadd.f32 %v698, %v840
    %v874 = vld [vmem:[%s2] sm:$0x1]
    %v876 = vperm.slane %v874, 0
    %v878 = vadd.f32 %v842, %v876
    %v879 = vadd.f32 %v843, %v876
    %v880 = vadd.f32 %v844, %v876
    %v881 = vadd.f32 %v845, %v876
    %v882 = vadd.f32 %v846, %v876
    %v883 = vadd.f32 %v847, %v876
    %v884 = vadd.f32 %v848, %v876
    %v885 = vadd.f32 %v849, %v876
    %v886 = vadd.f32 %v850, %v876
    %v887 = vadd.f32 %v851, %v876
    %v888 = vadd.f32 %v852, %v876
    %v889 = vadd.f32 %v853, %v876
    %v890 = vadd.f32 %v854, %v876
    %v891 = vadd.f32 %v855, %v876
    %v892 = vadd.f32 %v856, %v876
    %v893 = vadd.f32 %v857, %v876
    %v894 = vadd.f32 %v858, %v876
    %v895 = vadd.f32 %v859, %v876
    %v896 = vadd.f32 %v860, %v876
    %v897 = vadd.f32 %v861, %v876
    %v898 = vadd.f32 %v862, %v876
    %v899 = vadd.f32 %v863, %v876
    %v900 = vadd.f32 %v864, %v876
    %v901 = vadd.f32 %v865, %v876
    %v902 = vadd.f32 %v866, %v876
    %v903 = vadd.f32 %v867, %v876
    %v904 = vadd.f32 %v868, %v876
    %v905 = vadd.f32 %v869, %v876
    %v906 = vadd.f32 %v870, %v876
    %v907 = vadd.f32 %v871, %v876
    %v908 = vadd.f32 %v872, %v876
    %v909 = vadd.f32 %v873, %v876
    %vm910 = vcmp.gt.f32.partialorder %v878, 0.0
    %vm911 = vcmp.gt.f32.partialorder %v879, 0.0
    %vm912 = vcmp.gt.f32.partialorder %v880, 0.0
    %vm913 = vcmp.gt.f32.partialorder %v881, 0.0
    %vm914 = vcmp.gt.f32.partialorder %v882, 0.0
    %vm915 = vcmp.gt.f32.partialorder %v883, 0.0
    %vm916 = vcmp.gt.f32.partialorder %v884, 0.0
    %vm917 = vcmp.gt.f32.partialorder %v885, 0.0
    %vm918 = vcmp.gt.f32.partialorder %v886, 0.0
    %vm919 = vcmp.gt.f32.partialorder %v887, 0.0
    %vm920 = vcmp.gt.f32.partialorder %v888, 0.0
    %vm921 = vcmp.gt.f32.partialorder %v889, 0.0
    %vm922 = vcmp.gt.f32.partialorder %v890, 0.0
    %vm923 = vcmp.gt.f32.partialorder %v891, 0.0
    %vm924 = vcmp.gt.f32.partialorder %v892, 0.0
    %vm925 = vcmp.gt.f32.partialorder %v893, 0.0
    %vm926 = vcmp.gt.f32.partialorder %v894, 0.0
    %vm927 = vcmp.gt.f32.partialorder %v895, 0.0
    %vm928 = vcmp.gt.f32.partialorder %v896, 0.0
    %vm929 = vcmp.gt.f32.partialorder %v897, 0.0
    %vm930 = vcmp.gt.f32.partialorder %v898, 0.0
    %vm931 = vcmp.gt.f32.partialorder %v899, 0.0
    %vm932 = vcmp.gt.f32.partialorder %v900, 0.0
    %vm933 = vcmp.gt.f32.partialorder %v901, 0.0
    %vm934 = vcmp.gt.f32.partialorder %v902, 0.0
    %vm935 = vcmp.gt.f32.partialorder %v903, 0.0
    %vm936 = vcmp.gt.f32.partialorder %v904, 0.0
    %vm937 = vcmp.gt.f32.partialorder %v905, 0.0
    %vm938 = vcmp.gt.f32.partialorder %v906, 0.0
    %vm939 = vcmp.gt.f32.partialorder %v907, 0.0
    %vm940 = vcmp.gt.f32.partialorder %v908, 0.0
    %vm941 = vcmp.gt.f32.partialorder %v909, 0.0
    %v942 = vmul.f32 %v878, 0.2
    %v943 = vmul.f32 %v879, 0.2
    %v944 = vmul.f32 %v880, 0.2
    %v945 = vmul.f32 %v881, 0.2
    %v946 = vmul.f32 %v882, 0.2
    %v947 = vmul.f32 %v883, 0.2
    %v948 = vmul.f32 %v884, 0.2
    %v949 = vmul.f32 %v885, 0.2
    %v950 = vmul.f32 %v886, 0.2
    %v951 = vmul.f32 %v887, 0.2
    %v952 = vmul.f32 %v888, 0.2
    %v953 = vmul.f32 %v889, 0.2
    %v954 = vmul.f32 %v890, 0.2
    %v955 = vmul.f32 %v891, 0.2
    %v956 = vmul.f32 %v892, 0.2
    %v957 = vmul.f32 %v893, 0.2
    %v958 = vmul.f32 %v894, 0.2
    %v959 = vmul.f32 %v895, 0.2
    %v960 = vmul.f32 %v896, 0.2
    %v961 = vmul.f32 %v897, 0.2
    %v962 = vmul.f32 %v898, 0.2
    %v963 = vmul.f32 %v899, 0.2
    %v964 = vmul.f32 %v900, 0.2
    %v965 = vmul.f32 %v901, 0.2
    %v966 = vmul.f32 %v902, 0.2
    %v967 = vmul.f32 %v903, 0.2
    %v968 = vmul.f32 %v904, 0.2
    %v969 = vmul.f32 %v905, 0.2
    %v970 = vmul.f32 %v906, 0.2
    %v971 = vmul.f32 %v907, 0.2
    %v972 = vmul.f32 %v908, 0.2
    %v973 = vmul.f32 %v909, 0.2
    %v974 = vsel %vm910, %v878, %v942
    %v975 = vsel %vm911, %v879, %v943
    %v976 = vsel %vm912, %v880, %v944
    %v977 = vsel %vm913, %v881, %v945
    %v978 = vsel %vm914, %v882, %v946
    %v979 = vsel %vm915, %v883, %v947
    %v980 = vsel %vm916, %v884, %v948
    %v981 = vsel %vm917, %v885, %v949
    %v982 = vsel %vm918, %v886, %v950
    %v983 = vsel %vm919, %v887, %v951
    %v984 = vsel %vm920, %v888, %v952
    %v985 = vsel %vm921, %v889, %v953
    %v986 = vsel %vm922, %v890, %v954
    %v987 = vsel %vm923, %v891, %v955
    %v988 = vsel %vm924, %v892, %v956
    %v989 = vsel %vm925, %v893, %v957
    %v990 = vsel %vm926, %v894, %v958
    %v991 = vsel %vm927, %v895, %v959
    %v992 = vsel %vm928, %v896, %v960
    %v993 = vsel %vm929, %v897, %v961
    %v994 = vsel %vm930, %v898, %v962
    %v995 = vsel %vm931, %v899, %v963
    %v996 = vsel %vm932, %v900, %v964
    %v997 = vsel %vm933, %v901, %v965
    %v998 = vsel %vm934, %v902, %v966
    %v999 = vsel %vm935, %v903, %v967
    %v1000 = vsel %vm936, %v904, %v968
    %v1001 = vsel %vm937, %v905, %v969
    %v1002 = vsel %vm938, %v906, %v970
    %v1003 = vsel %vm939, %v907, %v971
    %v1004 = vsel %vm940, %v908, %v972
    %v1005 = vsel %vm941, %v909, %v973
    %v1006 = vpack.c.bf16 %v974, %v974
    %v1007 = vpack.c.bf16 %v975, %v975
    %v1008 = vpack.c.bf16 %v976, %v976
    %v1009 = vpack.c.bf16 %v977, %v977
    %v1010 = vpack.c.bf16 %v978, %v978
    %v1011 = vpack.c.bf16 %v979, %v979
    %v1012 = vpack.c.bf16 %v980, %v980
    %v1013 = vpack.c.bf16 %v981, %v981
    %v1014 = vpack.c.bf16 %v982, %v982
    %v1015 = vpack.c.bf16 %v983, %v983
    %v1016 = vpack.c.bf16 %v984, %v984
    %v1017 = vpack.c.bf16 %v985, %v985
    %v1018 = vpack.c.bf16 %v986, %v986
    %v1019 = vpack.c.bf16 %v987, %v987
    %v1020 = vpack.c.bf16 %v988, %v988
    %v1021 = vpack.c.bf16 %v989, %v989
    %v1022 = vpack.c.bf16 %v990, %v990
    %v1023 = vpack.c.bf16 %v991, %v991
    %v1024 = vpack.c.bf16 %v992, %v992
    %v1025 = vpack.c.bf16 %v993, %v993
    %v1026 = vpack.c.bf16 %v994, %v994
    %v1027 = vpack.c.bf16 %v995, %v995
    %v1028 = vpack.c.bf16 %v996, %v996
    %v1029 = vpack.c.bf16 %v997, %v997
    %v1030 = vpack.c.bf16 %v998, %v998
    %v1031 = vpack.c.bf16 %v999, %v999
    %v1032 = vpack.c.bf16 %v1000, %v1000
    %v1033 = vpack.c.bf16 %v1001, %v1001
    %v1034 = vpack.c.bf16 %v1002, %v1002
    %v1035 = vpack.c.bf16 %v1003, %v1003
    %v1036 = vpack.c.bf16 %v1004, %v1004
    %v1037 = vpack.c.bf16 %v1005, %v1005
    %v1070 = vunpack.c.l.b16 %v1006
    %v1071 = vunpack.c.l.b16 %v1007
    %v1072 = vunpack.c.l.b16 %v1008
    %v1073 = vunpack.c.l.b16 %v1009
    %v1074 = vunpack.c.l.b16 %v1010
    %v1075 = vunpack.c.l.b16 %v1011
    %v1076 = vunpack.c.l.b16 %v1012
    %v1077 = vunpack.c.l.b16 %v1013
    %v1078 = vunpack.c.l.b16 %v1014
    %v1079 = vunpack.c.l.b16 %v1015
    %v1080 = vunpack.c.l.b16 %v1016
    %v1081 = vunpack.c.l.b16 %v1017
    %v1082 = vunpack.c.l.b16 %v1018
    %v1083 = vunpack.c.l.b16 %v1019
    %v1084 = vunpack.c.l.b16 %v1020
    %v1085 = vunpack.c.l.b16 %v1021
    %v1086 = vunpack.c.l.b16 %v1022
    %v1087 = vunpack.c.l.b16 %v1023
    %v1088 = vunpack.c.l.b16 %v1024
    %v1089 = vunpack.c.l.b16 %v1025
    %v1090 = vunpack.c.l.b16 %v1026
    %v1091 = vunpack.c.l.b16 %v1027
    %v1092 = vunpack.c.l.b16 %v1028
    %v1093 = vunpack.c.l.b16 %v1029
    %v1094 = vunpack.c.l.b16 %v1030
    %v1095 = vunpack.c.l.b16 %v1031
    %v1096 = vunpack.c.l.b16 %v1032
    %v1097 = vunpack.c.l.b16 %v1033
    %v1098 = vunpack.c.l.b16 %v1034
    %v1099 = vunpack.c.l.b16 %v1035
    %v1100 = vunpack.c.l.b16 %v1036
    %v1101 = vunpack.c.l.b16 %v1037
    %v1102 = vpack.c.b16 %v1071, %v1070
    %v1103 = vpack.c.b16 %v1073, %v1072
    %v1104 = vpack.c.b16 %v1075, %v1074
    %v1105 = vpack.c.b16 %v1077, %v1076
    %v1106 = vpack.c.b16 %v1079, %v1078
    %v1107 = vpack.c.b16 %v1081, %v1080
    %v1108 = vpack.c.b16 %v1083, %v1082
    %v1109 = vpack.c.b16 %v1085, %v1084
    %v1110 = vpack.c.b16 %v1087, %v1086
    %v1111 = vpack.c.b16 %v1089, %v1088
    %v1112 = vpack.c.b16 %v1091, %v1090
    %v1113 = vpack.c.b16 %v1093, %v1092
    %v1114 = vpack.c.b16 %v1095, %v1094
    %v1115 = vpack.c.b16 %v1097, %v1096
    %v1116 = vpack.c.b16 %v1099, %v1098
    %v1117 = vpack.c.b16 %v1101, %v1100
    %v1119 = vshrl.u32 %v1102, 16
    %v1121 = vrot.slane %v1119, 7
    %v1122 = vshll.u32 %v1102, 16
    %v1124 = vor.u32 %v1121, %v1122
    %v1126 = vshrl.u32 %v1103, 16
    %v1128 = vrot.slane %v1126, 7
    %v1129 = vshll.u32 %v1103, 16
    %v1131 = vor.u32 %v1128, %v1129
    %v1133 = vshrl.u32 %v1104, 16
    %v1135 = vrot.slane %v1133, 7
    %v1136 = vshll.u32 %v1104, 16
    %v1138 = vor.u32 %v1135, %v1136
    %v1140 = vshrl.u32 %v1105, 16
    %v1142 = vrot.slane %v1140, 7
    %v1143 = vshll.u32 %v1105, 16
    %v1145 = vor.u32 %v1142, %v1143
    %v1147 = vshrl.u32 %v1106, 16
    %v1149 = vrot.slane %v1147, 7
    %v1150 = vshll.u32 %v1106, 16
    %v1152 = vor.u32 %v1149, %v1150
    %v1154 = vshrl.u32 %v1107, 16
    %v1156 = vrot.slane %v1154, 7
    %v1157 = vshll.u32 %v1107, 16
    %v1159 = vor.u32 %v1156, %v1157
    %v1161 = vshrl.u32 %v1108, 16
    %v1163 = vrot.slane %v1161, 7
    %v1164 = vshll.u32 %v1108, 16
    %v1166 = vor.u32 %v1163, %v1164
    %v1168 = vshrl.u32 %v1109, 16
    %v1170 = vrot.slane %v1168, 7
    %v1171 = vshll.u32 %v1109, 16
    %v1173 = vor.u32 %v1170, %v1171
    %v1175 = vshrl.u32 %v1110, 16
    %v1177 = vrot.slane %v1175, 7
    %v1178 = vshll.u32 %v1110, 16
    %v1180 = vor.u32 %v1177, %v1178
    %v1182 = vshrl.u32 %v1111, 16
    %v1184 = vrot.slane %v1182, 7
    %v1185 = vshll.u32 %v1111, 16
    %v1187 = vor.u32 %v1184, %v1185
    %v1189 = vshrl.u32 %v1112, 16
    %v1191 = vrot.slane %v1189, 7
    %v1192 = vshll.u32 %v1112, 16
    %v1194 = vor.u32 %v1191, %v1192
    %v1196 = vshrl.u32 %v1113, 16
    %v1198 = vrot.slane %v1196, 7
    %v1199 = vshll.u32 %v1113, 16
    %v1201 = vor.u32 %v1198, %v1199
    %v1203 = vshrl.u32 %v1114, 16
    %v1205 = vrot.slane %v1203, 7
    %v1206 = vshll.u32 %v1114, 16
    %v1208 = vor.u32 %v1205, %v1206
    %v1210 = vshrl.u32 %v1115, 16
    %v1212 = vrot.slane %v1210, 7
    %v1213 = vshll.u32 %v1115, 16
    %v1215 = vor.u32 %v1212, %v1213
    %v1217 = vshrl.u32 %v1116, 16
    %v1219 = vrot.slane %v1217, 7
    %v1220 = vshll.u32 %v1116, 16
    %v1222 = vor.u32 %v1219, %v1220
    %v1224 = vshrl.u32 %v1117, 16
    %v1226 = vrot.slane %v1224, 7
    %v1227 = vshll.u32 %v1117, 16
    %v1229 = vor.u32 %v1226, %v1227
    %v1246 = vsel %vm347, 0, %v1124
    %v1247 = vsel %vm347, 0, %v1131
    %v1248 = vsel %vm347, 0, %v1138
    %v1249 = vsel %vm347, 0, %v1145
    %v1250 = vsel %vm347, 0, %v1152
    %v1251 = vsel %vm347, 0, %v1159
    %v1252 = vsel %vm347, 0, %v1166
    %v1253 = vsel %vm347, 0, %v1173
    %v1254 = vsel %vm347, 0, %v1180
    %v1255 = vsel %vm347, 0, %v1187
    %v1256 = vsel %vm347, 0, %v1194
    %v1257 = vsel %vm347, 0, %v1201
    %v1258 = vsel %vm347, 0, %v1208
    %v1259 = vsel %vm347, 0, %v1215
    %v1260 = vsel %vm347, 0, %v1222
    %v1261 = vsel %vm347, 0, %v1229
    %v1262 = vrot.slane %v1122, 1
    %v1263 = vor.u32 %v1119, %v1262
    %v1264 = vrot.slane %v1129, 1
    %v1265 = vor.u32 %v1126, %v1264
    %v1266 = vrot.slane %v1136, 1
    %v1267 = vor.u32 %v1133, %v1266
    %v1268 = vrot.slane %v1143, 1
    %v1269 = vor.u32 %v1140, %v1268
    %v1270 = vrot.slane %v1150, 1
    %v1271 = vor.u32 %v1147, %v1270
    %v1272 = vrot.slane %v1157, 1
    %v1273 = vor.u32 %v1154, %v1272
    %v1274 = vrot.slane %v1164, 1
    %v1275 = vor.u32 %v1161, %v1274
    %v1276 = vrot.slane %v1171, 1
    %v1277 = vor.u32 %v1168, %v1276
    %v1278 = vrot.slane %v1178, 1
    %v1279 = vor.u32 %v1175, %v1278
    %v1280 = vrot.slane %v1185, 1
    %v1281 = vor.u32 %v1182, %v1280
    %v1282 = vrot.slane %v1192, 1
    %v1283 = vor.u32 %v1189, %v1282
    %v1284 = vrot.slane %v1199, 1
    %v1285 = vor.u32 %v1196, %v1284
    %v1286 = vrot.slane %v1206, 1
    %v1287 = vor.u32 %v1203, %v1286
    %v1288 = vrot.slane %v1213, 1
    %v1289 = vor.u32 %v1210, %v1288
    %v1290 = vrot.slane %v1220, 1
    %v1291 = vor.u32 %v1217, %v1290
    %v1292 = vrot.slane %v1227, 1
    %v1293 = vor.u32 %v1224, %v1292
    %v1310 = vsel %vm414, %v1263, 0
    %v1311 = vsel %vm414, %v1265, 0
    %v1312 = vsel %vm414, %v1267, 0
    %v1313 = vsel %vm414, %v1269, 0
    %v1314 = vsel %vm414, %v1271, 0
    %v1315 = vsel %vm414, %v1273, 0
    %v1316 = vsel %vm414, %v1275, 0
    %v1317 = vsel %vm414, %v1277, 0
    %v1318 = vsel %vm414, %v1279, 0
    %v1319 = vsel %vm414, %v1281, 0
    %v1320 = vsel %vm414, %v1283, 0
    %v1321 = vsel %vm414, %v1285, 0
    %v1322 = vsel %vm414, %v1287, 0
    %v1323 = vsel %vm414, %v1289, 0
    %v1324 = vsel %vm414, %v1291, 0
    %v1325 = vsel %vm414, %v1293, 0
    %v1326 = vld [vmem:[%s3] sm:$0xf]
    %v1327 = vld [vmem:[%s3 + $0x4] sm:$0xf]
    %v1328 = vld [vmem:[%s3 + $0x8] sm:$0xf]
    %v1329 = vld [vmem:[%s3 + $0xc] sm:$0xf]
    %v1330 = vld [vmem:[%s3 + $0x10] sm:$0xf]
    %v1331 = vld [vmem:[%s3 + $0x14] sm:$0xf]
    %v1332 = vld [vmem:[%s3 + $0x18] sm:$0xf]
    %v1333 = vld [vmem:[%s3 + $0x1c] sm:$0xf]
    %s1334 = scalar_lea.vmem %s3, 32
    %v1335 = vld [vmem:[%s1334] sm:$0xf]
    %v1336 = vld [vmem:[%s1334 + $0x4] sm:$0xf]
    %v1337 = vld [vmem:[%s1334 + $0x8] sm:$0xf]
    %v1338 = vld [vmem:[%s1334 + $0xc] sm:$0xf]
    %v1339 = vld [vmem:[%s1334 + $0x10] sm:$0xf]
    %v1340 = vld [vmem:[%s1334 + $0x14] sm:$0xf]
    %v1341 = vld [vmem:[%s1334 + $0x18] sm:$0xf]
    %v1342 = vld [vmem:[%s1334 + $0x1c] sm:$0xf]
    %v1351 = vunpack.c.l.b16 %v1335
    %v1352 = vunpack.c.l.b16 %v1336
    %v1353 = vunpack.c.l.b16 %v1337
    %v1354 = vunpack.c.l.b16 %v1338
    %v1355 = vunpack.c.l.b16 %v1339
    %v1356 = vunpack.c.l.b16 %v1340
    %v1357 = vunpack.c.l.b16 %v1341
    %v1358 = vunpack.c.l.b16 %v1342
    %v1359 = vpack.c.b16 %v1352, %v1351
    %v1360 = vpack.c.b16 %v1354, %v1353
    %v1361 = vpack.c.b16 %v1356, %v1355
    %v1362 = vpack.c.b16 %v1358, %v1357
    %vm1367 = vcmask 523264
    %v1368 = vsel %vm1367, %v1102, 0
    %v1370 = vsel %vm1367, %v1103, 0
    %v1372 = vsel %vm1367, %v1104, 0
    %v1374 = vsel %vm1367, %v1105, 0
    %v1376 = vsel %vm1367, %v1106, 0
    %v1378 = vsel %vm1367, %v1107, 0
    %v1380 = vsel %vm1367, %v1108, 0
    %v1382 = vsel %vm1367, %v1109, 0
    %v1384 = vsel %vm1367, %v1110, 0
    %v1386 = vsel %vm1367, %v1111, 0
    %v1388 = vsel %vm1367, %v1112, 0
    %v1390 = vsel %vm1367, %v1113, 0
    %v1392 = vsel %vm1367, %v1114, 0
    %v1394 = vsel %vm1367, %v1115, 0
    %v1396 = vsel %vm1367, %v1116, 0
    %v1398 = vsel %vm1367, %v1117, 0
    %1400 = vmatpush.bf16.msra.mxu0 0
    %1401 = vmatpush.bf16.msra.mxu0 0
    %1402 = vmatpush.bf16.msra.mxu0 0
    %1403 = vmatpush.bf16.msra.mxu0 0
    %1404 = vmatpush.bf16.msra.mxu0 %v1362
    %1405 = vmatpush.bf16.msra.mxu0 %v1361
    %1406 = vmatpush.bf16.msra.mxu0 %v1360
    %1407 = vmatpush.bf16.msra.mxu0 %v1359
    %1408 = vmatmul.bf16.gmra.mxu0 %v1368
    %v1409 = vpop.f32.mrf.mxu0
    %v1410 = vadd.f32 0.0, %v1409
    %v1411 = vpop.f32.mrf.mxu0
    %v1412 = vadd.f32 0.0, %v1411
    %1413 = vmatmul.bf16.gmra.mxu0 %v1370
    %v1414 = vpop.f32.mrf.mxu0
    %v1415 = vadd.f32 0.0, %v1414
    %v1416 = vpop.f32.mrf.mxu0
    %v1417 = vadd.f32 0.0, %v1416
    %1418 = vmatmul.bf16.gmra.mxu0 %v1372
    %v1419 = vpop.f32.mrf.mxu0
    %v1420 = vadd.f32 0.0, %v1419
    %v1421 = vpop.f32.mrf.mxu0
    %v1422 = vadd.f32 0.0, %v1421
    %1423 = vmatmul.bf16.gmra.mxu0 %v1374
    %v1424 = vpop.f32.mrf.mxu0
    %v1425 = vadd.f32 0.0, %v1424
    %v1426 = vpop.f32.mrf.mxu0
    %v1427 = vadd.f32 0.0, %v1426
    %1428 = vmatmul.bf16.gmra.mxu0 %v1376
    %v1429 = vpop.f32.mrf.mxu0
    %v1430 = vadd.f32 0.0, %v1429
    %v1431 = vpop.f32.mrf.mxu0
    %v1432 = vadd.f32 0.0, %v1431
    %1433 = vmatmul.bf16.gmra.mxu0 %v1378
    %v1434 = vpop.f32.mrf.mxu0
    %v1435 = vadd.f32 0.0, %v1434
    %v1436 = vpop.f32.mrf.mxu0
    %v1437 = vadd.f32 0.0, %v1436
    %1438 = vmatmul.bf16.gmra.mxu0 %v1380
    %v1439 = vpop.f32.mrf.mxu0
    %v1440 = vadd.f32 0.0, %v1439
    %v1441 = vpop.f32.mrf.mxu0
    %v1442 = vadd.f32 0.0, %v1441
    %1443 = vmatmul.bf16.gmra.mxu0 %v1382
    %v1444 = vpop.f32.mrf.mxu0
    %v1445 = vadd.f32 0.0, %v1444
    %v1446 = vpop.f32.mrf.mxu0
    %v1447 = vadd.f32 0.0, %v1446
    %1448 = vmatmul.bf16.gmra.mxu0 %v1384
    %v1449 = vpop.f32.mrf.mxu0
    %v1450 = vadd.f32 0.0, %v1449
    %v1451 = vpop.f32.mrf.mxu0
    %v1452 = vadd.f32 0.0, %v1451
    %1453 = vmatmul.bf16.gmra.mxu0 %v1386
    %v1454 = vpop.f32.mrf.mxu0
    %v1455 = vadd.f32 0.0, %v1454
    %v1456 = vpop.f32.mrf.mxu0
    %v1457 = vadd.f32 0.0, %v1456
    %1458 = vmatmul.bf16.gmra.mxu0 %v1388
    %v1459 = vpop.f32.mrf.mxu0
    %v1460 = vadd.f32 0.0, %v1459
    %v1461 = vpop.f32.mrf.mxu0
    %v1462 = vadd.f32 0.0, %v1461
    %1463 = vmatmul.bf16.gmra.mxu0 %v1390
    %v1464 = vpop.f32.mrf.mxu0
    %v1465 = vadd.f32 0.0, %v1464
    %v1466 = vpop.f32.mrf.mxu0
    %v1467 = vadd.f32 0.0, %v1466
    %1468 = vmatmul.bf16.gmra.mxu0 %v1392
    %v1469 = vpop.f32.mrf.mxu0
    %v1470 = vadd.f32 0.0, %v1469
    %v1471 = vpop.f32.mrf.mxu0
    %v1472 = vadd.f32 0.0, %v1471
    %1473 = vmatmul.bf16.gmra.mxu0 %v1394
    %v1474 = vpop.f32.mrf.mxu0
    %v1475 = vadd.f32 0.0, %v1474
    %v1476 = vpop.f32.mrf.mxu0
    %v1477 = vadd.f32 0.0, %v1476
    %1478 = vmatmul.bf16.gmra.mxu0 %v1396
    %v1479 = vpop.f32.mrf.mxu0
    %v1480 = vadd.f32 0.0, %v1479
    %v1481 = vpop.f32.mrf.mxu0
    %v1482 = vadd.f32 0.0, %v1481
    %1483 = vmatmul.bf16.gmra.mxu0 %v1398
    %v1484 = vpop.f32.mrf.mxu0
    %v1485 = vadd.f32 0.0, %v1484
    %v1486 = vpop.f32.mrf.mxu0
    %v1487 = vadd.f32 0.0, %v1486
    %1488 = vdwg.mxu0
    %v1497 = vunpack.c.l.b16 %v1326
    %v1498 = vunpack.c.l.b16 %v1327
    %v1499 = vunpack.c.l.b16 %v1328
    %v1500 = vunpack.c.l.b16 %v1329
    %v1501 = vunpack.c.l.b16 %v1330
    %v1502 = vunpack.c.l.b16 %v1331
    %v1503 = vunpack.c.l.b16 %v1332
    %v1504 = vunpack.c.l.b16 %v1333
    %v1505 = vpack.c.b16 %v1498, %v1497
    %v1506 = vpack.c.b16 %v1500, %v1499
    %v1507 = vpack.c.b16 %v1502, %v1501
    %v1508 = vpack.c.b16 %v1504, %v1503
    %v1514 = vsel %vm1367, %v1246, 0
    %v1517 = vsel %vm1367, %v1247, 0
    %v1520 = vsel %vm1367, %v1248, 0
    %v1523 = vsel %vm1367, %v1249, 0
    %v1526 = vsel %vm1367, %v1250, 0
    %v1529 = vsel %vm1367, %v1251, 0
    %v1532 = vsel %vm1367, %v1252, 0
    %v1535 = vsel %vm1367, %v1253, 0
    %v1538 = vsel %vm1367, %v1254, 0
    %v1541 = vsel %vm1367, %v1255, 0
    %v1544 = vsel %vm1367, %v1256, 0
    %v1547 = vsel %vm1367, %v1257, 0
    %v1550 = vsel %vm1367, %v1258, 0
    %v1553 = vsel %vm1367, %v1259, 0
    %v1556 = vsel %vm1367, %v1260, 0
    %v1559 = vsel %vm1367, %v1261, 0
    %1561 = vmatpush.bf16.msra.mxu0 0
    %1562 = vmatpush.bf16.msra.mxu0 0
    %1563 = vmatpush.bf16.msra.mxu0 0
    %1564 = vmatpush.bf16.msra.mxu0 0
    %1565 = vmatpush.bf16.msra.mxu0 %v1508
    %1566 = vmatpush.bf16.msra.mxu0 %v1507
    %1567 = vmatpush.bf16.msra.mxu0 %v1506
    %1568 = vmatpush.bf16.msra.mxu0 %v1505
    %1569 = vmatmul.bf16.gmra.mxu0 %v1514
    %v1570 = vpop.f32.mrf.mxu0
    %v1571 = vadd.f32 %v1410, %v1570
    %v1572 = vpop.f32.mrf.mxu0
    %v1573 = vadd.f32 %v1412, %v1572
    %1574 = vmatmul.bf16.gmra.mxu0 %v1517
    %v1575 = vpop.f32.mrf.mxu0
    %v1576 = vadd.f32 %v1415, %v1575
    %v1577 = vpop.f32.mrf.mxu0
    %v1578 = vadd.f32 %v1417, %v1577
    %1579 = vmatmul.bf16.gmra.mxu0 %v1520
    %v1580 = vpop.f32.mrf.mxu0
    %v1581 = vadd.f32 %v1420, %v1580
    %v1582 = vpop.f32.mrf.mxu0
    %v1583 = vadd.f32 %v1422, %v1582
    %1584 = vmatmul.bf16.gmra.mxu0 %v1523
    %v1585 = vpop.f32.mrf.mxu0
    %v1586 = vadd.f32 %v1425, %v1585
    %v1587 = vpop.f32.mrf.mxu0
    %v1588 = vadd.f32 %v1427, %v1587
    %1589 = vmatmul.bf16.gmra.mxu0 %v1526
    %v1590 = vpop.f32.mrf.mxu0
    %v1591 = vadd.f32 %v1430, %v1590
    %v1592 = vpop.f32.mrf.mxu0
    %v1593 = vadd.f32 %v1432, %v1592
    %1594 = vmatmul.bf16.gmra.mxu0 %v1529
    %v1595 = vpop.f32.mrf.mxu0
    %v1596 = vadd.f32 %v1435, %v1595
    %v1597 = vpop.f32.mrf.mxu0
    %v1598 = vadd.f32 %v1437, %v1597
    %1599 = vmatmul.bf16.gmra.mxu0 %v1532
    %v1600 = vpop.f32.mrf.mxu0
    %v1601 = vadd.f32 %v1440, %v1600
    %v1602 = vpop.f32.mrf.mxu0
    %v1603 = vadd.f32 %v1442, %v1602
    %1604 = vmatmul.bf16.gmra.mxu0 %v1535
    %v1605 = vpop.f32.mrf.mxu0
    %v1606 = vadd.f32 %v1445, %v1605
    %v1607 = vpop.f32.mrf.mxu0
    %v1608 = vadd.f32 %v1447, %v1607
    %1609 = vmatmul.bf16.gmra.mxu0 %v1538
    %v1610 = vpop.f32.mrf.mxu0
    %v1611 = vadd.f32 %v1450, %v1610
    %v1612 = vpop.f32.mrf.mxu0
    %v1613 = vadd.f32 %v1452, %v1612
    %1614 = vmatmul.bf16.gmra.mxu0 %v1541
    %v1615 = vpop.f32.mrf.mxu0
    %v1616 = vadd.f32 %v1455, %v1615
    %v1617 = vpop.f32.mrf.mxu0
    %v1618 = vadd.f32 %v1457, %v1617
    %1619 = vmatmul.bf16.gmra.mxu0 %v1544
    %v1620 = vpop.f32.mrf.mxu0
    %v1621 = vadd.f32 %v1460, %v1620
    %v1622 = vpop.f32.mrf.mxu0
    %v1623 = vadd.f32 %v1462, %v1622
    %1624 = vmatmul.bf16.gmra.mxu0 %v1547
    %v1625 = vpop.f32.mrf.mxu0
    %v1626 = vadd.f32 %v1465, %v1625
    %v1627 = vpop.f32.mrf.mxu0
    %v1628 = vadd.f32 %v1467, %v1627
    %1629 = vmatmul.bf16.gmra.mxu0 %v1550
    %v1630 = vpop.f32.mrf.mxu0
    %v1631 = vadd.f32 %v1470, %v1630
    %v1632 = vpop.f32.mrf.mxu0
    %v1633 = vadd.f32 %v1472, %v1632
    %1634 = vmatmul.bf16.gmra.mxu0 %v1553
    %v1635 = vpop.f32.mrf.mxu0
    %v1636 = vadd.f32 %v1475, %v1635
    %v1637 = vpop.f32.mrf.mxu0
    %v1638 = vadd.f32 %v1477, %v1637
    %1639 = vmatmul.bf16.gmra.mxu0 %v1556
    %v1640 = vpop.f32.mrf.mxu0
    %v1641 = vadd.f32 %v1480, %v1640
    %v1642 = vpop.f32.mrf.mxu0
    %v1643 = vadd.f32 %v1482, %v1642
    %1644 = vmatmul.bf16.gmra.mxu0 %v1559
    %v1645 = vpop.f32.mrf.mxu0
    %v1646 = vadd.f32 %v1485, %v1645
    %v1647 = vpop.f32.mrf.mxu0
    %v1648 = vadd.f32 %v1487, %v1647
    %1649 = vdwg.mxu0
    %s1650 = scalar_lea.vmem %s3, 64
    %v1651 = vld [vmem:[%s1650] sm:$0xf]
    %v1652 = vld [vmem:[%s1650 + $0x4] sm:$0xf]
    %v1653 = vld [vmem:[%s1650 + $0x8] sm:$0xf]
    %v1654 = vld [vmem:[%s1650 + $0xc] sm:$0xf]
    %v1655 = vld [vmem:[%s1650 + $0x10] sm:$0xf]
    %v1656 = vld [vmem:[%s1650 + $0x14] sm:$0xf]
    %v1657 = vld [vmem:[%s1650 + $0x18] sm:$0xf]
    %v1658 = vld [vmem:[%s1650 + $0x1c] sm:$0xf]
    %v1667 = vunpack.c.l.b16 %v1651
    %v1668 = vunpack.c.l.b16 %v1652
    %v1669 = vunpack.c.l.b16 %v1653
    %v1670 = vunpack.c.l.b16 %v1654
    %v1671 = vunpack.c.l.b16 %v1655
    %v1672 = vunpack.c.l.b16 %v1656
    %v1673 = vunpack.c.l.b16 %v1657
    %v1674 = vunpack.c.l.b16 %v1658
    %v1675 = vpack.c.b16 %v1668, %v1667
    %v1676 = vpack.c.b16 %v1670, %v1669
    %v1677 = vpack.c.b16 %v1672, %v1671
    %v1678 = vpack.c.b16 %v1674, %v1673
    %v1684 = vsel %vm1367, %v1310, 0
    %v1687 = vsel %vm1367, %v1311, 0
    %v1690 = vsel %vm1367, %v1312, 0
    %v1693 = vsel %vm1367, %v1313, 0
    %v1696 = vsel %vm1367, %v1314, 0
    %v1699 = vsel %vm1367, %v1315, 0
    %v1702 = vsel %vm1367, %v1316, 0
    %v1705 = vsel %vm1367, %v1317, 0
    %v1708 = vsel %vm1367, %v1318, 0
    %v1711 = vsel %vm1367, %v1319, 0
    %v1714 = vsel %vm1367, %v1320, 0
    %v1717 = vsel %vm1367, %v1321, 0
    %v1720 = vsel %vm1367, %v1322, 0
    %v1723 = vsel %vm1367, %v1323, 0
    %v1726 = vsel %vm1367, %v1324, 0
    %v1729 = vsel %vm1367, %v1325, 0
    %1731 = vmatpush.bf16.msra.mxu0 0
    %1732 = vmatpush.bf16.msra.mxu0 0
    %1733 = vmatpush.bf16.msra.mxu0 0
    %1734 = vmatpush.bf16.msra.mxu0 0
    %1735 = vmatpush.bf16.msra.mxu0 %v1678
    %1736 = vmatpush.bf16.msra.mxu0 %v1677
    %1737 = vmatpush.bf16.msra.mxu0 %v1676
    %1738 = vmatpush.bf16.msra.mxu0 %v1675
    %1739 = vmatmul.bf16.gmra.mxu0 %v1684
    %v1740 = vpop.f32.mrf.mxu0
    %v1741 = vadd.f32 0.0, %v1740
    %v1742 = vpop.f32.mrf.mxu0
    %v1743 = vadd.f32 0.0, %v1742
    %1744 = vmatmul.bf16.gmra.mxu0 %v1687
    %v1745 = vpop.f32.mrf.mxu0
    %v1746 = vadd.f32 0.0, %v1745
    %v1747 = vpop.f32.mrf.mxu0
    %v1748 = vadd.f32 0.0, %v1747
    %1749 = vmatmul.bf16.gmra.mxu0 %v1690
    %v1750 = vpop.f32.mrf.mxu0
    %v1751 = vadd.f32 0.0, %v1750
    %v1752 = vpop.f32.mrf.mxu0
    %v1753 = vadd.f32 0.0, %v1752
    %1754 = vmatmul.bf16.gmra.mxu0 %v1693
    %v1755 = vpop.f32.mrf.mxu0
    %v1756 = vadd.f32 0.0, %v1755
    %v1757 = vpop.f32.mrf.mxu0
    %v1758 = vadd.f32 0.0, %v1757
    %1759 = vmatmul.bf16.gmra.mxu0 %v1696
    %v1760 = vpop.f32.mrf.mxu0
    %v1761 = vadd.f32 0.0, %v1760
    %v1762 = vpop.f32.mrf.mxu0
    %v1763 = vadd.f32 0.0, %v1762
    %1764 = vmatmul.bf16.gmra.mxu0 %v1699
    %v1765 = vpop.f32.mrf.mxu0
    %v1766 = vadd.f32 0.0, %v1765
    %v1767 = vpop.f32.mrf.mxu0
    %v1768 = vadd.f32 0.0, %v1767
    %1769 = vmatmul.bf16.gmra.mxu0 %v1702
    %v1770 = vpop.f32.mrf.mxu0
    %v1771 = vadd.f32 0.0, %v1770
    %v1772 = vpop.f32.mrf.mxu0
    %v1773 = vadd.f32 0.0, %v1772
    %1774 = vmatmul.bf16.gmra.mxu0 %v1705
    %v1775 = vpop.f32.mrf.mxu0
    %v1776 = vadd.f32 0.0, %v1775
    %v1777 = vpop.f32.mrf.mxu0
    %v1778 = vadd.f32 0.0, %v1777
    %1779 = vmatmul.bf16.gmra.mxu0 %v1708
    %v1780 = vpop.f32.mrf.mxu0
    %v1781 = vadd.f32 0.0, %v1780
    %v1782 = vpop.f32.mrf.mxu0
    %v1783 = vadd.f32 0.0, %v1782
    %1784 = vmatmul.bf16.gmra.mxu0 %v1711
    %v1785 = vpop.f32.mrf.mxu0
    %v1786 = vadd.f32 0.0, %v1785
    %v1787 = vpop.f32.mrf.mxu0
    %v1788 = vadd.f32 0.0, %v1787
    %1789 = vmatmul.bf16.gmra.mxu0 %v1714
    %v1790 = vpop.f32.mrf.mxu0
    %v1791 = vadd.f32 0.0, %v1790
    %v1792 = vpop.f32.mrf.mxu0
    %v1793 = vadd.f32 0.0, %v1792
    %1794 = vmatmul.bf16.gmra.mxu0 %v1717
    %v1795 = vpop.f32.mrf.mxu0
    %v1796 = vadd.f32 0.0, %v1795
    %v1797 = vpop.f32.mrf.mxu0
    %v1798 = vadd.f32 0.0, %v1797
    %1799 = vmatmul.bf16.gmra.mxu0 %v1720
    %v1800 = vpop.f32.mrf.mxu0
    %v1801 = vadd.f32 0.0, %v1800
    %v1802 = vpop.f32.mrf.mxu0
    %v1803 = vadd.f32 0.0, %v1802
    %1804 = vmatmul.bf16.gmra.mxu0 %v1723
    %v1805 = vpop.f32.mrf.mxu0
    %v1806 = vadd.f32 0.0, %v1805
    %v1807 = vpop.f32.mrf.mxu0
    %v1808 = vadd.f32 0.0, %v1807
    %1809 = vmatmul.bf16.gmra.mxu0 %v1726
    %v1810 = vpop.f32.mrf.mxu0
    %v1811 = vadd.f32 0.0, %v1810
    %v1812 = vpop.f32.mrf.mxu0
    %v1813 = vadd.f32 0.0, %v1812
    %1814 = vmatmul.bf16.gmra.mxu0 %v1729
    %v1815 = vpop.f32.mrf.mxu0
    %v1816 = vadd.f32 0.0, %v1815
    %v1817 = vpop.f32.mrf.mxu0
    %v1818 = vadd.f32 0.0, %v1817
    %1819 = vdwg.mxu0
    %v1820 = vadd.f32 %v1571, %v1741
    %v1821 = vadd.f32 %v1573, %v1743
    %v1822 = vadd.f32 %v1576, %v1746
    %v1823 = vadd.f32 %v1578, %v1748
    %v1824 = vadd.f32 %v1581, %v1751
    %v1825 = vadd.f32 %v1583, %v1753
    %v1826 = vadd.f32 %v1586, %v1756
    %v1827 = vadd.f32 %v1588, %v1758
    %v1828 = vadd.f32 %v1591, %v1761
    %v1829 = vadd.f32 %v1593, %v1763
    %v1830 = vadd.f32 %v1596, %v1766
    %v1831 = vadd.f32 %v1598, %v1768
    %v1832 = vadd.f32 %v1601, %v1771
    %v1833 = vadd.f32 %v1603, %v1773
    %v1834 = vadd.f32 %v1606, %v1776
    %v1835 = vadd.f32 %v1608, %v1778
    %v1836 = vadd.f32 %v1611, %v1781
    %v1837 = vadd.f32 %v1613, %v1783
    %v1838 = vadd.f32 %v1616, %v1786
    %v1839 = vadd.f32 %v1618, %v1788
    %v1840 = vadd.f32 %v1621, %v1791
    %v1841 = vadd.f32 %v1623, %v1793
    %v1842 = vadd.f32 %v1626, %v1796
    %v1843 = vadd.f32 %v1628, %v1798
    %v1844 = vadd.f32 %v1631, %v1801
    %v1845 = vadd.f32 %v1633, %v1803
    %v1846 = vadd.f32 %v1636, %v1806
    %v1847 = vadd.f32 %v1638, %v1808
    %v1848 = vadd.f32 %v1641, %v1811
    %v1849 = vadd.f32 %v1643, %v1813
    %v1850 = vadd.f32 %v1646, %v1816
    %v1851 = vadd.f32 %v1648, %v1818
    %v1852 = vld [vmem:[%s4] sm:$0x1]
    %v1854 = vperm.slane %v1852, 0
    %v1856 = vadd.f32 %v1820, %v1854
    %v1857 = vadd.f32 %v1821, %v1854
    %v1858 = vadd.f32 %v1822, %v1854
    %v1859 = vadd.f32 %v1823, %v1854
    %v1860 = vadd.f32 %v1824, %v1854
    %v1861 = vadd.f32 %v1825, %v1854
    %v1862 = vadd.f32 %v1826, %v1854
    %v1863 = vadd.f32 %v1827, %v1854
    %v1864 = vadd.f32 %v1828, %v1854
    %v1865 = vadd.f32 %v1829, %v1854
    %v1866 = vadd.f32 %v1830, %v1854
    %v1867 = vadd.f32 %v1831, %v1854
    %v1868 = vadd.f32 %v1832, %v1854
    %v1869 = vadd.f32 %v1833, %v1854
    %v1870 = vadd.f32 %v1834, %v1854
    %v1871 = vadd.f32 %v1835, %v1854
    %v1872 = vadd.f32 %v1836, %v1854
    %v1873 = vadd.f32 %v1837, %v1854
    %v1874 = vadd.f32 %v1838, %v1854
    %v1875 = vadd.f32 %v1839, %v1854
    %v1876 = vadd.f32 %v1840, %v1854
    %v1877 = vadd.f32 %v1841, %v1854
    %v1878 = vadd.f32 %v1842, %v1854
    %v1879 = vadd.f32 %v1843, %v1854
    %v1880 = vadd.f32 %v1844, %v1854
    %v1881 = vadd.f32 %v1845, %v1854
    %v1882 = vadd.f32 %v1846, %v1854
    %v1883 = vadd.f32 %v1847, %v1854
    %v1884 = vadd.f32 %v1848, %v1854
    %v1885 = vadd.f32 %v1849, %v1854
    %v1886 = vadd.f32 %v1850, %v1854
    %v1887 = vadd.f32 %v1851, %v1854
    %vm1888 = vcmp.gt.f32.partialorder %v1856, 0.0
    %vm1889 = vcmp.gt.f32.partialorder %v1857, 0.0
    %vm1890 = vcmp.gt.f32.partialorder %v1858, 0.0
    %vm1891 = vcmp.gt.f32.partialorder %v1859, 0.0
    %vm1892 = vcmp.gt.f32.partialorder %v1860, 0.0
    %vm1893 = vcmp.gt.f32.partialorder %v1861, 0.0
    %vm1894 = vcmp.gt.f32.partialorder %v1862, 0.0
    %vm1895 = vcmp.gt.f32.partialorder %v1863, 0.0
    %vm1896 = vcmp.gt.f32.partialorder %v1864, 0.0
    %vm1897 = vcmp.gt.f32.partialorder %v1865, 0.0
    %vm1898 = vcmp.gt.f32.partialorder %v1866, 0.0
    %vm1899 = vcmp.gt.f32.partialorder %v1867, 0.0
    %vm1900 = vcmp.gt.f32.partialorder %v1868, 0.0
    %vm1901 = vcmp.gt.f32.partialorder %v1869, 0.0
    %vm1902 = vcmp.gt.f32.partialorder %v1870, 0.0
    %vm1903 = vcmp.gt.f32.partialorder %v1871, 0.0
    %vm1904 = vcmp.gt.f32.partialorder %v1872, 0.0
    %vm1905 = vcmp.gt.f32.partialorder %v1873, 0.0
    %vm1906 = vcmp.gt.f32.partialorder %v1874, 0.0
    %vm1907 = vcmp.gt.f32.partialorder %v1875, 0.0
    %vm1908 = vcmp.gt.f32.partialorder %v1876, 0.0
    %vm1909 = vcmp.gt.f32.partialorder %v1877, 0.0
    %vm1910 = vcmp.gt.f32.partialorder %v1878, 0.0
    %vm1911 = vcmp.gt.f32.partialorder %v1879, 0.0
    %vm1912 = vcmp.gt.f32.partialorder %v1880, 0.0
    %vm1913 = vcmp.gt.f32.partialorder %v1881, 0.0
    %vm1914 = vcmp.gt.f32.partialorder %v1882, 0.0
    %vm1915 = vcmp.gt.f32.partialorder %v1883, 0.0
    %vm1916 = vcmp.gt.f32.partialorder %v1884, 0.0
    %vm1917 = vcmp.gt.f32.partialorder %v1885, 0.0
    %vm1918 = vcmp.gt.f32.partialorder %v1886, 0.0
    %vm1919 = vcmp.gt.f32.partialorder %v1887, 0.0
    %v1920 = vmul.f32 %v1856, 0.2
    %v1921 = vmul.f32 %v1857, 0.2
    %v1922 = vmul.f32 %v1858, 0.2
    %v1923 = vmul.f32 %v1859, 0.2
    %v1924 = vmul.f32 %v1860, 0.2
    %v1925 = vmul.f32 %v1861, 0.2
    %v1926 = vmul.f32 %v1862, 0.2
    %v1927 = vmul.f32 %v1863, 0.2
    %v1928 = vmul.f32 %v1864, 0.2
    %v1929 = vmul.f32 %v1865, 0.2
    %v1930 = vmul.f32 %v1866, 0.2
    %v1931 = vmul.f32 %v1867, 0.2
    %v1932 = vmul.f32 %v1868, 0.2
    %v1933 = vmul.f32 %v1869, 0.2
    %v1934 = vmul.f32 %v1870, 0.2
    %v1935 = vmul.f32 %v1871, 0.2
    %v1936 = vmul.f32 %v1872, 0.2
    %v1937 = vmul.f32 %v1873, 0.2
    %v1938 = vmul.f32 %v1874, 0.2
    %v1939 = vmul.f32 %v1875, 0.2
    %v1940 = vmul.f32 %v1876, 0.2
    %v1941 = vmul.f32 %v1877, 0.2
    %v1942 = vmul.f32 %v1878, 0.2
    %v1943 = vmul.f32 %v1879, 0.2
    %v1944 = vmul.f32 %v1880, 0.2
    %v1945 = vmul.f32 %v1881, 0.2
    %v1946 = vmul.f32 %v1882, 0.2
    %v1947 = vmul.f32 %v1883, 0.2
    %v1948 = vmul.f32 %v1884, 0.2
    %v1949 = vmul.f32 %v1885, 0.2
    %v1950 = vmul.f32 %v1886, 0.2
    %v1951 = vmul.f32 %v1887, 0.2
    %v1952 = vsel %vm1888, %v1856, %v1920
    %v1953 = vsel %vm1889, %v1857, %v1921
    %v1954 = vsel %vm1890, %v1858, %v1922
    %v1955 = vsel %vm1891, %v1859, %v1923
    %v1956 = vsel %vm1892, %v1860, %v1924
    %v1957 = vsel %vm1893, %v1861, %v1925
    %v1958 = vsel %vm1894, %v1862, %v1926
    %v1959 = vsel %vm1895, %v1863, %v1927
    %v1960 = vsel %vm1896, %v1864, %v1928
    %v1961 = vsel %vm1897, %v1865, %v1929
    %v1962 = vsel %vm1898, %v1866, %v1930
    %v1963 = vsel %vm1899, %v1867, %v1931
    %v1964 = vsel %vm1900, %v1868, %v1932
    %v1965 = vsel %vm1901, %v1869, %v1933
    %v1966 = vsel %vm1902, %v1870, %v1934
    %v1967 = vsel %vm1903, %v1871, %v1935
    %v1968 = vsel %vm1904, %v1872, %v1936
    %v1969 = vsel %vm1905, %v1873, %v1937
    %v1970 = vsel %vm1906, %v1874, %v1938
    %v1971 = vsel %vm1907, %v1875, %v1939
    %v1972 = vsel %vm1908, %v1876, %v1940
    %v1973 = vsel %vm1909, %v1877, %v1941
    %v1974 = vsel %vm1910, %v1878, %v1942
    %v1975 = vsel %vm1911, %v1879, %v1943
    %v1976 = vsel %vm1912, %v1880, %v1944
    %v1977 = vsel %vm1913, %v1881, %v1945
    %v1978 = vsel %vm1914, %v1882, %v1946
    %v1979 = vsel %vm1915, %v1883, %v1947
    %v1980 = vsel %vm1916, %v1884, %v1948
    %v1981 = vsel %vm1917, %v1885, %v1949
    %v1982 = vsel %vm1918, %v1886, %v1950
    %v1983 = vsel %vm1919, %v1887, %v1951
    %v1984 = vpack.c.bf16 %v1952, %v1952
    %v1985 = vpack.c.bf16 %v1953, %v1953
    %v1986 = vpack.c.bf16 %v1954, %v1954
    %v1987 = vpack.c.bf16 %v1955, %v1955
    %v1988 = vpack.c.bf16 %v1956, %v1956
    %v1989 = vpack.c.bf16 %v1957, %v1957
    %v1990 = vpack.c.bf16 %v1958, %v1958
    %v1991 = vpack.c.bf16 %v1959, %v1959
    %v1992 = vpack.c.bf16 %v1960, %v1960
    %v1993 = vpack.c.bf16 %v1961, %v1961
    %v1994 = vpack.c.bf16 %v1962, %v1962
    %v1995 = vpack.c.bf16 %v1963, %v1963
    %v1996 = vpack.c.bf16 %v1964, %v1964
    %v1997 = vpack.c.bf16 %v1965, %v1965
    %v1998 = vpack.c.bf16 %v1966, %v1966
    %v1999 = vpack.c.bf16 %v1967, %v1967
    %v2000 = vpack.c.bf16 %v1968, %v1968
    %v2001 = vpack.c.bf16 %v1969, %v1969
    %v2002 = vpack.c.bf16 %v1970, %v1970
    %v2003 = vpack.c.bf16 %v1971, %v1971
    %v2004 = vpack.c.bf16 %v1972, %v1972
    %v2005 = vpack.c.bf16 %v1973, %v1973
    %v2006 = vpack.c.bf16 %v1974, %v1974
    %v2007 = vpack.c.bf16 %v1975, %v1975
    %v2008 = vpack.c.bf16 %v1976, %v1976
    %v2009 = vpack.c.bf16 %v1977, %v1977
    %v2010 = vpack.c.bf16 %v1978, %v1978
    %v2011 = vpack.c.bf16 %v1979, %v1979
    %v2012 = vpack.c.bf16 %v1980, %v1980
    %v2013 = vpack.c.bf16 %v1981, %v1981
    %v2014 = vpack.c.bf16 %v1982, %v1982
    %v2015 = vpack.c.bf16 %v1983, %v1983
    %v2048 = vunpack.c.l.b16 %v1984
    %v2049 = vunpack.c.l.b16 %v1985
    %v2050 = vunpack.c.l.b16 %v1986
    %v2051 = vunpack.c.l.b16 %v1987
    %v2052 = vunpack.c.l.b16 %v1988
    %v2053 = vunpack.c.l.b16 %v1989
    %v2054 = vunpack.c.l.b16 %v1990
    %v2055 = vunpack.c.l.b16 %v1991
    %v2056 = vunpack.c.l.b16 %v1992
    %v2057 = vunpack.c.l.b16 %v1993
    %v2058 = vunpack.c.l.b16 %v1994
    %v2059 = vunpack.c.l.b16 %v1995
    %v2060 = vunpack.c.l.b16 %v1996
    %v2061 = vunpack.c.l.b16 %v1997
    %v2062 = vunpack.c.l.b16 %v1998
    %v2063 = vunpack.c.l.b16 %v1999
    %v2064 = vunpack.c.l.b16 %v2000
    %v2065 = vunpack.c.l.b16 %v2001
    %v2066 = vunpack.c.l.b16 %v2002
    %v2067 = vunpack.c.l.b16 %v2003
    %v2068 = vunpack.c.l.b16 %v2004
    %v2069 = vunpack.c.l.b16 %v2005
    %v2070 = vunpack.c.l.b16 %v2006
    %v2071 = vunpack.c.l.b16 %v2007
    %v2072 = vunpack.c.l.b16 %v2008
    %v2073 = vunpack.c.l.b16 %v2009
    %v2074 = vunpack.c.l.b16 %v2010
    %v2075 = vunpack.c.l.b16 %v2011
    %v2076 = vunpack.c.l.b16 %v2012
    %v2077 = vunpack.c.l.b16 %v2013
    %v2078 = vunpack.c.l.b16 %v2014
    %v2079 = vunpack.c.l.b16 %v2015
    %v2080 = vpack.c.b16 %v2049, %v2048
    %v2081 = vpack.c.b16 %v2051, %v2050
    %v2082 = vpack.c.b16 %v2053, %v2052
    %v2083 = vpack.c.b16 %v2055, %v2054
    %v2084 = vpack.c.b16 %v2057, %v2056
    %v2085 = vpack.c.b16 %v2059, %v2058
    %v2086 = vpack.c.b16 %v2061, %v2060
    %v2087 = vpack.c.b16 %v2063, %v2062
    %v2088 = vpack.c.b16 %v2065, %v2064
    %v2089 = vpack.c.b16 %v2067, %v2066
    %v2090 = vpack.c.b16 %v2069, %v2068
    %v2091 = vpack.c.b16 %v2071, %v2070
    %v2092 = vpack.c.b16 %v2073, %v2072
    %v2093 = vpack.c.b16 %v2075, %v2074
    %v2094 = vpack.c.b16 %v2077, %v2076
    %v2095 = vpack.c.b16 %v2079, %v2078
    %v2097 = vshrl.u32 %v2080, 16
    %v2099 = vrot.slane %v2097, 7
    %v2100 = vshll.u32 %v2080, 16
    %v2102 = vor.u32 %v2099, %v2100
    %v2104 = vshrl.u32 %v2081, 16
    %v2106 = vrot.slane %v2104, 7
    %v2107 = vshll.u32 %v2081, 16
    %v2109 = vor.u32 %v2106, %v2107
    %v2111 = vshrl.u32 %v2082, 16
    %v2113 = vrot.slane %v2111, 7
    %v2114 = vshll.u32 %v2082, 16
    %v2116 = vor.u32 %v2113, %v2114
    %v2118 = vshrl.u32 %v2083, 16
    %v2120 = vrot.slane %v2118, 7
    %v2121 = vshll.u32 %v2083, 16
    %v2123 = vor.u32 %v2120, %v2121
    %v2125 = vshrl.u32 %v2084, 16
    %v2127 = vrot.slane %v2125, 7
    %v2128 = vshll.u32 %v2084, 16
    %v2130 = vor.u32 %v2127, %v2128
    %v2132 = vshrl.u32 %v2085, 16
    %v2134 = vrot.slane %v2132, 7
    %v2135 = vshll.u32 %v2085, 16
    %v2137 = vor.u32 %v2134, %v2135
    %v2139 = vshrl.u32 %v2086, 16
    %v2141 = vrot.slane %v2139, 7
    %v2142 = vshll.u32 %v2086, 16
    %v2144 = vor.u32 %v2141, %v2142
    %v2146 = vshrl.u32 %v2087, 16
    %v2148 = vrot.slane %v2146, 7
    %v2149 = vshll.u32 %v2087, 16
    %v2151 = vor.u32 %v2148, %v2149
    %v2153 = vshrl.u32 %v2088, 16
    %v2155 = vrot.slane %v2153, 7
    %v2156 = vshll.u32 %v2088, 16
    %v2158 = vor.u32 %v2155, %v2156
    %v2160 = vshrl.u32 %v2089, 16
    %v2162 = vrot.slane %v2160, 7
    %v2163 = vshll.u32 %v2089, 16
    %v2165 = vor.u32 %v2162, %v2163
    %v2167 = vshrl.u32 %v2090, 16
    %v2169 = vrot.slane %v2167, 7
    %v2170 = vshll.u32 %v2090, 16
    %v2172 = vor.u32 %v2169, %v2170
    %v2174 = vshrl.u32 %v2091, 16
    %v2176 = vrot.slane %v2174, 7
    %v2177 = vshll.u32 %v2091, 16
    %v2179 = vor.u32 %v2176, %v2177
    %v2181 = vshrl.u32 %v2092, 16
    %v2183 = vrot.slane %v2181, 7
    %v2184 = vshll.u32 %v2092, 16
    %v2186 = vor.u32 %v2183, %v2184
    %v2188 = vshrl.u32 %v2093, 16
    %v2190 = vrot.slane %v2188, 7
    %v2191 = vshll.u32 %v2093, 16
    %v2193 = vor.u32 %v2190, %v2191
    %v2195 = vshrl.u32 %v2094, 16
    %v2197 = vrot.slane %v2195, 7
    %v2198 = vshll.u32 %v2094, 16
    %v2200 = vor.u32 %v2197, %v2198
    %v2202 = vshrl.u32 %v2095, 16
    %v2204 = vrot.slane %v2202, 7
    %v2205 = vshll.u32 %v2095, 16
    %v2207 = vor.u32 %v2204, %v2205
    %v2224 = vsel %vm347, 0, %v2102
    %v2225 = vsel %vm347, 0, %v2109
    %v2226 = vsel %vm347, 0, %v2116
    %v2227 = vsel %vm347, 0, %v2123
    %v2228 = vsel %vm347, 0, %v2130
    %v2229 = vsel %vm347, 0, %v2137
    %v2230 = vsel %vm347, 0, %v2144
    %v2231 = vsel %vm347, 0, %v2151
    %v2232 = vsel %vm347, 0, %v2158
    %v2233 = vsel %vm347, 0, %v2165
    %v2234 = vsel %vm347, 0, %v2172
    %v2235 = vsel %vm347, 0, %v2179
    %v2236 = vsel %vm347, 0, %v2186
    %v2237 = vsel %vm347, 0, %v2193
    %v2238 = vsel %vm347, 0, %v2200
    %v2239 = vsel %vm347, 0, %v2207
    %v2240 = vrot.slane %v2100, 1
    %v2241 = vor.u32 %v2097, %v2240
    %v2242 = vrot.slane %v2107, 1
    %v2243 = vor.u32 %v2104, %v2242
    %v2244 = vrot.slane %v2114, 1
    %v2245 = vor.u32 %v2111, %v2244
    %v2246 = vrot.slane %v2121, 1
    %v2247 = vor.u32 %v2118, %v2246
    %v2248 = vrot.slane %v2128, 1
    %v2249 = vor.u32 %v2125, %v2248
    %v2250 = vrot.slane %v2135, 1
    %v2251 = vor.u32 %v2132, %v2250
    %v2252 = vrot.slane %v2142, 1
    %v2253 = vor.u32 %v2139, %v2252
    %v2254 = vrot.slane %v2149, 1
    %v2255 = vor.u32 %v2146, %v2254
    %v2256 = vrot.slane %v2156, 1
    %v2257 = vor.u32 %v2153, %v2256
    %v2258 = vrot.slane %v2163, 1
    %v2259 = vor.u32 %v2160, %v2258
    %v2260 = vrot.slane %v2170, 1
    %v2261 = vor.u32 %v2167, %v2260
    %v2262 = vrot.slane %v2177, 1
    %v2263 = vor.u32 %v2174, %v2262
    %v2264 = vrot.slane %v2184, 1
    %v2265 = vor.u32 %v2181, %v2264
    %v2266 = vrot.slane %v2191, 1
    %v2267 = vor.u32 %v2188, %v2266
    %v2268 = vrot.slane %v2198, 1
    %v2269 = vor.u32 %v2195, %v2268
    %v2270 = vrot.slane %v2205, 1
    %v2271 = vor.u32 %v2202, %v2270
    %v2288 = vsel %vm414, %v2241, 0
    %v2289 = vsel %vm414, %v2243, 0
    %v2290 = vsel %vm414, %v2245, 0
    %v2291 = vsel %vm414, %v2247, 0
    %v2292 = vsel %vm414, %v2249, 0
    %v2293 = vsel %vm414, %v2251, 0
    %v2294 = vsel %vm414, %v2253, 0
    %v2295 = vsel %vm414, %v2255, 0
    %v2296 = vsel %vm414, %v2257, 0
    %v2297 = vsel %vm414, %v2259, 0
    %v2298 = vsel %vm414, %v2261, 0
    %v2299 = vsel %vm414, %v2263, 0
    %v2300 = vsel %vm414, %v2265, 0
    %v2301 = vsel %vm414, %v2267, 0
    %v2302 = vsel %vm414, %v2269, 0
    %v2303 = vsel %vm414, %v2271, 0
    %v2320 = vld [vmem:[#allocation3] sm:$0xff]
    %v2321 = vld [vmem:[#allocation3 + $0x8] sm:$0xff]
    %v2322 = vld [vmem:[#allocation3 + $0x10] sm:$0xff]
    %v2323 = vld [vmem:[#allocation3 + $0x18] sm:$0xff]
    %v2324 = vld [vmem:[#allocation3 + $0x20] sm:$0xff]
    %v2325 = vld [vmem:[#allocation3 + $0x28] sm:$0xff]
    %v2326 = vld [vmem:[#allocation3 + $0x30] sm:$0xff]
    %v2327 = vld [vmem:[#allocation3 + $0x38] sm:$0xff]
    %v2328 = vld [vmem:[#allocation3 + $0x40] sm:$0xff]
    %v2329 = vld [vmem:[#allocation3 + $0x48] sm:$0xff]
    %v2330 = vld [vmem:[#allocation3 + $0x50] sm:$0xff]
    %v2331 = vld [vmem:[#allocation3 + $0x58] sm:$0xff]
    %v2332 = vld [vmem:[#allocation3 + $0x60] sm:$0xff]
    %v2333 = vld [vmem:[#allocation3 + $0x68] sm:$0xff]
    %v2334 = vld [vmem:[#allocation3 + $0x70] sm:$0xff]
    %v2335 = vld [vmem:[#allocation3 + $0x78] sm:$0xff]
    %v2336 = vld [vmem:[#allocation3 + $0x80] sm:$0xff]
    %v2337 = vld [vmem:[#allocation3 + $0x88] sm:$0xff]
    %v2338 = vld [vmem:[#allocation3 + $0x90] sm:$0xff]
    %v2339 = vld [vmem:[#allocation3 + $0x98] sm:$0xff]
    %v2340 = vld [vmem:[#allocation3 + $0xa0] sm:$0xff]
    %v2341 = vld [vmem:[#allocation3 + $0xa8] sm:$0xff]
    %v2342 = vld [vmem:[#allocation3 + $0xb0] sm:$0xff]
    %v2343 = vld [vmem:[#allocation3 + $0xb8] sm:$0xff]
    %v2344 = vld [vmem:[#allocation3 + $0xc0] sm:$0xff]
    %v2345 = vld [vmem:[#allocation3 + $0xc8] sm:$0xff]
    %v2346 = vld [vmem:[#allocation3 + $0xd0] sm:$0xff]
    %v2347 = vld [vmem:[#allocation3 + $0xd8] sm:$0xff]
    %v2348 = vld [vmem:[#allocation3 + $0xe0] sm:$0xff]
    %v2349 = vld [vmem:[#allocation3 + $0xe8] sm:$0xff]
    %v2350 = vld [vmem:[#allocation3 + $0xf0] sm:$0xff]
    %v2351 = vld [vmem:[#allocation3 + $0xf8] sm:$0xff]
    %v2352 = vld [vmem:[#allocation3 + $0x100] sm:$0xff]
    %v2353 = vld [vmem:[#allocation3 + $0x108] sm:$0xff]
    %v2354 = vld [vmem:[#allocation3 + $0x110] sm:$0xff]
    %v2355 = vld [vmem:[#allocation3 + $0x118] sm:$0xff]
    %v2356 = vld [vmem:[#allocation3 + $0x120] sm:$0xff]
    %v2357 = vld [vmem:[#allocation3 + $0x128] sm:$0xff]
    %v2358 = vld [vmem:[#allocation3 + $0x130] sm:$0xff]
    %v2359 = vld [vmem:[#allocation3 + $0x138] sm:$0xff]
    %v2360 = vld [vmem:[#allocation3 + $0x140] sm:$0xff]
    %v2361 = vld [vmem:[#allocation3 + $0x148] sm:$0xff]
    %v2362 = vld [vmem:[#allocation3 + $0x150] sm:$0xff]
    %v2363 = vld [vmem:[#allocation3 + $0x158] sm:$0xff]
    %v2364 = vld [vmem:[#allocation3 + $0x160] sm:$0xff]
    %v2365 = vld [vmem:[#allocation3 + $0x168] sm:$0xff]
    %v2366 = vld [vmem:[#allocation3 + $0x170] sm:$0xff]
    %v2367 = vld [vmem:[#allocation3 + $0x178] sm:$0xff]
    %v2416 = vunpack.c.l.b16 %v2320
    %v2417 = vunpack.c.h.b16 %v2320
    %v2418 = vunpack.c.l.b16 %v2321
    %v2419 = vunpack.c.h.b16 %v2321
    %v2420 = vunpack.c.l.b16 %v2322
    %v2421 = vunpack.c.h.b16 %v2322
    %v2422 = vunpack.c.l.b16 %v2323
    %v2423 = vunpack.c.h.b16 %v2323
    %v2424 = vunpack.c.l.b16 %v2324
    %v2425 = vunpack.c.h.b16 %v2324
    %v2426 = vunpack.c.l.b16 %v2325
    %v2427 = vunpack.c.h.b16 %v2325
    %v2428 = vunpack.c.l.b16 %v2326
    %v2429 = vunpack.c.h.b16 %v2326
    %v2430 = vunpack.c.l.b16 %v2327
    %v2431 = vunpack.c.h.b16 %v2327
    %v2432 = vunpack.c.l.b16 %v2328
    %v2433 = vunpack.c.h.b16 %v2328
    %v2434 = vunpack.c.l.b16 %v2329
    %v2435 = vunpack.c.h.b16 %v2329
    %v2436 = vunpack.c.l.b16 %v2330
    %v2437 = vunpack.c.h.b16 %v2330
    %v2438 = vunpack.c.l.b16 %v2331
    %v2439 = vunpack.c.h.b16 %v2331
    %v2440 = vunpack.c.l.b16 %v2332
    %v2441 = vunpack.c.h.b16 %v2332
    %v2442 = vunpack.c.l.b16 %v2333
    %v2443 = vunpack.c.h.b16 %v2333
    %v2444 = vunpack.c.l.b16 %v2334
    %v2445 = vunpack.c.h.b16 %v2334
    %v2446 = vunpack.c.l.b16 %v2335
    %v2447 = vunpack.c.h.b16 %v2335
    %v2448 = vunpack.c.l.b16 %v2336
    %v2449 = vunpack.c.h.b16 %v2336
    %v2450 = vunpack.c.l.b16 %v2337
    %v2451 = vunpack.c.h.b16 %v2337
    %v2452 = vunpack.c.l.b16 %v2338
    %v2453 = vunpack.c.h.b16 %v2338
    %v2454 = vunpack.c.l.b16 %v2339
    %v2455 = vunpack.c.h.b16 %v2339
    %v2456 = vunpack.c.l.b16 %v2340
    %v2457 = vunpack.c.h.b16 %v2340
    %v2458 = vunpack.c.l.b16 %v2341
    %v2459 = vunpack.c.h.b16 %v2341
    %v2460 = vunpack.c.l.b16 %v2342
    %v2461 = vunpack.c.h.b16 %v2342
    %v2462 = vunpack.c.l.b16 %v2343
    %v2463 = vunpack.c.h.b16 %v2343
    %v2464 = vunpack.c.l.b16 %v2344
    %v2465 = vunpack.c.h.b16 %v2344
    %v2466 = vunpack.c.l.b16 %v2345
    %v2467 = vunpack.c.h.b16 %v2345
    %v2468 = vunpack.c.l.b16 %v2346
    %v2469 = vunpack.c.h.b16 %v2346
    %v2470 = vunpack.c.l.b16 %v2347
    %v2471 = vunpack.c.h.b16 %v2347
    %v2472 = vunpack.c.l.b16 %v2348
    %v2473 = vunpack.c.h.b16 %v2348
    %v2474 = vunpack.c.l.b16 %v2349
    %v2475 = vunpack.c.h.b16 %v2349
    %v2476 = vunpack.c.l.b16 %v2350
    %v2477 = vunpack.c.h.b16 %v2350
    %v2478 = vunpack.c.l.b16 %v2351
    %v2479 = vunpack.c.h.b16 %v2351
    %v2480 = vunpack.c.l.b16 %v2352
    %v2481 = vunpack.c.h.b16 %v2352
    %v2482 = vunpack.c.l.b16 %v2353
    %v2483 = vunpack.c.h.b16 %v2353
    %v2484 = vunpack.c.l.b16 %v2354
    %v2485 = vunpack.c.h.b16 %v2354
    %v2486 = vunpack.c.l.b16 %v2355
    %v2487 = vunpack.c.h.b16 %v2355
    %v2488 = vunpack.c.l.b16 %v2356
    %v2489 = vunpack.c.h.b16 %v2356
    %v2490 = vunpack.c.l.b16 %v2357
    %v2491 = vunpack.c.h.b16 %v2357
    %v2492 = vunpack.c.l.b16 %v2358
    %v2493 = vunpack.c.h.b16 %v2358
    %v2494 = vunpack.c.l.b16 %v2359
    %v2495 = vunpack.c.h.b16 %v2359
    %v2496 = vunpack.c.l.b16 %v2360
    %v2497 = vunpack.c.h.b16 %v2360
    %v2498 = vunpack.c.l.b16 %v2361
    %v2499 = vunpack.c.h.b16 %v2361
    %v2500 = vunpack.c.l.b16 %v2362
    %v2501 = vunpack.c.h.b16 %v2362
    %v2502 = vunpack.c.l.b16 %v2363
    %v2503 = vunpack.c.h.b16 %v2363
    %v2504 = vunpack.c.l.b16 %v2364
    %v2505 = vunpack.c.h.b16 %v2364
    %v2506 = vunpack.c.l.b16 %v2365
    %v2507 = vunpack.c.h.b16 %v2365
    %v2508 = vunpack.c.l.b16 %v2366
    %v2509 = vunpack.c.h.b16 %v2366
    %v2510 = vunpack.c.l.b16 %v2367
    %v2511 = vunpack.c.h.b16 %v2367
    %v2512 = vpack.c.b16 %v2418, %v2416
    %v2513 = vpack.c.b16 %v2419, %v2417
    %v2514 = vpack.c.b16 %v2422, %v2420
    %v2515 = vpack.c.b16 %v2423, %v2421
    %v2516 = vpack.c.b16 %v2426, %v2424
    %v2517 = vpack.c.b16 %v2427, %v2425
    %v2518 = vpack.c.b16 %v2430, %v2428
    %v2519 = vpack.c.b16 %v2431, %v2429
    %v2520 = vpack.c.b16 %v2434, %v2432
    %v2521 = vpack.c.b16 %v2435, %v2433
    %v2522 = vpack.c.b16 %v2438, %v2436
    %v2523 = vpack.c.b16 %v2439, %v2437
    %v2524 = vpack.c.b16 %v2442, %v2440
    %v2525 = vpack.c.b16 %v2443, %v2441
    %v2526 = vpack.c.b16 %v2446, %v2444
    %v2527 = vpack.c.b16 %v2447, %v2445
    %v2528 = vpack.c.b16 %v2450, %v2448
    %v2529 = vpack.c.b16 %v2451, %v2449
    %v2530 = vpack.c.b16 %v2454, %v2452
    %v2531 = vpack.c.b16 %v2455, %v2453
    %v2532 = vpack.c.b16 %v2458, %v2456
    %v2533 = vpack.c.b16 %v2459, %v2457
    %v2534 = vpack.c.b16 %v2462, %v2460
    %v2535 = vpack.c.b16 %v2463, %v2461
    %v2536 = vpack.c.b16 %v2466, %v2464
    %v2537 = vpack.c.b16 %v2467, %v2465
    %v2538 = vpack.c.b16 %v2470, %v2468
    %v2539 = vpack.c.b16 %v2471, %v2469
    %v2540 = vpack.c.b16 %v2474, %v2472
    %v2541 = vpack.c.b16 %v2475, %v2473
    %v2542 = vpack.c.b16 %v2478, %v2476
    %v2543 = vpack.c.b16 %v2479, %v2477
    %v2544 = vpack.c.b16 %v2482, %v2480
    %v2545 = vpack.c.b16 %v2483, %v2481
    %v2546 = vpack.c.b16 %v2486, %v2484
    %v2547 = vpack.c.b16 %v2487, %v2485
    %v2548 = vpack.c.b16 %v2490, %v2488
    %v2549 = vpack.c.b16 %v2491, %v2489
    %v2550 = vpack.c.b16 %v2494, %v2492
    %v2551 = vpack.c.b16 %v2495, %v2493
    %v2552 = vpack.c.b16 %v2498, %v2496
    %v2553 = vpack.c.b16 %v2499, %v2497
    %v2554 = vpack.c.b16 %v2502, %v2500
    %v2555 = vpack.c.b16 %v2503, %v2501
    %v2556 = vpack.c.b16 %v2506, %v2504
    %v2557 = vpack.c.b16 %v2507, %v2505
    %v2558 = vpack.c.b16 %v2510, %v2508
    %v2559 = vpack.c.b16 %v2511, %v2509
    %2608 = vmatpush.bf16.msra.mxu0 %v2526
    %2609 = vmatpush.bf16.msra.mxu0 %v2524
    %2610 = vmatpush.bf16.msra.mxu0 %v2522
    %2611 = vmatpush.bf16.msra.mxu0 %v2520
    %2612 = vmatpush.bf16.msra.mxu0 %v2518
    %2613 = vmatpush.bf16.msra.mxu0 %v2516
    %2614 = vmatpush.bf16.msra.mxu0 %v2514
    %2615 = vmatpush.bf16.msra.mxu0 %v2512
    %2616 = vmatmul.bf16.gmra.mxu0 %v2224
    %v2617 = vpop.f32.mrf.mxu0
    %v2618 = vadd.f32 0.0, %v2617
    %v2619 = vpop.f32.mrf.mxu0
    %v2620 = vadd.f32 0.0, %v2619
    %2621 = vmatmul.bf16.gmra.mxu0 %v2225
    %v2622 = vpop.f32.mrf.mxu0
    %v2623 = vadd.f32 0.0, %v2622
    %v2624 = vpop.f32.mrf.mxu0
    %v2625 = vadd.f32 0.0, %v2624
    %2626 = vmatmul.bf16.gmra.mxu0 %v2226
    %v2627 = vpop.f32.mrf.mxu0
    %v2628 = vadd.f32 0.0, %v2627
    %v2629 = vpop.f32.mrf.mxu0
    %v2630 = vadd.f32 0.0, %v2629
    %2631 = vmatmul.bf16.gmra.mxu0 %v2227
    %v2632 = vpop.f32.mrf.mxu0
    %v2633 = vadd.f32 0.0, %v2632
    %v2634 = vpop.f32.mrf.mxu0
    %v2635 = vadd.f32 0.0, %v2634
    %2636 = vmatmul.bf16.gmra.mxu0 %v2228
    %v2637 = vpop.f32.mrf.mxu0
    %v2638 = vadd.f32 0.0, %v2637
    %v2639 = vpop.f32.mrf.mxu0
    %v2640 = vadd.f32 0.0, %v2639
    %2641 = vmatmul.bf16.gmra.mxu0 %v2229
    %v2642 = vpop.f32.mrf.mxu0
    %v2643 = vadd.f32 0.0, %v2642
    %v2644 = vpop.f32.mrf.mxu0
    %v2645 = vadd.f32 0.0, %v2644
    %2646 = vmatmul.bf16.gmra.mxu0 %v2230
    %v2647 = vpop.f32.mrf.mxu0
    %v2648 = vadd.f32 0.0, %v2647
    %v2649 = vpop.f32.mrf.mxu0
    %v2650 = vadd.f32 0.0, %v2649
    %2651 = vmatmul.bf16.gmra.mxu0 %v2231
    %v2652 = vpop.f32.mrf.mxu0
    %v2653 = vadd.f32 0.0, %v2652
    %v2654 = vpop.f32.mrf.mxu0
    %v2655 = vadd.f32 0.0, %v2654
    %2656 = vmatmul.bf16.gmra.mxu0 %v2232
    %v2657 = vpop.f32.mrf.mxu0
    %v2658 = vadd.f32 0.0, %v2657
    %v2659 = vpop.f32.mrf.mxu0
    %v2660 = vadd.f32 0.0, %v2659
    %2661 = vmatmul.bf16.gmra.mxu0 %v2233
    %v2662 = vpop.f32.mrf.mxu0
    %v2663 = vadd.f32 0.0, %v2662
    %v2664 = vpop.f32.mrf.mxu0
    %v2665 = vadd.f32 0.0, %v2664
    %2666 = vmatmul.bf16.gmra.mxu0 %v2234
    %v2667 = vpop.f32.mrf.mxu0
    %v2668 = vadd.f32 0.0, %v2667
    %v2669 = vpop.f32.mrf.mxu0
    %v2670 = vadd.f32 0.0, %v2669
    %2671 = vmatmul.bf16.gmra.mxu0 %v2235
    %v2672 = vpop.f32.mrf.mxu0
    %v2673 = vadd.f32 0.0, %v2672
    %v2674 = vpop.f32.mrf.mxu0
    %v2675 = vadd.f32 0.0, %v2674
    %2676 = vmatmul.bf16.gmra.mxu0 %v2236
    %v2677 = vpop.f32.mrf.mxu0
    %v2678 = vadd.f32 0.0, %v2677
    %v2679 = vpop.f32.mrf.mxu0
    %v2680 = vadd.f32 0.0, %v2679
    %2681 = vmatmul.bf16.gmra.mxu0 %v2237
    %v2682 = vpop.f32.mrf.mxu0
    %v2683 = vadd.f32 0.0, %v2682
    %v2684 = vpop.f32.mrf.mxu0
    %v2685 = vadd.f32 0.0, %v2684
    %2686 = vmatmul.bf16.gmra.mxu0 %v2238
    %v2687 = vpop.f32.mrf.mxu0
    %v2688 = vadd.f32 0.0, %v2687
    %v2689 = vpop.f32.mrf.mxu0
    %v2690 = vadd.f32 0.0, %v2689
    %2691 = vmatmul.bf16.gmra.mxu0 %v2239
    %v2692 = vpop.f32.mrf.mxu0
    %v2693 = vadd.f32 0.0, %v2692
    %v2694 = vpop.f32.mrf.mxu0
    %v2695 = vadd.f32 0.0, %v2694
    %2696 = vdwg.mxu0
    %2697 = vmatpush.bf16.msra.mxu0 %v2542
    %2698 = vmatpush.bf16.msra.mxu0 %v2540
    %2699 = vmatpush.bf16.msra.mxu0 %v2538
    %2700 = vmatpush.bf16.msra.mxu0 %v2536
    %2701 = vmatpush.bf16.msra.mxu0 %v2534
    %2702 = vmatpush.bf16.msra.mxu0 %v2532
    %2703 = vmatpush.bf16.msra.mxu0 %v2530
    %2704 = vmatpush.bf16.msra.mxu0 %v2528
    %2705 = vmatmul.bf16.gmra.mxu0 %v2080
    %v2706 = vpop.f32.mrf.mxu0
    %v2707 = vadd.f32 %v2618, %v2706
    %v2708 = vpop.f32.mrf.mxu0
    %v2709 = vadd.f32 %v2620, %v2708
    %2710 = vmatmul.bf16.gmra.mxu0 %v2081
    %v2711 = vpop.f32.mrf.mxu0
    %v2712 = vadd.f32 %v2623, %v2711
    %v2713 = vpop.f32.mrf.mxu0
    %v2714 = vadd.f32 %v2625, %v2713
    %2715 = vmatmul.bf16.gmra.mxu0 %v2082
    %v2716 = vpop.f32.mrf.mxu0
    %v2717 = vadd.f32 %v2628, %v2716
    %v2718 = vpop.f32.mrf.mxu0
    %v2719 = vadd.f32 %v2630, %v2718
    %2720 = vmatmul.bf16.gmra.mxu0 %v2083
    %v2721 = vpop.f32.mrf.mxu0
    %v2722 = vadd.f32 %v2633, %v2721
    %v2723 = vpop.f32.mrf.mxu0
    %v2724 = vadd.f32 %v2635, %v2723
    %2725 = vmatmul.bf16.gmra.mxu0 %v2084
    %v2726 = vpop.f32.mrf.mxu0
    %v2727 = vadd.f32 %v2638, %v2726
    %v2728 = vpop.f32.mrf.mxu0
    %v2729 = vadd.f32 %v2640, %v2728
    %2730 = vmatmul.bf16.gmra.mxu0 %v2085
    %v2731 = vpop.f32.mrf.mxu0
    %v2732 = vadd.f32 %v2643, %v2731
    %v2733 = vpop.f32.mrf.mxu0
    %v2734 = vadd.f32 %v2645, %v2733
    %2735 = vmatmul.bf16.gmra.mxu0 %v2086
    %v2736 = vpop.f32.mrf.mxu0
    %v2737 = vadd.f32 %v2648, %v2736
    %v2738 = vpop.f32.mrf.mxu0
    %v2739 = vadd.f32 %v2650, %v2738
    %2740 = vmatmul.bf16.gmra.mxu0 %v2087
    %v2741 = vpop.f32.mrf.mxu0
    %v2742 = vadd.f32 %v2653, %v2741
    %v2743 = vpop.f32.mrf.mxu0
    %v2744 = vadd.f32 %v2655, %v2743
    %2745 = vmatmul.bf16.gmra.mxu0 %v2088
    %v2746 = vpop.f32.mrf.mxu0
    %v2747 = vadd.f32 %v2658, %v2746
    %v2748 = vpop.f32.mrf.mxu0
    %v2749 = vadd.f32 %v2660, %v2748
    %2750 = vmatmul.bf16.gmra.mxu0 %v2089
    %v2751 = vpop.f32.mrf.mxu0
    %v2752 = vadd.f32 %v2663, %v2751
    %v2753 = vpop.f32.mrf.mxu0
    %v2754 = vadd.f32 %v2665, %v2753
    %2755 = vmatmul.bf16.gmra.mxu0 %v2090
    %v2756 = vpop.f32.mrf.mxu0
    %v2757 = vadd.f32 %v2668, %v2756
    %v2758 = vpop.f32.mrf.mxu0
    %v2759 = vadd.f32 %v2670, %v2758
    %2760 = vmatmul.bf16.gmra.mxu0 %v2091
    %v2761 = vpop.f32.mrf.mxu0
    %v2762 = vadd.f32 %v2673, %v2761
    %v2763 = vpop.f32.mrf.mxu0
    %v2764 = vadd.f32 %v2675, %v2763
    %2765 = vmatmul.bf16.gmra.mxu0 %v2092
    %v2766 = vpop.f32.mrf.mxu0
    %v2767 = vadd.f32 %v2678, %v2766
    %v2768 = vpop.f32.mrf.mxu0
    %v2769 = vadd.f32 %v2680, %v2768
    %2770 = vmatmul.bf16.gmra.mxu0 %v2093
    %v2771 = vpop.f32.mrf.mxu0
    %v2772 = vadd.f32 %v2683, %v2771
    %v2773 = vpop.f32.mrf.mxu0
    %v2774 = vadd.f32 %v2685, %v2773
    %2775 = vmatmul.bf16.gmra.mxu0 %v2094
    %v2776 = vpop.f32.mrf.mxu0
    %v2777 = vadd.f32 %v2688, %v2776
    %v2778 = vpop.f32.mrf.mxu0
    %v2779 = vadd.f32 %v2690, %v2778
    %2780 = vmatmul.bf16.gmra.mxu0 %v2095
    %v2781 = vpop.f32.mrf.mxu0
    %v2782 = vadd.f32 %v2693, %v2781
    %v2783 = vpop.f32.mrf.mxu0
    %v2784 = vadd.f32 %v2695, %v2783
    %2785 = vdwg.mxu0
    %2786 = vmatpush.bf16.msra.mxu0 %v2558
    %2787 = vmatpush.bf16.msra.mxu0 %v2556
    %2788 = vmatpush.bf16.msra.mxu0 %v2554
    %2789 = vmatpush.bf16.msra.mxu0 %v2552
    %2790 = vmatpush.bf16.msra.mxu0 %v2550
    %2791 = vmatpush.bf16.msra.mxu0 %v2548
    %2792 = vmatpush.bf16.msra.mxu0 %v2546
    %2793 = vmatpush.bf16.msra.mxu0 %v2544
    %2794 = vmatmul.bf16.gmra.mxu0 %v2288
    %v2795 = vpop.f32.mrf.mxu0
    %v2796 = vadd.f32 %v2707, %v2795
    %v2797 = vpop.f32.mrf.mxu0
    %v2798 = vadd.f32 %v2709, %v2797
    %2799 = vmatmul.bf16.gmra.mxu0 %v2289
    %v2800 = vpop.f32.mrf.mxu0
    %v2801 = vadd.f32 %v2712, %v2800
    %v2802 = vpop.f32.mrf.mxu0
    %v2803 = vadd.f32 %v2714, %v2802
    %2804 = vmatmul.bf16.gmra.mxu0 %v2290
    %v2805 = vpop.f32.mrf.mxu0
    %v2806 = vadd.f32 %v2717, %v2805
    %v2807 = vpop.f32.mrf.mxu0
    %v2808 = vadd.f32 %v2719, %v2807
    %2809 = vmatmul.bf16.gmra.mxu0 %v2291
    %v2810 = vpop.f32.mrf.mxu0
    %v2811 = vadd.f32 %v2722, %v2810
    %v2812 = vpop.f32.mrf.mxu0
    %v2813 = vadd.f32 %v2724, %v2812
    %2814 = vmatmul.bf16.gmra.mxu0 %v2292
    %v2815 = vpop.f32.mrf.mxu0
    %v2816 = vadd.f32 %v2727, %v2815
    %v2817 = vpop.f32.mrf.mxu0
    %v2818 = vadd.f32 %v2729, %v2817
    %2819 = vmatmul.bf16.gmra.mxu0 %v2293
    %v2820 = vpop.f32.mrf.mxu0
    %v2821 = vadd.f32 %v2732, %v2820
    %v2822 = vpop.f32.mrf.mxu0
    %v2823 = vadd.f32 %v2734, %v2822
    %2824 = vmatmul.bf16.gmra.mxu0 %v2294
    %v2825 = vpop.f32.mrf.mxu0
    %v2826 = vadd.f32 %v2737, %v2825
    %v2827 = vpop.f32.mrf.mxu0
    %v2828 = vadd.f32 %v2739, %v2827
    %2829 = vmatmul.bf16.gmra.mxu0 %v2295
    %v2830 = vpop.f32.mrf.mxu0
    %v2831 = vadd.f32 %v2742, %v2830
    %v2832 = vpop.f32.mrf.mxu0
    %v2833 = vadd.f32 %v2744, %v2832
    %2834 = vmatmul.bf16.gmra.mxu0 %v2296
    %v2835 = vpop.f32.mrf.mxu0
    %v2836 = vadd.f32 %v2747, %v2835
    %v2837 = vpop.f32.mrf.mxu0
    %v2838 = vadd.f32 %v2749, %v2837
    %2839 = vmatmul.bf16.gmra.mxu0 %v2297
    %v2840 = vpop.f32.mrf.mxu0
    %v2841 = vadd.f32 %v2752, %v2840
    %v2842 = vpop.f32.mrf.mxu0
    %v2843 = vadd.f32 %v2754, %v2842
    %2844 = vmatmul.bf16.gmra.mxu0 %v2298
    %v2845 = vpop.f32.mrf.mxu0
    %v2846 = vadd.f32 %v2757, %v2845
    %v2847 = vpop.f32.mrf.mxu0
    %v2848 = vadd.f32 %v2759, %v2847
    %2849 = vmatmul.bf16.gmra.mxu0 %v2299
    %v2850 = vpop.f32.mrf.mxu0
    %v2851 = vadd.f32 %v2762, %v2850
    %v2852 = vpop.f32.mrf.mxu0
    %v2853 = vadd.f32 %v2764, %v2852
    %2854 = vmatmul.bf16.gmra.mxu0 %v2300
    %v2855 = vpop.f32.mrf.mxu0
    %v2856 = vadd.f32 %v2767, %v2855
    %v2857 = vpop.f32.mrf.mxu0
    %v2858 = vadd.f32 %v2769, %v2857
    %2859 = vmatmul.bf16.gmra.mxu0 %v2301
    %v2860 = vpop.f32.mrf.mxu0
    %v2861 = vadd.f32 %v2772, %v2860
    %v2862 = vpop.f32.mrf.mxu0
    %v2863 = vadd.f32 %v2774, %v2862
    %2864 = vmatmul.bf16.gmra.mxu0 %v2302
    %v2865 = vpop.f32.mrf.mxu0
    %v2866 = vadd.f32 %v2777, %v2865
    %v2867 = vpop.f32.mrf.mxu0
    %v2868 = vadd.f32 %v2779, %v2867
    %2869 = vmatmul.bf16.gmra.mxu0 %v2303
    %v2870 = vpop.f32.mrf.mxu0
    %v2871 = vadd.f32 %v2782, %v2870
    %v2872 = vpop.f32.mrf.mxu0
    %v2873 = vadd.f32 %v2784, %v2872
    %2874 = vdwg.mxu0
    %2875 = vmatpush.bf16.msra.mxu0 %v2527
    %2876 = vmatpush.bf16.msra.mxu0 %v2525
    %2877 = vmatpush.bf16.msra.mxu0 %v2523
    %2878 = vmatpush.bf16.msra.mxu0 %v2521
    %2879 = vmatpush.bf16.msra.mxu0 %v2519
    %2880 = vmatpush.bf16.msra.mxu0 %v2517
    %2881 = vmatpush.bf16.msra.mxu0 %v2515
    %2882 = vmatpush.bf16.msra.mxu0 %v2513
    %2883 = vmatmul.bf16.gmra.mxu0 %v2224
    %v2884 = vpop.f32.mrf.mxu0
    %v2885 = vadd.f32 0.0, %v2884
    %v2886 = vpop.f32.mrf.mxu0
    %v2887 = vadd.f32 0.0, %v2886
    %2888 = vmatmul.bf16.gmra.mxu0 %v2225
    %v2889 = vpop.f32.mrf.mxu0
    %v2890 = vadd.f32 0.0, %v2889
    %v2891 = vpop.f32.mrf.mxu0
    %v2892 = vadd.f32 0.0, %v2891
    %2893 = vmatmul.bf16.gmra.mxu0 %v2226
    %v2894 = vpop.f32.mrf.mxu0
    %v2895 = vadd.f32 0.0, %v2894
    %v2896 = vpop.f32.mrf.mxu0
    %v2897 = vadd.f32 0.0, %v2896
    %2898 = vmatmul.bf16.gmra.mxu0 %v2227
    %v2899 = vpop.f32.mrf.mxu0
    %v2900 = vadd.f32 0.0, %v2899
    %v2901 = vpop.f32.mrf.mxu0
    %v2902 = vadd.f32 0.0, %v2901
    %2903 = vmatmul.bf16.gmra.mxu0 %v2228
    %v2904 = vpop.f32.mrf.mxu0
    %v2905 = vadd.f32 0.0, %v2904
    %v2906 = vpop.f32.mrf.mxu0
    %v2907 = vadd.f32 0.0, %v2906
    %2908 = vmatmul.bf16.gmra.mxu0 %v2229
    %v2909 = vpop.f32.mrf.mxu0
    %v2910 = vadd.f32 0.0, %v2909
    %v2911 = vpop.f32.mrf.mxu0
    %v2912 = vadd.f32 0.0, %v2911
    %2913 = vmatmul.bf16.gmra.mxu0 %v2230
    %v2914 = vpop.f32.mrf.mxu0
    %v2915 = vadd.f32 0.0, %v2914
    %v2916 = vpop.f32.mrf.mxu0
    %v2917 = vadd.f32 0.0, %v2916
    %2918 = vmatmul.bf16.gmra.mxu0 %v2231
    %v2919 = vpop.f32.mrf.mxu0
    %v2920 = vadd.f32 0.0, %v2919
    %v2921 = vpop.f32.mrf.mxu0
    %v2922 = vadd.f32 0.0, %v2921
    %2923 = vmatmul.bf16.gmra.mxu0 %v2232
    %v2924 = vpop.f32.mrf.mxu0
    %v2925 = vadd.f32 0.0, %v2924
    %v2926 = vpop.f32.mrf.mxu0
    %v2927 = vadd.f32 0.0, %v2926
    %2928 = vmatmul.bf16.gmra.mxu0 %v2233
    %v2929 = vpop.f32.mrf.mxu0
    %v2930 = vadd.f32 0.0, %v2929
    %v2931 = vpop.f32.mrf.mxu0
    %v2932 = vadd.f32 0.0, %v2931
    %2933 = vmatmul.bf16.gmra.mxu0 %v2234
    %v2934 = vpop.f32.mrf.mxu0
    %v2935 = vadd.f32 0.0, %v2934
    %v2936 = vpop.f32.mrf.mxu0
    %v2937 = vadd.f32 0.0, %v2936
    %2938 = vmatmul.bf16.gmra.mxu0 %v2235
    %v2939 = vpop.f32.mrf.mxu0
    %v2940 = vadd.f32 0.0, %v2939
    %v2941 = vpop.f32.mrf.mxu0
    %v2942 = vadd.f32 0.0, %v2941
    %2943 = vmatmul.bf16.gmra.mxu0 %v2236
    %v2944 = vpop.f32.mrf.mxu0
    %v2945 = vadd.f32 0.0, %v2944
    %v2946 = vpop.f32.mrf.mxu0
    %v2947 = vadd.f32 0.0, %v2946
    %2948 = vmatmul.bf16.gmra.mxu0 %v2237
    %v2949 = vpop.f32.mrf.mxu0
    %v2950 = vadd.f32 0.0, %v2949
    %v2951 = vpop.f32.mrf.mxu0
    %v2952 = vadd.f32 0.0, %v2951
    %2953 = vmatmul.bf16.gmra.mxu0 %v2238
    %v2954 = vpop.f32.mrf.mxu0
    %v2955 = vadd.f32 0.0, %v2954
    %v2956 = vpop.f32.mrf.mxu0
    %v2957 = vadd.f32 0.0, %v2956
    %2958 = vmatmul.bf16.gmra.mxu0 %v2239
    %v2959 = vpop.f32.mrf.mxu0
    %v2960 = vadd.f32 0.0, %v2959
    %v2961 = vpop.f32.mrf.mxu0
    %v2962 = vadd.f32 0.0, %v2961
    %2963 = vdwg.mxu0
    %2964 = vmatpush.bf16.msra.mxu0 %v2543
    %2965 = vmatpush.bf16.msra.mxu0 %v2541
    %2966 = vmatpush.bf16.msra.mxu0 %v2539
    %2967 = vmatpush.bf16.msra.mxu0 %v2537
    %2968 = vmatpush.bf16.msra.mxu0 %v2535
    %2969 = vmatpush.bf16.msra.mxu0 %v2533
    %2970 = vmatpush.bf16.msra.mxu0 %v2531
    %2971 = vmatpush.bf16.msra.mxu0 %v2529
    %2972 = vmatmul.bf16.gmra.mxu0 %v2080
    %v2973 = vpop.f32.mrf.mxu0
    %v2974 = vadd.f32 %v2885, %v2973
    %v2975 = vpop.f32.mrf.mxu0
    %v2976 = vadd.f32 %v2887, %v2975
    %2977 = vmatmul.bf16.gmra.mxu0 %v2081
    %v2978 = vpop.f32.mrf.mxu0
    %v2979 = vadd.f32 %v2890, %v2978
    %v2980 = vpop.f32.mrf.mxu0
    %v2981 = vadd.f32 %v2892, %v2980
    %2982 = vmatmul.bf16.gmra.mxu0 %v2082
    %v2983 = vpop.f32.mrf.mxu0
    %v2984 = vadd.f32 %v2895, %v2983
    %v2985 = vpop.f32.mrf.mxu0
    %v2986 = vadd.f32 %v2897, %v2985
    %2987 = vmatmul.bf16.gmra.mxu0 %v2083
    %v2988 = vpop.f32.mrf.mxu0
    %v2989 = vadd.f32 %v2900, %v2988
    %v2990 = vpop.f32.mrf.mxu0
    %v2991 = vadd.f32 %v2902, %v2990
    %2992 = vmatmul.bf16.gmra.mxu0 %v2084
    %v2993 = vpop.f32.mrf.mxu0
    %v2994 = vadd.f32 %v2905, %v2993
    %v2995 = vpop.f32.mrf.mxu0
    %v2996 = vadd.f32 %v2907, %v2995
    %2997 = vmatmul.bf16.gmra.mxu0 %v2085
    %v2998 = vpop.f32.mrf.mxu0
    %v2999 = vadd.f32 %v2910, %v2998
    %v3000 = vpop.f32.mrf.mxu0
    %v3001 = vadd.f32 %v2912, %v3000
    %3002 = vmatmul.bf16.gmra.mxu0 %v2086
    %v3003 = vpop.f32.mrf.mxu0
    %v3004 = vadd.f32 %v2915, %v3003
    %v3005 = vpop.f32.mrf.mxu0
    %v3006 = vadd.f32 %v2917, %v3005
    %3007 = vmatmul.bf16.gmra.mxu0 %v2087
    %v3008 = vpop.f32.mrf.mxu0
    %v3009 = vadd.f32 %v2920, %v3008
    %v3010 = vpop.f32.mrf.mxu0
    %v3011 = vadd.f32 %v2922, %v3010
    %3012 = vmatmul.bf16.gmra.mxu0 %v2088
    %v3013 = vpop.f32.mrf.mxu0
    %v3014 = vadd.f32 %v2925, %v3013
    %v3015 = vpop.f32.mrf.mxu0
    %v3016 = vadd.f32 %v2927, %v3015
    %3017 = vmatmul.bf16.gmra.mxu0 %v2089
    %v3018 = vpop.f32.mrf.mxu0
    %v3019 = vadd.f32 %v2930, %v3018
    %v3020 = vpop.f32.mrf.mxu0
    %v3021 = vadd.f32 %v2932, %v3020
    %3022 = vmatmul.bf16.gmra.mxu0 %v2090
    %v3023 = vpop.f32.mrf.mxu0
    %v3024 = vadd.f32 %v2935, %v3023
    %v3025 = vpop.f32.mrf.mxu0
    %v3026 = vadd.f32 %v2937, %v3025
    %3027 = vmatmul.bf16.gmra.mxu0 %v2091
    %v3028 = vpop.f32.mrf.mxu0
    %v3029 = vadd.f32 %v2940, %v3028
    %v3030 = vpop.f32.mrf.mxu0
    %v3031 = vadd.f32 %v2942, %v3030
    %3032 = vmatmul.bf16.gmra.mxu0 %v2092
    %v3033 = vpop.f32.mrf.mxu0
    %v3034 = vadd.f32 %v2945, %v3033
    %v3035 = vpop.f32.mrf.mxu0
    %v3036 = vadd.f32 %v2947, %v3035
    %3037 = vmatmul.bf16.gmra.mxu0 %v2093
    %v3038 = vpop.f32.mrf.mxu0
    %v3039 = vadd.f32 %v2950, %v3038
    %v3040 = vpop.f32.mrf.mxu0
    %v3041 = vadd.f32 %v2952, %v3040
    %3042 = vmatmul.bf16.gmra.mxu0 %v2094
    %v3043 = vpop.f32.mrf.mxu0
    %v3044 = vadd.f32 %v2955, %v3043
    %v3045 = vpop.f32.mrf.mxu0
    %v3046 = vadd.f32 %v2957, %v3045
    %3047 = vmatmul.bf16.gmra.mxu0 %v2095
    %v3048 = vpop.f32.mrf.mxu0
    %v3049 = vadd.f32 %v2960, %v3048
    %v3050 = vpop.f32.mrf.mxu0
    %v3051 = vadd.f32 %v2962, %v3050
    %3052 = vdwg.mxu0
    %3053 = vmatpush.bf16.msra.mxu0 %v2559
    %3054 = vmatpush.bf16.msra.mxu0 %v2557
    %3055 = vmatpush.bf16.msra.mxu0 %v2555
    %3056 = vmatpush.bf16.msra.mxu0 %v2553
    %3057 = vmatpush.bf16.msra.mxu0 %v2551
    %3058 = vmatpush.bf16.msra.mxu0 %v2549
    %3059 = vmatpush.bf16.msra.mxu0 %v2547
    %3060 = vmatpush.bf16.msra.mxu0 %v2545
    %3061 = vmatmul.bf16.gmra.mxu0 %v2288
    %v3062 = vpop.f32.mrf.mxu0
    %v3063 = vadd.f32 %v2974, %v3062
    %v3064 = vpop.f32.mrf.mxu0
    %v3065 = vadd.f32 %v2976, %v3064
    %3066 = vmatmul.bf16.gmra.mxu0 %v2289
    %v3067 = vpop.f32.mrf.mxu0
    %v3068 = vadd.f32 %v2979, %v3067
    %v3069 = vpop.f32.mrf.mxu0
    %v3070 = vadd.f32 %v2981, %v3069
    %3071 = vmatmul.bf16.gmra.mxu0 %v2290
    %v3072 = vpop.f32.mrf.mxu0
    %v3073 = vadd.f32 %v2984, %v3072
    %v3074 = vpop.f32.mrf.mxu0
    %v3075 = vadd.f32 %v2986, %v3074
    %3076 = vmatmul.bf16.gmra.mxu0 %v2291
    %v3077 = vpop.f32.mrf.mxu0
    %v3078 = vadd.f32 %v2989, %v3077
    %v3079 = vpop.f32.mrf.mxu0
    %v3080 = vadd.f32 %v2991, %v3079
    %3081 = vmatmul.bf16.gmra.mxu0 %v2292
    %v3082 = vpop.f32.mrf.mxu0
    %v3083 = vadd.f32 %v2994, %v3082
    %v3084 = vpop.f32.mrf.mxu0
    %v3085 = vadd.f32 %v2996, %v3084
    %3086 = vmatmul.bf16.gmra.mxu0 %v2293
    %v3087 = vpop.f32.mrf.mxu0
    %v3088 = vadd.f32 %v2999, %v3087
    %v3089 = vpop.f32.mrf.mxu0
    %v3090 = vadd.f32 %v3001, %v3089
    %3091 = vmatmul.bf16.gmra.mxu0 %v2294
    %v3092 = vpop.f32.mrf.mxu0
    %v3093 = vadd.f32 %v3004, %v3092
    %v3094 = vpop.f32.mrf.mxu0
    %v3095 = vadd.f32 %v3006, %v3094
    %3096 = vmatmul.bf16.gmra.mxu0 %v2295
    %v3097 = vpop.f32.mrf.mxu0
    %v3098 = vadd.f32 %v3009, %v3097
    %v3099 = vpop.f32.mrf.mxu0
    %v3100 = vadd.f32 %v3011, %v3099
    %3101 = vmatmul.bf16.gmra.mxu0 %v2296
    %v3102 = vpop.f32.mrf.mxu0
    %v3103 = vadd.f32 %v3014, %v3102
    %v3104 = vpop.f32.mrf.mxu0
    %v3105 = vadd.f32 %v3016, %v3104
    %3106 = vmatmul.bf16.gmra.mxu0 %v2297
    %v3107 = vpop.f32.mrf.mxu0
    %v3108 = vadd.f32 %v3019, %v3107
    %v3109 = vpop.f32.mrf.mxu0
    %v3110 = vadd.f32 %v3021, %v3109
    %3111 = vmatmul.bf16.gmra.mxu0 %v2298
    %v3112 = vpop.f32.mrf.mxu0
    %v3113 = vadd.f32 %v3024, %v3112
    %v3114 = vpop.f32.mrf.mxu0
    %v3115 = vadd.f32 %v3026, %v3114
    %3116 = vmatmul.bf16.gmra.mxu0 %v2299
    %v3117 = vpop.f32.mrf.mxu0
    %v3118 = vadd.f32 %v3029, %v3117
    %v3119 = vpop.f32.mrf.mxu0
    %v3120 = vadd.f32 %v3031, %v3119
    %3121 = vmatmul.bf16.gmra.mxu0 %v2300
    %v3122 = vpop.f32.mrf.mxu0
    %v3123 = vadd.f32 %v3034, %v3122
    %v3124 = vpop.f32.mrf.mxu0
    %v3125 = vadd.f32 %v3036, %v3124
    %3126 = vmatmul.bf16.gmra.mxu0 %v2301
    %v3127 = vpop.f32.mrf.mxu0
    %v3128 = vadd.f32 %v3039, %v3127
    %v3129 = vpop.f32.mrf.mxu0
    %v3130 = vadd.f32 %v3041, %v3129
    %3131 = vmatmul.bf16.gmra.mxu0 %v2302
    %v3132 = vpop.f32.mrf.mxu0
    %v3133 = vadd.f32 %v3044, %v3132
    %v3134 = vpop.f32.mrf.mxu0
    %v3135 = vadd.f32 %v3046, %v3134
    %3136 = vmatmul.bf16.gmra.mxu0 %v2303
    %v3137 = vpop.f32.mrf.mxu0
    %v3138 = vadd.f32 %v3049, %v3137
    %v3139 = vpop.f32.mrf.mxu0
    %v3140 = vadd.f32 %v3051, %v3139
    %3141 = vdwg.mxu0
    %v3142 = vld [vmem:[%s6] sm:$0x3]
    %v3144 = vperm.slane %v3142, 0
    %v3145 = vperm.slane %v3142, 1
    %v3148 = vadd.f32 %v2796, %v3144
    %v3149 = vadd.f32 %v3063, %v3145
    %v3150 = vadd.f32 %v2798, %v3144
    %v3151 = vadd.f32 %v3065, %v3145
    %v3152 = vadd.f32 %v2801, %v3144
    %v3153 = vadd.f32 %v3068, %v3145
    %v3154 = vadd.f32 %v2803, %v3144
    %v3155 = vadd.f32 %v3070, %v3145
    %v3156 = vadd.f32 %v2806, %v3144
    %v3157 = vadd.f32 %v3073, %v3145
    %v3158 = vadd.f32 %v2808, %v3144
    %v3159 = vadd.f32 %v3075, %v3145
    %v3160 = vadd.f32 %v2811, %v3144
    %v3161 = vadd.f32 %v3078, %v3145
    %v3162 = vadd.f32 %v2813, %v3144
    %v3163 = vadd.f32 %v3080, %v3145
    %v3164 = vadd.f32 %v2816, %v3144
    %v3165 = vadd.f32 %v3083, %v3145
    %v3166 = vadd.f32 %v2818, %v3144
    %v3167 = vadd.f32 %v3085, %v3145
    %v3168 = vadd.f32 %v2821, %v3144
    %v3169 = vadd.f32 %v3088, %v3145
    %v3170 = vadd.f32 %v2823, %v3144
    %v3171 = vadd.f32 %v3090, %v3145
    %v3172 = vadd.f32 %v2826, %v3144
    %v3173 = vadd.f32 %v3093, %v3145
    %v3174 = vadd.f32 %v2828, %v3144
    %v3175 = vadd.f32 %v3095, %v3145
    %v3176 = vadd.f32 %v2831, %v3144
    %v3177 = vadd.f32 %v3098, %v3145
    %v3178 = vadd.f32 %v2833, %v3144
    %v3179 = vadd.f32 %v3100, %v3145
    %v3180 = vadd.f32 %v2836, %v3144
    %v3181 = vadd.f32 %v3103, %v3145
    %v3182 = vadd.f32 %v2838, %v3144
    %v3183 = vadd.f32 %v3105, %v3145
    %v3184 = vadd.f32 %v2841, %v3144
    %v3185 = vadd.f32 %v3108, %v3145
    %v3186 = vadd.f32 %v2843, %v3144
    %v3187 = vadd.f32 %v3110, %v3145
    %v3188 = vadd.f32 %v2846, %v3144
    %v3189 = vadd.f32 %v3113, %v3145
    %v3190 = vadd.f32 %v2848, %v3144
    %v3191 = vadd.f32 %v3115, %v3145
    %v3192 = vadd.f32 %v2851, %v3144
    %v3193 = vadd.f32 %v3118, %v3145
    %v3194 = vadd.f32 %v2853, %v3144
    %v3195 = vadd.f32 %v3120, %v3145
    %v3196 = vadd.f32 %v2856, %v3144
    %v3197 = vadd.f32 %v3123, %v3145
    %v3198 = vadd.f32 %v2858, %v3144
    %v3199 = vadd.f32 %v3125, %v3145
    %v3200 = vadd.f32 %v2861, %v3144
    %v3201 = vadd.f32 %v3128, %v3145
    %v3202 = vadd.f32 %v2863, %v3144
    %v3203 = vadd.f32 %v3130, %v3145
    %v3204 = vadd.f32 %v2866, %v3144
    %v3205 = vadd.f32 %v3133, %v3145
    %v3206 = vadd.f32 %v2868, %v3144
    %v3207 = vadd.f32 %v3135, %v3145
    %v3208 = vadd.f32 %v2871, %v3144
    %v3209 = vadd.f32 %v3138, %v3145
    %v3210 = vadd.f32 %v2873, %v3144
    %v3211 = vadd.f32 %v3140, %v3145
    %vm3212 = vcmp.gt.f32.partialorder %v3148, 0.0
    %vm3213 = vcmp.gt.f32.partialorder %v3149, 0.0
    %vm3214 = vcmp.gt.f32.partialorder %v3150, 0.0
    %vm3215 = vcmp.gt.f32.partialorder %v3151, 0.0
    %vm3216 = vcmp.gt.f32.partialorder %v3152, 0.0
    %vm3217 = vcmp.gt.f32.partialorder %v3153, 0.0
    %vm3218 = vcmp.gt.f32.partialorder %v3154, 0.0
    %vm3219 = vcmp.gt.f32.partialorder %v3155, 0.0
    %vm3220 = vcmp.gt.f32.partialorder %v3156, 0.0
    %vm3221 = vcmp.gt.f32.partialorder %v3157, 0.0
    %vm3222 = vcmp.gt.f32.partialorder %v3158, 0.0
    %vm3223 = vcmp.gt.f32.partialorder %v3159, 0.0
    %vm3224 = vcmp.gt.f32.partialorder %v3160, 0.0
    %vm3225 = vcmp.gt.f32.partialorder %v3161, 0.0
    %vm3226 = vcmp.gt.f32.partialorder %v3162, 0.0
    %vm3227 = vcmp.gt.f32.partialorder %v3163, 0.0
    %vm3228 = vcmp.gt.f32.partialorder %v3164, 0.0
    %vm3229 = vcmp.gt.f32.partialorder %v3165, 0.0
    %vm3230 = vcmp.gt.f32.partialorder %v3166, 0.0
    %vm3231 = vcmp.gt.f32.partialorder %v3167, 0.0
    %vm3232 = vcmp.gt.f32.partialorder %v3168, 0.0
    %vm3233 = vcmp.gt.f32.partialorder %v3169, 0.0
    %vm3234 = vcmp.gt.f32.partialorder %v3170, 0.0
    %vm3235 = vcmp.gt.f32.partialorder %v3171, 0.0
    %vm3236 = vcmp.gt.f32.partialorder %v3172, 0.0
    %vm3237 = vcmp.gt.f32.partialorder %v3173, 0.0
    %vm3238 = vcmp.gt.f32.partialorder %v3174, 0.0
    %vm3239 = vcmp.gt.f32.partialorder %v3175, 0.0
    %vm3240 = vcmp.gt.f32.partialorder %v3176, 0.0
    %vm3241 = vcmp.gt.f32.partialorder %v3177, 0.0
    %vm3242 = vcmp.gt.f32.partialorder %v3178, 0.0
    %vm3243 = vcmp.gt.f32.partialorder %v3179, 0.0
    %vm3244 = vcmp.gt.f32.partialorder %v3180, 0.0
    %vm3245 = vcmp.gt.f32.partialorder %v3181, 0.0
    %vm3246 = vcmp.gt.f32.partialorder %v3182, 0.0
    %vm3247 = vcmp.gt.f32.partialorder %v3183, 0.0
    %vm3248 = vcmp.gt.f32.partialorder %v3184, 0.0
    %vm3249 = vcmp.gt.f32.partialorder %v3185, 0.0
    %vm3250 = vcmp.gt.f32.partialorder %v3186, 0.0
    %vm3251 = vcmp.gt.f32.partialorder %v3187, 0.0
    %vm3252 = vcmp.gt.f32.partialorder %v3188, 0.0
    %vm3253 = vcmp.gt.f32.partialorder %v3189, 0.0
    %vm3254 = vcmp.gt.f32.partialorder %v3190, 0.0
    %vm3255 = vcmp.gt.f32.partialorder %v3191, 0.0
    %vm3256 = vcmp.gt.f32.partialorder %v3192, 0.0
    %vm3257 = vcmp.gt.f32.partialorder %v3193, 0.0
    %vm3258 = vcmp.gt.f32.partialorder %v3194, 0.0
    %vm3259 = vcmp.gt.f32.partialorder %v3195, 0.0
    %vm3260 = vcmp.gt.f32.partialorder %v3196, 0.0
    %vm3261 = vcmp.gt.f32.partialorder %v3197, 0.0
    %vm3262 = vcmp.gt.f32.partialorder %v3198, 0.0
    %vm3263 = vcmp.gt.f32.partialorder %v3199, 0.0
    %vm3264 = vcmp.gt.f32.partialorder %v3200, 0.0
    %vm3265 = vcmp.gt.f32.partialorder %v3201, 0.0
    %vm3266 = vcmp.gt.f32.partialorder %v3202, 0.0
    %vm3267 = vcmp.gt.f32.partialorder %v3203, 0.0
    %vm3268 = vcmp.gt.f32.partialorder %v3204, 0.0
    %vm3269 = vcmp.gt.f32.partialorder %v3205, 0.0
    %vm3270 = vcmp.gt.f32.partialorder %v3206, 0.0
    %vm3271 = vcmp.gt.f32.partialorder %v3207, 0.0
    %vm3272 = vcmp.gt.f32.partialorder %v3208, 0.0
    %vm3273 = vcmp.gt.f32.partialorder %v3209, 0.0
    %vm3274 = vcmp.gt.f32.partialorder %v3210, 0.0
    %vm3275 = vcmp.gt.f32.partialorder %v3211, 0.0
    %v3276 = vmul.f32 %v3148, 0.2
    %v3277 = vmul.f32 %v3149, 0.2
    %v3278 = vmul.f32 %v3150, 0.2
    %v3279 = vmul.f32 %v3151, 0.2
    %v3280 = vmul.f32 %v3152, 0.2
    %v3281 = vmul.f32 %v3153, 0.2
    %v3282 = vmul.f32 %v3154, 0.2
    %v3283 = vmul.f32 %v3155, 0.2
    %v3284 = vmul.f32 %v3156, 0.2
    %v3285 = vmul.f32 %v3157, 0.2
    %v3286 = vmul.f32 %v3158, 0.2
    %v3287 = vmul.f32 %v3159, 0.2
    %v3288 = vmul.f32 %v3160, 0.2
    %v3289 = vmul.f32 %v3161, 0.2
    %v3290 = vmul.f32 %v3162, 0.2
    %v3291 = vmul.f32 %v3163, 0.2
    %v3292 = vmul.f32 %v3164, 0.2
    %v3293 = vmul.f32 %v3165, 0.2
    %v3294 = vmul.f32 %v3166, 0.2
    %v3295 = vmul.f32 %v3167, 0.2
    %v3296 = vmul.f32 %v3168, 0.2
    %v3297 = vmul.f32 %v3169, 0.2
    %v3298 = vmul.f32 %v3170, 0.2
    %v3299 = vmul.f32 %v3171, 0.2
    %v3300 = vmul.f32 %v3172, 0.2
    %v3301 = vmul.f32 %v3173, 0.2
    %v3302 = vmul.f32 %v3174, 0.2
    %v3303 = vmul.f32 %v3175, 0.2
    %v3304 = vmul.f32 %v3176, 0.2
    %v3305 = vmul.f32 %v3177, 0.2
    %v3306 = vmul.f32 %v3178, 0.2
    %v3307 = vmul.f32 %v3179, 0.2
    %v3308 = vmul.f32 %v3180, 0.2
    %v3309 = vmul.f32 %v3181, 0.2
    %v3310 = vmul.f32 %v3182, 0.2
    %v3311 = vmul.f32 %v3183, 0.2
    %v3312 = vmul.f32 %v3184, 0.2
    %v3313 = vmul.f32 %v3185, 0.2
    %v3314 = vmul.f32 %v3186, 0.2
    %v3315 = vmul.f32 %v3187, 0.2
    %v3316 = vmul.f32 %v3188, 0.2
    %v3317 = vmul.f32 %v3189, 0.2
    %v3318 = vmul.f32 %v3190, 0.2
    %v3319 = vmul.f32 %v3191, 0.2
    %v3320 = vmul.f32 %v3192, 0.2
    %v3321 = vmul.f32 %v3193, 0.2
    %v3322 = vmul.f32 %v3194, 0.2
    %v3323 = vmul.f32 %v3195, 0.2
    %v3324 = vmul.f32 %v3196, 0.2
    %v3325 = vmul.f32 %v3197, 0.2
    %v3326 = vmul.f32 %v3198, 0.2
    %v3327 = vmul.f32 %v3199, 0.2
    %v3328 = vmul.f32 %v3200, 0.2
    %v3329 = vmul.f32 %v3201, 0.2
    %v3330 = vmul.f32 %v3202, 0.2
    %v3331 = vmul.f32 %v3203, 0.2
    %v3332 = vmul.f32 %v3204, 0.2
    %v3333 = vmul.f32 %v3205, 0.2
    %v3334 = vmul.f32 %v3206, 0.2
    %v3335 = vmul.f32 %v3207, 0.2
    %v3336 = vmul.f32 %v3208, 0.2
    %v3337 = vmul.f32 %v3209, 0.2
    %v3338 = vmul.f32 %v3210, 0.2
    %v3339 = vmul.f32 %v3211, 0.2
    %v3340 = vsel %vm3212, %v3148, %v3276
    %v3341 = vsel %vm3213, %v3149, %v3277
    %v3342 = vsel %vm3214, %v3150, %v3278
    %v3343 = vsel %vm3215, %v3151, %v3279
    %v3344 = vsel %vm3216, %v3152, %v3280
    %v3345 = vsel %vm3217, %v3153, %v3281
    %v3346 = vsel %vm3218, %v3154, %v3282
    %v3347 = vsel %vm3219, %v3155, %v3283
    %v3348 = vsel %vm3220, %v3156, %v3284
    %v3349 = vsel %vm3221, %v3157, %v3285
    %v3350 = vsel %vm3222, %v3158, %v3286
    %v3351 = vsel %vm3223, %v3159, %v3287
    %v3352 = vsel %vm3224, %v3160, %v3288
    %v3353 = vsel %vm3225, %v3161, %v3289
    %v3354 = vsel %vm3226, %v3162, %v3290
    %v3355 = vsel %vm3227, %v3163, %v3291
    %v3356 = vsel %vm3228, %v3164, %v3292
    %v3357 = vsel %vm3229, %v3165, %v3293
    %v3358 = vsel %vm3230, %v3166, %v3294
    %v3359 = vsel %vm3231, %v3167, %v3295
    %v3360 = vsel %vm3232, %v3168, %v3296
    %v3361 = vsel %vm3233, %v3169, %v3297
    %v3362 = vsel %vm3234, %v3170, %v3298
    %v3363 = vsel %vm3235, %v3171, %v3299
    %v3364 = vsel %vm3236, %v3172, %v3300
    %v3365 = vsel %vm3237, %v3173, %v3301
    %v3366 = vsel %vm3238, %v3174, %v3302
    %v3367 = vsel %vm3239, %v3175, %v3303
    %v3368 = vsel %vm3240, %v3176, %v3304
    %v3369 = vsel %vm3241, %v3177, %v3305
    %v3370 = vsel %vm3242, %v3178, %v3306
    %v3371 = vsel %vm3243, %v3179, %v3307
    %v3372 = vsel %vm3244, %v3180, %v3308
    %v3373 = vsel %vm3245, %v3181, %v3309
    %v3374 = vsel %vm3246, %v3182, %v3310
    %v3375 = vsel %vm3247, %v3183, %v3311
    %v3376 = vsel %vm3248, %v3184, %v3312
    %v3377 = vsel %vm3249, %v3185, %v3313
    %v3378 = vsel %vm3250, %v3186, %v3314
    %v3379 = vsel %vm3251, %v3187, %v3315
    %v3380 = vsel %vm3252, %v3188, %v3316
    %v3381 = vsel %vm3253, %v3189, %v3317
    %v3382 = vsel %vm3254, %v3190, %v3318
    %v3383 = vsel %vm3255, %v3191, %v3319
    %v3384 = vsel %vm3256, %v3192, %v3320
    %v3385 = vsel %vm3257, %v3193, %v3321
    %v3386 = vsel %vm3258, %v3194, %v3322
    %v3387 = vsel %vm3259, %v3195, %v3323
    %v3388 = vsel %vm3260, %v3196, %v3324
    %v3389 = vsel %vm3261, %v3197, %v3325
    %v3390 = vsel %vm3262, %v3198, %v3326
    %v3391 = vsel %vm3263, %v3199, %v3327
    %v3392 = vsel %vm3264, %v3200, %v3328
    %v3393 = vsel %vm3265, %v3201, %v3329
    %v3394 = vsel %vm3266, %v3202, %v3330
    %v3395 = vsel %vm3267, %v3203, %v3331
    %v3396 = vsel %vm3268, %v3204, %v3332
    %v3397 = vsel %vm3269, %v3205, %v3333
    %v3398 = vsel %vm3270, %v3206, %v3334
    %v3399 = vsel %vm3271, %v3207, %v3335
    %v3400 = vsel %vm3272, %v3208, %v3336
    %v3401 = vsel %vm3273, %v3209, %v3337
    %v3402 = vsel %vm3274, %v3210, %v3338
    %v3403 = vsel %vm3275, %v3211, %v3339
    %v3404 = vpack.c.bf16 %v3341, %v3340
    %v3405 = vpack.c.bf16 %v3343, %v3342
    %v3406 = vpack.c.bf16 %v3345, %v3344
    %v3407 = vpack.c.bf16 %v3347, %v3346
    %v3408 = vpack.c.bf16 %v3349, %v3348
    %v3409 = vpack.c.bf16 %v3351, %v3350
    %v3410 = vpack.c.bf16 %v3353, %v3352
    %v3411 = vpack.c.bf16 %v3355, %v3354
    %v3412 = vpack.c.bf16 %v3357, %v3356
    %v3413 = vpack.c.bf16 %v3359, %v3358
    %v3414 = vpack.c.bf16 %v3361, %v3360
    %v3415 = vpack.c.bf16 %v3363, %v3362
    %v3416 = vpack.c.bf16 %v3365, %v3364
    %v3417 = vpack.c.bf16 %v3367, %v3366
    %v3418 = vpack.c.bf16 %v3369, %v3368
    %v3419 = vpack.c.bf16 %v3371, %v3370
    %v3420 = vpack.c.bf16 %v3373, %v3372
    %v3421 = vpack.c.bf16 %v3375, %v3374
    %v3422 = vpack.c.bf16 %v3377, %v3376
    %v3423 = vpack.c.bf16 %v3379, %v3378
    %v3424 = vpack.c.bf16 %v3381, %v3380
    %v3425 = vpack.c.bf16 %v3383, %v3382
    %v3426 = vpack.c.bf16 %v3385, %v3384
    %v3427 = vpack.c.bf16 %v3387, %v3386
    %v3428 = vpack.c.bf16 %v3389, %v3388
    %v3429 = vpack.c.bf16 %v3391, %v3390
    %v3430 = vpack.c.bf16 %v3393, %v3392
    %v3431 = vpack.c.bf16 %v3395, %v3394
    %v3432 = vpack.c.bf16 %v3397, %v3396
    %v3433 = vpack.c.bf16 %v3399, %v3398
    %v3434 = vpack.c.bf16 %v3401, %v3400
    %v3435 = vpack.c.bf16 %v3403, %v3402
    %v3436 = vrot.slane %v3412, 4
    %vm3437 = vcmask 1047556
    %v3438 = vsel %vm3437, %v3436, %v3404
    %v3439 = vrot.slane %v3404, 4
    %v3440 = vsel %vm3437, %v3412, %v3439
    %v3442 = vunpack.c.l.s4 1983009808
    %v3443 = vunpack.c.0.s8 %v3442
    %v3444 = vperm.slane %v3438, %v3443
    %v3446 = vunpack.c.l.s4 1983009808
    %v3447 = vunpack.c.0.s8 %v3446
    %v3448 = vperm.slane %v3440, %v3447
    %v3449 = vrot.slane %v3416, 4
    %v3450 = vsel %vm3437, %v3449, %v3408
    %v3451 = vrot.slane %v3408, 4
    %v3452 = vsel %vm3437, %v3416, %v3451
    %v3454 = vunpack.c.l.s4 1983009808
    %v3455 = vunpack.c.0.s8 %v3454
    %v3456 = vperm.slane %v3450, %v3455
    %v3458 = vunpack.c.l.s4 1983009808
    %v3459 = vunpack.c.0.s8 %v3458
    %v3460 = vperm.slane %v3452, %v3459
    %v3461 = vrot.slane %v3456, 4
    %v3462 = vsel %vm3437, %v3461, %v3444
    %v3463 = vrot.slane %v3444, 4
    %v3464 = vsel %vm3437, %v3456, %v3463
    %v3466 = vunpack.c.l.s4 1934713408
    %v3467 = vunpack.c.0.s8 %v3466
    %v3468 = vperm.slane %v3462, %v3467
    %v3470 = vunpack.c.l.s4 1934713408
    %v3471 = vunpack.c.0.s8 %v3470
    %v3472 = vperm.slane %v3464, %v3471
    %v3473 = vrot.slane %v3460, 4
    %v3474 = vsel %vm3437, %v3473, %v3448
    %v3475 = vrot.slane %v3448, 4
    %v3476 = vsel %vm3437, %v3460, %v3475
    %v3478 = vunpack.c.l.s4 1934713408
    %v3479 = vunpack.c.0.s8 %v3478
    %v3480 = vperm.slane %v3474, %v3479
    %v3482 = vunpack.c.l.s4 1934713408
    %v3483 = vunpack.c.0.s8 %v3482
    %v3484 = vperm.slane %v3476, %v3483
    %v3485 = vrot.slane %v3480, 4
    %v3486 = vsel %vm3437, %v3485, %v3468
    %v3487 = vrot.slane %v3468, 4
    %v3488 = vsel %vm3437, %v3480, %v3487
    %v3489 = vrot.slane %v3484, 4
    %v3490 = vsel %vm3437, %v3489, %v3472
    %v3491 = vrot.slane %v3472, 4
    %v3492 = vsel %vm3437, %v3484, %v3491
    %v3493 = vrot.slane %v3414, 4
    %v3494 = vsel %vm3437, %v3493, %v3406
    %v3495 = vrot.slane %v3406, 4
    %v3496 = vsel %vm3437, %v3414, %v3495
    %v3498 = vunpack.c.l.s4 1983009808
    %v3499 = vunpack.c.0.s8 %v3498
    %v3500 = vperm.slane %v3494, %v3499
    %v3502 = vunpack.c.l.s4 1983009808
    %v3503 = vunpack.c.0.s8 %v3502
    %v3504 = vperm.slane %v3496, %v3503
    %v3505 = vrot.slane %v3418, 4
    %v3506 = vsel %vm3437, %v3505, %v3410
    %v3507 = vrot.slane %v3410, 4
    %v3508 = vsel %vm3437, %v3418, %v3507
    %v3510 = vunpack.c.l.s4 1983009808
    %v3511 = vunpack.c.0.s8 %v3510
    %v3512 = vperm.slane %v3506, %v3511
    %v3514 = vunpack.c.l.s4 1983009808
    %v3515 = vunpack.c.0.s8 %v3514
    %v3516 = vperm.slane %v3508, %v3515
    %v3517 = vrot.slane %v3512, 4
    %v3518 = vsel %vm3437, %v3517, %v3500
    %v3519 = vrot.slane %v3500, 4
    %v3520 = vsel %vm3437, %v3512, %v3519
    %v3522 = vunpack.c.l.s4 1934713408
    %v3523 = vunpack.c.0.s8 %v3522
    %v3524 = vperm.slane %v3518, %v3523
    %v3526 = vunpack.c.l.s4 1934713408
    %v3527 = vunpack.c.0.s8 %v3526
    %v3528 = vperm.slane %v3520, %v3527
    %v3529 = vrot.slane %v3516, 4
    %v3530 = vsel %vm3437, %v3529, %v3504
    %v3531 = vrot.slane %v3504, 4
    %v3532 = vsel %vm3437, %v3516, %v3531
    %v3534 = vunpack.c.l.s4 1934713408
    %v3535 = vunpack.c.0.s8 %v3534
    %v3536 = vperm.slane %v3530, %v3535
    %v3538 = vunpack.c.l.s4 1934713408
    %v3539 = vunpack.c.0.s8 %v3538
    %v3540 = vperm.slane %v3532, %v3539
    %v3541 = vrot.slane %v3536, 4
    %v3542 = vsel %vm3437, %v3541, %v3524
    %v3543 = vrot.slane %v3524, 4
    %v3544 = vsel %vm3437, %v3536, %v3543
    %v3545 = vrot.slane %v3540, 4
    %v3546 = vsel %vm3437, %v3545, %v3528
    %v3547 = vrot.slane %v3528, 4
    %v3548 = vsel %vm3437, %v3540, %v3547
    %v3549 = vrot.slane %v3428, 4
    %v3550 = vsel %vm3437, %v3549, %v3420
    %v3551 = vrot.slane %v3420, 4
    %v3552 = vsel %vm3437, %v3428, %v3551
    %v3554 = vunpack.c.l.s4 1983009808
    %v3555 = vunpack.c.0.s8 %v3554
    %v3556 = vperm.slane %v3550, %v3555
    %v3558 = vunpack.c.l.s4 1983009808
    %v3559 = vunpack.c.0.s8 %v3558
    %v3560 = vperm.slane %v3552, %v3559
    %v3561 = vrot.slane %v3432, 4
    %v3562 = vsel %vm3437, %v3561, %v3424
    %v3563 = vrot.slane %v3424, 4
    %v3564 = vsel %vm3437, %v3432, %v3563
    %v3566 = vunpack.c.l.s4 1983009808
    %v3567 = vunpack.c.0.s8 %v3566
    %v3568 = vperm.slane %v3562, %v3567
    %v3570 = vunpack.c.l.s4 1983009808
    %v3571 = vunpack.c.0.s8 %v3570
    %v3572 = vperm.slane %v3564, %v3571
    %v3573 = vrot.slane %v3568, 4
    %v3574 = vsel %vm3437, %v3573, %v3556
    %v3575 = vrot.slane %v3556, 4
    %v3576 = vsel %vm3437, %v3568, %v3575
    %v3578 = vunpack.c.l.s4 1934713408
    %v3579 = vunpack.c.0.s8 %v3578
    %v3580 = vperm.slane %v3574, %v3579
    %v3582 = vunpack.c.l.s4 1934713408
    %v3583 = vunpack.c.0.s8 %v3582
    %v3584 = vperm.slane %v3576, %v3583
    %v3585 = vrot.slane %v3572, 4
    %v3586 = vsel %vm3437, %v3585, %v3560
    %v3587 = vrot.slane %v3560, 4
    %v3588 = vsel %vm3437, %v3572, %v3587
    %v3590 = vunpack.c.l.s4 1934713408
    %v3591 = vunpack.c.0.s8 %v3590
    %v3592 = vperm.slane %v3586, %v3591
    %v3594 = vunpack.c.l.s4 1934713408
    %v3595 = vunpack.c.0.s8 %v3594
    %v3596 = vperm.slane %v3588, %v3595
    %v3597 = vrot.slane %v3592, 4
    %v3598 = vsel %vm3437, %v3597, %v3580
    %v3599 = vrot.slane %v3580, 4
    %v3600 = vsel %vm3437, %v3592, %v3599
    %v3601 = vrot.slane %v3596, 4
    %v3602 = vsel %vm3437, %v3601, %v3584
    %v3603 = vrot.slane %v3584, 4
    %v3604 = vsel %vm3437, %v3596, %v3603
    %v3605 = vrot.slane %v3430, 4
    %v3606 = vsel %vm3437, %v3605, %v3422
    %v3607 = vrot.slane %v3422, 4
    %v3608 = vsel %vm3437, %v3430, %v3607
    %v3610 = vunpack.c.l.s4 1983009808
    %v3611 = vunpack.c.0.s8 %v3610
    %v3612 = vperm.slane %v3606, %v3611
    %v3614 = vunpack.c.l.s4 1983009808
    %v3615 = vunpack.c.0.s8 %v3614
    %v3616 = vperm.slane %v3608, %v3615
    %v3617 = vrot.slane %v3434, 4
    %v3618 = vsel %vm3437, %v3617, %v3426
    %v3619 = vrot.slane %v3426, 4
    %v3620 = vsel %vm3437, %v3434, %v3619
    %v3622 = vunpack.c.l.s4 1983009808
    %v3623 = vunpack.c.0.s8 %v3622
    %v3624 = vperm.slane %v3618, %v3623
    %v3626 = vunpack.c.l.s4 1983009808
    %v3627 = vunpack.c.0.s8 %v3626
    %v3628 = vperm.slane %v3620, %v3627
    %v3629 = vrot.slane %v3624, 4
    %v3630 = vsel %vm3437, %v3629, %v3612
    %v3631 = vrot.slane %v3612, 4
    %v3632 = vsel %vm3437, %v3624, %v3631
    %v3634 = vunpack.c.l.s4 1934713408
    %v3635 = vunpack.c.0.s8 %v3634
    %v3636 = vperm.slane %v3630, %v3635
    %v3638 = vunpack.c.l.s4 1934713408
    %v3639 = vunpack.c.0.s8 %v3638
    %v3640 = vperm.slane %v3632, %v3639
    %v3641 = vrot.slane %v3628, 4
    %v3642 = vsel %vm3437, %v3641, %v3616
    %v3643 = vrot.slane %v3616, 4
    %v3644 = vsel %vm3437, %v3628, %v3643
    %v3646 = vunpack.c.l.s4 1934713408
    %v3647 = vunpack.c.0.s8 %v3646
    %v3648 = vperm.slane %v3642, %v3647
    %v3650 = vunpack.c.l.s4 1934713408
    %v3651 = vunpack.c.0.s8 %v3650
    %v3652 = vperm.slane %v3644, %v3651
    %v3653 = vrot.slane %v3648, 4
    %v3654 = vsel %vm3437, %v3653, %v3636
    %v3655 = vrot.slane %v3636, 4
    %v3656 = vsel %vm3437, %v3648, %v3655
    %v3657 = vrot.slane %v3652, 4
    %v3658 = vsel %vm3437, %v3657, %v3640
    %v3659 = vrot.slane %v3640, 4
    %v3660 = vsel %vm3437, %v3652, %v3659
    %v3661 = vrot.slane %v3413, 4
    %v3662 = vsel %vm3437, %v3661, %v3405
    %v3663 = vrot.slane %v3405, 4
    %v3664 = vsel %vm3437, %v3413, %v3663
    %v3666 = vunpack.c.l.s4 1983009808
    %v3667 = vunpack.c.0.s8 %v3666
    %v3668 = vperm.slane %v3662, %v3667
    %v3670 = vunpack.c.l.s4 1983009808
    %v3671 = vunpack.c.0.s8 %v3670
    %v3672 = vperm.slane %v3664, %v3671
    %v3673 = vrot.slane %v3417, 4
    %v3674 = vsel %vm3437, %v3673, %v3409
    %v3675 = vrot.slane %v3409, 4
    %v3676 = vsel %vm3437, %v3417, %v3675
    %v3678 = vunpack.c.l.s4 1983009808
    %v3679 = vunpack.c.0.s8 %v3678
    %v3680 = vperm.slane %v3674, %v3679
    %v3682 = vunpack.c.l.s4 1983009808
    %v3683 = vunpack.c.0.s8 %v3682
    %v3684 = vperm.slane %v3676, %v3683
    %v3685 = vrot.slane %v3680, 4
    %v3686 = vsel %vm3437, %v3685, %v3668
    %v3687 = vrot.slane %v3668, 4
    %v3688 = vsel %vm3437, %v3680, %v3687
    %v3690 = vunpack.c.l.s4 1934713408
    %v3691 = vunpack.c.0.s8 %v3690
    %v3692 = vperm.slane %v3686, %v3691
    %v3694 = vunpack.c.l.s4 1934713408
    %v3695 = vunpack.c.0.s8 %v3694
    %v3696 = vperm.slane %v3688, %v3695
    %v3697 = vrot.slane %v3684, 4
    %v3698 = vsel %vm3437, %v3697, %v3672
    %v3699 = vrot.slane %v3672, 4
    %v3700 = vsel %vm3437, %v3684, %v3699
    %v3702 = vunpack.c.l.s4 1934713408
    %v3703 = vunpack.c.0.s8 %v3702
    %v3704 = vperm.slane %v3698, %v3703
    %v3706 = vunpack.c.l.s4 1934713408
    %v3707 = vunpack.c.0.s8 %v3706
    %v3708 = vperm.slane %v3700, %v3707
    %v3709 = vrot.slane %v3704, 4
    %v3710 = vsel %vm3437, %v3709, %v3692
    %v3711 = vrot.slane %v3692, 4
    %v3712 = vsel %vm3437, %v3704, %v3711
    %v3713 = vrot.slane %v3708, 4
    %v3714 = vsel %vm3437, %v3713, %v3696
    %v3715 = vrot.slane %v3696, 4
    %v3716 = vsel %vm3437, %v3708, %v3715
    %v3717 = vrot.slane %v3415, 4
    %v3718 = vsel %vm3437, %v3717, %v3407
    %v3719 = vrot.slane %v3407, 4
    %v3720 = vsel %vm3437, %v3415, %v3719
    %v3722 = vunpack.c.l.s4 1983009808
    %v3723 = vunpack.c.0.s8 %v3722
    %v3724 = vperm.slane %v3718, %v3723
    %v3726 = vunpack.c.l.s4 1983009808
    %v3727 = vunpack.c.0.s8 %v3726
    %v3728 = vperm.slane %v3720, %v3727
    %v3729 = vrot.slane %v3419, 4
    %v3730 = vsel %vm3437, %v3729, %v3411
    %v3731 = vrot.slane %v3411, 4
    %v3732 = vsel %vm3437, %v3419, %v3731
    %v3734 = vunpack.c.l.s4 1983009808
    %v3735 = vunpack.c.0.s8 %v3734
    %v3736 = vperm.slane %v3730, %v3735
    %v3738 = vunpack.c.l.s4 1983009808
    %v3739 = vunpack.c.0.s8 %v3738
    %v3740 = vperm.slane %v3732, %v3739
    %v3741 = vrot.slane %v3736, 4
    %v3742 = vsel %vm3437, %v3741, %v3724
    %v3743 = vrot.slane %v3724, 4
    %v3744 = vsel %vm3437, %v3736, %v3743
    %v3746 = vunpack.c.l.s4 1934713408
    %v3747 = vunpack.c.0.s8 %v3746
    %v3748 = vperm.slane %v3742, %v3747
    %v3750 = vunpack.c.l.s4 1934713408
    %v3751 = vunpack.c.0.s8 %v3750
    %v3752 = vperm.slane %v3744, %v3751
    %v3753 = vrot.slane %v3740, 4
    %v3754 = vsel %vm3437, %v3753, %v3728
    %v3755 = vrot.slane %v3728, 4
    %v3756 = vsel %vm3437, %v3740, %v3755
    %v3758 = vunpack.c.l.s4 1934713408
    %v3759 = vunpack.c.0.s8 %v3758
    %v3760 = vperm.slane %v3754, %v3759
    %v3762 = vunpack.c.l.s4 1934713408
    %v3763 = vunpack.c.0.s8 %v3762
    %v3764 = vperm.slane %v3756, %v3763
    %v3765 = vrot.slane %v3760, 4
    %v3766 = vsel %vm3437, %v3765, %v3748
    %v3767 = vrot.slane %v3748, 4
    %v3768 = vsel %vm3437, %v3760, %v3767
    %v3769 = vrot.slane %v3764, 4
    %v3770 = vsel %vm3437, %v3769, %v3752
    %v3771 = vrot.slane %v3752, 4
    %v3772 = vsel %vm3437, %v3764, %v3771
    %v3773 = vrot.slane %v3429, 4
    %v3774 = vsel %vm3437, %v3773, %v3421
    %v3775 = vrot.slane %v3421, 4
    %v3776 = vsel %vm3437, %v3429, %v3775
    %v3778 = vunpack.c.l.s4 1983009808
    %v3779 = vunpack.c.0.s8 %v3778
    %v3780 = vperm.slane %v3774, %v3779
    %v3782 = vunpack.c.l.s4 1983009808
    %v3783 = vunpack.c.0.s8 %v3782
    %v3784 = vperm.slane %v3776, %v3783
    %v3785 = vrot.slane %v3433, 4
    %v3786 = vsel %vm3437, %v3785, %v3425
    %v3787 = vrot.slane %v3425, 4
    %v3788 = vsel %vm3437, %v3433, %v3787
    %v3790 = vunpack.c.l.s4 1983009808
    %v3791 = vunpack.c.0.s8 %v3790
    %v3792 = vperm.slane %v3786, %v3791
    %v3794 = vunpack.c.l.s4 1983009808
    %v3795 = vunpack.c.0.s8 %v3794
    %v3796 = vperm.slane %v3788, %v3795
    %v3797 = vrot.slane %v3792, 4
    %v3798 = vsel %vm3437, %v3797, %v3780
    %v3799 = vrot.slane %v3780, 4
    %v3800 = vsel %vm3437, %v3792, %v3799
    %v3802 = vunpack.c.l.s4 1934713408
    %v3803 = vunpack.c.0.s8 %v3802
    %v3804 = vperm.slane %v3798, %v3803
    %v3806 = vunpack.c.l.s4 1934713408
    %v3807 = vunpack.c.0.s8 %v3806
    %v3808 = vperm.slane %v3800, %v3807
    %v3809 = vrot.slane %v3796, 4
    %v3810 = vsel %vm3437, %v3809, %v3784
    %v3811 = vrot.slane %v3784, 4
    %v3812 = vsel %vm3437, %v3796, %v3811
    %v3814 = vunpack.c.l.s4 1934713408
    %v3815 = vunpack.c.0.s8 %v3814
    %v3816 = vperm.slane %v3810, %v3815
    %v3818 = vunpack.c.l.s4 1934713408
    %v3819 = vunpack.c.0.s8 %v3818
    %v3820 = vperm.slane %v3812, %v3819
    %v3821 = vrot.slane %v3816, 4
    %v3822 = vsel %vm3437, %v3821, %v3804
    %v3823 = vrot.slane %v3804, 4
    %v3824 = vsel %vm3437, %v3816, %v3823
    %v3825 = vrot.slane %v3820, 4
    %v3826 = vsel %vm3437, %v3825, %v3808
    %v3827 = vrot.slane %v3808, 4
    %v3828 = vsel %vm3437, %v3820, %v3827
    %v3829 = vrot.slane %v3431, 4
    %v3830 = vsel %vm3437, %v3829, %v3423
    %v3831 = vrot.slane %v3423, 4
    %v3832 = vsel %vm3437, %v3431, %v3831
    %v3834 = vunpack.c.l.s4 1983009808
    %v3835 = vunpack.c.0.s8 %v3834
    %v3836 = vperm.slane %v3830, %v3835
    %v3838 = vunpack.c.l.s4 1983009808
    %v3839 = vunpack.c.0.s8 %v3838
    %v3840 = vperm.slane %v3832, %v3839
    %v3841 = vrot.slane %v3435, 4
    %v3842 = vsel %vm3437, %v3841, %v3427
    %v3843 = vrot.slane %v3427, 4
    %v3844 = vsel %vm3437, %v3435, %v3843
    %v3846 = vunpack.c.l.s4 1983009808
    %v3847 = vunpack.c.0.s8 %v3846
    %v3848 = vperm.slane %v3842, %v3847
    %v3850 = vunpack.c.l.s4 1983009808
    %v3851 = vunpack.c.0.s8 %v3850
    %v3852 = vperm.slane %v3844, %v3851
    %v3853 = vrot.slane %v3848, 4
    %v3854 = vsel %vm3437, %v3853, %v3836
    %v3855 = vrot.slane %v3836, 4
    %v3856 = vsel %vm3437, %v3848, %v3855
    %v3858 = vunpack.c.l.s4 1934713408
    %v3859 = vunpack.c.0.s8 %v3858
    %v3860 = vperm.slane %v3854, %v3859
    %v3862 = vunpack.c.l.s4 1934713408
    %v3863 = vunpack.c.0.s8 %v3862
    %v3864 = vperm.slane %v3856, %v3863
    %v3865 = vrot.slane %v3852, 4
    %v3866 = vsel %vm3437, %v3865, %v3840
    %v3867 = vrot.slane %v3840, 4
    %v3868 = vsel %vm3437, %v3852, %v3867
    %v3870 = vunpack.c.l.s4 1934713408
    %v3871 = vunpack.c.0.s8 %v3870
    %v3872 = vperm.slane %v3866, %v3871
    %v3874 = vunpack.c.l.s4 1934713408
    %v3875 = vunpack.c.0.s8 %v3874
    %v3876 = vperm.slane %v3868, %v3875
    %v3877 = vrot.slane %v3872, 4
    %v3878 = vsel %vm3437, %v3877, %v3860
    %v3879 = vrot.slane %v3860, 4
    %v3880 = vsel %vm3437, %v3872, %v3879
    %v3881 = vrot.slane %v3876, 4
    %v3882 = vsel %vm3437, %v3881, %v3864
    %v3883 = vrot.slane %v3864, 4
    %v3884 = vsel %vm3437, %v3876, %v3883
    %v3887 = vpack.i.b16 %v3542, %v3486
    %v3888 = vshrl.u32 %v3486, 16
    %v3889 = vshrl.u32 %v3542, 16
    %v3890 = vpack.i.b16 %v3889, %v3888
    %v3893 = vpack.i.b16 %v3544, %v3488
    %v3894 = vshrl.u32 %v3488, 16
    %v3895 = vshrl.u32 %v3544, 16
    %v3896 = vpack.i.b16 %v3895, %v3894
    %v3899 = vpack.i.b16 %v3546, %v3490
    %v3900 = vshrl.u32 %v3490, 16
    %v3901 = vshrl.u32 %v3546, 16
    %v3902 = vpack.i.b16 %v3901, %v3900
    %v3905 = vpack.i.b16 %v3548, %v3492
    %v3906 = vshrl.u32 %v3492, 16
    %v3907 = vshrl.u32 %v3548, 16
    %v3908 = vpack.i.b16 %v3907, %v3906
    %v3911 = vpack.i.b16 %v3766, %v3710
    %v3912 = vshrl.u32 %v3710, 16
    %v3913 = vshrl.u32 %v3766, 16
    %v3914 = vpack.i.b16 %v3913, %v3912
    %v3917 = vpack.i.b16 %v3768, %v3712
    %v3918 = vshrl.u32 %v3712, 16
    %v3919 = vshrl.u32 %v3768, 16
    %v3920 = vpack.i.b16 %v3919, %v3918
    %v3923 = vpack.i.b16 %v3770, %v3714
    %v3924 = vshrl.u32 %v3714, 16
    %v3925 = vshrl.u32 %v3770, 16
    %v3926 = vpack.i.b16 %v3925, %v3924
    %v3929 = vpack.i.b16 %v3772, %v3716
    %v3930 = vshrl.u32 %v3716, 16
    %v3931 = vshrl.u32 %v3772, 16
    %v3932 = vpack.i.b16 %v3931, %v3930
    %v3935 = vpack.i.b16 %v3654, %v3598
    %v3936 = vshrl.u32 %v3598, 16
    %v3937 = vshrl.u32 %v3654, 16
    %v3938 = vpack.i.b16 %v3937, %v3936
    %v3941 = vpack.i.b16 %v3656, %v3600
    %v3942 = vshrl.u32 %v3600, 16
    %v3943 = vshrl.u32 %v3656, 16
    %v3944 = vpack.i.b16 %v3943, %v3942
    %v3947 = vpack.i.b16 %v3658, %v3602
    %v3948 = vshrl.u32 %v3602, 16
    %v3949 = vshrl.u32 %v3658, 16
    %v3950 = vpack.i.b16 %v3949, %v3948
    %v3953 = vpack.i.b16 %v3660, %v3604
    %v3954 = vshrl.u32 %v3604, 16
    %v3955 = vshrl.u32 %v3660, 16
    %v3956 = vpack.i.b16 %v3955, %v3954
    %v3959 = vpack.i.b16 %v3878, %v3822
    %v3960 = vshrl.u32 %v3822, 16
    %v3961 = vshrl.u32 %v3878, 16
    %v3962 = vpack.i.b16 %v3961, %v3960
    %v3965 = vpack.i.b16 %v3880, %v3824
    %v3966 = vshrl.u32 %v3824, 16
    %v3967 = vshrl.u32 %v3880, 16
    %v3968 = vpack.i.b16 %v3967, %v3966
    %v3971 = vpack.i.b16 %v3882, %v3826
    %v3972 = vshrl.u32 %v3826, 16
    %v3973 = vshrl.u32 %v3882, 16
    %v3974 = vpack.i.b16 %v3973, %v3972
    %v3977 = vpack.i.b16 %v3884, %v3828
    %v3978 = vshrl.u32 %v3828, 16
    %v3979 = vshrl.u32 %v3884, 16
    %v3980 = vpack.i.b16 %v3979, %v3978
    %v3981 = vunpack.c.l.b16 %v3887
    %v3982 = vunpack.c.h.b16 %v3887
    %v3983 = vunpack.c.l.b16 %v3935
    %v3984 = vunpack.c.h.b16 %v3935
    %v3985 = vpack.c.b16 %v3983, %v3981
    %v3986 = vpack.c.b16 %v3984, %v3982
    %v3989 = vunpack.c.l.b16 %v3890
    %v3990 = vunpack.c.h.b16 %v3890
    %v3991 = vunpack.c.l.b16 %v3938
    %v3992 = vunpack.c.h.b16 %v3938
    %v3993 = vpack.c.b16 %v3991, %v3989
    %v3994 = vpack.c.b16 %v3992, %v3990
    %v3997 = vunpack.c.l.b16 %v3893
    %v3998 = vunpack.c.h.b16 %v3893
    %v3999 = vunpack.c.l.b16 %v3941
    %v4000 = vunpack.c.h.b16 %v3941
    %v4001 = vpack.c.b16 %v3999, %v3997
    %v4002 = vpack.c.b16 %v4000, %v3998
    %v4005 = vunpack.c.l.b16 %v3896
    %v4006 = vunpack.c.h.b16 %v3896
    %v4007 = vunpack.c.l.b16 %v3944
    %v4008 = vunpack.c.h.b16 %v3944
    %v4009 = vpack.c.b16 %v4007, %v4005
    %v4010 = vpack.c.b16 %v4008, %v4006
    %v4013 = vunpack.c.l.b16 %v3899
    %v4014 = vunpack.c.h.b16 %v3899
    %v4015 = vunpack.c.l.b16 %v3947
    %v4016 = vunpack.c.h.b16 %v3947
    %v4017 = vpack.c.b16 %v4015, %v4013
    %v4018 = vpack.c.b16 %v4016, %v4014
    %v4021 = vunpack.c.l.b16 %v3902
    %v4022 = vunpack.c.h.b16 %v3902
    %v4023 = vunpack.c.l.b16 %v3950
    %v4024 = vunpack.c.h.b16 %v3950
    %v4025 = vpack.c.b16 %v4023, %v4021
    %v4026 = vpack.c.b16 %v4024, %v4022
    %v4029 = vunpack.c.l.b16 %v3905
    %v4030 = vunpack.c.h.b16 %v3905
    %v4031 = vunpack.c.l.b16 %v3953
    %v4032 = vunpack.c.h.b16 %v3953
    %v4033 = vpack.c.b16 %v4031, %v4029
    %v4034 = vpack.c.b16 %v4032, %v4030
    %v4037 = vunpack.c.l.b16 %v3908
    %v4038 = vunpack.c.h.b16 %v3908
    %v4039 = vunpack.c.l.b16 %v3956
    %v4040 = vunpack.c.h.b16 %v3956
    %v4041 = vpack.c.b16 %v4039, %v4037
    %v4042 = vpack.c.b16 %v4040, %v4038
    %v4045 = vunpack.c.l.b16 %v3911
    %v4046 = vunpack.c.h.b16 %v3911
    %v4047 = vunpack.c.l.b16 %v3959
    %v4048 = vunpack.c.h.b16 %v3959
    %v4049 = vpack.c.b16 %v4047, %v4045
    %v4050 = vpack.c.b16 %v4048, %v4046
    %v4053 = vunpack.c.l.b16 %v3914
    %v4054 = vunpack.c.h.b16 %v3914
    %v4055 = vunpack.c.l.b16 %v3962
    %v4056 = vunpack.c.h.b16 %v3962
    %v4057 = vpack.c.b16 %v4055, %v4053
    %v4058 = vpack.c.b16 %v4056, %v4054
    %v4061 = vunpack.c.l.b16 %v3917
    %v4062 = vunpack.c.h.b16 %v3917
    %v4063 = vunpack.c.l.b16 %v3965
    %v4064 = vunpack.c.h.b16 %v3965
    %v4065 = vpack.c.b16 %v4063, %v4061
    %v4066 = vpack.c.b16 %v4064, %v4062
    %v4069 = vunpack.c.l.b16 %v3920
    %v4070 = vunpack.c.h.b16 %v3920
    %v4071 = vunpack.c.l.b16 %v3968
    %v4072 = vunpack.c.h.b16 %v3968
    %v4073 = vpack.c.b16 %v4071, %v4069
    %v4074 = vpack.c.b16 %v4072, %v4070
    %v4077 = vunpack.c.l.b16 %v3923
    %v4078 = vunpack.c.h.b16 %v3923
    %v4079 = vunpack.c.l.b16 %v3971
    %v4080 = vunpack.c.h.b16 %v3971
    %v4081 = vpack.c.b16 %v4079, %v4077
    %v4082 = vpack.c.b16 %v4080, %v4078
    %v4085 = vunpack.c.l.b16 %v3926
    %v4086 = vunpack.c.h.b16 %v3926
    %v4087 = vunpack.c.l.b16 %v3974
    %v4088 = vunpack.c.h.b16 %v3974
    %v4089 = vpack.c.b16 %v4087, %v4085
    %v4090 = vpack.c.b16 %v4088, %v4086
    %v4093 = vunpack.c.l.b16 %v3929
    %v4094 = vunpack.c.h.b16 %v3929
    %v4095 = vunpack.c.l.b16 %v3977
    %v4096 = vunpack.c.h.b16 %v3977
    %v4097 = vpack.c.b16 %v4095, %v4093
    %v4098 = vpack.c.b16 %v4096, %v4094
    %v4101 = vunpack.c.l.b16 %v3932
    %v4102 = vunpack.c.h.b16 %v3932
    %v4103 = vunpack.c.l.b16 %v3980
    %v4104 = vunpack.c.h.b16 %v3980
    %v4105 = vpack.c.b16 %v4103, %v4101
    %v4106 = vpack.c.b16 %v4104, %v4102
    %v4109 = vld [vmem:[#allocation5] sm:$0xf]
    %v4110 = vld [vmem:[#allocation5 + $0x4] sm:$0xf]
    %v4111 = vld [vmem:[#allocation5 + $0x8] sm:$0xf]
    %v4112 = vld [vmem:[#allocation5 + $0xc] sm:$0xf]
    %v4113 = vld [vmem:[#allocation5 + $0x10] sm:$0xf]
    %v4114 = vld [vmem:[#allocation5 + $0x14] sm:$0xf]
    %v4115 = vld [vmem:[#allocation5 + $0x18] sm:$0xf]
    %v4116 = vld [vmem:[#allocation5 + $0x1c] sm:$0xf]
    %v4117 = vld [vmem:[#allocation5 + $0x20] sm:$0xf]
    %v4118 = vld [vmem:[#allocation5 + $0x24] sm:$0xf]
    %v4119 = vld [vmem:[#allocation5 + $0x28] sm:$0xf]
    %v4120 = vld [vmem:[#allocation5 + $0x2c] sm:$0xf]
    %v4121 = vld [vmem:[#allocation5 + $0x30] sm:$0xf]
    %v4122 = vld [vmem:[#allocation5 + $0x34] sm:$0xf]
    %v4123 = vld [vmem:[#allocation5 + $0x38] sm:$0xf]
    %v4124 = vld [vmem:[#allocation5 + $0x3c] sm:$0xf]
    %v4125 = vld [vmem:[#allocation5 + $0x40] sm:$0xf]
    %v4126 = vld [vmem:[#allocation5 + $0x44] sm:$0xf]
    %v4127 = vld [vmem:[#allocation5 + $0x48] sm:$0xf]
    %v4128 = vld [vmem:[#allocation5 + $0x4c] sm:$0xf]
    %v4129 = vld [vmem:[#allocation5 + $0x50] sm:$0xf]
    %v4130 = vld [vmem:[#allocation5 + $0x54] sm:$0xf]
    %v4131 = vld [vmem:[#allocation5 + $0x58] sm:$0xf]
    %v4132 = vld [vmem:[#allocation5 + $0x5c] sm:$0xf]
    %v4133 = vld [vmem:[#allocation5 + $0x60] sm:$0xf]
    %v4134 = vld [vmem:[#allocation5 + $0x64] sm:$0xf]
    %v4135 = vld [vmem:[#allocation5 + $0x68] sm:$0xf]
    %v4136 = vld [vmem:[#allocation5 + $0x6c] sm:$0xf]
    %v4137 = vld [vmem:[#allocation5 + $0x70] sm:$0xf]
    %v4138 = vld [vmem:[#allocation5 + $0x74] sm:$0xf]
    %v4139 = vld [vmem:[#allocation5 + $0x78] sm:$0xf]
    %v4140 = vld [vmem:[#allocation5 + $0x7c] sm:$0xf]
    %v4141 = vld [vmem:[#allocation5 + $0x80] sm:$0xf]
    %v4142 = vld [vmem:[#allocation5 + $0x84] sm:$0xf]
    %v4143 = vld [vmem:[#allocation5 + $0x88] sm:$0xf]
    %v4144 = vld [vmem:[#allocation5 + $0x8c] sm:$0xf]
    %v4145 = vld [vmem:[#allocation5 + $0x90] sm:$0xf]
    %v4146 = vld [vmem:[#allocation5 + $0x94] sm:$0xf]
    %v4147 = vld [vmem:[#allocation5 + $0x98] sm:$0xf]
    %v4148 = vld [vmem:[#allocation5 + $0x9c] sm:$0xf]
    %v4149 = vld [vmem:[#allocation5 + $0xa0] sm:$0xf]
    %v4150 = vld [vmem:[#allocation5 + $0xa4] sm:$0xf]
    %v4151 = vld [vmem:[#allocation5 + $0xa8] sm:$0xf]
    %v4152 = vld [vmem:[#allocation5 + $0xac] sm:$0xf]
    %v4153 = vld [vmem:[#allocation5 + $0xb0] sm:$0xf]
    %v4154 = vld [vmem:[#allocation5 + $0xb4] sm:$0xf]
    %v4155 = vld [vmem:[#allocation5 + $0xb8] sm:$0xf]
    %v4156 = vld [vmem:[#allocation5 + $0xbc] sm:$0xf]
    %v4157 = vld [vmem:[#allocation5 + $0xc0] sm:$0xf]
    %v4158 = vld [vmem:[#allocation5 + $0xc4] sm:$0xf]
    %v4159 = vld [vmem:[#allocation5 + $0xc8] sm:$0xf]
    %v4160 = vld [vmem:[#allocation5 + $0xcc] sm:$0xf]
    %v4161 = vld [vmem:[#allocation5 + $0xd0] sm:$0xf]
    %v4162 = vld [vmem:[#allocation5 + $0xd4] sm:$0xf]
    %v4163 = vld [vmem:[#allocation5 + $0xd8] sm:$0xf]
    %v4164 = vld [vmem:[#allocation5 + $0xdc] sm:$0xf]
    %v4165 = vld [vmem:[#allocation5 + $0xe0] sm:$0xf]
    %v4166 = vld [vmem:[#allocation5 + $0xe4] sm:$0xf]
    %v4167 = vld [vmem:[#allocation5 + $0xe8] sm:$0xf]
    %v4168 = vld [vmem:[#allocation5 + $0xec] sm:$0xf]
    %v4169 = vld [vmem:[#allocation5 + $0xf0] sm:$0xf]
    %v4170 = vld [vmem:[#allocation5 + $0xf4] sm:$0xf]
    %v4171 = vld [vmem:[#allocation5 + $0xf8] sm:$0xf]
    %v4172 = vld [vmem:[#allocation5 + $0xfc] sm:$0xf]
    %v4173 = vld [vmem:[#allocation5 + $0x100] sm:$0xf]
    %v4174 = vld [vmem:[#allocation5 + $0x104] sm:$0xf]
    %v4175 = vld [vmem:[#allocation5 + $0x108] sm:$0xf]
    %v4176 = vld [vmem:[#allocation5 + $0x10c] sm:$0xf]
    %v4177 = vld [vmem:[#allocation5 + $0x110] sm:$0xf]
    %v4178 = vld [vmem:[#allocation5 + $0x114] sm:$0xf]
    %v4179 = vld [vmem:[#allocation5 + $0x118] sm:$0xf]
    %v4180 = vld [vmem:[#allocation5 + $0x11c] sm:$0xf]
    %v4181 = vld [vmem:[#allocation5 + $0x120] sm:$0xf]
    %v4182 = vld [vmem:[#allocation5 + $0x124] sm:$0xf]
    %v4183 = vld [vmem:[#allocation5 + $0x128] sm:$0xf]
    %v4184 = vld [vmem:[#allocation5 + $0x12c] sm:$0xf]
    %v4185 = vld [vmem:[#allocation5 + $0x130] sm:$0xf]
    %v4186 = vld [vmem:[#allocation5 + $0x134] sm:$0xf]
    %v4187 = vld [vmem:[#allocation5 + $0x138] sm:$0xf]
    %v4188 = vld [vmem:[#allocation5 + $0x13c] sm:$0xf]
    %v4189 = vld [vmem:[#allocation5 + $0x140] sm:$0xf]
    %v4190 = vld [vmem:[#allocation5 + $0x144] sm:$0xf]
    %v4191 = vld [vmem:[#allocation5 + $0x148] sm:$0xf]
    %v4192 = vld [vmem:[#allocation5 + $0x14c] sm:$0xf]
    %v4193 = vld [vmem:[#allocation5 + $0x150] sm:$0xf]
    %v4194 = vld [vmem:[#allocation5 + $0x154] sm:$0xf]
    %v4195 = vld [vmem:[#allocation5 + $0x158] sm:$0xf]
    %v4196 = vld [vmem:[#allocation5 + $0x15c] sm:$0xf]
    %v4197 = vld [vmem:[#allocation5 + $0x160] sm:$0xf]
    %v4198 = vld [vmem:[#allocation5 + $0x164] sm:$0xf]
    %v4199 = vld [vmem:[#allocation5 + $0x168] sm:$0xf]
    %v4200 = vld [vmem:[#allocation5 + $0x16c] sm:$0xf]
    %v4201 = vld [vmem:[#allocation5 + $0x170] sm:$0xf]
    %v4202 = vld [vmem:[#allocation5 + $0x174] sm:$0xf]
    %v4203 = vld [vmem:[#allocation5 + $0x178] sm:$0xf]
    %v4204 = vld [vmem:[#allocation5 + $0x17c] sm:$0xf]
    %v4205 = vld [vmem:[#allocation5 + $0x180] sm:$0xf]
    %v4206 = vld [vmem:[#allocation5 + $0x184] sm:$0xf]
    %v4207 = vld [vmem:[#allocation5 + $0x188] sm:$0xf]
    %v4208 = vld [vmem:[#allocation5 + $0x18c] sm:$0xf]
    %v4209 = vld [vmem:[#allocation5 + $0x190] sm:$0xf]
    %v4210 = vld [vmem:[#allocation5 + $0x194] sm:$0xf]
    %v4211 = vld [vmem:[#allocation5 + $0x198] sm:$0xf]
    %v4212 = vld [vmem:[#allocation5 + $0x19c] sm:$0xf]
    %v4213 = vld [vmem:[#allocation5 + $0x1a0] sm:$0xf]
    %v4214 = vld [vmem:[#allocation5 + $0x1a4] sm:$0xf]
    %v4215 = vld [vmem:[#allocation5 + $0x1a8] sm:$0xf]
    %v4216 = vld [vmem:[#allocation5 + $0x1ac] sm:$0xf]
    %v4217 = vld [vmem:[#allocation5 + $0x1b0] sm:$0xf]
    %v4218 = vld [vmem:[#allocation5 + $0x1b4] sm:$0xf]
    %v4219 = vld [vmem:[#allocation5 + $0x1b8] sm:$0xf]
    %v4220 = vld [vmem:[#allocation5 + $0x1bc] sm:$0xf]
    %v4221 = vld [vmem:[#allocation5 + $0x1c0] sm:$0xf]
    %v4222 = vld [vmem:[#allocation5 + $0x1c4] sm:$0xf]
    %v4223 = vld [vmem:[#allocation5 + $0x1c8] sm:$0xf]
    %v4224 = vld [vmem:[#allocation5 + $0x1cc] sm:$0xf]
    %v4225 = vld [vmem:[#allocation5 + $0x1d0] sm:$0xf]
    %v4226 = vld [vmem:[#allocation5 + $0x1d4] sm:$0xf]
    %v4227 = vld [vmem:[#allocation5 + $0x1d8] sm:$0xf]
    %v4228 = vld [vmem:[#allocation5 + $0x1dc] sm:$0xf]
    %v4229 = vld [vmem:[#allocation5 + $0x1e0] sm:$0xf]
    %v4230 = vld [vmem:[#allocation5 + $0x1e4] sm:$0xf]
    %v4231 = vld [vmem:[#allocation5 + $0x1e8] sm:$0xf]
    %v4232 = vld [vmem:[#allocation5 + $0x1ec] sm:$0xf]
    %v4233 = vld [vmem:[#allocation5 + $0x1f0] sm:$0xf]
    %v4234 = vld [vmem:[#allocation5 + $0x1f4] sm:$0xf]
    %v4235 = vld [vmem:[#allocation5 + $0x1f8] sm:$0xf]
    %v4236 = vld [vmem:[#allocation5 + $0x1fc] sm:$0xf]
    %v4237 = vld [vmem:[#allocation5 + $0x200] sm:$0xf]
    %v4238 = vld [vmem:[#allocation5 + $0x204] sm:$0xf]
    %v4239 = vld [vmem:[#allocation5 + $0x208] sm:$0xf]
    %v4240 = vld [vmem:[#allocation5 + $0x20c] sm:$0xf]
    %v4241 = vld [vmem:[#allocation5 + $0x210] sm:$0xf]
    %v4242 = vld [vmem:[#allocation5 + $0x214] sm:$0xf]
    %v4243 = vld [vmem:[#allocation5 + $0x218] sm:$0xf]
    %v4244 = vld [vmem:[#allocation5 + $0x21c] sm:$0xf]
    %v4245 = vld [vmem:[#allocation5 + $0x220] sm:$0xf]
    %v4246 = vld [vmem:[#allocation5 + $0x224] sm:$0xf]
    %v4247 = vld [vmem:[#allocation5 + $0x228] sm:$0xf]
    %v4248 = vld [vmem:[#allocation5 + $0x22c] sm:$0xf]
    %v4249 = vld [vmem:[#allocation5 + $0x230] sm:$0xf]
    %v4250 = vld [vmem:[#allocation5 + $0x234] sm:$0xf]
    %v4251 = vld [vmem:[#allocation5 + $0x238] sm:$0xf]
    %v4252 = vld [vmem:[#allocation5 + $0x23c] sm:$0xf]
    %v4253 = vld [vmem:[#allocation5 + $0x240] sm:$0xf]
    %v4254 = vld [vmem:[#allocation5 + $0x244] sm:$0xf]
    %v4255 = vld [vmem:[#allocation5 + $0x248] sm:$0xf]
    %v4256 = vld [vmem:[#allocation5 + $0x24c] sm:$0xf]
    %v4257 = vld [vmem:[#allocation5 + $0x250] sm:$0xf]
    %v4258 = vld [vmem:[#allocation5 + $0x254] sm:$0xf]
    %v4259 = vld [vmem:[#allocation5 + $0x258] sm:$0xf]
    %v4260 = vld [vmem:[#allocation5 + $0x25c] sm:$0xf]
    %v4261 = vld [vmem:[#allocation5 + $0x260] sm:$0xf]
    %v4262 = vld [vmem:[#allocation5 + $0x264] sm:$0xf]
    %v4263 = vld [vmem:[#allocation5 + $0x268] sm:$0xf]
    %v4264 = vld [vmem:[#allocation5 + $0x26c] sm:$0xf]
    %v4265 = vld [vmem:[#allocation5 + $0x270] sm:$0xf]
    %v4266 = vld [vmem:[#allocation5 + $0x274] sm:$0xf]
    %v4267 = vld [vmem:[#allocation5 + $0x278] sm:$0xf]
    %v4268 = vld [vmem:[#allocation5 + $0x27c] sm:$0xf]
    %v4269 = vld [vmem:[#allocation5 + $0x280] sm:$0xf]
    %v4270 = vld [vmem:[#allocation5 + $0x284] sm:$0xf]
    %v4271 = vld [vmem:[#allocation5 + $0x288] sm:$0xf]
    %v4272 = vld [vmem:[#allocation5 + $0x28c] sm:$0xf]
    %v4273 = vld [vmem:[#allocation5 + $0x290] sm:$0xf]
    %v4274 = vld [vmem:[#allocation5 + $0x294] sm:$0xf]
    %v4275 = vld [vmem:[#allocation5 + $0x298] sm:$0xf]
    %v4276 = vld [vmem:[#allocation5 + $0x29c] sm:$0xf]
    %v4277 = vld [vmem:[#allocation5 + $0x2a0] sm:$0xf]
    %v4278 = vld [vmem:[#allocation5 + $0x2a4] sm:$0xf]
    %v4279 = vld [vmem:[#allocation5 + $0x2a8] sm:$0xf]
    %v4280 = vld [vmem:[#allocation5 + $0x2ac] sm:$0xf]
    %v4281 = vld [vmem:[#allocation5 + $0x2b0] sm:$0xf]
    %v4282 = vld [vmem:[#allocation5 + $0x2b4] sm:$0xf]
    %v4283 = vld [vmem:[#allocation5 + $0x2b8] sm:$0xf]
    %v4284 = vld [vmem:[#allocation5 + $0x2bc] sm:$0xf]
    %v4285 = vld [vmem:[#allocation5 + $0x2c0] sm:$0xf]
    %v4286 = vld [vmem:[#allocation5 + $0x2c4] sm:$0xf]
    %v4287 = vld [vmem:[#allocation5 + $0x2c8] sm:$0xf]
    %v4288 = vld [vmem:[#allocation5 + $0x2cc] sm:$0xf]
    %v4289 = vld [vmem:[#allocation5 + $0x2d0] sm:$0xf]
    %v4290 = vld [vmem:[#allocation5 + $0x2d4] sm:$0xf]
    %v4291 = vld [vmem:[#allocation5 + $0x2d8] sm:$0xf]
    %v4292 = vld [vmem:[#allocation5 + $0x2dc] sm:$0xf]
    %v4293 = vld [vmem:[#allocation5 + $0x2e0] sm:$0xf]
    %v4294 = vld [vmem:[#allocation5 + $0x2e4] sm:$0xf]
    %v4295 = vld [vmem:[#allocation5 + $0x2e8] sm:$0xf]
    %v4296 = vld [vmem:[#allocation5 + $0x2ec] sm:$0xf]
    %v4297 = vld [vmem:[#allocation5 + $0x2f0] sm:$0xf]
    %v4298 = vld [vmem:[#allocation5 + $0x2f4] sm:$0xf]
    %v4299 = vld [vmem:[#allocation5 + $0x2f8] sm:$0xf]
    %v4300 = vld [vmem:[#allocation5 + $0x2fc] sm:$0xf]
    %v4301 = vld [vmem:[#allocation5 + $0x300] sm:$0xf]
    %v4302 = vld [vmem:[#allocation5 + $0x304] sm:$0xf]
    %v4303 = vld [vmem:[#allocation5 + $0x308] sm:$0xf]
    %v4304 = vld [vmem:[#allocation5 + $0x30c] sm:$0xf]
    %v4305 = vld [vmem:[#allocation5 + $0x310] sm:$0xf]
    %v4306 = vld [vmem:[#allocation5 + $0x314] sm:$0xf]
    %v4307 = vld [vmem:[#allocation5 + $0x318] sm:$0xf]
    %v4308 = vld [vmem:[#allocation5 + $0x31c] sm:$0xf]
    %v4309 = vld [vmem:[#allocation5 + $0x320] sm:$0xf]
    %v4310 = vld [vmem:[#allocation5 + $0x324] sm:$0xf]
    %v4311 = vld [vmem:[#allocation5 + $0x328] sm:$0xf]
    %v4312 = vld [vmem:[#allocation5 + $0x32c] sm:$0xf]
    %v4313 = vld [vmem:[#allocation5 + $0x330] sm:$0xf]
    %v4314 = vld [vmem:[#allocation5 + $0x334] sm:$0xf]
    %v4315 = vld [vmem:[#allocation5 + $0x338] sm:$0xf]
    %v4316 = vld [vmem:[#allocation5 + $0x33c] sm:$0xf]
    %v4317 = vld [vmem:[#allocation5 + $0x340] sm:$0xf]
    %v4318 = vld [vmem:[#allocation5 + $0x344] sm:$0xf]
    %v4319 = vld [vmem:[#allocation5 + $0x348] sm:$0xf]
    %v4320 = vld [vmem:[#allocation5 + $0x34c] sm:$0xf]
    %v4321 = vld [vmem:[#allocation5 + $0x350] sm:$0xf]
    %v4322 = vld [vmem:[#allocation5 + $0x354] sm:$0xf]
    %v4323 = vld [vmem:[#allocation5 + $0x358] sm:$0xf]
    %v4324 = vld [vmem:[#allocation5 + $0x35c] sm:$0xf]
    %v4325 = vld [vmem:[#allocation5 + $0x360] sm:$0xf]
    %v4326 = vld [vmem:[#allocation5 + $0x364] sm:$0xf]
    %v4327 = vld [vmem:[#allocation5 + $0x368] sm:$0xf]
    %v4328 = vld [vmem:[#allocation5 + $0x36c] sm:$0xf]
    %v4329 = vld [vmem:[#allocation5 + $0x370] sm:$0xf]
    %v4330 = vld [vmem:[#allocation5 + $0x374] sm:$0xf]
    %v4331 = vld [vmem:[#allocation5 + $0x378] sm:$0xf]
    %v4332 = vld [vmem:[#allocation5 + $0x37c] sm:$0xf]
    %v4333 = vld [vmem:[#allocation5 + $0x380] sm:$0xf]
    %v4334 = vld [vmem:[#allocation5 + $0x384] sm:$0xf]
    %v4335 = vld [vmem:[#allocation5 + $0x388] sm:$0xf]
    %v4336 = vld [vmem:[#allocation5 + $0x38c] sm:$0xf]
    %v4337 = vld [vmem:[#allocation5 + $0x390] sm:$0xf]
    %v4338 = vld [vmem:[#allocation5 + $0x394] sm:$0xf]
    %v4339 = vld [vmem:[#allocation5 + $0x398] sm:$0xf]
    %v4340 = vld [vmem:[#allocation5 + $0x39c] sm:$0xf]
    %v4341 = vld [vmem:[#allocation5 + $0x3a0] sm:$0xf]
    %v4342 = vld [vmem:[#allocation5 + $0x3a4] sm:$0xf]
    %v4343 = vld [vmem:[#allocation5 + $0x3a8] sm:$0xf]
    %v4344 = vld [vmem:[#allocation5 + $0x3ac] sm:$0xf]
    %v4345 = vld [vmem:[#allocation5 + $0x3b0] sm:$0xf]
    %v4346 = vld [vmem:[#allocation5 + $0x3b4] sm:$0xf]
    %v4347 = vld [vmem:[#allocation5 + $0x3b8] sm:$0xf]
    %v4348 = vld [vmem:[#allocation5 + $0x3bc] sm:$0xf]
    %v4349 = vld [vmem:[#allocation5 + $0x3c0] sm:$0xf]
    %v4350 = vld [vmem:[#allocation5 + $0x3c4] sm:$0xf]
    %v4351 = vld [vmem:[#allocation5 + $0x3c8] sm:$0xf]
    %v4352 = vld [vmem:[#allocation5 + $0x3cc] sm:$0xf]
    %v4353 = vld [vmem:[#allocation5 + $0x3d0] sm:$0xf]
    %v4354 = vld [vmem:[#allocation5 + $0x3d4] sm:$0xf]
    %v4355 = vld [vmem:[#allocation5 + $0x3d8] sm:$0xf]
    %v4356 = vld [vmem:[#allocation5 + $0x3dc] sm:$0xf]
    %v4357 = vld [vmem:[#allocation5 + $0x3e0] sm:$0xf]
    %v4358 = vld [vmem:[#allocation5 + $0x3e4] sm:$0xf]
    %v4359 = vld [vmem:[#allocation5 + $0x3e8] sm:$0xf]
    %v4360 = vld [vmem:[#allocation5 + $0x3ec] sm:$0xf]
    %v4361 = vld [vmem:[#allocation5 + $0x3f0] sm:$0xf]
    %v4362 = vld [vmem:[#allocation5 + $0x3f4] sm:$0xf]
    %v4363 = vld [vmem:[#allocation5 + $0x3f8] sm:$0xf]
    %v4364 = vld [vmem:[#allocation5 + $0x3fc] sm:$0xf]
    %v4365 = vld [vmem:[#allocation5 + $0x400] sm:$0xf]
    %v4366 = vld [vmem:[#allocation5 + $0x404] sm:$0xf]
    %v4367 = vld [vmem:[#allocation5 + $0x408] sm:$0xf]
    %v4368 = vld [vmem:[#allocation5 + $0x40c] sm:$0xf]
    %v4369 = vld [vmem:[#allocation5 + $0x410] sm:$0xf]
    %v4370 = vld [vmem:[#allocation5 + $0x414] sm:$0xf]
    %v4371 = vld [vmem:[#allocation5 + $0x418] sm:$0xf]
    %v4372 = vld [vmem:[#allocation5 + $0x41c] sm:$0xf]
    %v4373 = vld [vmem:[#allocation5 + $0x420] sm:$0xf]
    %v4374 = vld [vmem:[#allocation5 + $0x424] sm:$0xf]
    %v4375 = vld [vmem:[#allocation5 + $0x428] sm:$0xf]
    %v4376 = vld [vmem:[#allocation5 + $0x42c] sm:$0xf]
    %v4377 = vld [vmem:[#allocation5 + $0x430] sm:$0xf]
    %v4378 = vld [vmem:[#allocation5 + $0x434] sm:$0xf]
    %v4379 = vld [vmem:[#allocation5 + $0x438] sm:$0xf]
    %v4380 = vld [vmem:[#allocation5 + $0x43c] sm:$0xf]
    %v4381 = vld [vmem:[#allocation5 + $0x440] sm:$0xf]
    %v4382 = vld [vmem:[#allocation5 + $0x444] sm:$0xf]
    %v4383 = vld [vmem:[#allocation5 + $0x448] sm:$0xf]
    %v4384 = vld [vmem:[#allocation5 + $0x44c] sm:$0xf]
    %v4385 = vld [vmem:[#allocation5 + $0x450] sm:$0xf]
    %v4386 = vld [vmem:[#allocation5 + $0x454] sm:$0xf]
    %v4387 = vld [vmem:[#allocation5 + $0x458] sm:$0xf]
    %v4388 = vld [vmem:[#allocation5 + $0x45c] sm:$0xf]
    %v4389 = vld [vmem:[#allocation5 + $0x460] sm:$0xf]
    %v4390 = vld [vmem:[#allocation5 + $0x464] sm:$0xf]
    %v4391 = vld [vmem:[#allocation5 + $0x468] sm:$0xf]
    %v4392 = vld [vmem:[#allocation5 + $0x46c] sm:$0xf]
    %v4393 = vld [vmem:[#allocation5 + $0x470] sm:$0xf]
    %v4394 = vld [vmem:[#allocation5 + $0x474] sm:$0xf]
    %v4395 = vld [vmem:[#allocation5 + $0x478] sm:$0xf]
    %v4396 = vld [vmem:[#allocation5 + $0x47c] sm:$0xf]
    %v4397 = vld [vmem:[#allocation5 + $0x480] sm:$0xf]
    %v4398 = vld [vmem:[#allocation5 + $0x484] sm:$0xf]
    %v4399 = vld [vmem:[#allocation5 + $0x488] sm:$0xf]
    %v4400 = vld [vmem:[#allocation5 + $0x48c] sm:$0xf]
    %v4401 = vld [vmem:[#allocation5 + $0x490] sm:$0xf]
    %v4402 = vld [vmem:[#allocation5 + $0x494] sm:$0xf]
    %v4403 = vld [vmem:[#allocation5 + $0x498] sm:$0xf]
    %v4404 = vld [vmem:[#allocation5 + $0x49c] sm:$0xf]
    %v4405 = vld [vmem:[#allocation5 + $0x4a0] sm:$0xf]
    %v4406 = vld [vmem:[#allocation5 + $0x4a4] sm:$0xf]
    %v4407 = vld [vmem:[#allocation5 + $0x4a8] sm:$0xf]
    %v4408 = vld [vmem:[#allocation5 + $0x4ac] sm:$0xf]
    %v4409 = vld [vmem:[#allocation5 + $0x4b0] sm:$0xf]
    %v4410 = vld [vmem:[#allocation5 + $0x4b4] sm:$0xf]
    %v4411 = vld [vmem:[#allocation5 + $0x4b8] sm:$0xf]
    %v4412 = vld [vmem:[#allocation5 + $0x4bc] sm:$0xf]
    %v4413 = vld [vmem:[#allocation5 + $0x4c0] sm:$0xf]
    %v4414 = vld [vmem:[#allocation5 + $0x4c4] sm:$0xf]
    %v4415 = vld [vmem:[#allocation5 + $0x4c8] sm:$0xf]
    %v4416 = vld [vmem:[#allocation5 + $0x4cc] sm:$0xf]
    %v4417 = vld [vmem:[#allocation5 + $0x4d0] sm:$0xf]
    %v4418 = vld [vmem:[#allocation5 + $0x4d4] sm:$0xf]
    %v4419 = vld [vmem:[#allocation5 + $0x4d8] sm:$0xf]
    %v4420 = vld [vmem:[#allocation5 + $0x4dc] sm:$0xf]
    %v4421 = vld [vmem:[#allocation5 + $0x4e0] sm:$0xf]
    %v4422 = vld [vmem:[#allocation5 + $0x4e4] sm:$0xf]
    %v4423 = vld [vmem:[#allocation5 + $0x4e8] sm:$0xf]
    %v4424 = vld [vmem:[#allocation5 + $0x4ec] sm:$0xf]
    %v4425 = vld [vmem:[#allocation5 + $0x4f0] sm:$0xf]
    %v4426 = vld [vmem:[#allocation5 + $0x4f4] sm:$0xf]
    %v4427 = vld [vmem:[#allocation5 + $0x4f8] sm:$0xf]
    %v4428 = vld [vmem:[#allocation5 + $0x4fc] sm:$0xf]
    %v4429 = vld [vmem:[#allocation5 + $0x500] sm:$0xf]
    %v4430 = vld [vmem:[#allocation5 + $0x504] sm:$0xf]
    %v4431 = vld [vmem:[#allocation5 + $0x508] sm:$0xf]
    %v4432 = vld [vmem:[#allocation5 + $0x50c] sm:$0xf]
    %v4433 = vld [vmem:[#allocation5 + $0x510] sm:$0xf]
    %v4434 = vld [vmem:[#allocation5 + $0x514] sm:$0xf]
    %v4435 = vld [vmem:[#allocation5 + $0x518] sm:$0xf]
    %v4436 = vld [vmem:[#allocation5 + $0x51c] sm:$0xf]
    %v4437 = vld [vmem:[#allocation5 + $0x520] sm:$0xf]
    %v4438 = vld [vmem:[#allocation5 + $0x524] sm:$0xf]
    %v4439 = vld [vmem:[#allocation5 + $0x528] sm:$0xf]
    %v4440 = vld [vmem:[#allocation5 + $0x52c] sm:$0xf]
    %v4441 = vld [vmem:[#allocation5 + $0x530] sm:$0xf]
    %v4442 = vld [vmem:[#allocation5 + $0x534] sm:$0xf]
    %v4443 = vld [vmem:[#allocation5 + $0x538] sm:$0xf]
    %v4444 = vld [vmem:[#allocation5 + $0x53c] sm:$0xf]
    %v4445 = vld [vmem:[#allocation5 + $0x540] sm:$0xf]
    %v4446 = vld [vmem:[#allocation5 + $0x544] sm:$0xf]
    %v4447 = vld [vmem:[#allocation5 + $0x548] sm:$0xf]
    %v4448 = vld [vmem:[#allocation5 + $0x54c] sm:$0xf]
    %v4449 = vld [vmem:[#allocation5 + $0x550] sm:$0xf]
    %v4450 = vld [vmem:[#allocation5 + $0x554] sm:$0xf]
    %v4451 = vld [vmem:[#allocation5 + $0x558] sm:$0xf]
    %v4452 = vld [vmem:[#allocation5 + $0x55c] sm:$0xf]
    %v4453 = vld [vmem:[#allocation5 + $0x560] sm:$0xf]
    %v4454 = vld [vmem:[#allocation5 + $0x564] sm:$0xf]
    %v4455 = vld [vmem:[#allocation5 + $0x568] sm:$0xf]
    %v4456 = vld [vmem:[#allocation5 + $0x56c] sm:$0xf]
    %v4457 = vld [vmem:[#allocation5 + $0x570] sm:$0xf]
    %v4458 = vld [vmem:[#allocation5 + $0x574] sm:$0xf]
    %v4459 = vld [vmem:[#allocation5 + $0x578] sm:$0xf]
    %v4460 = vld [vmem:[#allocation5 + $0x57c] sm:$0xf]
    %v4461 = vld [vmem:[#allocation5 + $0x580] sm:$0xf]
    %v4462 = vld [vmem:[#allocation5 + $0x584] sm:$0xf]
    %v4463 = vld [vmem:[#allocation5 + $0x588] sm:$0xf]
    %v4464 = vld [vmem:[#allocation5 + $0x58c] sm:$0xf]
    %v4465 = vld [vmem:[#allocation5 + $0x590] sm:$0xf]
    %v4466 = vld [vmem:[#allocation5 + $0x594] sm:$0xf]
    %v4467 = vld [vmem:[#allocation5 + $0x598] sm:$0xf]
    %v4468 = vld [vmem:[#allocation5 + $0x59c] sm:$0xf]
    %v4469 = vld [vmem:[#allocation5 + $0x5a0] sm:$0xf]
    %v4470 = vld [vmem:[#allocation5 + $0x5a4] sm:$0xf]
    %v4471 = vld [vmem:[#allocation5 + $0x5a8] sm:$0xf]
    %v4472 = vld [vmem:[#allocation5 + $0x5ac] sm:$0xf]
    %v4473 = vld [vmem:[#allocation5 + $0x5b0] sm:$0xf]
    %v4474 = vld [vmem:[#allocation5 + $0x5b4] sm:$0xf]
    %v4475 = vld [vmem:[#allocation5 + $0x5b8] sm:$0xf]
    %v4476 = vld [vmem:[#allocation5 + $0x5bc] sm:$0xf]
    %v4477 = vld [vmem:[#allocation5 + $0x5c0] sm:$0xf]
    %v4478 = vld [vmem:[#allocation5 + $0x5c4] sm:$0xf]
    %v4479 = vld [vmem:[#allocation5 + $0x5c8] sm:$0xf]
    %v4480 = vld [vmem:[#allocation5 + $0x5cc] sm:$0xf]
    %v4481 = vld [vmem:[#allocation5 + $0x5d0] sm:$0xf]
    %v4482 = vld [vmem:[#allocation5 + $0x5d4] sm:$0xf]
    %v4483 = vld [vmem:[#allocation5 + $0x5d8] sm:$0xf]
    %v4484 = vld [vmem:[#allocation5 + $0x5dc] sm:$0xf]
    %v4485 = vld [vmem:[#allocation5 + $0x5e0] sm:$0xf]
    %v4486 = vld [vmem:[#allocation5 + $0x5e4] sm:$0xf]
    %v4487 = vld [vmem:[#allocation5 + $0x5e8] sm:$0xf]
    %v4488 = vld [vmem:[#allocation5 + $0x5ec] sm:$0xf]
    %v4489 = vld [vmem:[#allocation5 + $0x5f0] sm:$0xf]
    %v4490 = vld [vmem:[#allocation5 + $0x5f4] sm:$0xf]
    %v4491 = vld [vmem:[#allocation5 + $0x5f8] sm:$0xf]
    %v4492 = vld [vmem:[#allocation5 + $0x5fc] sm:$0xf]
    %v4493 = vld [vmem:[#allocation5 + $0x600] sm:$0xf]
    %v4494 = vld [vmem:[#allocation5 + $0x604] sm:$0xf]
    %v4495 = vld [vmem:[#allocation5 + $0x608] sm:$0xf]
    %v4496 = vld [vmem:[#allocation5 + $0x60c] sm:$0xf]
    %v4497 = vld [vmem:[#allocation5 + $0x610] sm:$0xf]
    %v4498 = vld [vmem:[#allocation5 + $0x614] sm:$0xf]
    %v4499 = vld [vmem:[#allocation5 + $0x618] sm:$0xf]
    %v4500 = vld [vmem:[#allocation5 + $0x61c] sm:$0xf]
    %v4501 = vld [vmem:[#allocation5 + $0x620] sm:$0xf]
    %v4502 = vld [vmem:[#allocation5 + $0x624] sm:$0xf]
    %v4503 = vld [vmem:[#allocation5 + $0x628] sm:$0xf]
    %v4504 = vld [vmem:[#allocation5 + $0x62c] sm:$0xf]
    %v4505 = vld [vmem:[#allocation5 + $0x630] sm:$0xf]
    %v4506 = vld [vmem:[#allocation5 + $0x634] sm:$0xf]
    %v4507 = vld [vmem:[#allocation5 + $0x638] sm:$0xf]
    %v4508 = vld [vmem:[#allocation5 + $0x63c] sm:$0xf]
    %v4509 = vld [vmem:[#allocation5 + $0x640] sm:$0xf]
    %v4510 = vld [vmem:[#allocation5 + $0x644] sm:$0xf]
    %v4511 = vld [vmem:[#allocation5 + $0x648] sm:$0xf]
    %v4512 = vld [vmem:[#allocation5 + $0x64c] sm:$0xf]
    %v4513 = vld [vmem:[#allocation5 + $0x650] sm:$0xf]
    %v4514 = vld [vmem:[#allocation5 + $0x654] sm:$0xf]
    %v4515 = vld [vmem:[#allocation5 + $0x658] sm:$0xf]
    %v4516 = vld [vmem:[#allocation5 + $0x65c] sm:$0xf]
    %v4517 = vld [vmem:[#allocation5 + $0x660] sm:$0xf]
    %v4518 = vld [vmem:[#allocation5 + $0x664] sm:$0xf]
    %v4519 = vld [vmem:[#allocation5 + $0x668] sm:$0xf]
    %v4520 = vld [vmem:[#allocation5 + $0x66c] sm:$0xf]
    %v4521 = vld [vmem:[#allocation5 + $0x670] sm:$0xf]
    %v4522 = vld [vmem:[#allocation5 + $0x674] sm:$0xf]
    %v4523 = vld [vmem:[#allocation5 + $0x678] sm:$0xf]
    %v4524 = vld [vmem:[#allocation5 + $0x67c] sm:$0xf]
    %v4525 = vld [vmem:[#allocation5 + $0x680] sm:$0xf]
    %v4526 = vld [vmem:[#allocation5 + $0x684] sm:$0xf]
    %v4527 = vld [vmem:[#allocation5 + $0x688] sm:$0xf]
    %v4528 = vld [vmem:[#allocation5 + $0x68c] sm:$0xf]
    %v4529 = vld [vmem:[#allocation5 + $0x690] sm:$0xf]
    %v4530 = vld [vmem:[#allocation5 + $0x694] sm:$0xf]
    %v4531 = vld [vmem:[#allocation5 + $0x698] sm:$0xf]
    %v4532 = vld [vmem:[#allocation5 + $0x69c] sm:$0xf]
    %v4533 = vld [vmem:[#allocation5 + $0x6a0] sm:$0xf]
    %v4534 = vld [vmem:[#allocation5 + $0x6a4] sm:$0xf]
    %v4535 = vld [vmem:[#allocation5 + $0x6a8] sm:$0xf]
    %v4536 = vld [vmem:[#allocation5 + $0x6ac] sm:$0xf]
    %v4537 = vld [vmem:[#allocation5 + $0x6b0] sm:$0xf]
    %v4538 = vld [vmem:[#allocation5 + $0x6b4] sm:$0xf]
    %v4539 = vld [vmem:[#allocation5 + $0x6b8] sm:$0xf]
    %v4540 = vld [vmem:[#allocation5 + $0x6bc] sm:$0xf]
    %v4541 = vld [vmem:[#allocation5 + $0x6c0] sm:$0xf]
    %v4542 = vld [vmem:[#allocation5 + $0x6c4] sm:$0xf]
    %v4543 = vld [vmem:[#allocation5 + $0x6c8] sm:$0xf]
    %v4544 = vld [vmem:[#allocation5 + $0x6cc] sm:$0xf]
    %v4545 = vld [vmem:[#allocation5 + $0x6d0] sm:$0xf]
    %v4546 = vld [vmem:[#allocation5 + $0x6d4] sm:$0xf]
    %v4547 = vld [vmem:[#allocation5 + $0x6d8] sm:$0xf]
    %v4548 = vld [vmem:[#allocation5 + $0x6dc] sm:$0xf]
    %v4549 = vld [vmem:[#allocation5 + $0x6e0] sm:$0xf]
    %v4550 = vld [vmem:[#allocation5 + $0x6e4] sm:$0xf]
    %v4551 = vld [vmem:[#allocation5 + $0x6e8] sm:$0xf]
    %v4552 = vld [vmem:[#allocation5 + $0x6ec] sm:$0xf]
    %v4553 = vld [vmem:[#allocation5 + $0x6f0] sm:$0xf]
    %v4554 = vld [vmem:[#allocation5 + $0x6f4] sm:$0xf]
    %v4555 = vld [vmem:[#allocation5 + $0x6f8] sm:$0xf]
    %v4556 = vld [vmem:[#allocation5 + $0x6fc] sm:$0xf]
    %v4557 = vld [vmem:[#allocation5 + $0x700] sm:$0xf]
    %v4558 = vld [vmem:[#allocation5 + $0x704] sm:$0xf]
    %v4559 = vld [vmem:[#allocation5 + $0x708] sm:$0xf]
    %v4560 = vld [vmem:[#allocation5 + $0x70c] sm:$0xf]
    %v4561 = vld [vmem:[#allocation5 + $0x710] sm:$0xf]
    %v4562 = vld [vmem:[#allocation5 + $0x714] sm:$0xf]
    %v4563 = vld [vmem:[#allocation5 + $0x718] sm:$0xf]
    %v4564 = vld [vmem:[#allocation5 + $0x71c] sm:$0xf]
    %v4565 = vld [vmem:[#allocation5 + $0x720] sm:$0xf]
    %v4566 = vld [vmem:[#allocation5 + $0x724] sm:$0xf]
    %v4567 = vld [vmem:[#allocation5 + $0x728] sm:$0xf]
    %v4568 = vld [vmem:[#allocation5 + $0x72c] sm:$0xf]
    %v4569 = vld [vmem:[#allocation5 + $0x730] sm:$0xf]
    %v4570 = vld [vmem:[#allocation5 + $0x734] sm:$0xf]
    %v4571 = vld [vmem:[#allocation5 + $0x738] sm:$0xf]
    %v4572 = vld [vmem:[#allocation5 + $0x73c] sm:$0xf]
    %v4573 = vld [vmem:[#allocation5 + $0x740] sm:$0xf]
    %v4574 = vld [vmem:[#allocation5 + $0x744] sm:$0xf]
    %v4575 = vld [vmem:[#allocation5 + $0x748] sm:$0xf]
    %v4576 = vld [vmem:[#allocation5 + $0x74c] sm:$0xf]
    %v4577 = vld [vmem:[#allocation5 + $0x750] sm:$0xf]
    %v4578 = vld [vmem:[#allocation5 + $0x754] sm:$0xf]
    %v4579 = vld [vmem:[#allocation5 + $0x758] sm:$0xf]
    %v4580 = vld [vmem:[#allocation5 + $0x75c] sm:$0xf]
    %v4581 = vld [vmem:[#allocation5 + $0x760] sm:$0xf]
    %v4582 = vld [vmem:[#allocation5 + $0x764] sm:$0xf]
    %v4583 = vld [vmem:[#allocation5 + $0x768] sm:$0xf]
    %v4584 = vld [vmem:[#allocation5 + $0x76c] sm:$0xf]
    %v4585 = vld [vmem:[#allocation5 + $0x770] sm:$0xf]
    %v4586 = vld [vmem:[#allocation5 + $0x774] sm:$0xf]
    %v4587 = vld [vmem:[#allocation5 + $0x778] sm:$0xf]
    %v4588 = vld [vmem:[#allocation5 + $0x77c] sm:$0xf]
    %v4589 = vld [vmem:[#allocation5 + $0x780] sm:$0xf]
    %v4590 = vld [vmem:[#allocation5 + $0x784] sm:$0xf]
    %v4591 = vld [vmem:[#allocation5 + $0x788] sm:$0xf]
    %v4592 = vld [vmem:[#allocation5 + $0x78c] sm:$0xf]
    %v4593 = vld [vmem:[#allocation5 + $0x790] sm:$0xf]
    %v4594 = vld [vmem:[#allocation5 + $0x794] sm:$0xf]
    %v4595 = vld [vmem:[#allocation5 + $0x798] sm:$0xf]
    %v4596 = vld [vmem:[#allocation5 + $0x79c] sm:$0xf]
    %v4597 = vld [vmem:[#allocation5 + $0x7a0] sm:$0xf]
    %v4598 = vld [vmem:[#allocation5 + $0x7a4] sm:$0xf]
    %v4599 = vld [vmem:[#allocation5 + $0x7a8] sm:$0xf]
    %v4600 = vld [vmem:[#allocation5 + $0x7ac] sm:$0xf]
    %v4601 = vld [vmem:[#allocation5 + $0x7b0] sm:$0xf]
    %v4602 = vld [vmem:[#allocation5 + $0x7b4] sm:$0xf]
    %v4603 = vld [vmem:[#allocation5 + $0x7b8] sm:$0xf]
    %v4604 = vld [vmem:[#allocation5 + $0x7bc] sm:$0xf]
    %v4605 = vld [vmem:[#allocation5 + $0x7c0] sm:$0xf]
    %v4606 = vld [vmem:[#allocation5 + $0x7c4] sm:$0xf]
    %v4607 = vld [vmem:[#allocation5 + $0x7c8] sm:$0xf]
    %v4608 = vld [vmem:[#allocation5 + $0x7cc] sm:$0xf]
    %v4609 = vld [vmem:[#allocation5 + $0x7d0] sm:$0xf]
    %v4610 = vld [vmem:[#allocation5 + $0x7d4] sm:$0xf]
    %v4611 = vld [vmem:[#allocation5 + $0x7d8] sm:$0xf]
    %v4612 = vld [vmem:[#allocation5 + $0x7dc] sm:$0xf]
    %v4613 = vld [vmem:[#allocation5 + $0x7e0] sm:$0xf]
    %v4614 = vld [vmem:[#allocation5 + $0x7e4] sm:$0xf]
    %v4615 = vld [vmem:[#allocation5 + $0x7e8] sm:$0xf]
    %v4616 = vld [vmem:[#allocation5 + $0x7ec] sm:$0xf]
    %v4617 = vld [vmem:[#allocation5 + $0x7f0] sm:$0xf]
    %v4618 = vld [vmem:[#allocation5 + $0x7f4] sm:$0xf]
    %v4619 = vld [vmem:[#allocation5 + $0x7f8] sm:$0xf]
    %v4620 = vld [vmem:[#allocation5 + $0x7fc] sm:$0xf]
    %v4621 = vld [vmem:[%s8] sm:$0x1]
    %v4623 = vperm.slane %v4621, 0
    %v5137 = vunpack.c.l.b16 %v4109
    %v5138 = vunpack.c.l.b16 %v4110
    %v5139 = vunpack.c.l.b16 %v4111
    %v5140 = vunpack.c.l.b16 %v4112
    %v5141 = vunpack.c.l.b16 %v4113
    %v5142 = vunpack.c.l.b16 %v4114
    %v5143 = vunpack.c.l.b16 %v4115
    %v5144 = vunpack.c.l.b16 %v4116
    %v5145 = vunpack.c.l.b16 %v4117
    %v5146 = vunpack.c.l.b16 %v4118
    %v5147 = vunpack.c.l.b16 %v4119
    %v5148 = vunpack.c.l.b16 %v4120
    %v5149 = vunpack.c.l.b16 %v4121
    %v5150 = vunpack.c.l.b16 %v4122
    %v5151 = vunpack.c.l.b16 %v4123
    %v5152 = vunpack.c.l.b16 %v4124
    %v5153 = vunpack.c.l.b16 %v4125
    %v5154 = vunpack.c.l.b16 %v4126
    %v5155 = vunpack.c.l.b16 %v4127
    %v5156 = vunpack.c.l.b16 %v4128
    %v5157 = vunpack.c.l.b16 %v4129
    %v5158 = vunpack.c.l.b16 %v4130
    %v5159 = vunpack.c.l.b16 %v4131
    %v5160 = vunpack.c.l.b16 %v4132
    %v5161 = vunpack.c.l.b16 %v4133
    %v5162 = vunpack.c.l.b16 %v4134
    %v5163 = vunpack.c.l.b16 %v4135
    %v5164 = vunpack.c.l.b16 %v4136
    %v5165 = vunpack.c.l.b16 %v4137
    %v5166 = vunpack.c.l.b16 %v4138
    %v5167 = vunpack.c.l.b16 %v4139
    %v5168 = vunpack.c.l.b16 %v4140
    %v5169 = vunpack.c.l.b16 %v4141
    %v5170 = vunpack.c.l.b16 %v4142
    %v5171 = vunpack.c.l.b16 %v4143
    %v5172 = vunpack.c.l.b16 %v4144
    %v5173 = vunpack.c.l.b16 %v4145
    %v5174 = vunpack.c.l.b16 %v4146
    %v5175 = vunpack.c.l.b16 %v4147
    %v5176 = vunpack.c.l.b16 %v4148
    %v5177 = vunpack.c.l.b16 %v4149
    %v5178 = vunpack.c.l.b16 %v4150
    %v5179 = vunpack.c.l.b16 %v4151
    %v5180 = vunpack.c.l.b16 %v4152
    %v5181 = vunpack.c.l.b16 %v4153
    %v5182 = vunpack.c.l.b16 %v4154
    %v5183 = vunpack.c.l.b16 %v4155
    %v5184 = vunpack.c.l.b16 %v4156
    %v5185 = vunpack.c.l.b16 %v4157
    %v5186 = vunpack.c.l.b16 %v4158
    %v5187 = vunpack.c.l.b16 %v4159
    %v5188 = vunpack.c.l.b16 %v4160
    %v5189 = vunpack.c.l.b16 %v4161
    %v5190 = vunpack.c.l.b16 %v4162
    %v5191 = vunpack.c.l.b16 %v4163
    %v5192 = vunpack.c.l.b16 %v4164
    %v5193 = vunpack.c.l.b16 %v4165
    %v5194 = vunpack.c.l.b16 %v4166
    %v5195 = vunpack.c.l.b16 %v4167
    %v5196 = vunpack.c.l.b16 %v4168
    %v5197 = vunpack.c.l.b16 %v4169
    %v5198 = vunpack.c.l.b16 %v4170
    %v5199 = vunpack.c.l.b16 %v4171
    %v5200 = vunpack.c.l.b16 %v4172
    %v5201 = vunpack.c.l.b16 %v4173
    %v5202 = vunpack.c.l.b16 %v4174
    %v5203 = vunpack.c.l.b16 %v4175
    %v5204 = vunpack.c.l.b16 %v4176
    %v5205 = vunpack.c.l.b16 %v4177
    %v5206 = vunpack.c.l.b16 %v4178
    %v5207 = vunpack.c.l.b16 %v4179
    %v5208 = vunpack.c.l.b16 %v4180
    %v5209 = vunpack.c.l.b16 %v4181
    %v5210 = vunpack.c.l.b16 %v4182
    %v5211 = vunpack.c.l.b16 %v4183
    %v5212 = vunpack.c.l.b16 %v4184
    %v5213 = vunpack.c.l.b16 %v4185
    %v5214 = vunpack.c.l.b16 %v4186
    %v5215 = vunpack.c.l.b16 %v4187
    %v5216 = vunpack.c.l.b16 %v4188
    %v5217 = vunpack.c.l.b16 %v4189
    %v5218 = vunpack.c.l.b16 %v4190
    %v5219 = vunpack.c.l.b16 %v4191
    %v5220 = vunpack.c.l.b16 %v4192
    %v5221 = vunpack.c.l.b16 %v4193
    %v5222 = vunpack.c.l.b16 %v4194
    %v5223 = vunpack.c.l.b16 %v4195
    %v5224 = vunpack.c.l.b16 %v4196
    %v5225 = vunpack.c.l.b16 %v4197
    %v5226 = vunpack.c.l.b16 %v4198
    %v5227 = vunpack.c.l.b16 %v4199
    %v5228 = vunpack.c.l.b16 %v4200
    %v5229 = vunpack.c.l.b16 %v4201
    %v5230 = vunpack.c.l.b16 %v4202
    %v5231 = vunpack.c.l.b16 %v4203
    %v5232 = vunpack.c.l.b16 %v4204
    %v5233 = vunpack.c.l.b16 %v4205
    %v5234 = vunpack.c.l.b16 %v4206
    %v5235 = vunpack.c.l.b16 %v4207
    %v5236 = vunpack.c.l.b16 %v4208
    %v5237 = vunpack.c.l.b16 %v4209
    %v5238 = vunpack.c.l.b16 %v4210
    %v5239 = vunpack.c.l.b16 %v4211
    %v5240 = vunpack.c.l.b16 %v4212
    %v5241 = vunpack.c.l.b16 %v4213
    %v5242 = vunpack.c.l.b16 %v4214
    %v5243 = vunpack.c.l.b16 %v4215
    %v5244 = vunpack.c.l.b16 %v4216
    %v5245 = vunpack.c.l.b16 %v4217
    %v5246 = vunpack.c.l.b16 %v4218
    %v5247 = vunpack.c.l.b16 %v4219
    %v5248 = vunpack.c.l.b16 %v4220
    %v5249 = vunpack.c.l.b16 %v4221
    %v5250 = vunpack.c.l.b16 %v4222
    %v5251 = vunpack.c.l.b16 %v4223
    %v5252 = vunpack.c.l.b16 %v4224
    %v5253 = vunpack.c.l.b16 %v4225
    %v5254 = vunpack.c.l.b16 %v4226
    %v5255 = vunpack.c.l.b16 %v4227
    %v5256 = vunpack.c.l.b16 %v4228
    %v5257 = vunpack.c.l.b16 %v4229
    %v5258 = vunpack.c.l.b16 %v4230
    %v5259 = vunpack.c.l.b16 %v4231
    %v5260 = vunpack.c.l.b16 %v4232
    %v5261 = vunpack.c.l.b16 %v4233
    %v5262 = vunpack.c.l.b16 %v4234
    %v5263 = vunpack.c.l.b16 %v4235
    %v5264 = vunpack.c.l.b16 %v4236
    %v5265 = vunpack.c.l.b16 %v4237
    %v5266 = vunpack.c.l.b16 %v4238
    %v5267 = vunpack.c.l.b16 %v4239
    %v5268 = vunpack.c.l.b16 %v4240
    %v5269 = vunpack.c.l.b16 %v4241
    %v5270 = vunpack.c.l.b16 %v4242
    %v5271 = vunpack.c.l.b16 %v4243
    %v5272 = vunpack.c.l.b16 %v4244
    %v5273 = vunpack.c.l.b16 %v4245
    %v5274 = vunpack.c.l.b16 %v4246
    %v5275 = vunpack.c.l.b16 %v4247
    %v5276 = vunpack.c.l.b16 %v4248
    %v5277 = vunpack.c.l.b16 %v4249
    %v5278 = vunpack.c.l.b16 %v4250
    %v5279 = vunpack.c.l.b16 %v4251
    %v5280 = vunpack.c.l.b16 %v4252
    %v5281 = vunpack.c.l.b16 %v4253
    %v5282 = vunpack.c.l.b16 %v4254
    %v5283 = vunpack.c.l.b16 %v4255
    %v5284 = vunpack.c.l.b16 %v4256
    %v5285 = vunpack.c.l.b16 %v4257
    %v5286 = vunpack.c.l.b16 %v4258
    %v5287 = vunpack.c.l.b16 %v4259
    %v5288 = vunpack.c.l.b16 %v4260
    %v5289 = vunpack.c.l.b16 %v4261
    %v5290 = vunpack.c.l.b16 %v4262
    %v5291 = vunpack.c.l.b16 %v4263
    %v5292 = vunpack.c.l.b16 %v4264
    %v5293 = vunpack.c.l.b16 %v4265
    %v5294 = vunpack.c.l.b16 %v4266
    %v5295 = vunpack.c.l.b16 %v4267
    %v5296 = vunpack.c.l.b16 %v4268
    %v5297 = vunpack.c.l.b16 %v4269
    %v5298 = vunpack.c.l.b16 %v4270
    %v5299 = vunpack.c.l.b16 %v4271
    %v5300 = vunpack.c.l.b16 %v4272
    %v5301 = vunpack.c.l.b16 %v4273
    %v5302 = vunpack.c.l.b16 %v4274
    %v5303 = vunpack.c.l.b16 %v4275
    %v5304 = vunpack.c.l.b16 %v4276
    %v5305 = vunpack.c.l.b16 %v4277
    %v5306 = vunpack.c.l.b16 %v4278
    %v5307 = vunpack.c.l.b16 %v4279
    %v5308 = vunpack.c.l.b16 %v4280
    %v5309 = vunpack.c.l.b16 %v4281
    %v5310 = vunpack.c.l.b16 %v4282
    %v5311 = vunpack.c.l.b16 %v4283
    %v5312 = vunpack.c.l.b16 %v4284
    %v5313 = vunpack.c.l.b16 %v4285
    %v5314 = vunpack.c.l.b16 %v4286
    %v5315 = vunpack.c.l.b16 %v4287
    %v5316 = vunpack.c.l.b16 %v4288
    %v5317 = vunpack.c.l.b16 %v4289
    %v5318 = vunpack.c.l.b16 %v4290
    %v5319 = vunpack.c.l.b16 %v4291
    %v5320 = vunpack.c.l.b16 %v4292
    %v5321 = vunpack.c.l.b16 %v4293
    %v5322 = vunpack.c.l.b16 %v4294
    %v5323 = vunpack.c.l.b16 %v4295
    %v5324 = vunpack.c.l.b16 %v4296
    %v5325 = vunpack.c.l.b16 %v4297
    %v5326 = vunpack.c.l.b16 %v4298
    %v5327 = vunpack.c.l.b16 %v4299
    %v5328 = vunpack.c.l.b16 %v4300
    %v5329 = vunpack.c.l.b16 %v4301
    %v5330 = vunpack.c.l.b16 %v4302
    %v5331 = vunpack.c.l.b16 %v4303
    %v5332 = vunpack.c.l.b16 %v4304
    %v5333 = vunpack.c.l.b16 %v4305
    %v5334 = vunpack.c.l.b16 %v4306
    %v5335 = vunpack.c.l.b16 %v4307
    %v5336 = vunpack.c.l.b16 %v4308
    %v5337 = vunpack.c.l.b16 %v4309
    %v5338 = vunpack.c.l.b16 %v4310
    %v5339 = vunpack.c.l.b16 %v4311
    %v5340 = vunpack.c.l.b16 %v4312
    %v5341 = vunpack.c.l.b16 %v4313
    %v5342 = vunpack.c.l.b16 %v4314
    %v5343 = vunpack.c.l.b16 %v4315
    %v5344 = vunpack.c.l.b16 %v4316
    %v5345 = vunpack.c.l.b16 %v4317
    %v5346 = vunpack.c.l.b16 %v4318
    %v5347 = vunpack.c.l.b16 %v4319
    %v5348 = vunpack.c.l.b16 %v4320
    %v5349 = vunpack.c.l.b16 %v4321
    %v5350 = vunpack.c.l.b16 %v4322
    %v5351 = vunpack.c.l.b16 %v4323
    %v5352 = vunpack.c.l.b16 %v4324
    %v5353 = vunpack.c.l.b16 %v4325
    %v5354 = vunpack.c.l.b16 %v4326
    %v5355 = vunpack.c.l.b16 %v4327
    %v5356 = vunpack.c.l.b16 %v4328
    %v5357 = vunpack.c.l.b16 %v4329
    %v5358 = vunpack.c.l.b16 %v4330
    %v5359 = vunpack.c.l.b16 %v4331
    %v5360 = vunpack.c.l.b16 %v4332
    %v5361 = vunpack.c.l.b16 %v4333
    %v5362 = vunpack.c.l.b16 %v4334
    %v5363 = vunpack.c.l.b16 %v4335
    %v5364 = vunpack.c.l.b16 %v4336
    %v5365 = vunpack.c.l.b16 %v4337
    %v5366 = vunpack.c.l.b16 %v4338
    %v5367 = vunpack.c.l.b16 %v4339
    %v5368 = vunpack.c.l.b16 %v4340
    %v5369 = vunpack.c.l.b16 %v4341
    %v5370 = vunpack.c.l.b16 %v4342
    %v5371 = vunpack.c.l.b16 %v4343
    %v5372 = vunpack.c.l.b16 %v4344
    %v5373 = vunpack.c.l.b16 %v4345
    %v5374 = vunpack.c.l.b16 %v4346
    %v5375 = vunpack.c.l.b16 %v4347
    %v5376 = vunpack.c.l.b16 %v4348
    %v5377 = vunpack.c.l.b16 %v4349
    %v5378 = vunpack.c.l.b16 %v4350
    %v5379 = vunpack.c.l.b16 %v4351
    %v5380 = vunpack.c.l.b16 %v4352
    %v5381 = vunpack.c.l.b16 %v4353
    %v5382 = vunpack.c.l.b16 %v4354
    %v5383 = vunpack.c.l.b16 %v4355
    %v5384 = vunpack.c.l.b16 %v4356
    %v5385 = vunpack.c.l.b16 %v4357
    %v5386 = vunpack.c.l.b16 %v4358
    %v5387 = vunpack.c.l.b16 %v4359
    %v5388 = vunpack.c.l.b16 %v4360
    %v5389 = vunpack.c.l.b16 %v4361
    %v5390 = vunpack.c.l.b16 %v4362
    %v5391 = vunpack.c.l.b16 %v4363
    %v5392 = vunpack.c.l.b16 %v4364
    %v5393 = vunpack.c.l.b16 %v4365
    %v5394 = vunpack.c.l.b16 %v4366
    %v5395 = vunpack.c.l.b16 %v4367
    %v5396 = vunpack.c.l.b16 %v4368
    %v5397 = vunpack.c.l.b16 %v4369
    %v5398 = vunpack.c.l.b16 %v4370
    %v5399 = vunpack.c.l.b16 %v4371
    %v5400 = vunpack.c.l.b16 %v4372
    %v5401 = vunpack.c.l.b16 %v4373
    %v5402 = vunpack.c.l.b16 %v4374
    %v5403 = vunpack.c.l.b16 %v4375
    %v5404 = vunpack.c.l.b16 %v4376
    %v5405 = vunpack.c.l.b16 %v4377
    %v5406 = vunpack.c.l.b16 %v4378
    %v5407 = vunpack.c.l.b16 %v4379
    %v5408 = vunpack.c.l.b16 %v4380
    %v5409 = vunpack.c.l.b16 %v4381
    %v5410 = vunpack.c.l.b16 %v4382
    %v5411 = vunpack.c.l.b16 %v4383
    %v5412 = vunpack.c.l.b16 %v4384
    %v5413 = vunpack.c.l.b16 %v4385
    %v5414 = vunpack.c.l.b16 %v4386
    %v5415 = vunpack.c.l.b16 %v4387
    %v5416 = vunpack.c.l.b16 %v4388
    %v5417 = vunpack.c.l.b16 %v4389
    %v5418 = vunpack.c.l.b16 %v4390
    %v5419 = vunpack.c.l.b16 %v4391
    %v5420 = vunpack.c.l.b16 %v4392
    %v5421 = vunpack.c.l.b16 %v4393
    %v5422 = vunpack.c.l.b16 %v4394
    %v5423 = vunpack.c.l.b16 %v4395
    %v5424 = vunpack.c.l.b16 %v4396
    %v5425 = vunpack.c.l.b16 %v4397
    %v5426 = vunpack.c.l.b16 %v4398
    %v5427 = vunpack.c.l.b16 %v4399
    %v5428 = vunpack.c.l.b16 %v4400
    %v5429 = vunpack.c.l.b16 %v4401
    %v5430 = vunpack.c.l.b16 %v4402
    %v5431 = vunpack.c.l.b16 %v4403
    %v5432 = vunpack.c.l.b16 %v4404
    %v5433 = vunpack.c.l.b16 %v4405
    %v5434 = vunpack.c.l.b16 %v4406
    %v5435 = vunpack.c.l.b16 %v4407
    %v5436 = vunpack.c.l.b16 %v4408
    %v5437 = vunpack.c.l.b16 %v4409
    %v5438 = vunpack.c.l.b16 %v4410
    %v5439 = vunpack.c.l.b16 %v4411
    %v5440 = vunpack.c.l.b16 %v4412
    %v5441 = vunpack.c.l.b16 %v4413
    %v5442 = vunpack.c.l.b16 %v4414
    %v5443 = vunpack.c.l.b16 %v4415
    %v5444 = vunpack.c.l.b16 %v4416
    %v5445 = vunpack.c.l.b16 %v4417
    %v5446 = vunpack.c.l.b16 %v4418
    %v5447 = vunpack.c.l.b16 %v4419
    %v5448 = vunpack.c.l.b16 %v4420
    %v5449 = vunpack.c.l.b16 %v4421
    %v5450 = vunpack.c.l.b16 %v4422
    %v5451 = vunpack.c.l.b16 %v4423
    %v5452 = vunpack.c.l.b16 %v4424
    %v5453 = vunpack.c.l.b16 %v4425
    %v5454 = vunpack.c.l.b16 %v4426
    %v5455 = vunpack.c.l.b16 %v4427
    %v5456 = vunpack.c.l.b16 %v4428
    %v5457 = vunpack.c.l.b16 %v4429
    %v5458 = vunpack.c.l.b16 %v4430
    %v5459 = vunpack.c.l.b16 %v4431
    %v5460 = vunpack.c.l.b16 %v4432
    %v5461 = vunpack.c.l.b16 %v4433
    %v5462 = vunpack.c.l.b16 %v4434
    %v5463 = vunpack.c.l.b16 %v4435
    %v5464 = vunpack.c.l.b16 %v4436
    %v5465 = vunpack.c.l.b16 %v4437
    %v5466 = vunpack.c.l.b16 %v4438
    %v5467 = vunpack.c.l.b16 %v4439
    %v5468 = vunpack.c.l.b16 %v4440
    %v5469 = vunpack.c.l.b16 %v4441
    %v5470 = vunpack.c.l.b16 %v4442
    %v5471 = vunpack.c.l.b16 %v4443
    %v5472 = vunpack.c.l.b16 %v4444
    %v5473 = vunpack.c.l.b16 %v4445
    %v5474 = vunpack.c.l.b16 %v4446
    %v5475 = vunpack.c.l.b16 %v4447
    %v5476 = vunpack.c.l.b16 %v4448
    %v5477 = vunpack.c.l.b16 %v4449
    %v5478 = vunpack.c.l.b16 %v4450
    %v5479 = vunpack.c.l.b16 %v4451
    %v5480 = vunpack.c.l.b16 %v4452
    %v5481 = vunpack.c.l.b16 %v4453
    %v5482 = vunpack.c.l.b16 %v4454
    %v5483 = vunpack.c.l.b16 %v4455
    %v5484 = vunpack.c.l.b16 %v4456
    %v5485 = vunpack.c.l.b16 %v4457
    %v5486 = vunpack.c.l.b16 %v4458
    %v5487 = vunpack.c.l.b16 %v4459
    %v5488 = vunpack.c.l.b16 %v4460
    %v5489 = vunpack.c.l.b16 %v4461
    %v5490 = vunpack.c.l.b16 %v4462
    %v5491 = vunpack.c.l.b16 %v4463
    %v5492 = vunpack.c.l.b16 %v4464
    %v5493 = vunpack.c.l.b16 %v4465
    %v5494 = vunpack.c.l.b16 %v4466
    %v5495 = vunpack.c.l.b16 %v4467
    %v5496 = vunpack.c.l.b16 %v4468
    %v5497 = vunpack.c.l.b16 %v4469
    %v5498 = vunpack.c.l.b16 %v4470
    %v5499 = vunpack.c.l.b16 %v4471
    %v5500 = vunpack.c.l.b16 %v4472
    %v5501 = vunpack.c.l.b16 %v4473
    %v5502 = vunpack.c.l.b16 %v4474
    %v5503 = vunpack.c.l.b16 %v4475
    %v5504 = vunpack.c.l.b16 %v4476
    %v5505 = vunpack.c.l.b16 %v4477
    %v5506 = vunpack.c.l.b16 %v4478
    %v5507 = vunpack.c.l.b16 %v4479
    %v5508 = vunpack.c.l.b16 %v4480
    %v5509 = vunpack.c.l.b16 %v4481
    %v5510 = vunpack.c.l.b16 %v4482
    %v5511 = vunpack.c.l.b16 %v4483
    %v5512 = vunpack.c.l.b16 %v4484
    %v5513 = vunpack.c.l.b16 %v4485
    %v5514 = vunpack.c.l.b16 %v4486
    %v5515 = vunpack.c.l.b16 %v4487
    %v5516 = vunpack.c.l.b16 %v4488
    %v5517 = vunpack.c.l.b16 %v4489
    %v5518 = vunpack.c.l.b16 %v4490
    %v5519 = vunpack.c.l.b16 %v4491
    %v5520 = vunpack.c.l.b16 %v4492
    %v5521 = vunpack.c.l.b16 %v4493
    %v5522 = vunpack.c.l.b16 %v4494
    %v5523 = vunpack.c.l.b16 %v4495
    %v5524 = vunpack.c.l.b16 %v4496
    %v5525 = vunpack.c.l.b16 %v4497
    %v5526 = vunpack.c.l.b16 %v4498
    %v5527 = vunpack.c.l.b16 %v4499
    %v5528 = vunpack.c.l.b16 %v4500
    %v5529 = vunpack.c.l.b16 %v4501
    %v5530 = vunpack.c.l.b16 %v4502
    %v5531 = vunpack.c.l.b16 %v4503
    %v5532 = vunpack.c.l.b16 %v4504
    %v5533 = vunpack.c.l.b16 %v4505
    %v5534 = vunpack.c.l.b16 %v4506
    %v5535 = vunpack.c.l.b16 %v4507
    %v5536 = vunpack.c.l.b16 %v4508
    %v5537 = vunpack.c.l.b16 %v4509
    %v5538 = vunpack.c.l.b16 %v4510
    %v5539 = vunpack.c.l.b16 %v4511
    %v5540 = vunpack.c.l.b16 %v4512
    %v5541 = vunpack.c.l.b16 %v4513
    %v5542 = vunpack.c.l.b16 %v4514
    %v5543 = vunpack.c.l.b16 %v4515
    %v5544 = vunpack.c.l.b16 %v4516
    %v5545 = vunpack.c.l.b16 %v4517
    %v5546 = vunpack.c.l.b16 %v4518
    %v5547 = vunpack.c.l.b16 %v4519
    %v5548 = vunpack.c.l.b16 %v4520
    %v5549 = vunpack.c.l.b16 %v4521
    %v5550 = vunpack.c.l.b16 %v4522
    %v5551 = vunpack.c.l.b16 %v4523
    %v5552 = vunpack.c.l.b16 %v4524
    %v5553 = vunpack.c.l.b16 %v4525
    %v5554 = vunpack.c.l.b16 %v4526
    %v5555 = vunpack.c.l.b16 %v4527
    %v5556 = vunpack.c.l.b16 %v4528
    %v5557 = vunpack.c.l.b16 %v4529
    %v5558 = vunpack.c.l.b16 %v4530
    %v5559 = vunpack.c.l.b16 %v4531
    %v5560 = vunpack.c.l.b16 %v4532
    %v5561 = vunpack.c.l.b16 %v4533
    %v5562 = vunpack.c.l.b16 %v4534
    %v5563 = vunpack.c.l.b16 %v4535
    %v5564 = vunpack.c.l.b16 %v4536
    %v5565 = vunpack.c.l.b16 %v4537
    %v5566 = vunpack.c.l.b16 %v4538
    %v5567 = vunpack.c.l.b16 %v4539
    %v5568 = vunpack.c.l.b16 %v4540
    %v5569 = vunpack.c.l.b16 %v4541
    %v5570 = vunpack.c.l.b16 %v4542
    %v5571 = vunpack.c.l.b16 %v4543
    %v5572 = vunpack.c.l.b16 %v4544
    %v5573 = vunpack.c.l.b16 %v4545
    %v5574 = vunpack.c.l.b16 %v4546
    %v5575 = vunpack.c.l.b16 %v4547
    %v5576 = vunpack.c.l.b16 %v4548
    %v5577 = vunpack.c.l.b16 %v4549
    %v5578 = vunpack.c.l.b16 %v4550
    %v5579 = vunpack.c.l.b16 %v4551
    %v5580 = vunpack.c.l.b16 %v4552
    %v5581 = vunpack.c.l.b16 %v4553
    %v5582 = vunpack.c.l.b16 %v4554
    %v5583 = vunpack.c.l.b16 %v4555
    %v5584 = vunpack.c.l.b16 %v4556
    %v5585 = vunpack.c.l.b16 %v4557
    %v5586 = vunpack.c.l.b16 %v4558
    %v5587 = vunpack.c.l.b16 %v4559
    %v5588 = vunpack.c.l.b16 %v4560
    %v5589 = vunpack.c.l.b16 %v4561
    %v5590 = vunpack.c.l.b16 %v4562
    %v5591 = vunpack.c.l.b16 %v4563
    %v5592 = vunpack.c.l.b16 %v4564
    %v5593 = vunpack.c.l.b16 %v4565
    %v5594 = vunpack.c.l.b16 %v4566
    %v5595 = vunpack.c.l.b16 %v4567
    %v5596 = vunpack.c.l.b16 %v4568
    %v5597 = vunpack.c.l.b16 %v4569
    %v5598 = vunpack.c.l.b16 %v4570
    %v5599 = vunpack.c.l.b16 %v4571
    %v5600 = vunpack.c.l.b16 %v4572
    %v5601 = vunpack.c.l.b16 %v4573
    %v5602 = vunpack.c.l.b16 %v4574
    %v5603 = vunpack.c.l.b16 %v4575
    %v5604 = vunpack.c.l.b16 %v4576
    %v5605 = vunpack.c.l.b16 %v4577
    %v5606 = vunpack.c.l.b16 %v4578
    %v5607 = vunpack.c.l.b16 %v4579
    %v5608 = vunpack.c.l.b16 %v4580
    %v5609 = vunpack.c.l.b16 %v4581
    %v5610 = vunpack.c.l.b16 %v4582
    %v5611 = vunpack.c.l.b16 %v4583
    %v5612 = vunpack.c.l.b16 %v4584
    %v5613 = vunpack.c.l.b16 %v4585
    %v5614 = vunpack.c.l.b16 %v4586
    %v5615 = vunpack.c.l.b16 %v4587
    %v5616 = vunpack.c.l.b16 %v4588
    %v5617 = vunpack.c.l.b16 %v4589
    %v5618 = vunpack.c.l.b16 %v4590
    %v5619 = vunpack.c.l.b16 %v4591
    %v5620 = vunpack.c.l.b16 %v4592
    %v5621 = vunpack.c.l.b16 %v4593
    %v5622 = vunpack.c.l.b16 %v4594
    %v5623 = vunpack.c.l.b16 %v4595
    %v5624 = vunpack.c.l.b16 %v4596
    %v5625 = vunpack.c.l.b16 %v4597
    %v5626 = vunpack.c.l.b16 %v4598
    %v5627 = vunpack.c.l.b16 %v4599
    %v5628 = vunpack.c.l.b16 %v4600
    %v5629 = vunpack.c.l.b16 %v4601
    %v5630 = vunpack.c.l.b16 %v4602
    %v5631 = vunpack.c.l.b16 %v4603
    %v5632 = vunpack.c.l.b16 %v4604
    %v5633 = vunpack.c.l.b16 %v4605
    %v5634 = vunpack.c.l.b16 %v4606
    %v5635 = vunpack.c.l.b16 %v4607
    %v5636 = vunpack.c.l.b16 %v4608
    %v5637 = vunpack.c.l.b16 %v4609
    %v5638 = vunpack.c.l.b16 %v4610
    %v5639 = vunpack.c.l.b16 %v4611
    %v5640 = vunpack.c.l.b16 %v4612
    %v5641 = vunpack.c.l.b16 %v4613
    %v5642 = vunpack.c.l.b16 %v4614
    %v5643 = vunpack.c.l.b16 %v4615
    %v5644 = vunpack.c.l.b16 %v4616
    %v5645 = vunpack.c.l.b16 %v4617
    %v5646 = vunpack.c.l.b16 %v4618
    %v5647 = vunpack.c.l.b16 %v4619
    %v5648 = vunpack.c.l.b16 %v4620
    %v5649 = vpack.c.b16 %v5138, %v5137
    %v5650 = vpack.c.b16 %v5140, %v5139
    %v5651 = vpack.c.b16 %v5142, %v5141
    %v5652 = vpack.c.b16 %v5144, %v5143
    %v5653 = vpack.c.b16 %v5146, %v5145
    %v5654 = vpack.c.b16 %v5148, %v5147
    %v5655 = vpack.c.b16 %v5150, %v5149
    %v5656 = vpack.c.b16 %v5152, %v5151
    %v5657 = vpack.c.b16 %v5154, %v5153
    %v5658 = vpack.c.b16 %v5156, %v5155
    %v5659 = vpack.c.b16 %v5158, %v5157
    %v5660 = vpack.c.b16 %v5160, %v5159
    %v5661 = vpack.c.b16 %v5162, %v5161
    %v5662 = vpack.c.b16 %v5164, %v5163
    %v5663 = vpack.c.b16 %v5166, %v5165
    %v5664 = vpack.c.b16 %v5168, %v5167
    %v5665 = vpack.c.b16 %v5170, %v5169
    %v5666 = vpack.c.b16 %v5172, %v5171
    %v5667 = vpack.c.b16 %v5174, %v5173
    %v5668 = vpack.c.b16 %v5176, %v5175
    %v5669 = vpack.c.b16 %v5178, %v5177
    %v5670 = vpack.c.b16 %v5180, %v5179
    %v5671 = vpack.c.b16 %v5182, %v5181
    %v5672 = vpack.c.b16 %v5184, %v5183
    %v5673 = vpack.c.b16 %v5186, %v5185
    %v5674 = vpack.c.b16 %v5188, %v5187
    %v5675 = vpack.c.b16 %v5190, %v5189
    %v5676 = vpack.c.b16 %v5192, %v5191
    %v5677 = vpack.c.b16 %v5194, %v5193
    %v5678 = vpack.c.b16 %v5196, %v5195
    %v5679 = vpack.c.b16 %v5198, %v5197
    %v5680 = vpack.c.b16 %v5200, %v5199
    %v5681 = vpack.c.b16 %v5202, %v5201
    %v5682 = vpack.c.b16 %v5204, %v5203
    %v5683 = vpack.c.b16 %v5206, %v5205
    %v5684 = vpack.c.b16 %v5208, %v5207
    %v5685 = vpack.c.b16 %v5210, %v5209
    %v5686 = vpack.c.b16 %v5212, %v5211
    %v5687 = vpack.c.b16 %v5214, %v5213
    %v5688 = vpack.c.b16 %v5216, %v5215
    %v5689 = vpack.c.b16 %v5218, %v5217
    %v5690 = vpack.c.b16 %v5220, %v5219
    %v5691 = vpack.c.b16 %v5222, %v5221
    %v5692 = vpack.c.b16 %v5224, %v5223
    %v5693 = vpack.c.b16 %v5226, %v5225
    %v5694 = vpack.c.b16 %v5228, %v5227
    %v5695 = vpack.c.b16 %v5230, %v5229
    %v5696 = vpack.c.b16 %v5232, %v5231
    %v5697 = vpack.c.b16 %v5234, %v5233
    %v5698 = vpack.c.b16 %v5236, %v5235
    %v5699 = vpack.c.b16 %v5238, %v5237
    %v5700 = vpack.c.b16 %v5240, %v5239
    %v5701 = vpack.c.b16 %v5242, %v5241
    %v5702 = vpack.c.b16 %v5244, %v5243
    %v5703 = vpack.c.b16 %v5246, %v5245
    %v5704 = vpack.c.b16 %v5248, %v5247
    %v5705 = vpack.c.b16 %v5250, %v5249
    %v5706 = vpack.c.b16 %v5252, %v5251
    %v5707 = vpack.c.b16 %v5254, %v5253
    %v5708 = vpack.c.b16 %v5256, %v5255
    %v5709 = vpack.c.b16 %v5258, %v5257
    %v5710 = vpack.c.b16 %v5260, %v5259
    %v5711 = vpack.c.b16 %v5262, %v5261
    %v5712 = vpack.c.b16 %v5264, %v5263
    %v5713 = vpack.c.b16 %v5266, %v5265
    %v5714 = vpack.c.b16 %v5268, %v5267
    %v5715 = vpack.c.b16 %v5270, %v5269
    %v5716 = vpack.c.b16 %v5272, %v5271
    %v5717 = vpack.c.b16 %v5274, %v5273
    %v5718 = vpack.c.b16 %v5276, %v5275
    %v5719 = vpack.c.b16 %v5278, %v5277
    %v5720 = vpack.c.b16 %v5280, %v5279
    %v5721 = vpack.c.b16 %v5282, %v5281
    %v5722 = vpack.c.b16 %v5284, %v5283
    %v5723 = vpack.c.b16 %v5286, %v5285
    %v5724 = vpack.c.b16 %v5288, %v5287
    %v5725 = vpack.c.b16 %v5290, %v5289
    %v5726 = vpack.c.b16 %v5292, %v5291
    %v5727 = vpack.c.b16 %v5294, %v5293
    %v5728 = vpack.c.b16 %v5296, %v5295
    %v5729 = vpack.c.b16 %v5298, %v5297
    %v5730 = vpack.c.b16 %v5300, %v5299
    %v5731 = vpack.c.b16 %v5302, %v5301
    %v5732 = vpack.c.b16 %v5304, %v5303
    %v5733 = vpack.c.b16 %v5306, %v5305
    %v5734 = vpack.c.b16 %v5308, %v5307
    %v5735 = vpack.c.b16 %v5310, %v5309
    %v5736 = vpack.c.b16 %v5312, %v5311
    %v5737 = vpack.c.b16 %v5314, %v5313
    %v5738 = vpack.c.b16 %v5316, %v5315
    %v5739 = vpack.c.b16 %v5318, %v5317
    %v5740 = vpack.c.b16 %v5320, %v5319
    %v5741 = vpack.c.b16 %v5322, %v5321
    %v5742 = vpack.c.b16 %v5324, %v5323
    %v5743 = vpack.c.b16 %v5326, %v5325
    %v5744 = vpack.c.b16 %v5328, %v5327
    %v5745 = vpack.c.b16 %v5330, %v5329
    %v5746 = vpack.c.b16 %v5332, %v5331
    %v5747 = vpack.c.b16 %v5334, %v5333
    %v5748 = vpack.c.b16 %v5336, %v5335
    %v5749 = vpack.c.b16 %v5338, %v5337
    %v5750 = vpack.c.b16 %v5340, %v5339
    %v5751 = vpack.c.b16 %v5342, %v5341
    %v5752 = vpack.c.b16 %v5344, %v5343
    %v5753 = vpack.c.b16 %v5346, %v5345
    %v5754 = vpack.c.b16 %v5348, %v5347
    %v5755 = vpack.c.b16 %v5350, %v5349
    %v5756 = vpack.c.b16 %v5352, %v5351
    %v5757 = vpack.c.b16 %v5354, %v5353
    %v5758 = vpack.c.b16 %v5356, %v5355
    %v5759 = vpack.c.b16 %v5358, %v5357
    %v5760 = vpack.c.b16 %v5360, %v5359
    %v5761 = vpack.c.b16 %v5362, %v5361
    %v5762 = vpack.c.b16 %v5364, %v5363
    %v5763 = vpack.c.b16 %v5366, %v5365
    %v5764 = vpack.c.b16 %v5368, %v5367
    %v5765 = vpack.c.b16 %v5370, %v5369
    %v5766 = vpack.c.b16 %v5372, %v5371
    %v5767 = vpack.c.b16 %v5374, %v5373
    %v5768 = vpack.c.b16 %v5376, %v5375
    %v5769 = vpack.c.b16 %v5378, %v5377
    %v5770 = vpack.c.b16 %v5380, %v5379
    %v5771 = vpack.c.b16 %v5382, %v5381
    %v5772 = vpack.c.b16 %v5384, %v5383
    %v5773 = vpack.c.b16 %v5386, %v5385
    %v5774 = vpack.c.b16 %v5388, %v5387
    %v5775 = vpack.c.b16 %v5390, %v5389
    %v5776 = vpack.c.b16 %v5392, %v5391
    %v5777 = vpack.c.b16 %v5394, %v5393
    %v5778 = vpack.c.b16 %v5396, %v5395
    %v5779 = vpack.c.b16 %v5398, %v5397
    %v5780 = vpack.c.b16 %v5400, %v5399
    %v5781 = vpack.c.b16 %v5402, %v5401
    %v5782 = vpack.c.b16 %v5404, %v5403
    %v5783 = vpack.c.b16 %v5406, %v5405
    %v5784 = vpack.c.b16 %v5408, %v5407
    %v5785 = vpack.c.b16 %v5410, %v5409
    %v5786 = vpack.c.b16 %v5412, %v5411
    %v5787 = vpack.c.b16 %v5414, %v5413
    %v5788 = vpack.c.b16 %v5416, %v5415
    %v5789 = vpack.c.b16 %v5418, %v5417
    %v5790 = vpack.c.b16 %v5420, %v5419
    %v5791 = vpack.c.b16 %v5422, %v5421
    %v5792 = vpack.c.b16 %v5424, %v5423
    %v5793 = vpack.c.b16 %v5426, %v5425
    %v5794 = vpack.c.b16 %v5428, %v5427
    %v5795 = vpack.c.b16 %v5430, %v5429
    %v5796 = vpack.c.b16 %v5432, %v5431
    %v5797 = vpack.c.b16 %v5434, %v5433
    %v5798 = vpack.c.b16 %v5436, %v5435
    %v5799 = vpack.c.b16 %v5438, %v5437
    %v5800 = vpack.c.b16 %v5440, %v5439
    %v5801 = vpack.c.b16 %v5442, %v5441
    %v5802 = vpack.c.b16 %v5444, %v5443
    %v5803 = vpack.c.b16 %v5446, %v5445
    %v5804 = vpack.c.b16 %v5448, %v5447
    %v5805 = vpack.c.b16 %v5450, %v5449
    %v5806 = vpack.c.b16 %v5452, %v5451
    %v5807 = vpack.c.b16 %v5454, %v5453
    %v5808 = vpack.c.b16 %v5456, %v5455
    %v5809 = vpack.c.b16 %v5458, %v5457
    %v5810 = vpack.c.b16 %v5460, %v5459
    %v5811 = vpack.c.b16 %v5462, %v5461
    %v5812 = vpack.c.b16 %v5464, %v5463
    %v5813 = vpack.c.b16 %v5466, %v5465
    %v5814 = vpack.c.b16 %v5468, %v5467
    %v5815 = vpack.c.b16 %v5470, %v5469
    %v5816 = vpack.c.b16 %v5472, %v5471
    %v5817 = vpack.c.b16 %v5474, %v5473
    %v5818 = vpack.c.b16 %v5476, %v5475
    %v5819 = vpack.c.b16 %v5478, %v5477
    %v5820 = vpack.c.b16 %v5480, %v5479
    %v5821 = vpack.c.b16 %v5482, %v5481
    %v5822 = vpack.c.b16 %v5484, %v5483
    %v5823 = vpack.c.b16 %v5486, %v5485
    %v5824 = vpack.c.b16 %v5488, %v5487
    %v5825 = vpack.c.b16 %v5490, %v5489
    %v5826 = vpack.c.b16 %v5492, %v5491
    %v5827 = vpack.c.b16 %v5494, %v5493
    %v5828 = vpack.c.b16 %v5496, %v5495
    %v5829 = vpack.c.b16 %v5498, %v5497
    %v5830 = vpack.c.b16 %v5500, %v5499
    %v5831 = vpack.c.b16 %v5502, %v5501
    %v5832 = vpack.c.b16 %v5504, %v5503
    %v5833 = vpack.c.b16 %v5506, %v5505
    %v5834 = vpack.c.b16 %v5508, %v5507
    %v5835 = vpack.c.b16 %v5510, %v5509
    %v5836 = vpack.c.b16 %v5512, %v5511
    %v5837 = vpack.c.b16 %v5514, %v5513
    %v5838 = vpack.c.b16 %v5516, %v5515
    %v5839 = vpack.c.b16 %v5518, %v5517
    %v5840 = vpack.c.b16 %v5520, %v5519
    %v5841 = vpack.c.b16 %v5522, %v5521
    %v5842 = vpack.c.b16 %v5524, %v5523
    %v5843 = vpack.c.b16 %v5526, %v5525
    %v5844 = vpack.c.b16 %v5528, %v5527
    %v5845 = vpack.c.b16 %v5530, %v5529
    %v5846 = vpack.c.b16 %v5532, %v5531
    %v5847 = vpack.c.b16 %v5534, %v5533
    %v5848 = vpack.c.b16 %v5536, %v5535
    %v5849 = vpack.c.b16 %v5538, %v5537
    %v5850 = vpack.c.b16 %v5540, %v5539
    %v5851 = vpack.c.b16 %v5542, %v5541
    %v5852 = vpack.c.b16 %v5544, %v5543
    %v5853 = vpack.c.b16 %v5546, %v5545
    %v5854 = vpack.c.b16 %v5548, %v5547
    %v5855 = vpack.c.b16 %v5550, %v5549
    %v5856 = vpack.c.b16 %v5552, %v5551
    %v5857 = vpack.c.b16 %v5554, %v5553
    %v5858 = vpack.c.b16 %v5556, %v5555
    %v5859 = vpack.c.b16 %v5558, %v5557
    %v5860 = vpack.c.b16 %v5560, %v5559
    %v5861 = vpack.c.b16 %v5562, %v5561
    %v5862 = vpack.c.b16 %v5564, %v5563
    %v5863 = vpack.c.b16 %v5566, %v5565
    %v5864 = vpack.c.b16 %v5568, %v5567
    %v5865 = vpack.c.b16 %v5570, %v5569
    %v5866 = vpack.c.b16 %v5572, %v5571
    %v5867 = vpack.c.b16 %v5574, %v5573
    %v5868 = vpack.c.b16 %v5576, %v5575
    %v5869 = vpack.c.b16 %v5578, %v5577
    %v5870 = vpack.c.b16 %v5580, %v5579
    %v5871 = vpack.c.b16 %v5582, %v5581
    %v5872 = vpack.c.b16 %v5584, %v5583
    %v5873 = vpack.c.b16 %v5586, %v5585
    %v5874 = vpack.c.b16 %v5588, %v5587
    %v5875 = vpack.c.b16 %v5590, %v5589
    %v5876 = vpack.c.b16 %v5592, %v5591
    %v5877 = vpack.c.b16 %v5594, %v5593
    %v5878 = vpack.c.b16 %v5596, %v5595
    %v5879 = vpack.c.b16 %v5598, %v5597
    %v5880 = vpack.c.b16 %v5600, %v5599
    %v5881 = vpack.c.b16 %v5602, %v5601
    %v5882 = vpack.c.b16 %v5604, %v5603
    %v5883 = vpack.c.b16 %v5606, %v5605
    %v5884 = vpack.c.b16 %v5608, %v5607
    %v5885 = vpack.c.b16 %v5610, %v5609
    %v5886 = vpack.c.b16 %v5612, %v5611
    %v5887 = vpack.c.b16 %v5614, %v5613
    %v5888 = vpack.c.b16 %v5616, %v5615
    %v5889 = vpack.c.b16 %v5618, %v5617
    %v5890 = vpack.c.b16 %v5620, %v5619
    %v5891 = vpack.c.b16 %v5622, %v5621
    %v5892 = vpack.c.b16 %v5624, %v5623
    %v5893 = vpack.c.b16 %v5626, %v5625
    %v5894 = vpack.c.b16 %v5628, %v5627
    %v5895 = vpack.c.b16 %v5630, %v5629
    %v5896 = vpack.c.b16 %v5632, %v5631
    %v5897 = vpack.c.b16 %v5634, %v5633
    %v5898 = vpack.c.b16 %v5636, %v5635
    %v5899 = vpack.c.b16 %v5638, %v5637
    %v5900 = vpack.c.b16 %v5640, %v5639
    %v5901 = vpack.c.b16 %v5642, %v5641
    %v5902 = vpack.c.b16 %v5644, %v5643
    %v5903 = vpack.c.b16 %v5646, %v5645
    %v5904 = vpack.c.b16 %v5648, %v5647
    %6161 = vmatpush.bf16.msra.mxu0 %v5656
    %6162 = vmatpush.bf16.msra.mxu0 %v5655
    %6163 = vmatpush.bf16.msra.mxu0 %v5654
    %6164 = vmatpush.bf16.msra.mxu0 %v5653
    %6165 = vmatpush.bf16.msra.mxu0 %v5652
    %6166 = vmatpush.bf16.msra.mxu0 %v5651
    %6167 = vmatpush.bf16.msra.mxu0 %v5650
    %6168 = vmatpush.bf16.msra.mxu0 %v5649
    %6169 = vmatmul.bf16.gmra.mxu0 %v3985
    %v6170 = vpop.f32.mrf.mxu0
    %v6171 = vadd.f32 %v4623, %v6170
    %v6172 = vpop.f32.mrf.mxu0
    %v6173 = vadd.f32 %v4623, %v6172
    %6174 = vdwg.mxu0
    %6175 = vmatpush.bf16.msra.mxu0 %v5664
    %6176 = vmatpush.bf16.msra.mxu0 %v5663
    %6177 = vmatpush.bf16.msra.mxu0 %v5662
    %6178 = vmatpush.bf16.msra.mxu0 %v5661
    %6179 = vmatpush.bf16.msra.mxu0 %v5660
    %6180 = vmatpush.bf16.msra.mxu0 %v5659
    %6181 = vmatpush.bf16.msra.mxu0 %v5658
    %6182 = vmatpush.bf16.msra.mxu0 %v5657
    %6183 = vmatmul.bf16.gmra.mxu0 %v3986
    %v6184 = vpop.f32.mrf.mxu0
    %v6185 = vadd.f32 %v6171, %v6184
    %v6186 = vpop.f32.mrf.mxu0
    %v6187 = vadd.f32 %v6173, %v6186
    %6188 = vdwg.mxu0
    %6189 = vmatpush.bf16.msra.mxu0 %v5672
    %6190 = vmatpush.bf16.msra.mxu0 %v5671
    %6191 = vmatpush.bf16.msra.mxu0 %v5670
    %6192 = vmatpush.bf16.msra.mxu0 %v5669
    %6193 = vmatpush.bf16.msra.mxu0 %v5668
    %6194 = vmatpush.bf16.msra.mxu0 %v5667
    %6195 = vmatpush.bf16.msra.mxu0 %v5666
    %6196 = vmatpush.bf16.msra.mxu0 %v5665
    %6197 = vmatmul.bf16.gmra.mxu0 %v3993
    %v6198 = vpop.f32.mrf.mxu0
    %v6199 = vadd.f32 %v6185, %v6198
    %v6200 = vpop.f32.mrf.mxu0
    %v6201 = vadd.f32 %v6187, %v6200
    %6202 = vdwg.mxu0
    %6203 = vmatpush.bf16.msra.mxu0 %v5680
    %6204 = vmatpush.bf16.msra.mxu0 %v5679
    %6205 = vmatpush.bf16.msra.mxu0 %v5678
    %6206 = vmatpush.bf16.msra.mxu0 %v5677
    %6207 = vmatpush.bf16.msra.mxu0 %v5676
    %6208 = vmatpush.bf16.msra.mxu0 %v5675
    %6209 = vmatpush.bf16.msra.mxu0 %v5674
    %6210 = vmatpush.bf16.msra.mxu0 %v5673
    %6211 = vmatmul.bf16.gmra.mxu0 %v3994
    %v6212 = vpop.f32.mrf.mxu0
    %v6213 = vadd.f32 %v6199, %v6212
    %v6214 = vpop.f32.mrf.mxu0
    %v6215 = vadd.f32 %v6201, %v6214
    %6216 = vdwg.mxu0
    %6217 = vmatpush.bf16.msra.mxu0 %v5688
    %6218 = vmatpush.bf16.msra.mxu0 %v5687
    %6219 = vmatpush.bf16.msra.mxu0 %v5686
    %6220 = vmatpush.bf16.msra.mxu0 %v5685
    %6221 = vmatpush.bf16.msra.mxu0 %v5684
    %6222 = vmatpush.bf16.msra.mxu0 %v5683
    %6223 = vmatpush.bf16.msra.mxu0 %v5682
    %6224 = vmatpush.bf16.msra.mxu0 %v5681
    %6225 = vmatmul.bf16.gmra.mxu0 %v4001
    %v6226 = vpop.f32.mrf.mxu0
    %v6227 = vadd.f32 %v6213, %v6226
    %v6228 = vpop.f32.mrf.mxu0
    %v6229 = vadd.f32 %v6215, %v6228
    %6230 = vdwg.mxu0
    %6231 = vmatpush.bf16.msra.mxu0 %v5696
    %6232 = vmatpush.bf16.msra.mxu0 %v5695
    %6233 = vmatpush.bf16.msra.mxu0 %v5694
    %6234 = vmatpush.bf16.msra.mxu0 %v5693
    %6235 = vmatpush.bf16.msra.mxu0 %v5692
    %6236 = vmatpush.bf16.msra.mxu0 %v5691
    %6237 = vmatpush.bf16.msra.mxu0 %v5690
    %6238 = vmatpush.bf16.msra.mxu0 %v5689
    %6239 = vmatmul.bf16.gmra.mxu0 %v4002
    %v6240 = vpop.f32.mrf.mxu0
    %v6241 = vadd.f32 %v6227, %v6240
    %v6242 = vpop.f32.mrf.mxu0
    %v6243 = vadd.f32 %v6229, %v6242
    %6244 = vdwg.mxu0
    %6245 = vmatpush.bf16.msra.mxu0 %v5704
    %6246 = vmatpush.bf16.msra.mxu0 %v5703
    %6247 = vmatpush.bf16.msra.mxu0 %v5702
    %6248 = vmatpush.bf16.msra.mxu0 %v5701
    %6249 = vmatpush.bf16.msra.mxu0 %v5700
    %6250 = vmatpush.bf16.msra.mxu0 %v5699
    %6251 = vmatpush.bf16.msra.mxu0 %v5698
    %6252 = vmatpush.bf16.msra.mxu0 %v5697
    %6253 = vmatmul.bf16.gmra.mxu0 %v4009
    %v6254 = vpop.f32.mrf.mxu0
    %v6255 = vadd.f32 %v6241, %v6254
    %v6256 = vpop.f32.mrf.mxu0
    %v6257 = vadd.f32 %v6243, %v6256
    %6258 = vdwg.mxu0
    %6259 = vmatpush.bf16.msra.mxu0 %v5712
    %6260 = vmatpush.bf16.msra.mxu0 %v5711
    %6261 = vmatpush.bf16.msra.mxu0 %v5710
    %6262 = vmatpush.bf16.msra.mxu0 %v5709
    %6263 = vmatpush.bf16.msra.mxu0 %v5708
    %6264 = vmatpush.bf16.msra.mxu0 %v5707
    %6265 = vmatpush.bf16.msra.mxu0 %v5706
    %6266 = vmatpush.bf16.msra.mxu0 %v5705
    %6267 = vmatmul.bf16.gmra.mxu0 %v4010
    %v6268 = vpop.f32.mrf.mxu0
    %v6269 = vadd.f32 %v6255, %v6268
    %v6270 = vpop.f32.mrf.mxu0
    %v6271 = vadd.f32 %v6257, %v6270
    %6272 = vdwg.mxu0
    %6273 = vmatpush.bf16.msra.mxu0 %v5720
    %6274 = vmatpush.bf16.msra.mxu0 %v5719
    %6275 = vmatpush.bf16.msra.mxu0 %v5718
    %6276 = vmatpush.bf16.msra.mxu0 %v5717
    %6277 = vmatpush.bf16.msra.mxu0 %v5716
    %6278 = vmatpush.bf16.msra.mxu0 %v5715
    %6279 = vmatpush.bf16.msra.mxu0 %v5714
    %6280 = vmatpush.bf16.msra.mxu0 %v5713
    %6281 = vmatmul.bf16.gmra.mxu0 %v4017
    %v6282 = vpop.f32.mrf.mxu0
    %v6283 = vadd.f32 %v6269, %v6282
    %v6284 = vpop.f32.mrf.mxu0
    %v6285 = vadd.f32 %v6271, %v6284
    %6286 = vdwg.mxu0
    %6287 = vmatpush.bf16.msra.mxu0 %v5728
    %6288 = vmatpush.bf16.msra.mxu0 %v5727
    %6289 = vmatpush.bf16.msra.mxu0 %v5726
    %6290 = vmatpush.bf16.msra.mxu0 %v5725
    %6291 = vmatpush.bf16.msra.mxu0 %v5724
    %6292 = vmatpush.bf16.msra.mxu0 %v5723
    %6293 = vmatpush.bf16.msra.mxu0 %v5722
    %6294 = vmatpush.bf16.msra.mxu0 %v5721
    %6295 = vmatmul.bf16.gmra.mxu0 %v4018
    %v6296 = vpop.f32.mrf.mxu0
    %v6297 = vadd.f32 %v6283, %v6296
    %v6298 = vpop.f32.mrf.mxu0
    %v6299 = vadd.f32 %v6285, %v6298
    %6300 = vdwg.mxu0
    %6301 = vmatpush.bf16.msra.mxu0 %v5736
    %6302 = vmatpush.bf16.msra.mxu0 %v5735
    %6303 = vmatpush.bf16.msra.mxu0 %v5734
    %6304 = vmatpush.bf16.msra.mxu0 %v5733
    %6305 = vmatpush.bf16.msra.mxu0 %v5732
    %6306 = vmatpush.bf16.msra.mxu0 %v5731
    %6307 = vmatpush.bf16.msra.mxu0 %v5730
    %6308 = vmatpush.bf16.msra.mxu0 %v5729
    %6309 = vmatmul.bf16.gmra.mxu0 %v4025
    %v6310 = vpop.f32.mrf.mxu0
    %v6311 = vadd.f32 %v6297, %v6310
    %v6312 = vpop.f32.mrf.mxu0
    %v6313 = vadd.f32 %v6299, %v6312
    %6314 = vdwg.mxu0
    %6315 = vmatpush.bf16.msra.mxu0 %v5744
    %6316 = vmatpush.bf16.msra.mxu0 %v5743
    %6317 = vmatpush.bf16.msra.mxu0 %v5742
    %6318 = vmatpush.bf16.msra.mxu0 %v5741
    %6319 = vmatpush.bf16.msra.mxu0 %v5740
    %6320 = vmatpush.bf16.msra.mxu0 %v5739
    %6321 = vmatpush.bf16.msra.mxu0 %v5738
    %6322 = vmatpush.bf16.msra.mxu0 %v5737
    %6323 = vmatmul.bf16.gmra.mxu0 %v4026
    %v6324 = vpop.f32.mrf.mxu0
    %v6325 = vadd.f32 %v6311, %v6324
    %v6326 = vpop.f32.mrf.mxu0
    %v6327 = vadd.f32 %v6313, %v6326
    %6328 = vdwg.mxu0
    %6329 = vmatpush.bf16.msra.mxu0 %v5752
    %6330 = vmatpush.bf16.msra.mxu0 %v5751
    %6331 = vmatpush.bf16.msra.mxu0 %v5750
    %6332 = vmatpush.bf16.msra.mxu0 %v5749
    %6333 = vmatpush.bf16.msra.mxu0 %v5748
    %6334 = vmatpush.bf16.msra.mxu0 %v5747
    %6335 = vmatpush.bf16.msra.mxu0 %v5746
    %6336 = vmatpush.bf16.msra.mxu0 %v5745
    %6337 = vmatmul.bf16.gmra.mxu0 %v4033
    %v6338 = vpop.f32.mrf.mxu0
    %v6339 = vadd.f32 %v6325, %v6338
    %v6340 = vpop.f32.mrf.mxu0
    %v6341 = vadd.f32 %v6327, %v6340
    %6342 = vdwg.mxu0
    %6343 = vmatpush.bf16.msra.mxu0 %v5760
    %6344 = vmatpush.bf16.msra.mxu0 %v5759
    %6345 = vmatpush.bf16.msra.mxu0 %v5758
    %6346 = vmatpush.bf16.msra.mxu0 %v5757
    %6347 = vmatpush.bf16.msra.mxu0 %v5756
    %6348 = vmatpush.bf16.msra.mxu0 %v5755
    %6349 = vmatpush.bf16.msra.mxu0 %v5754
    %6350 = vmatpush.bf16.msra.mxu0 %v5753
    %6351 = vmatmul.bf16.gmra.mxu0 %v4034
    %v6352 = vpop.f32.mrf.mxu0
    %v6353 = vadd.f32 %v6339, %v6352
    %v6354 = vpop.f32.mrf.mxu0
    %v6355 = vadd.f32 %v6341, %v6354
    %6356 = vdwg.mxu0
    %6357 = vmatpush.bf16.msra.mxu0 %v5768
    %6358 = vmatpush.bf16.msra.mxu0 %v5767
    %6359 = vmatpush.bf16.msra.mxu0 %v5766
    %6360 = vmatpush.bf16.msra.mxu0 %v5765
    %6361 = vmatpush.bf16.msra.mxu0 %v5764
    %6362 = vmatpush.bf16.msra.mxu0 %v5763
    %6363 = vmatpush.bf16.msra.mxu0 %v5762
    %6364 = vmatpush.bf16.msra.mxu0 %v5761
    %6365 = vmatmul.bf16.gmra.mxu0 %v4041
    %v6366 = vpop.f32.mrf.mxu0
    %v6367 = vadd.f32 %v6353, %v6366
    %v6368 = vpop.f32.mrf.mxu0
    %v6369 = vadd.f32 %v6355, %v6368
    %6370 = vdwg.mxu0
    %6371 = vmatpush.bf16.msra.mxu0 %v5776
    %6372 = vmatpush.bf16.msra.mxu0 %v5775
    %6373 = vmatpush.bf16.msra.mxu0 %v5774
    %6374 = vmatpush.bf16.msra.mxu0 %v5773
    %6375 = vmatpush.bf16.msra.mxu0 %v5772
    %6376 = vmatpush.bf16.msra.mxu0 %v5771
    %6377 = vmatpush.bf16.msra.mxu0 %v5770
    %6378 = vmatpush.bf16.msra.mxu0 %v5769
    %6379 = vmatmul.bf16.gmra.mxu0 %v4042
    %v6380 = vpop.f32.mrf.mxu0
    %v6381 = vadd.f32 %v6367, %v6380
    %v6382 = vpop.f32.mrf.mxu0
    %v6383 = vadd.f32 %v6369, %v6382
    %6384 = vdwg.mxu0
    %6385 = vmatpush.bf16.msra.mxu0 %v5784
    %6386 = vmatpush.bf16.msra.mxu0 %v5783
    %6387 = vmatpush.bf16.msra.mxu0 %v5782
    %6388 = vmatpush.bf16.msra.mxu0 %v5781
    %6389 = vmatpush.bf16.msra.mxu0 %v5780
    %6390 = vmatpush.bf16.msra.mxu0 %v5779
    %6391 = vmatpush.bf16.msra.mxu0 %v5778
    %6392 = vmatpush.bf16.msra.mxu0 %v5777
    %6393 = vmatmul.bf16.gmra.mxu0 %v4049
    %v6394 = vpop.f32.mrf.mxu0
    %v6395 = vadd.f32 %v6381, %v6394
    %v6396 = vpop.f32.mrf.mxu0
    %v6397 = vadd.f32 %v6383, %v6396
    %6398 = vdwg.mxu0
    %6399 = vmatpush.bf16.msra.mxu0 %v5792
    %6400 = vmatpush.bf16.msra.mxu0 %v5791
    %6401 = vmatpush.bf16.msra.mxu0 %v5790
    %6402 = vmatpush.bf16.msra.mxu0 %v5789
    %6403 = vmatpush.bf16.msra.mxu0 %v5788
    %6404 = vmatpush.bf16.msra.mxu0 %v5787
    %6405 = vmatpush.bf16.msra.mxu0 %v5786
    %6406 = vmatpush.bf16.msra.mxu0 %v5785
    %6407 = vmatmul.bf16.gmra.mxu0 %v4050
    %v6408 = vpop.f32.mrf.mxu0
    %v6409 = vadd.f32 %v6395, %v6408
    %v6410 = vpop.f32.mrf.mxu0
    %v6411 = vadd.f32 %v6397, %v6410
    %6412 = vdwg.mxu0
    %6413 = vmatpush.bf16.msra.mxu0 %v5800
    %6414 = vmatpush.bf16.msra.mxu0 %v5799
    %6415 = vmatpush.bf16.msra.mxu0 %v5798
    %6416 = vmatpush.bf16.msra.mxu0 %v5797
    %6417 = vmatpush.bf16.msra.mxu0 %v5796
    %6418 = vmatpush.bf16.msra.mxu0 %v5795
    %6419 = vmatpush.bf16.msra.mxu0 %v5794
    %6420 = vmatpush.bf16.msra.mxu0 %v5793
    %6421 = vmatmul.bf16.gmra.mxu0 %v4057
    %v6422 = vpop.f32.mrf.mxu0
    %v6423 = vadd.f32 %v6409, %v6422
    %v6424 = vpop.f32.mrf.mxu0
    %v6425 = vadd.f32 %v6411, %v6424
    %6426 = vdwg.mxu0
    %6427 = vmatpush.bf16.msra.mxu0 %v5808
    %6428 = vmatpush.bf16.msra.mxu0 %v5807
    %6429 = vmatpush.bf16.msra.mxu0 %v5806
    %6430 = vmatpush.bf16.msra.mxu0 %v5805
    %6431 = vmatpush.bf16.msra.mxu0 %v5804
    %6432 = vmatpush.bf16.msra.mxu0 %v5803
    %6433 = vmatpush.bf16.msra.mxu0 %v5802
    %6434 = vmatpush.bf16.msra.mxu0 %v5801
    %6435 = vmatmul.bf16.gmra.mxu0 %v4058
    %v6436 = vpop.f32.mrf.mxu0
    %v6437 = vadd.f32 %v6423, %v6436
    %v6438 = vpop.f32.mrf.mxu0
    %v6439 = vadd.f32 %v6425, %v6438
    %6440 = vdwg.mxu0
    %6441 = vmatpush.bf16.msra.mxu0 %v5816
    %6442 = vmatpush.bf16.msra.mxu0 %v5815
    %6443 = vmatpush.bf16.msra.mxu0 %v5814
    %6444 = vmatpush.bf16.msra.mxu0 %v5813
    %6445 = vmatpush.bf16.msra.mxu0 %v5812
    %6446 = vmatpush.bf16.msra.mxu0 %v5811
    %6447 = vmatpush.bf16.msra.mxu0 %v5810
    %6448 = vmatpush.bf16.msra.mxu0 %v5809
    %6449 = vmatmul.bf16.gmra.mxu0 %v4065
    %v6450 = vpop.f32.mrf.mxu0
    %v6451 = vadd.f32 %v6437, %v6450
    %v6452 = vpop.f32.mrf.mxu0
    %v6453 = vadd.f32 %v6439, %v6452
    %6454 = vdwg.mxu0
    %6455 = vmatpush.bf16.msra.mxu0 %v5824
    %6456 = vmatpush.bf16.msra.mxu0 %v5823
    %6457 = vmatpush.bf16.msra.mxu0 %v5822
    %6458 = vmatpush.bf16.msra.mxu0 %v5821
    %6459 = vmatpush.bf16.msra.mxu0 %v5820
    %6460 = vmatpush.bf16.msra.mxu0 %v5819
    %6461 = vmatpush.bf16.msra.mxu0 %v5818
    %6462 = vmatpush.bf16.msra.mxu0 %v5817
    %6463 = vmatmul.bf16.gmra.mxu0 %v4066
    %v6464 = vpop.f32.mrf.mxu0
    %v6465 = vadd.f32 %v6451, %v6464
    %v6466 = vpop.f32.mrf.mxu0
    %v6467 = vadd.f32 %v6453, %v6466
    %6468 = vdwg.mxu0
    %6469 = vmatpush.bf16.msra.mxu0 %v5832
    %6470 = vmatpush.bf16.msra.mxu0 %v5831
    %6471 = vmatpush.bf16.msra.mxu0 %v5830
    %6472 = vmatpush.bf16.msra.mxu0 %v5829
    %6473 = vmatpush.bf16.msra.mxu0 %v5828
    %6474 = vmatpush.bf16.msra.mxu0 %v5827
    %6475 = vmatpush.bf16.msra.mxu0 %v5826
    %6476 = vmatpush.bf16.msra.mxu0 %v5825
    %6477 = vmatmul.bf16.gmra.mxu0 %v4073
    %v6478 = vpop.f32.mrf.mxu0
    %v6479 = vadd.f32 %v6465, %v6478
    %v6480 = vpop.f32.mrf.mxu0
    %v6481 = vadd.f32 %v6467, %v6480
    %6482 = vdwg.mxu0
    %6483 = vmatpush.bf16.msra.mxu0 %v5840
    %6484 = vmatpush.bf16.msra.mxu0 %v5839
    %6485 = vmatpush.bf16.msra.mxu0 %v5838
    %6486 = vmatpush.bf16.msra.mxu0 %v5837
    %6487 = vmatpush.bf16.msra.mxu0 %v5836
    %6488 = vmatpush.bf16.msra.mxu0 %v5835
    %6489 = vmatpush.bf16.msra.mxu0 %v5834
    %6490 = vmatpush.bf16.msra.mxu0 %v5833
    %6491 = vmatmul.bf16.gmra.mxu0 %v4074
    %v6492 = vpop.f32.mrf.mxu0
    %v6493 = vadd.f32 %v6479, %v6492
    %v6494 = vpop.f32.mrf.mxu0
    %v6495 = vadd.f32 %v6481, %v6494
    %6496 = vdwg.mxu0
    %6497 = vmatpush.bf16.msra.mxu0 %v5848
    %6498 = vmatpush.bf16.msra.mxu0 %v5847
    %6499 = vmatpush.bf16.msra.mxu0 %v5846
    %6500 = vmatpush.bf16.msra.mxu0 %v5845
    %6501 = vmatpush.bf16.msra.mxu0 %v5844
    %6502 = vmatpush.bf16.msra.mxu0 %v5843
    %6503 = vmatpush.bf16.msra.mxu0 %v5842
    %6504 = vmatpush.bf16.msra.mxu0 %v5841
    %6505 = vmatmul.bf16.gmra.mxu0 %v4081
    %v6506 = vpop.f32.mrf.mxu0
    %v6507 = vadd.f32 %v6493, %v6506
    %v6508 = vpop.f32.mrf.mxu0
    %v6509 = vadd.f32 %v6495, %v6508
    %6510 = vdwg.mxu0
    %6511 = vmatpush.bf16.msra.mxu0 %v5856
    %6512 = vmatpush.bf16.msra.mxu0 %v5855
    %6513 = vmatpush.bf16.msra.mxu0 %v5854
    %6514 = vmatpush.bf16.msra.mxu0 %v5853
    %6515 = vmatpush.bf16.msra.mxu0 %v5852
    %6516 = vmatpush.bf16.msra.mxu0 %v5851
    %6517 = vmatpush.bf16.msra.mxu0 %v5850
    %6518 = vmatpush.bf16.msra.mxu0 %v5849
    %6519 = vmatmul.bf16.gmra.mxu0 %v4082
    %v6520 = vpop.f32.mrf.mxu0
    %v6521 = vadd.f32 %v6507, %v6520
    %v6522 = vpop.f32.mrf.mxu0
    %v6523 = vadd.f32 %v6509, %v6522
    %6524 = vdwg.mxu0
    %6525 = vmatpush.bf16.msra.mxu0 %v5864
    %6526 = vmatpush.bf16.msra.mxu0 %v5863
    %6527 = vmatpush.bf16.msra.mxu0 %v5862
    %6528 = vmatpush.bf16.msra.mxu0 %v5861
    %6529 = vmatpush.bf16.msra.mxu0 %v5860
    %6530 = vmatpush.bf16.msra.mxu0 %v5859
    %6531 = vmatpush.bf16.msra.mxu0 %v5858
    %6532 = vmatpush.bf16.msra.mxu0 %v5857
    %6533 = vmatmul.bf16.gmra.mxu0 %v4089
    %v6534 = vpop.f32.mrf.mxu0
    %v6535 = vadd.f32 %v6521, %v6534
    %v6536 = vpop.f32.mrf.mxu0
    %v6537 = vadd.f32 %v6523, %v6536
    %6538 = vdwg.mxu0
    %6539 = vmatpush.bf16.msra.mxu0 %v5872
    %6540 = vmatpush.bf16.msra.mxu0 %v5871
    %6541 = vmatpush.bf16.msra.mxu0 %v5870
    %6542 = vmatpush.bf16.msra.mxu0 %v5869
    %6543 = vmatpush.bf16.msra.mxu0 %v5868
    %6544 = vmatpush.bf16.msra.mxu0 %v5867
    %6545 = vmatpush.bf16.msra.mxu0 %v5866
    %6546 = vmatpush.bf16.msra.mxu0 %v5865
    %6547 = vmatmul.bf16.gmra.mxu0 %v4090
    %v6548 = vpop.f32.mrf.mxu0
    %v6549 = vadd.f32 %v6535, %v6548
    %v6550 = vpop.f32.mrf.mxu0
    %v6551 = vadd.f32 %v6537, %v6550
    %6552 = vdwg.mxu0
    %6553 = vmatpush.bf16.msra.mxu0 %v5880
    %6554 = vmatpush.bf16.msra.mxu0 %v5879
    %6555 = vmatpush.bf16.msra.mxu0 %v5878
    %6556 = vmatpush.bf16.msra.mxu0 %v5877
    %6557 = vmatpush.bf16.msra.mxu0 %v5876
    %6558 = vmatpush.bf16.msra.mxu0 %v5875
    %6559 = vmatpush.bf16.msra.mxu0 %v5874
    %6560 = vmatpush.bf16.msra.mxu0 %v5873
    %6561 = vmatmul.bf16.gmra.mxu0 %v4097
    %v6562 = vpop.f32.mrf.mxu0
    %v6563 = vadd.f32 %v6549, %v6562
    %v6564 = vpop.f32.mrf.mxu0
    %v6565 = vadd.f32 %v6551, %v6564
    %6566 = vdwg.mxu0
    %6567 = vmatpush.bf16.msra.mxu0 %v5888
    %6568 = vmatpush.bf16.msra.mxu0 %v5887
    %6569 = vmatpush.bf16.msra.mxu0 %v5886
    %6570 = vmatpush.bf16.msra.mxu0 %v5885
    %6571 = vmatpush.bf16.msra.mxu0 %v5884
    %6572 = vmatpush.bf16.msra.mxu0 %v5883
    %6573 = vmatpush.bf16.msra.mxu0 %v5882
    %6574 = vmatpush.bf16.msra.mxu0 %v5881
    %6575 = vmatmul.bf16.gmra.mxu0 %v4098
    %v6576 = vpop.f32.mrf.mxu0
    %v6577 = vadd.f32 %v6563, %v6576
    %v6578 = vpop.f32.mrf.mxu0
    %v6579 = vadd.f32 %v6565, %v6578
    %6580 = vdwg.mxu0
    %6581 = vmatpush.bf16.msra.mxu0 %v5896
    %6582 = vmatpush.bf16.msra.mxu0 %v5895
    %6583 = vmatpush.bf16.msra.mxu0 %v5894
    %6584 = vmatpush.bf16.msra.mxu0 %v5893
    %6585 = vmatpush.bf16.msra.mxu0 %v5892
    %6586 = vmatpush.bf16.msra.mxu0 %v5891
    %6587 = vmatpush.bf16.msra.mxu0 %v5890
    %6588 = vmatpush.bf16.msra.mxu0 %v5889
    %6589 = vmatmul.bf16.gmra.mxu0 %v4105
    %v6590 = vpop.f32.mrf.mxu0
    %v6591 = vadd.f32 %v6577, %v6590
    %v6592 = vpop.f32.mrf.mxu0
    %v6593 = vadd.f32 %v6579, %v6592
    %6594 = vdwg.mxu0
    %6595 = vmatpush.bf16.msra.mxu0 %v5904
    %6596 = vmatpush.bf16.msra.mxu0 %v5903
    %6597 = vmatpush.bf16.msra.mxu0 %v5902
    %6598 = vmatpush.bf16.msra.mxu0 %v5901
    %6599 = vmatpush.bf16.msra.mxu0 %v5900
    %6600 = vmatpush.bf16.msra.mxu0 %v5899
    %6601 = vmatpush.bf16.msra.mxu0 %v5898
    %6602 = vmatpush.bf16.msra.mxu0 %v5897
    %6603 = vmatmul.bf16.gmra.mxu0 %v4106
    %v6604 = vpop.f32.mrf.mxu0
    %v6605 = vadd.f32 %v6591, %v6604
    %v6606 = vpop.f32.mrf.mxu0
    %v6607 = vadd.f32 %v6593, %v6606
    %6608 = vdwg.mxu0
    %vm6609 = vcmp.gt.f32.partialorder %v6605, 0.0
    %vm6610 = vcmp.gt.f32.partialorder %v6607, 0.0
    %v6611 = vmul.f32 %v6605, 0.2
    %v6612 = vmul.f32 %v6607, 0.2
    %v6613 = vsel %vm6609, %v6605, %v6611
    %v6614 = vsel %vm6610, %v6607, %v6612
    %v6615 = vld [vmem:[%s9] sm:$0x1]
    %v6617 = vperm.slane %v6615, 0
    %v6619 = vmul.f32 %v6613, %v6617
    %v6620 = vmul.f32 %v6614, %v6617
    %6621 = vadd.xlane.f32.xlu0 %v6619
    %v6622 = vpop.xlane.xlu0 %6621
    %6623 = vadd.xlane.f32.xlu0 %v6620
    %v6624 = vpop.xlane.xlu0 %6623
    %v6625 = vld [vmem:[#allocation2] sm:$0x1]
    %v6627 = vperm.slane %v6625, 0
    %v6629 = vadd.f32 %v6622, %v6627
    %v6630 = vadd.f32 %v6624, %v6627
    %v6631 = vsub.f32 0.0, %v6629
    %v6632 = vsub.f32 0.0, %v6630
    %v6633 = vmul.f32 %v6631, 1.442695
    %v6634 = vpow.pop %v6633
    %v6635 = vmul.f32 %v6632, 1.442695
    %v6636 = vpow.pop %v6635
    %v6637 = vadd.f32 %v6634, 1.0
    %v6638 = vadd.f32 %v6636, 1.0
    %v6639 = vrcp.pop %v6637
    %v6640 = vmul.f32 %v6637, %v6639
    %v6641 = vsub.f32 1.0, %v6640
    %v6642 = vmul.f32 %v6639, %v6641
    %v6643 = vadd.f32 %v6639, %v6642
    %vm6644 = vweird.f32 %v6637
    %vm6645 = vweird.f32 %v6639
    %vm6646 = vmor %vm6644, %vm6645
    %v6647 = vsel %vm6646, %v6639, %v6643
    %v6648 = vand.u32 2147483647, %v6637
    %vm6649 = vcmp.eq.f32.partialorder %v6648, 8.507059e+37
    %v6650 = vand.u32 %v6637, 2147483648
    %v6651 = vor.u32 1.1754944e-38, %v6650
    %v6652 = vsel %vm6649, %v6651, %v6647
    %v6653 = vmul.f32 1.0, %v6652
    %v6654 = vrcp.pop %v6638
    %v6655 = vmul.f32 %v6638, %v6654
    %v6656 = vsub.f32 1.0, %v6655
    %v6657 = vmul.f32 %v6654, %v6656
    %v6658 = vadd.f32 %v6654, %v6657
    %vm6659 = vweird.f32 %v6638
    %vm6660 = vweird.f32 %v6654
    %vm6661 = vmor %vm6659, %vm6660
    %v6662 = vsel %vm6661, %v6654, %v6658
    %v6663 = vand.u32 2147483647, %v6638
    %vm6664 = vcmp.eq.f32.partialorder %v6663, 8.507059e+37
    %v6665 = vand.u32 %v6638, 2147483648
    %v6666 = vor.u32 1.1754944e-38, %v6665
    %v6667 = vsel %vm6664, %v6666, %v6662
    %v6668 = vmul.f32 1.0, %v6667
    %vm6669 = vcmask 7168
    %6670 = vst.msk [vmem:[%s11] sm:$0xff] %vm6669, %v6653
    %6671 = vst.msk [vmem:[%s11 + $0x8] sm:$0xff] %vm6669, %v6668
    // Predicated region
    $region54: #{tpu_custom_call.1} parent=1 // pred_check
      _
    $region55: #{tpu_custom_call.1} parent=1 // pred_check_branch
      %6673 = sbr.rel (0) target = $region57
    $region56: #{tpu_custom_call.1} parent=1 // pred_region
      _
    $region57: #{tpu_custom_call.1} parent=1 // pred_fallthru
      _
    // Predicated region
    $region58: #{tpu_custom_call.1} parent=1 // pred_check
      _
    $region59: #{tpu_custom_call.1} parent=1 // pred_check_branch
      %6675 = sbr.rel (0) target = $region61
    $region60: #{tpu_custom_call.1} parent=1 // pred_region
      _
    $region61: #{tpu_custom_call.1} parent=1 // pred_fallthru
      _
    %6676 = vsyncpa [#allocation4], 1
    %6677 = vsyncpa [#allocation6], 1

</llo_original>
